<compile_context>
chip_gen: v6e
topology: v6e:2x2x1
jax: 0.10.0
libtpu: 0.0.40
codegen_flags: <defaults>
</compile_context>

<pallas_src>
import functools

import jax
import jax.numpy as jnp
from jax.experimental import pallas as pl
from jax.experimental.pallas import tpu as pltpu


# ----------------------------------------------------------------------------
# Fused Pallas kernel
# ----------------------------------------------------------------------------
def _fused_lstm_kernel(n_layers, x_ref, *refs):
    """Fused multi-layer LSTM forward + ReLU + Linear.  Runs once (grid=(1,)).

    refs layout (after x_ref):
      [wih_t_0, whh_t_0, b_0, ..., wih_t_{L-1}, whh_t_{L-1}, b_{L-1},
       h0, c0, fc_w_t, fc_b,                  # remaining inputs
       out,                                   # output (B, O)
       gx_i, gx_f, gx_g, gx_o]                # (T*B, H) f32 VMEM scratches
    Per-layer arrays are stacked per gate (PyTorch order i, f, g, o):
      wih_t: (4, D_in, H) bf16, whh_t: (4, H, H) bf16, b: (4, 1, H) f32.
    """
    L = n_layers
    layer_refs = refs[:3 * L]
    (h0_ref, c0_ref, wfc_ref, bfc_ref, out_ref,
     gxi_sc, gxf_sc, gxg_sc, gxo_sc) = refs[3 * L:]
    gx_sc = (gxi_sc, gxf_sc, gxg_sc, gxo_sc)

    B = h0_ref.shape[1]
    H = h0_ref.shape[2]
    T = x_ref.shape[0] // B
    f32, bf16 = jnp.float32, jnp.bfloat16

    def sigmoid(v):               # single tanh (EUP) instead of exp + divide
        return 0.5 * jnp.tanh(0.5 * v) + 0.5

    # ---- Hoisted layer-0 input projection (off the recurrent chain):
    # one dense (T*B, D) @ (D, H) matmul per gate, bias fused, 2-D scratch.
    x_bf = x_ref[...].astype(bf16)
    wih0_ref, b0_ref = layer_refs[0], layer_refs[2]
    for k in range(4):
        gx_sc[k][...] = (
            jnp.dot(x_bf, wih0_ref[k], preferred_element_type=f32)
            + b0_ref[k])

    # Hoist upper-layer bias broadcasts out of the time loop (no per-iteration
    # broadcast_in_dim).
    up_bias = [None] + [
        [jnp.broadcast_to(layer_refs[3 * l + 2][k], (B, H)) for k in range(4)]
        for l in range(1, L)]

    def cell(gx, h, c, whh_ref):
        # One LSTM step.  Every operand is an offset-0 (B, H) tile; the dots
        # use bf16 operands with f32 accumulation; elementwise math is f32.
        hb = h.astype(bf16)
        pre = [gx[k] + jnp.dot(hb, whh_ref[k], preferred_element_type=f32)
               for k in range(4)]                    # gate order: i, f, g, o
        i_g, f_g = sigmoid(pre[0]), sigmoid(pre[1])
        g_g, o_g = jnp.tanh(pre[2]), sigmoid(pre[3])
        c_new = f_g * c + i_g * g_g
        h_new = o_g * jnp.tanh(c_new)
        return h_new, c_new

    hs = [h0_ref[l].astype(f32) for l in range(L)]
    cs = [c0_ref[l].astype(f32) for l in range(L)]

    # Statically unrolled time loop: all slices below are static views.
    for t in range(T):
        off = t * B
        gx0 = tuple(gx_sc[k][pl.ds(off, B), :] for k in range(4))
        hs[0], cs[0] = cell(gx0, hs[0], cs[0], layer_refs[1])
        # Wavefront: layer l consumes h_{l-1}[t] right away; its per-step
        # projection rides the otherwise idle MXU and overlaps layer 0's
        # step t+1 (which only depends on h_0[t]).
        for l in range(1, L):
            hb = hs[l - 1].astype(bf16)
            wih_ref = layer_refs[3 * l]
            gx = tuple(
                jnp.dot(hb, wih_ref[k], preferred_element_type=f32)
                + up_bias[l][k] for k in range(4))
            hs[l], cs[l] = cell(gx, hs[l], cs[l], layer_refs[3 * l + 1])

    # ReLU + FC epilogue on the last timestep of the top layer.
    h_relu = jnp.maximum(hs[-1], 0.0).astype(bf16)
    out_ref[...] = (
        jnp.dot(h_relu, wfc_ref[...], preferred_element_type=f32)
        + bfc_ref[...]).astype(out_ref.dtype)


# ----------------------------------------------------------------------------
# Wrapper
# ----------------------------------------------------------------------------
def _full_spec(shape):
    zeros = (0,) * len(shape)
    return pl.BlockSpec(shape, lambda i, _z=zeros: _z)


def lstm_forward_pallas(x, kparams, h0, c0):
    """x: (B, T, D) batch-first input -> (B, output_dim)."""
    B, T, D = x.shape
    L = h0.shape[0]
    H = h0.shape[-1]
    O = kparams["fc_w_t"].shape[-1]

    # Time-major, flattened to dense 2-D (T*B, D): step t is rows [t*B,(t+1)*B).
    x_flat = jnp.transpose(x, (1, 0, 2)).reshape(T * B, D)

    inputs = [x_flat]
    for l in range(L):
        p = kparams["lstm"][l]
        inputs += [p["w_ih_t"], p["w_hh_t"], p["b"]]
    inputs += [h0, c0, kparams["fc_w_t"], kparams["fc_b"]]

    grid_spec = pltpu.PrefetchScalarGridSpec(
        num_scalar_prefetch=0,
        grid=(1,),
        in_specs=[_full_spec(a.shape) for a in inputs],
        out_specs=_full_spec((B, O)),
        scratch_shapes=[pltpu.VMEM((T * B, H), jnp.float32)
                        for _ in range(4)],           # per-gate x-projection
    )

    return pl.pallas_call(
        functools.partial(_fused_lstm_kernel, L),
        out_shape=jax.ShapeDtypeStruct((B, O), x.dtype),
        grid_spec=grid_spec,
        compiler_params=pltpu.CompilerParams(
            dimension_semantics=("arbitrary",)),
    )(*inputs)


lstm_forward = jax.jit(lstm_forward_pallas)


# ----------------------------------------------------------------------------
# One-time host-side parameter prep (per-gate split, transpose, bias fuse,
# bf16 matmul operands).
# ----------------------------------------------------------------------------
def prepare_params(params):
    def split_gates(w):           # PyTorch (4H, ...) [i,f,g,o] -> (4, H, ...)
        return jnp.stack(jnp.split(w, 4, axis=0), axis=0)

    kp = {"lstm": []}
    for p in params["lstm"]:
        w_ih = split_gates(p["w_ih"])                     # (4, H, D_in)
        w_hh = split_gates(p["w_hh"])                     # (4, H, H)
        b = split_gates(p["b_ih"] + p["b_hh"])            # (4, H)
        kp["lstm"].append({
            "w_ih_t": jnp.transpose(w_ih, (0, 2, 1)).astype(jnp.bfloat16),
            "w_hh_t": jnp.transpose(w_hh, (0, 2, 1)).astype(jnp.bfloat16),
            "b": b[:, None, :],                           # (4, 1, H) f32
        })
    kp["fc_w_t"] = jnp.transpose(params["fc_w"]).astype(jnp.bfloat16)  # (H, O)
    kp["fc_b"] = params["fc_b"].reshape(1, -1)                         # (1, O)
    return kp


# ----------------------------------------------------------------------------
# Pure-JAX reference (PyTorch gate order, raw f32 params)
# ----------------------------------------------------------------------------
def lstm_forward_ref(x, params, h0, c0):
    x_tbd = jnp.transpose(x, (1, 0, 2))
    n_layers = len(params["lstm"])
    layer_in = x_tbd
    for l in range(n_layers):
        p = params["lstm"][l]
        H = p["w_hh"].shape[1]
        h, c = h0[l], c0[l]
        outs = []
        for t in range(layer_in.shape[0]):
            gates = (layer_in[t] @ p["w_ih"].T + h @ p["w_hh"].T
                     + p["b_ih"] + p["b_hh"])
            i_g = jax.nn.sigmoid(gates[:, 0 * H:1 * H])
            f_g = jax.nn.sigmoid(gates[:, 1 * H:2 * H])
            g_g = jnp.tanh(gates[:, 2 * H:3 * H])
            o_g = jax.nn.sigmoid(gates[:, 3 * H:4 * H])
            c = f_g * c + i_g * g_g
            h = o_g * jnp.tanh(c)
            outs.append(h)
        layer_in = jnp.stack(outs, axis=0)
    h_last = layer_in[-1]
    return jnp.maximum(h_last, 0.0) @ params["fc_w"].T + params["fc_b"]


# ----------------------------------------------------------------------------
# Parameter init (mimics PyTorch uniform(-1/sqrt(H), 1/sqrt(H)))
# ----------------------------------------------------------------------------
def init_params(key, input_dim, hidden_dim, output_dim, n_layers):
    bound = 1.0 / jnp.sqrt(hidden_dim)
    params = {"lstm": []}
    for l in range(n_layers):
        d_in = input_dim if l == 0 else hidden_dim
        key, k1, k2, k3, k4 = jax.random.split(key, 5)
        params["lstm"].append({
            "w_ih": jax.random.uniform(k1, (4 * hidden_dim, d_in),
                                       jnp.float32, -bound, bound),
            "w_hh": jax.random.uniform(k2, (4 * hidden_dim, hidden_dim),
                                       jnp.float32, -bound, bound),
            "b_ih": jax.random.uniform(k3, (4 * hidden_dim,),
                                       jnp.float32, -bound, bound),
            "b_hh": jax.random.uniform(k4, (4 * hidden_dim,),
                                       jnp.float32, -bound, bound),
        })
    key, k5, k6 = jax.random.split(key, 3)
    fc_bound = 1.0 / jnp.sqrt(hidden_dim)
    params["fc_w"] = jax.random.uniform(k5, (output_dim, hidden_dim),
                                        jnp.float32, -fc_bound, fc_bound)
    params["fc_b"] = jax.random.uniform(k6, (output_dim,),
                                        jnp.float32, -fc_bound, fc_bound)
    return params, key


# ----------------------------------------------------------------------------
# Main
# ----------------------------------------------------------------------------
if __name__ == "__main__":
    B, T, D, H, O, L = 4, 8, 16, 32, 8, 2

    key = jax.random.PRNGKey(0)
    params, key = init_params(key, D, H, O, L)
    kparams = prepare_params(params)

    key, kx, kh, kc = jax.random.split(key, 4)
    x = jax.random.normal(kx, (B, T, D), jnp.float32)
    # forward() draws fresh randn h_0/c_0 each call; here deterministic randn.
    h0 = jax.random.normal(kh, (L, B, H), jnp.float32)
    c0 = jax.random.normal(kc, (L, B, H), jnp.float32)

    out = lstm_forward(x, kparams, h0, c0)
    out = jax.block_until_ready(out)

    ref = lstm_forward_ref(x, params, h0, c0)
    assert out.shape == (B, O), out.shape
    # Tolerance relaxed for bf16 matmul operands (f32 accumulate / f32 state).
    assert jnp.allclose(out, ref, atol=3e-2, rtol=3e-2), (
        float(jnp.max(jnp.abs(out - ref))))

    print("KERNEL_OK")
</pallas_src>

<mosaic_0001>
module attributes {stable_mosaic.version = 11 : i64} {
  func.func @_fused_lstm_kernel(%arg0: i32, %arg1: memref<32x16xf32, #tpu.memory_space<vmem>>, %arg2: memref<4x16x32xbf16, #tpu.memory_space<vmem>>, %arg3: memref<4x32x32xbf16, #tpu.memory_space<vmem>>, %arg4: memref<4x1x32xf32, #tpu.memory_space<vmem>>, %arg5: memref<4x32x32xbf16, #tpu.memory_space<vmem>>, %arg6: memref<4x32x32xbf16, #tpu.memory_space<vmem>>, %arg7: memref<4x1x32xf32, #tpu.memory_space<vmem>>, %arg8: memref<2x4x32xf32, #tpu.memory_space<vmem>>, %arg9: memref<2x4x32xf32, #tpu.memory_space<vmem>>, %arg10: memref<32x8xbf16, #tpu.memory_space<vmem>>, %arg11: memref<1x8xf32, #tpu.memory_space<vmem>>, %arg12: memref<4x8xf32, #tpu.memory_space<vmem>>, %arg13: memref<32x32xf32, #tpu.memory_space<vmem>>, %arg14: memref<32x32xf32, #tpu.memory_space<vmem>>, %arg15: memref<32x32xf32, #tpu.memory_space<vmem>>, %arg16: memref<32x32xf32, #tpu.memory_space<vmem>>) attributes {dimension_semantics = [#tpu.dimension_semantics<arbitrary>], iteration_bounds = array<i64: 1>, scalar_prefetch = 0 : i64, scratch_operands = 4 : i64, tpu.core_type = #tpu.core_type<tc>, window_params = [{pipeline_mode = #tpu.pipeline_mode<synchronous>, transform_indices = @transform_0, window_bounds = array<i64: 32, 16>}, {pipeline_mode = #tpu.pipeline_mode<synchronous>, transform_indices = @transform_1, window_bounds = array<i64: 4, 16, 32>}, {pipeline_mode = #tpu.pipeline_mode<synchronous>, transform_indices = @transform_2, window_bounds = array<i64: 4, 32, 32>}, {pipeline_mode = #tpu.pipeline_mode<synchronous>, transform_indices = @transform_3, window_bounds = array<i64: 4, 1, 32>}, {pipeline_mode = #tpu.pipeline_mode<synchronous>, transform_indices = @transform_4, window_bounds = array<i64: 4, 32, 32>}, {pipeline_mode = #tpu.pipeline_mode<synchronous>, transform_indices = @transform_5, window_bounds = array<i64: 4, 32, 32>}, {pipeline_mode = #tpu.pipeline_mode<synchronous>, transform_indices = @transform_6, window_bounds = array<i64: 4, 1, 32>}, {pipeline_mode = #tpu.pipeline_mode<synchronous>, transform_indices = @transform_7, window_bounds = array<i64: 2, 4, 32>}, {pipeline_mode = #tpu.pipeline_mode<synchronous>, transform_indices = @transform_8, window_bounds = array<i64: 2, 4, 32>}, {pipeline_mode = #tpu.pipeline_mode<synchronous>, transform_indices = @transform_9, window_bounds = array<i64: 32, 8>}, {pipeline_mode = #tpu.pipeline_mode<synchronous>, transform_indices = @transform_10, window_bounds = array<i64: 1, 8>}, {pipeline_mode = #tpu.pipeline_mode<synchronous>, transform_indices = @transform_11, window_bounds = array<i64: 4, 8>}]} {
    %c0 = arith.constant 0 : index
    %c0_0 = arith.constant 0 : index
    %0 = vector.load %arg1[%c0, %c0_0] : memref<32x16xf32, #tpu.memory_space<vmem>>, vector<32x16xf32>
    %1 = arith.truncf %0 : vector<32x16xf32> to vector<32x16xbf16>
    %c0_1 = arith.constant 0 : index
    %c0_2 = arith.constant 0 : index
    %c0_3 = arith.constant 0 : index
    %2 = vector.load %arg2[%c0_1, %c0_2, %c0_3] : memref<4x16x32xbf16, #tpu.memory_space<vmem>>, vector<1x16x32xbf16>
    %3 = vector.shape_cast %2 : vector<1x16x32xbf16> to vector<16x32xbf16>
    %cst = arith.constant dense<0.000000e+00> : vector<32x32xf32>
    %4 = tpu.matmul %1, %3, %cst {dimension_numbers = #tpu.dot_dimension_numbers<[1], [0], [0], [1], [0, 0, 1, 1], [], []>} : vector<32x16xbf16>, vector<16x32xbf16>, vector<32x32xf32> -> vector<32x32xf32>
    %c0_4 = arith.constant 0 : index
    %c0_5 = arith.constant 0 : index
    %c0_6 = arith.constant 0 : index
    %5 = vector.load %arg4[%c0_4, %c0_5, %c0_6] : memref<4x1x32xf32, #tpu.memory_space<vmem>>, vector<1x1x32xf32>
    %6 = vector.shape_cast %5 : vector<1x1x32xf32> to vector<1x32xf32>
    %7 = vector.broadcast %6 : vector<1x32xf32> to vector<32x32xf32>
    %8 = arith.addf %4, %7 : vector<32x32xf32>
    %c0_7 = arith.constant 0 : index
    %c0_8 = arith.constant 0 : index
    %9 = vector.load %arg13[%c0_7, %c0_8] : memref<32x32xf32, #tpu.memory_space<vmem>>, vector<32x32xf32>
    tpu.vector_store %arg13[%c0_7, %c0_8], %8 {strides = array<i32>} : memref<32x32xf32, #tpu.memory_space<vmem>>, vector<32x32xf32>,
    %c1 = arith.constant 1 : index
    %c0_9 = arith.constant 0 : index
    %c0_10 = arith.constant 0 : index
    %10 = vector.load %arg2[%c1, %c0_9, %c0_10] : memref<4x16x32xbf16, #tpu.memory_space<vmem>>, vector<1x16x32xbf16>
    %11 = vector.shape_cast %10 : vector<1x16x32xbf16> to vector<16x32xbf16>
    %cst_11 = arith.constant dense<0.000000e+00> : vector<32x32xf32>
    %12 = tpu.matmul %1, %11, %cst_11 {dimension_numbers = #tpu.dot_dimension_numbers<[1], [0], [0], [1], [0, 0, 1, 1], [], []>} : vector<32x16xbf16>, vector<16x32xbf16>, vector<32x32xf32> -> vector<32x32xf32>
    %c1_12 = arith.constant 1 : index
    %c0_13 = arith.constant 0 : index
    %c0_14 = arith.constant 0 : index
    %13 = vector.load %arg4[%c1_12, %c0_13, %c0_14] : memref<4x1x32xf32, #tpu.memory_space<vmem>>, vector<1x1x32xf32>
    %14 = vector.shape_cast %13 : vector<1x1x32xf32> to vector<1x32xf32>
    %15 = vector.broadcast %14 : vector<1x32xf32> to vector<32x32xf32>
    %16 = arith.addf %12, %15 : vector<32x32xf32>
    %c0_15 = arith.constant 0 : index
    %c0_16 = arith.constant 0 : index
    %17 = vector.load %arg14[%c0_15, %c0_16] : memref<32x32xf32, #tpu.memory_space<vmem>>, vector<32x32xf32>
    tpu.vector_store %arg14[%c0_15, %c0_16], %16 {strides = array<i32>} : memref<32x32xf32, #tpu.memory_space<vmem>>, vector<32x32xf32>,
    %c2 = arith.constant 2 : index
    %c0_17 = arith.constant 0 : index
    %c0_18 = arith.constant 0 : index
    %18 = vector.load %arg2[%c2, %c0_17, %c0_18] : memref<4x16x32xbf16, #tpu.memory_space<vmem>>, vector<1x16x32xbf16>
    %19 = vector.shape_cast %18 : vector<1x16x32xbf16> to vector<16x32xbf16>
    %cst_19 = arith.constant dense<0.000000e+00> : vector<32x32xf32>
    %20 = tpu.matmul %1, %19, %cst_19 {dimension_numbers = #tpu.dot_dimension_numbers<[1], [0], [0], [1], [0, 0, 1, 1], [], []>} : vector<32x16xbf16>, vector<16x32xbf16>, vector<32x32xf32> -> vector<32x32xf32>
    %c2_20 = arith.constant 2 : index
    %c0_21 = arith.constant 0 : index
    %c0_22 = arith.constant 0 : index
    %21 = vector.load %arg4[%c2_20, %c0_21, %c0_22] : memref<4x1x32xf32, #tpu.memory_space<vmem>>, vector<1x1x32xf32>
    %22 = vector.shape_cast %21 : vector<1x1x32xf32> to vector<1x32xf32>
    %23 = vector.broadcast %22 : vector<1x32xf32> to vector<32x32xf32>
    %24 = arith.addf %20, %23 : vector<32x32xf32>
    %c0_23 = arith.constant 0 : index
    %c0_24 = arith.constant 0 : index
    %25 = vector.load %arg15[%c0_23, %c0_24] : memref<32x32xf32, #tpu.memory_space<vmem>>, vector<32x32xf32>
    tpu.vector_store %arg15[%c0_23, %c0_24], %24 {strides = array<i32>} : memref<32x32xf32, #tpu.memory_space<vmem>>, vector<32x32xf32>,
    %c3 = arith.constant 3 : index
    %c0_25 = arith.constant 0 : index
    %c0_26 = arith.constant 0 : index
    %26 = vector.load %arg2[%c3, %c0_25, %c0_26] : memref<4x16x32xbf16, #tpu.memory_space<vmem>>, vector<1x16x32xbf16>
    %27 = vector.shape_cast %26 : vector<1x16x32xbf16> to vector<16x32xbf16>
    %cst_27 = arith.constant dense<0.000000e+00> : vector<32x32xf32>
    %28 = tpu.matmul %1, %27, %cst_27 {dimension_numbers = #tpu.dot_dimension_numbers<[1], [0], [0], [1], [0, 0, 1, 1], [], []>} : vector<32x16xbf16>, vector<16x32xbf16>, vector<32x32xf32> -> vector<32x32xf32>
    %c3_28 = arith.constant 3 : index
    %c0_29 = arith.constant 0 : index
    %c0_30 = arith.constant 0 : index
    %29 = vector.load %arg4[%c3_28, %c0_29, %c0_30] : memref<4x1x32xf32, #tpu.memory_space<vmem>>, vector<1x1x32xf32>
    %30 = vector.shape_cast %29 : vector<1x1x32xf32> to vector<1x32xf32>
    %31 = vector.broadcast %30 : vector<1x32xf32> to vector<32x32xf32>
    %32 = arith.addf %28, %31 : vector<32x32xf32>
    %c0_31 = arith.constant 0 : index
    %c0_32 = arith.constant 0 : index
    %33 = vector.load %arg16[%c0_31, %c0_32] : memref<32x32xf32, #tpu.memory_space<vmem>>, vector<32x32xf32>
    tpu.vector_store %arg16[%c0_31, %c0_32], %32 {strides = array<i32>} : memref<32x32xf32, #tpu.memory_space<vmem>>, vector<32x32xf32>,
    %c0_33 = arith.constant 0 : index
    %c0_34 = arith.constant 0 : index
    %c0_35 = arith.constant 0 : index
    %34 = vector.load %arg7[%c0_33, %c0_34, %c0_35] : memref<4x1x32xf32, #tpu.memory_space<vmem>>, vector<1x1x32xf32>
    %35 = vector.shape_cast %34 : vector<1x1x32xf32> to vector<1x32xf32>
    %36 = vector.shape_cast %35 : vector<1x32xf32> to vector<1x32xf32>
    %37 = vector.broadcast %36 : vector<1x32xf32> to vector<4x32xf32>
    %c1_36 = arith.constant 1 : index
    %c0_37 = arith.constant 0 : index
    %c0_38 = arith.constant 0 : index
    %38 = vector.load %arg7[%c1_36, %c0_37, %c0_38] : memref<4x1x32xf32, #tpu.memory_space<vmem>>, vector<1x1x32xf32>
    %39 = vector.shape_cast %38 : vector<1x1x32xf32> to vector<1x32xf32>
    %40 = vector.shape_cast %39 : vector<1x32xf32> to vector<1x32xf32>
    %41 = vector.broadcast %40 : vector<1x32xf32> to vector<4x32xf32>
    %c2_39 = arith.constant 2 : index
    %c0_40 = arith.constant 0 : index
    %c0_41 = arith.constant 0 : index
    %42 = vector.load %arg7[%c2_39, %c0_40, %c0_41] : memref<4x1x32xf32, #tpu.memory_space<vmem>>, vector<1x1x32xf32>
    %43 = vector.shape_cast %42 : vector<1x1x32xf32> to vector<1x32xf32>
    %44 = vector.shape_cast %43 : vector<1x32xf32> to vector<1x32xf32>
    %45 = vector.broadcast %44 : vector<1x32xf32> to vector<4x32xf32>
    %c3_42 = arith.constant 3 : index
    %c0_43 = arith.constant 0 : index
    %c0_44 = arith.constant 0 : index
    %46 = vector.load %arg7[%c3_42, %c0_43, %c0_44] : memref<4x1x32xf32, #tpu.memory_space<vmem>>, vector<1x1x32xf32>
    %47 = vector.shape_cast %46 : vector<1x1x32xf32> to vector<1x32xf32>
    %48 = vector.shape_cast %47 : vector<1x32xf32> to vector<1x32xf32>
    %49 = vector.broadcast %48 : vector<1x32xf32> to vector<4x32xf32>
    %c0_45 = arith.constant 0 : index
    %c0_46 = arith.constant 0 : index
    %c0_47 = arith.constant 0 : index
    %50 = vector.load %arg8[%c0_45, %c0_46, %c0_47] : memref<2x4x32xf32, #tpu.memory_space<vmem>>, vector<1x4x32xf32>
    %51 = vector.shape_cast %50 : vector<1x4x32xf32> to vector<4x32xf32>
    %c1_48 = arith.constant 1 : index
    %c0_49 = arith.constant 0 : index
    %c0_50 = arith.constant 0 : index
    %52 = vector.load %arg8[%c1_48, %c0_49, %c0_50] : memref<2x4x32xf32, #tpu.memory_space<vmem>>, vector<1x4x32xf32>
    %53 = vector.shape_cast %52 : vector<1x4x32xf32> to vector<4x32xf32>
    %c0_51 = arith.constant 0 : index
    %c0_52 = arith.constant 0 : index
    %c0_53 = arith.constant 0 : index
    %54 = vector.load %arg9[%c0_51, %c0_52, %c0_53] : memref<2x4x32xf32, #tpu.memory_space<vmem>>, vector<1x4x32xf32>
    %55 = vector.shape_cast %54 : vector<1x4x32xf32> to vector<4x32xf32>
    %c1_54 = arith.constant 1 : index
    %c0_55 = arith.constant 0 : index
    %c0_56 = arith.constant 0 : index
    %56 = vector.load %arg9[%c1_54, %c0_55, %c0_56] : memref<2x4x32xf32, #tpu.memory_space<vmem>>, vector<1x4x32xf32>
    %57 = vector.shape_cast %56 : vector<1x4x32xf32> to vector<4x32xf32>
    %c0_57 = arith.constant 0 : index
    %c0_58 = arith.constant 0 : index
    %58 = vector.load %arg13[%c0_57, %c0_58] : memref<32x32xf32, #tpu.memory_space<vmem>>, vector<4x32xf32>
    %c0_59 = arith.constant 0 : index
    %c0_60 = arith.constant 0 : index
    %59 = vector.load %arg14[%c0_59, %c0_60] : memref<32x32xf32, #tpu.memory_space<vmem>>, vector<4x32xf32>
    %c0_61 = arith.constant 0 : index
    %c0_62 = arith.constant 0 : index
    %60 = vector.load %arg15[%c0_61, %c0_62] : memref<32x32xf32, #tpu.memory_space<vmem>>, vector<4x32xf32>
    %c0_63 = arith.constant 0 : index
    %c0_64 = arith.constant 0 : index
    %61 = vector.load %arg16[%c0_63, %c0_64] : memref<32x32xf32, #tpu.memory_space<vmem>>, vector<4x32xf32>
    %62 = arith.truncf %51 : vector<4x32xf32> to vector<4x32xbf16>
    %c0_65 = arith.constant 0 : index
    %c0_66 = arith.constant 0 : index
    %c0_67 = arith.constant 0 : index
    %63 = vector.load %arg3[%c0_65, %c0_66, %c0_67] : memref<4x32x32xbf16, #tpu.memory_space<vmem>>, vector<1x32x32xbf16>
    %64 = vector.shape_cast %63 : vector<1x32x32xbf16> to vector<32x32xbf16>
    %cst_68 = arith.constant dense<0.000000e+00> : vector<4x32xf32>
    %65 = tpu.matmul %62, %64, %cst_68 {dimension_numbers = #tpu.dot_dimension_numbers<[1], [0], [0], [1], [0, 0, 1, 1], [], []>} : vector<4x32xbf16>, vector<32x32xbf16>, vector<4x32xf32> -> vector<4x32xf32>
    %66 = arith.addf %58, %65 : vector<4x32xf32>
    %c1_69 = arith.constant 1 : index
    %c0_70 = arith.constant 0 : index
    %c0_71 = arith.constant 0 : index
    %67 = vector.load %arg3[%c1_69, %c0_70, %c0_71] : memref<4x32x32xbf16, #tpu.memory_space<vmem>>, vector<1x32x32xbf16>
    %68 = vector.shape_cast %67 : vector<1x32x32xbf16> to vector<32x32xbf16>
    %cst_72 = arith.constant dense<0.000000e+00> : vector<4x32xf32>
    %69 = tpu.matmul %62, %68, %cst_72 {dimension_numbers = #tpu.dot_dimension_numbers<[1], [0], [0], [1], [0, 0, 1, 1], [], []>} : vector<4x32xbf16>, vector<32x32xbf16>, vector<4x32xf32> -> vector<4x32xf32>
    %70 = arith.addf %59, %69 : vector<4x32xf32>
    %c2_73 = arith.constant 2 : index
    %c0_74 = arith.constant 0 : index
    %c0_75 = arith.constant 0 : index
    %71 = vector.load %arg3[%c2_73, %c0_74, %c0_75] : memref<4x32x32xbf16, #tpu.memory_space<vmem>>, vector<1x32x32xbf16>
    %72 = vector.shape_cast %71 : vector<1x32x32xbf16> to vector<32x32xbf16>
    %cst_76 = arith.constant dense<0.000000e+00> : vector<4x32xf32>
    %73 = tpu.matmul %62, %72, %cst_76 {dimension_numbers = #tpu.dot_dimension_numbers<[1], [0], [0], [1], [0, 0, 1, 1], [], []>} : vector<4x32xbf16>, vector<32x32xbf16>, vector<4x32xf32> -> vector<4x32xf32>
    %74 = arith.addf %60, %73 : vector<4x32xf32>
    %c3_77 = arith.constant 3 : index
    %c0_78 = arith.constant 0 : index
    %c0_79 = arith.constant 0 : index
    %75 = vector.load %arg3[%c3_77, %c0_78, %c0_79] : memref<4x32x32xbf16, #tpu.memory_space<vmem>>, vector<1x32x32xbf16>
    %76 = vector.shape_cast %75 : vector<1x32x32xbf16> to vector<32x32xbf16>
    %cst_80 = arith.constant dense<0.000000e+00> : vector<4x32xf32>
    %77 = tpu.matmul %62, %76, %cst_80 {dimension_numbers = #tpu.dot_dimension_numbers<[1], [0], [0], [1], [0, 0, 1, 1], [], []>} : vector<4x32xbf16>, vector<32x32xbf16>, vector<4x32xf32> -> vector<4x32xf32>
    %78 = arith.addf %61, %77 : vector<4x32xf32>
    %cst_81 = arith.constant 5.000000e-01 : f32
    %79 = vector.broadcast %cst_81 : f32 to vector<4x32xf32>
    %80 = arith.mulf %79, %66 : vector<4x32xf32>
    %81 = math.tanh %80 : vector<4x32xf32>
    %cst_82 = arith.constant 5.000000e-01 : f32
    %82 = vector.broadcast %cst_82 : f32 to vector<4x32xf32>
    %83 = arith.mulf %82, %81 : vector<4x32xf32>
    %cst_83 = arith.constant 5.000000e-01 : f32
    %84 = vector.broadcast %cst_83 : f32 to vector<4x32xf32>
    %85 = arith.addf %83, %84 : vector<4x32xf32>
    %cst_84 = arith.constant 5.000000e-01 : f32
    %86 = vector.broadcast %cst_84 : f32 to vector<4x32xf32>
    %87 = arith.mulf %86, %70 : vector<4x32xf32>
    %88 = math.tanh %87 : vector<4x32xf32>
    %cst_85 = arith.constant 5.000000e-01 : f32
    %89 = vector.broadcast %cst_85 : f32 to vector<4x32xf32>
    %90 = arith.mulf %89, %88 : vector<4x32xf32>
    %cst_86 = arith.constant 5.000000e-01 : f32
    %91 = vector.broadcast %cst_86 : f32 to vector<4x32xf32>
    %92 = arith.addf %90, %91 : vector<4x32xf32>
    %93 = math.tanh %74 : vector<4x32xf32>
    %cst_87 = arith.constant 5.000000e-01 : f32
    %94 = vector.broadcast %cst_87 : f32 to vector<4x32xf32>
    %95 = arith.mulf %94, %78 : vector<4x32xf32>
    %96 = math.tanh %95 : vector<4x32xf32>
    %cst_88 = arith.constant 5.000000e-01 : f32
    %97 = vector.broadcast %cst_88 : f32 to vector<4x32xf32>
    %98 = arith.mulf %97, %96 : vector<4x32xf32>
    %cst_89 = arith.constant 5.000000e-01 : f32
    %99 = vector.broadcast %cst_89 : f32 to vector<4x32xf32>
    %100 = arith.addf %98, %99 : vector<4x32xf32>
    %101 = arith.mulf %92, %55 : vector<4x32xf32>
    %102 = arith.mulf %85, %93 : vector<4x32xf32>
    %103 = arith.addf %101, %102 : vector<4x32xf32>
    %104 = math.tanh %103 : vector<4x32xf32>
    %105 = arith.mulf %100, %104 : vector<4x32xf32>
    %106 = arith.truncf %105 : vector<4x32xf32> to vector<4x32xbf16>
    %c0_90 = arith.constant 0 : index
    %c0_91 = arith.constant 0 : index
    %c0_92 = arith.constant 0 : index
    %107 = vector.load %arg5[%c0_90, %c0_91, %c0_92] : memref<4x32x32xbf16, #tpu.memory_space<vmem>>, vector<1x32x32xbf16>
    %108 = vector.shape_cast %107 : vector<1x32x32xbf16> to vector<32x32xbf16>
    %cst_93 = arith.constant dense<0.000000e+00> : vector<4x32xf32>
    %109 = tpu.matmul %106, %108, %cst_93 {dimension_numbers = #tpu.dot_dimension_numbers<[1], [0], [0], [1], [0, 0, 1, 1], [], []>} : vector<4x32xbf16>, vector<32x32xbf16>, vector<4x32xf32> -> vector<4x32xf32>
    %110 = arith.addf %109, %37 : vector<4x32xf32>
    %c1_94 = arith.constant 1 : index
    %c0_95 = arith.constant 0 : index
    %c0_96 = arith.constant 0 : index
    %111 = vector.load %arg5[%c1_94, %c0_95, %c0_96] : memref<4x32x32xbf16, #tpu.memory_space<vmem>>, vector<1x32x32xbf16>
    %112 = vector.shape_cast %111 : vector<1x32x32xbf16> to vector<32x32xbf16>
    %cst_97 = arith.constant dense<0.000000e+00> : vector<4x32xf32>
    %113 = tpu.matmul %106, %112, %cst_97 {dimension_numbers = #tpu.dot_dimension_numbers<[1], [0], [0], [1], [0, 0, 1, 1], [], []>} : vector<4x32xbf16>, vector<32x32xbf16>, vector<4x32xf32> -> vector<4x32xf32>
    %114 = arith.addf %113, %41 : vector<4x32xf32>
    %c2_98 = arith.constant 2 : index
    %c0_99 = arith.constant 0 : index
    %c0_100 = arith.constant 0 : index
    %115 = vector.load %arg5[%c2_98, %c0_99, %c0_100] : memref<4x32x32xbf16, #tpu.memory_space<vmem>>, vector<1x32x32xbf16>
    %116 = vector.shape_cast %115 : vector<1x32x32xbf16> to vector<32x32xbf16>
    %cst_101 = arith.constant dense<0.000000e+00> : vector<4x32xf32>
    %117 = tpu.matmul %106, %116, %cst_101 {dimension_numbers = #tpu.dot_dimension_numbers<[1], [0], [0], [1], [0, 0, 1, 1], [], []>} : vector<4x32xbf16>, vector<32x32xbf16>, vector<4x32xf32> -> vector<4x32xf32>
    %118 = arith.addf %117, %45 : vector<4x32xf32>
    %c3_102 = arith.constant 3 : index
    %c0_103 = arith.constant 0 : index
    %c0_104 = arith.constant 0 : index
    %119 = vector.load %arg5[%c3_102, %c0_103, %c0_104] : memref<4x32x32xbf16, #tpu.memory_space<vmem>>, vector<1x32x32xbf16>
    %120 = vector.shape_cast %119 : vector<1x32x32xbf16> to vector<32x32xbf16>
    %cst_105 = arith.constant dense<0.000000e+00> : vector<4x32xf32>
    %121 = tpu.matmul %106, %120, %cst_105 {dimension_numbers = #tpu.dot_dimension_numbers<[1], [0], [0], [1], [0, 0, 1, 1], [], []>} : vector<4x32xbf16>, vector<32x32xbf16>, vector<4x32xf32> -> vector<4x32xf32>
    %122 = arith.addf %121, %49 : vector<4x32xf32>
    %123 = arith.truncf %53 : vector<4x32xf32> to vector<4x32xbf16>
    %c0_106 = arith.constant 0 : index
    %c0_107 = arith.constant 0 : index
    %c0_108 = arith.constant 0 : index
    %124 = vector.load %arg6[%c0_106, %c0_107, %c0_108] : memref<4x32x32xbf16, #tpu.memory_space<vmem>>, vector<1x32x32xbf16>
    %125 = vector.shape_cast %124 : vector<1x32x32xbf16> to vector<32x32xbf16>
    %cst_109 = arith.constant dense<0.000000e+00> : vector<4x32xf32>
    %126 = tpu.matmul %123, %125, %cst_109 {dimension_numbers = #tpu.dot_dimension_numbers<[1], [0], [0], [1], [0, 0, 1, 1], [], []>} : vector<4x32xbf16>, vector<32x32xbf16>, vector<4x32xf32> -> vector<4x32xf32>
    %127 = arith.addf %110, %126 : vector<4x32xf32>
    %c1_110 = arith.constant 1 : index
    %c0_111 = arith.constant 0 : index
    %c0_112 = arith.constant 0 : index
    %128 = vector.load %arg6[%c1_110, %c0_111, %c0_112] : memref<4x32x32xbf16, #tpu.memory_space<vmem>>, vector<1x32x32xbf16>
    %129 = vector.shape_cast %128 : vector<1x32x32xbf16> to vector<32x32xbf16>
    %cst_113 = arith.constant dense<0.000000e+00> : vector<4x32xf32>
    %130 = tpu.matmul %123, %129, %cst_113 {dimension_numbers = #tpu.dot_dimension_numbers<[1], [0], [0], [1], [0, 0, 1, 1], [], []>} : vector<4x32xbf16>, vector<32x32xbf16>, vector<4x32xf32> -> vector<4x32xf32>
    %131 = arith.addf %114, %130 : vector<4x32xf32>
    %c2_114 = arith.constant 2 : index
    %c0_115 = arith.constant 0 : index
    %c0_116 = arith.constant 0 : index
    %132 = vector.load %arg6[%c2_114, %c0_115, %c0_116] : memref<4x32x32xbf16, #tpu.memory_space<vmem>>, vector<1x32x32xbf16>
    %133 = vector.shape_cast %132 : vector<1x32x32xbf16> to vector<32x32xbf16>
    %cst_117 = arith.constant dense<0.000000e+00> : vector<4x32xf32>
    %134 = tpu.matmul %123, %133, %cst_117 {dimension_numbers = #tpu.dot_dimension_numbers<[1], [0], [0], [1], [0, 0, 1, 1], [], []>} : vector<4x32xbf16>, vector<32x32xbf16>, vector<4x32xf32> -> vector<4x32xf32>
    %135 = arith.addf %118, %134 : vector<4x32xf32>
    %c3_118 = arith.constant 3 : index
    %c0_119 = arith.constant 0 : index
    %c0_120 = arith.constant 0 : index
    %136 = vector.load %arg6[%c3_118, %c0_119, %c0_120] : memref<4x32x32xbf16, #tpu.memory_space<vmem>>, vector<1x32x32xbf16>
    %137 = vector.shape_cast %136 : vector<1x32x32xbf16> to vector<32x32xbf16>
    %cst_121 = arith.constant dense<0.000000e+00> : vector<4x32xf32>
    %138 = tpu.matmul %123, %137, %cst_121 {dimension_numbers = #tpu.dot_dimension_numbers<[1], [0], [0], [1], [0, 0, 1, 1], [], []>} : vector<4x32xbf16>, vector<32x32xbf16>, vector<4x32xf32> -> vector<4x32xf32>
    %139 = arith.addf %122, %138 : vector<4x32xf32>
    %cst_122 = arith.constant 5.000000e-01 : f32
    %140 = vector.broadcast %cst_122 : f32 to vector<4x32xf32>
    %141 = arith.mulf %140, %127 : vector<4x32xf32>
    %142 = math.tanh %141 : vector<4x32xf32>
    %cst_123 = arith.constant 5.000000e-01 : f32
    %143 = vector.broadcast %cst_123 : f32 to vector<4x32xf32>
    %144 = arith.mulf %143, %142 : vector<4x32xf32>
    %cst_124 = arith.constant 5.000000e-01 : f32
    %145 = vector.broadcast %cst_124 : f32 to vector<4x32xf32>
    %146 = arith.addf %144, %145 : vector<4x32xf32>
    %cst_125 = arith.constant 5.000000e-01 : f32
    %147 = vector.broadcast %cst_125 : f32 to vector<4x32xf32>
    %148 = arith.mulf %147, %131 : vector<4x32xf32>
    %149 = math.tanh %148 : vector<4x32xf32>
    %cst_126 = arith.constant 5.000000e-01 : f32
    %150 = vector.broadcast %cst_126 : f32 to vector<4x32xf32>
    %151 = arith.mulf %150, %149 : vector<4x32xf32>
    %cst_127 = arith.constant 5.000000e-01 : f32
    %152 = vector.broadcast %cst_127 : f32 to vector<4x32xf32>
    %153 = arith.addf %151, %152 : vector<4x32xf32>
    %154 = math.tanh %135 : vector<4x32xf32>
    %cst_128 = arith.constant 5.000000e-01 : f32
    %155 = vector.broadcast %cst_128 : f32 to vector<4x32xf32>
    %156 = arith.mulf %155, %139 : vector<4x32xf32>
    %157 = math.tanh %156 : vector<4x32xf32>
    %cst_129 = arith.constant 5.000000e-01 : f32
    %158 = vector.broadcast %cst_129 : f32 to vector<4x32xf32>
    %159 = arith.mulf %158, %157 : vector<4x32xf32>
    %cst_130 = arith.constant 5.000000e-01 : f32
    %160 = vector.broadcast %cst_130 : f32 to vector<4x32xf32>
    %161 = arith.addf %159, %160 : vector<4x32xf32>
    %162 = arith.mulf %153, %57 : vector<4x32xf32>
    %163 = arith.mulf %146, %154 : vector<4x32xf32>
    %164 = arith.addf %162, %163 : vector<4x32xf32>
    %165 = math.tanh %164 : vector<4x32xf32>
    %166 = arith.mulf %161, %165 : vector<4x32xf32>
    %c4 = arith.constant 4 : index
    %c0_131 = arith.constant 0 : index
    %167 = vector.load %arg13[%c4, %c0_131] : memref<32x32xf32, #tpu.memory_space<vmem>>, vector<4x32xf32>
    %c4_132 = arith.constant 4 : index
    %c0_133 = arith.constant 0 : index
    %168 = vector.load %arg14[%c4_132, %c0_133] : memref<32x32xf32, #tpu.memory_space<vmem>>, vector<4x32xf32>
    %c4_134 = arith.constant 4 : index
    %c0_135 = arith.constant 0 : index
    %169 = vector.load %arg15[%c4_134, %c0_135] : memref<32x32xf32, #tpu.memory_space<vmem>>, vector<4x32xf32>
    %c4_136 = arith.constant 4 : index
    %c0_137 = arith.constant 0 : index
    %170 = vector.load %arg16[%c4_136, %c0_137] : memref<32x32xf32, #tpu.memory_space<vmem>>, vector<4x32xf32>
    %171 = arith.truncf %105 : vector<4x32xf32> to vector<4x32xbf16>
    %c0_138 = arith.constant 0 : index
    %c0_139 = arith.constant 0 : index
    %c0_140 = arith.constant 0 : index
    %172 = vector.load %arg3[%c0_138, %c0_139, %c0_140] : memref<4x32x32xbf16, #tpu.memory_space<vmem>>, vector<1x32x32xbf16>
    %173 = vector.shape_cast %172 : vector<1x32x32xbf16> to vector<32x32xbf16>
    %cst_141 = arith.constant dense<0.000000e+00> : vector<4x32xf32>
    %174 = tpu.matmul %171, %173, %cst_141 {dimension_numbers = #tpu.dot_dimension_numbers<[1], [0], [0], [1], [0, 0, 1, 1], [], []>} : vector<4x32xbf16>, vector<32x32xbf16>, vector<4x32xf32> -> vector<4x32xf32>
    %175 = arith.addf %167, %174 : vector<4x32xf32>
    %c1_142 = arith.constant 1 : index
    %c0_143 = arith.constant 0 : index
    %c0_144 = arith.constant 0 : index
    %176 = vector.load %arg3[%c1_142, %c0_143, %c0_144] : memref<4x32x32xbf16, #tpu.memory_space<vmem>>, vector<1x32x32xbf16>
    %177 = vector.shape_cast %176 : vector<1x32x32xbf16> to vector<32x32xbf16>
    %cst_145 = arith.constant dense<0.000000e+00> : vector<4x32xf32>
    %178 = tpu.matmul %171, %177, %cst_145 {dimension_numbers = #tpu.dot_dimension_numbers<[1], [0], [0], [1], [0, 0, 1, 1], [], []>} : vector<4x32xbf16>, vector<32x32xbf16>, vector<4x32xf32> -> vector<4x32xf32>
    %179 = arith.addf %168, %178 : vector<4x32xf32>
    %c2_146 = arith.constant 2 : index
    %c0_147 = arith.constant 0 : index
    %c0_148 = arith.constant 0 : index
    %180 = vector.load %arg3[%c2_146, %c0_147, %c0_148] : memref<4x32x32xbf16, #tpu.memory_space<vmem>>, vector<1x32x32xbf16>
    %181 = vector.shape_cast %180 : vector<1x32x32xbf16> to vector<32x32xbf16>
    %cst_149 = arith.constant dense<0.000000e+00> : vector<4x32xf32>
    %182 = tpu.matmul %171, %181, %cst_149 {dimension_numbers = #tpu.dot_dimension_numbers<[1], [0], [0], [1], [0, 0, 1, 1], [], []>} : vector<4x32xbf16>, vector<32x32xbf16>, vector<4x32xf32> -> vector<4x32xf32>
    %183 = arith.addf %169, %182 : vector<4x32xf32>
    %c3_150 = arith.constant 3 : index
    %c0_151 = arith.constant 0 : index
    %c0_152 = arith.constant 0 : index
    %184 = vector.load %arg3[%c3_150, %c0_151, %c0_152] : memref<4x32x32xbf16, #tpu.memory_space<vmem>>, vector<1x32x32xbf16>
    %185 = vector.shape_cast %184 : vector<1x32x32xbf16> to vector<32x32xbf16>
    %cst_153 = arith.constant dense<0.000000e+00> : vector<4x32xf32>
    %186 = tpu.matmul %171, %185, %cst_153 {dimension_numbers = #tpu.dot_dimension_numbers<[1], [0], [0], [1], [0, 0, 1, 1], [], []>} : vector<4x32xbf16>, vector<32x32xbf16>, vector<4x32xf32> -> vector<4x32xf32>
    %187 = arith.addf %170, %186 : vector<4x32xf32>
    %cst_154 = arith.constant 5.000000e-01 : f32
    %188 = vector.broadcast %cst_154 : f32 to vector<4x32xf32>
    %189 = arith.mulf %188, %175 : vector<4x32xf32>
    %190 = math.tanh %189 : vector<4x32xf32>
    %cst_155 = arith.constant 5.000000e-01 : f32
    %191 = vector.broadcast %cst_155 : f32 to vector<4x32xf32>
    %192 = arith.mulf %191, %190 : vector<4x32xf32>
    %cst_156 = arith.constant 5.000000e-01 : f32
    %193 = vector.broadcast %cst_156 : f32 to vector<4x32xf32>
    %194 = arith.addf %192, %193 : vector<4x32xf32>
    %cst_157 = arith.constant 5.000000e-01 : f32
    %195 = vector.broadcast %cst_157 : f32 to vector<4x32xf32>
    %196 = arith.mulf %195, %179 : vector<4x32xf32>
    %197 = math.tanh %196 : vector<4x32xf32>
    %cst_158 = arith.constant 5.000000e-01 : f32
    %198 = vector.broadcast %cst_158 : f32 to vector<4x32xf32>
    %199 = arith.mulf %198, %197 : vector<4x32xf32>
    %cst_159 = arith.constant 5.000000e-01 : f32
    %200 = vector.broadcast %cst_159 : f32 to vector<4x32xf32>
    %201 = arith.addf %199, %200 : vector<4x32xf32>
    %202 = math.tanh %183 : vector<4x32xf32>
    %cst_160 = arith.constant 5.000000e-01 : f32
    %203 = vector.broadcast %cst_160 : f32 to vector<4x32xf32>
    %204 = arith.mulf %203, %187 : vector<4x32xf32>
    %205 = math.tanh %204 : vector<4x32xf32>
    %cst_161 = arith.constant 5.000000e-01 : f32
    %206 = vector.broadcast %cst_161 : f32 to vector<4x32xf32>
    %207 = arith.mulf %206, %205 : vector<4x32xf32>
    %cst_162 = arith.constant 5.000000e-01 : f32
    %208 = vector.broadcast %cst_162 : f32 to vector<4x32xf32>
    %209 = arith.addf %207, %208 : vector<4x32xf32>
    %210 = arith.mulf %201, %103 : vector<4x32xf32>
    %211 = arith.mulf %194, %202 : vector<4x32xf32>
    %212 = arith.addf %210, %211 : vector<4x32xf32>
    %213 = math.tanh %212 : vector<4x32xf32>
    %214 = arith.mulf %209, %213 : vector<4x32xf32>
    %215 = arith.truncf %214 : vector<4x32xf32> to vector<4x32xbf16>
    %c0_163 = arith.constant 0 : index
    %c0_164 = arith.constant 0 : index
    %c0_165 = arith.constant 0 : index
    %216 = vector.load %arg5[%c0_163, %c0_164, %c0_165] : memref<4x32x32xbf16, #tpu.memory_space<vmem>>, vector<1x32x32xbf16>
    %217 = vector.shape_cast %216 : vector<1x32x32xbf16> to vector<32x32xbf16>
    %cst_166 = arith.constant dense<0.000000e+00> : vector<4x32xf32>
    %218 = tpu.matmul %215, %217, %cst_166 {dimension_numbers = #tpu.dot_dimension_numbers<[1], [0], [0], [1], [0, 0, 1, 1], [], []>} : vector<4x32xbf16>, vector<32x32xbf16>, vector<4x32xf32> -> vector<4x32xf32>
    %219 = arith.addf %218, %37 : vector<4x32xf32>
    %c1_167 = arith.constant 1 : index
    %c0_168 = arith.constant 0 : index
    %c0_169 = arith.constant 0 : index
    %220 = vector.load %arg5[%c1_167, %c0_168, %c0_169] : memref<4x32x32xbf16, #tpu.memory_space<vmem>>, vector<1x32x32xbf16>
    %221 = vector.shape_cast %220 : vector<1x32x32xbf16> to vector<32x32xbf16>
    %cst_170 = arith.constant dense<0.000000e+00> : vector<4x32xf32>
    %222 = tpu.matmul %215, %221, %cst_170 {dimension_numbers = #tpu.dot_dimension_numbers<[1], [0], [0], [1], [0, 0, 1, 1], [], []>} : vector<4x32xbf16>, vector<32x32xbf16>, vector<4x32xf32> -> vector<4x32xf32>
    %223 = arith.addf %222, %41 : vector<4x32xf32>
    %c2_171 = arith.constant 2 : index
    %c0_172 = arith.constant 0 : index
    %c0_173 = arith.constant 0 : index
    %224 = vector.load %arg5[%c2_171, %c0_172, %c0_173] : memref<4x32x32xbf16, #tpu.memory_space<vmem>>, vector<1x32x32xbf16>
    %225 = vector.shape_cast %224 : vector<1x32x32xbf16> to vector<32x32xbf16>
    %cst_174 = arith.constant dense<0.000000e+00> : vector<4x32xf32>
    %226 = tpu.matmul %215, %225, %cst_174 {dimension_numbers = #tpu.dot_dimension_numbers<[1], [0], [0], [1], [0, 0, 1, 1], [], []>} : vector<4x32xbf16>, vector<32x32xbf16>, vector<4x32xf32> -> vector<4x32xf32>
    %227 = arith.addf %226, %45 : vector<4x32xf32>
    %c3_175 = arith.constant 3 : index
    %c0_176 = arith.constant 0 : index
    %c0_177 = arith.constant 0 : index
    %228 = vector.load %arg5[%c3_175, %c0_176, %c0_177] : memref<4x32x32xbf16, #tpu.memory_space<vmem>>, vector<1x32x32xbf16>
    %229 = vector.shape_cast %228 : vector<1x32x32xbf16> to vector<32x32xbf16>
    %cst_178 = arith.constant dense<0.000000e+00> : vector<4x32xf32>
    %230 = tpu.matmul %215, %229, %cst_178 {dimension_numbers = #tpu.dot_dimension_numbers<[1], [0], [0], [1], [0, 0, 1, 1], [], []>} : vector<4x32xbf16>, vector<32x32xbf16>, vector<4x32xf32> -> vector<4x32xf32>
    %231 = arith.addf %230, %49 : vector<4x32xf32>
    %232 = arith.truncf %166 : vector<4x32xf32> to vector<4x32xbf16>
    %c0_179 = arith.constant 0 : index
    %c0_180 = arith.constant 0 : index
    %c0_181 = arith.constant 0 : index
    %233 = vector.load %arg6[%c0_179, %c0_180, %c0_181] : memref<4x32x32xbf16, #tpu.memory_space<vmem>>, vector<1x32x32xbf16>
    %234 = vector.shape_cast %233 : vector<1x32x32xbf16> to vector<32x32xbf16>
    %cst_182 = arith.constant dense<0.000000e+00> : vector<4x32xf32>
    %235 = tpu.matmul %232, %234, %cst_182 {dimension_numbers = #tpu.dot_dimension_numbers<[1], [0], [0], [1], [0, 0, 1, 1], [], []>} : vector<4x32xbf16>, vector<32x32xbf16>, vector<4x32xf32> -> vector<4x32xf32>
    %236 = arith.addf %219, %235 : vector<4x32xf32>
    %c1_183 = arith.constant 1 : index
    %c0_184 = arith.constant 0 : index
    %c0_185 = arith.constant 0 : index
    %237 = vector.load %arg6[%c1_183, %c0_184, %c0_185] : memref<4x32x32xbf16, #tpu.memory_space<vmem>>, vector<1x32x32xbf16>
    %238 = vector.shape_cast %237 : vector<1x32x32xbf16> to vector<32x32xbf16>
    %cst_186 = arith.constant dense<0.000000e+00> : vector<4x32xf32>
    %239 = tpu.matmul %232, %238, %cst_186 {dimension_numbers = #tpu.dot_dimension_numbers<[1], [0], [0], [1], [0, 0, 1, 1], [], []>} : vector<4x32xbf16>, vector<32x32xbf16>, vector<4x32xf32> -> vector<4x32xf32>
    %240 = arith.addf %223, %239 : vector<4x32xf32>
    %c2_187 = arith.constant 2 : index
    %c0_188 = arith.constant 0 : index
    %c0_189 = arith.constant 0 : index
    %241 = vector.load %arg6[%c2_187, %c0_188, %c0_189] : memref<4x32x32xbf16, #tpu.memory_space<vmem>>, vector<1x32x32xbf16>
    %242 = vector.shape_cast %241 : vector<1x32x32xbf16> to vector<32x32xbf16>
    %cst_190 = arith.constant dense<0.000000e+00> : vector<4x32xf32>
    %243 = tpu.matmul %232, %242, %cst_190 {dimension_numbers = #tpu.dot_dimension_numbers<[1], [0], [0], [1], [0, 0, 1, 1], [], []>} : vector<4x32xbf16>, vector<32x32xbf16>, vector<4x32xf32> -> vector<4x32xf32>
    %244 = arith.addf %227, %243 : vector<4x32xf32>
    %c3_191 = arith.constant 3 : index
    %c0_192 = arith.constant 0 : index
    %c0_193 = arith.constant 0 : index
    %245 = vector.load %arg6[%c3_191, %c0_192, %c0_193] : memref<4x32x32xbf16, #tpu.memory_space<vmem>>, vector<1x32x32xbf16>
    %246 = vector.shape_cast %245 : vector<1x32x32xbf16> to vector<32x32xbf16>
    %cst_194 = arith.constant dense<0.000000e+00> : vector<4x32xf32>
    %247 = tpu.matmul %232, %246, %cst_194 {dimension_numbers = #tpu.dot_dimension_numbers<[1], [0], [0], [1], [0, 0, 1, 1], [], []>} : vector<4x32xbf16>, vector<32x32xbf16>, vector<4x32xf32> -> vector<4x32xf32>
    %248 = arith.addf %231, %247 : vector<4x32xf32>
    %cst_195 = arith.constant 5.000000e-01 : f32
    %249 = vector.broadcast %cst_195 : f32 to vector<4x32xf32>
    %250 = arith.mulf %249, %236 : vector<4x32xf32>
    %251 = math.tanh %250 : vector<4x32xf32>
    %cst_196 = arith.constant 5.000000e-01 : f32
    %252 = vector.broadcast %cst_196 : f32 to vector<4x32xf32>
    %253 = arith.mulf %252, %251 : vector<4x32xf32>
    %cst_197 = arith.constant 5.000000e-01 : f32
    %254 = vector.broadcast %cst_197 : f32 to vector<4x32xf32>
    %255 = arith.addf %253, %254 : vector<4x32xf32>
    %cst_198 = arith.constant 5.000000e-01 : f32
    %256 = vector.broadcast %cst_198 : f32 to vector<4x32xf32>
    %257 = arith.mulf %256, %240 : vector<4x32xf32>
    %258 = math.tanh %257 : vector<4x32xf32>
    %cst_199 = arith.constant 5.000000e-01 : f32
    %259 = vector.broadcast %cst_199 : f32 to vector<4x32xf32>
    %260 = arith.mulf %259, %258 : vector<4x32xf32>
    %cst_200 = arith.constant 5.000000e-01 : f32
    %261 = vector.broadcast %cst_200 : f32 to vector<4x32xf32>
    %262 = arith.addf %260, %261 : vector<4x32xf32>
    %263 = math.tanh %244 : vector<4x32xf32>
    %cst_201 = arith.constant 5.000000e-01 : f32
    %264 = vector.broadcast %cst_201 : f32 to vector<4x32xf32>
    %265 = arith.mulf %264, %248 : vector<4x32xf32>
    %266 = math.tanh %265 : vector<4x32xf32>
    %cst_202 = arith.constant 5.000000e-01 : f32
    %267 = vector.broadcast %cst_202 : f32 to vector<4x32xf32>
    %268 = arith.mulf %267, %266 : vector<4x32xf32>
    %cst_203 = arith.constant 5.000000e-01 : f32
    %269 = vector.broadcast %cst_203 : f32 to vector<4x32xf32>
    %270 = arith.addf %268, %269 : vector<4x32xf32>
    %271 = arith.mulf %262, %164 : vector<4x32xf32>
    %272 = arith.mulf %255, %263 : vector<4x32xf32>
    %273 = arith.addf %271, %272 : vector<4x32xf32>
    %274 = math.tanh %273 : vector<4x32xf32>
    %275 = arith.mulf %270, %274 : vector<4x32xf32>
    %c8 = arith.constant 8 : index
    %c0_204 = arith.constant 0 : index
    %276 = vector.load %arg13[%c8, %c0_204] : memref<32x32xf32, #tpu.memory_space<vmem>>, vector<4x32xf32>
    %c8_205 = arith.constant 8 : index
    %c0_206 = arith.constant 0 : index
    %277 = vector.load %arg14[%c8_205, %c0_206] : memref<32x32xf32, #tpu.memory_space<vmem>>, vector<4x32xf32>
    %c8_207 = arith.constant 8 : index
    %c0_208 = arith.constant 0 : index
    %278 = vector.load %arg15[%c8_207, %c0_208] : memref<32x32xf32, #tpu.memory_space<vmem>>, vector<4x32xf32>
    %c8_209 = arith.constant 8 : index
    %c0_210 = arith.constant 0 : index
    %279 = vector.load %arg16[%c8_209, %c0_210] : memref<32x32xf32, #tpu.memory_space<vmem>>, vector<4x32xf32>
    %280 = arith.truncf %214 : vector<4x32xf32> to vector<4x32xbf16>
    %c0_211 = arith.constant 0 : index
    %c0_212 = arith.constant 0 : index
    %c0_213 = arith.constant 0 : index
    %281 = vector.load %arg3[%c0_211, %c0_212, %c0_213] : memref<4x32x32xbf16, #tpu.memory_space<vmem>>, vector<1x32x32xbf16>
    %282 = vector.shape_cast %281 : vector<1x32x32xbf16> to vector<32x32xbf16>
    %cst_214 = arith.constant dense<0.000000e+00> : vector<4x32xf32>
    %283 = tpu.matmul %280, %282, %cst_214 {dimension_numbers = #tpu.dot_dimension_numbers<[1], [0], [0], [1], [0, 0, 1, 1], [], []>} : vector<4x32xbf16>, vector<32x32xbf16>, vector<4x32xf32> -> vector<4x32xf32>
    %284 = arith.addf %276, %283 : vector<4x32xf32>
    %c1_215 = arith.constant 1 : index
    %c0_216 = arith.constant 0 : index
    %c0_217 = arith.constant 0 : index
    %285 = vector.load %arg3[%c1_215, %c0_216, %c0_217] : memref<4x32x32xbf16, #tpu.memory_space<vmem>>, vector<1x32x32xbf16>
    %286 = vector.shape_cast %285 : vector<1x32x32xbf16> to vector<32x32xbf16>
    %cst_218 = arith.constant dense<0.000000e+00> : vector<4x32xf32>
    %287 = tpu.matmul %280, %286, %cst_218 {dimension_numbers = #tpu.dot_dimension_numbers<[1], [0], [0], [1], [0, 0, 1, 1], [], []>} : vector<4x32xbf16>, vector<32x32xbf16>, vector<4x32xf32> -> vector<4x32xf32>
    %288 = arith.addf %277, %287 : vector<4x32xf32>
    %c2_219 = arith.constant 2 : index
    %c0_220 = arith.constant 0 : index
    %c0_221 = arith.constant 0 : index
    %289 = vector.load %arg3[%c2_219, %c0_220, %c0_221] : memref<4x32x32xbf16, #tpu.memory_space<vmem>>, vector<1x32x32xbf16>
    %290 = vector.shape_cast %289 : vector<1x32x32xbf16> to vector<32x32xbf16>
    %cst_222 = arith.constant dense<0.000000e+00> : vector<4x32xf32>
    %291 = tpu.matmul %280, %290, %cst_222 {dimension_numbers = #tpu.dot_dimension_numbers<[1], [0], [0], [1], [0, 0, 1, 1], [], []>} : vector<4x32xbf16>, vector<32x32xbf16>, vector<4x32xf32> -> vector<4x32xf32>
    %292 = arith.addf %278, %291 : vector<4x32xf32>
    %c3_223 = arith.constant 3 : index
    %c0_224 = arith.constant 0 : index
    %c0_225 = arith.constant 0 : index
    %293 = vector.load %arg3[%c3_223, %c0_224, %c0_225] : memref<4x32x32xbf16, #tpu.memory_space<vmem>>, vector<1x32x32xbf16>
    %294 = vector.shape_cast %293 : vector<1x32x32xbf16> to vector<32x32xbf16>
    %cst_226 = arith.constant dense<0.000000e+00> : vector<4x32xf32>
    %295 = tpu.matmul %280, %294, %cst_226 {dimension_numbers = #tpu.dot_dimension_numbers<[1], [0], [0], [1], [0, 0, 1, 1], [], []>} : vector<4x32xbf16>, vector<32x32xbf16>, vector<4x32xf32> -> vector<4x32xf32>
    %296 = arith.addf %279, %295 : vector<4x32xf32>
    %cst_227 = arith.constant 5.000000e-01 : f32
    %297 = vector.broadcast %cst_227 : f32 to vector<4x32xf32>
    %298 = arith.mulf %297, %284 : vector<4x32xf32>
    %299 = math.tanh %298 : vector<4x32xf32>
    %cst_228 = arith.constant 5.000000e-01 : f32
    %300 = vector.broadcast %cst_228 : f32 to vector<4x32xf32>
    %301 = arith.mulf %300, %299 : vector<4x32xf32>
    %cst_229 = arith.constant 5.000000e-01 : f32
    %302 = vector.broadcast %cst_229 : f32 to vector<4x32xf32>
    %303 = arith.addf %301, %302 : vector<4x32xf32>
    %cst_230 = arith.constant 5.000000e-01 : f32
    %304 = vector.broadcast %cst_230 : f32 to vector<4x32xf32>
    %305 = arith.mulf %304, %288 : vector<4x32xf32>
    %306 = math.tanh %305 : vector<4x32xf32>
    %cst_231 = arith.constant 5.000000e-01 : f32
    %307 = vector.broadcast %cst_231 : f32 to vector<4x32xf32>
    %308 = arith.mulf %307, %306 : vector<4x32xf32>
    %cst_232 = arith.constant 5.000000e-01 : f32
    %309 = vector.broadcast %cst_232 : f32 to vector<4x32xf32>
    %310 = arith.addf %308, %309 : vector<4x32xf32>
    %311 = math.tanh %292 : vector<4x32xf32>
    %cst_233 = arith.constant 5.000000e-01 : f32
    %312 = vector.broadcast %cst_233 : f32 to vector<4x32xf32>
    %313 = arith.mulf %312, %296 : vector<4x32xf32>
    %314 = math.tanh %313 : vector<4x32xf32>
    %cst_234 = arith.constant 5.000000e-01 : f32
    %315 = vector.broadcast %cst_234 : f32 to vector<4x32xf32>
    %316 = arith.mulf %315, %314 : vector<4x32xf32>
    %cst_235 = arith.constant 5.000000e-01 : f32
    %317 = vector.broadcast %cst_235 : f32 to vector<4x32xf32>
    %318 = arith.addf %316, %317 : vector<4x32xf32>
    %319 = arith.mulf %310, %212 : vector<4x32xf32>
    %320 = arith.mulf %303, %311 : vector<4x32xf32>
    %321 = arith.addf %319, %320 : vector<4x32xf32>
    %322 = math.tanh %321 : vector<4x32xf32>
    %323 = arith.mulf %318, %322 : vector<4x32xf32>
    %324 = arith.truncf %323 : vector<4x32xf32> to vector<4x32xbf16>
    %c0_236 = arith.constant 0 : index
    %c0_237 = arith.constant 0 : index
    %c0_238 = arith.constant 0 : index
    %325 = vector.load %arg5[%c0_236, %c0_237, %c0_238] : memref<4x32x32xbf16, #tpu.memory_space<vmem>>, vector<1x32x32xbf16>
    %326 = vector.shape_cast %325 : vector<1x32x32xbf16> to vector<32x32xbf16>
    %cst_239 = arith.constant dense<0.000000e+00> : vector<4x32xf32>
    %327 = tpu.matmul %324, %326, %cst_239 {dimension_numbers = #tpu.dot_dimension_numbers<[1], [0], [0], [1], [0, 0, 1, 1], [], []>} : vector<4x32xbf16>, vector<32x32xbf16>, vector<4x32xf32> -> vector<4x32xf32>
    %328 = arith.addf %327, %37 : vector<4x32xf32>
    %c1_240 = arith.constant 1 : index
    %c0_241 = arith.constant 0 : index
    %c0_242 = arith.constant 0 : index
    %329 = vector.load %arg5[%c1_240, %c0_241, %c0_242] : memref<4x32x32xbf16, #tpu.memory_space<vmem>>, vector<1x32x32xbf16>
    %330 = vector.shape_cast %329 : vector<1x32x32xbf16> to vector<32x32xbf16>
    %cst_243 = arith.constant dense<0.000000e+00> : vector<4x32xf32>
    %331 = tpu.matmul %324, %330, %cst_243 {dimension_numbers = #tpu.dot_dimension_numbers<[1], [0], [0], [1], [0, 0, 1, 1], [], []>} : vector<4x32xbf16>, vector<32x32xbf16>, vector<4x32xf32> -> vector<4x32xf32>
    %332 = arith.addf %331, %41 : vector<4x32xf32>
    %c2_244 = arith.constant 2 : index
    %c0_245 = arith.constant 0 : index
    %c0_246 = arith.constant 0 : index
    %333 = vector.load %arg5[%c2_244, %c0_245, %c0_246] : memref<4x32x32xbf16, #tpu.memory_space<vmem>>, vector<1x32x32xbf16>
    %334 = vector.shape_cast %333 : vector<1x32x32xbf16> to vector<32x32xbf16>
    %cst_247 = arith.constant dense<0.000000e+00> : vector<4x32xf32>
    %335 = tpu.matmul %324, %334, %cst_247 {dimension_numbers = #tpu.dot_dimension_numbers<[1], [0], [0], [1], [0, 0, 1, 1], [], []>} : vector<4x32xbf16>, vector<32x32xbf16>, vector<4x32xf32> -> vector<4x32xf32>
    %336 = arith.addf %335, %45 : vector<4x32xf32>
    %c3_248 = arith.constant 3 : index
    %c0_249 = arith.constant 0 : index
    %c0_250 = arith.constant 0 : index
    %337 = vector.load %arg5[%c3_248, %c0_249, %c0_250] : memref<4x32x32xbf16, #tpu.memory_space<vmem>>, vector<1x32x32xbf16>
    %338 = vector.shape_cast %337 : vector<1x32x32xbf16> to vector<32x32xbf16>
    %cst_251 = arith.constant dense<0.000000e+00> : vector<4x32xf32>
    %339 = tpu.matmul %324, %338, %cst_251 {dimension_numbers = #tpu.dot_dimension_numbers<[1], [0], [0], [1], [0, 0, 1, 1], [], []>} : vector<4x32xbf16>, vector<32x32xbf16>, vector<4x32xf32> -> vector<4x32xf32>
    %340 = arith.addf %339, %49 : vector<4x32xf32>
    %341 = arith.truncf %275 : vector<4x32xf32> to vector<4x32xbf16>
    %c0_252 = arith.constant 0 : index
    %c0_253 = arith.constant 0 : index
    %c0_254 = arith.constant 0 : index
    %342 = vector.load %arg6[%c0_252, %c0_253, %c0_254] : memref<4x32x32xbf16, #tpu.memory_space<vmem>>, vector<1x32x32xbf16>
    %343 = vector.shape_cast %342 : vector<1x32x32xbf16> to vector<32x32xbf16>
    %cst_255 = arith.constant dense<0.000000e+00> : vector<4x32xf32>
    %344 = tpu.matmul %341, %343, %cst_255 {dimension_numbers = #tpu.dot_dimension_numbers<[1], [0], [0], [1], [0, 0, 1, 1], [], []>} : vector<4x32xbf16>, vector<32x32xbf16>, vector<4x32xf32> -> vector<4x32xf32>
    %345 = arith.addf %328, %344 : vector<4x32xf32>
    %c1_256 = arith.constant 1 : index
    %c0_257 = arith.constant 0 : index
    %c0_258 = arith.constant 0 : index
    %346 = vector.load %arg6[%c1_256, %c0_257, %c0_258] : memref<4x32x32xbf16, #tpu.memory_space<vmem>>, vector<1x32x32xbf16>
    %347 = vector.shape_cast %346 : vector<1x32x32xbf16> to vector<32x32xbf16>
    %cst_259 = arith.constant dense<0.000000e+00> : vector<4x32xf32>
    %348 = tpu.matmul %341, %347, %cst_259 {dimension_numbers = #tpu.dot_dimension_numbers<[1], [0], [0], [1], [0, 0, 1, 1], [], []>} : vector<4x32xbf16>, vector<32x32xbf16>, vector<4x32xf32> -> vector<4x32xf32>
    %349 = arith.addf %332, %348 : vector<4x32xf32>
    %c2_260 = arith.constant 2 : index
    %c0_261 = arith.constant 0 : index
    %c0_262 = arith.constant 0 : index
    %350 = vector.load %arg6[%c2_260, %c0_261, %c0_262] : memref<4x32x32xbf16, #tpu.memory_space<vmem>>, vector<1x32x32xbf16>
    %351 = vector.shape_cast %350 : vector<1x32x32xbf16> to vector<32x32xbf16>
    %cst_263 = arith.constant dense<0.000000e+00> : vector<4x32xf32>
    %352 = tpu.matmul %341, %351, %cst_263 {dimension_numbers = #tpu.dot_dimension_numbers<[1], [0], [0], [1], [0, 0, 1, 1], [], []>} : vector<4x32xbf16>, vector<32x32xbf16>, vector<4x32xf32> -> vector<4x32xf32>
    %353 = arith.addf %336, %352 : vector<4x32xf32>
    %c3_264 = arith.constant 3 : index
    %c0_265 = arith.constant 0 : index
    %c0_266 = arith.constant 0 : index
    %354 = vector.load %arg6[%c3_264, %c0_265, %c0_266] : memref<4x32x32xbf16, #tpu.memory_space<vmem>>, vector<1x32x32xbf16>
    %355 = vector.shape_cast %354 : vector<1x32x32xbf16> to vector<32x32xbf16>
    %cst_267 = arith.constant dense<0.000000e+00> : vector<4x32xf32>
    %356 = tpu.matmul %341, %355, %cst_267 {dimension_numbers = #tpu.dot_dimension_numbers<[1], [0], [0], [1], [0, 0, 1, 1], [], []>} : vector<4x32xbf16>, vector<32x32xbf16>, vector<4x32xf32> -> vector<4x32xf32>
    %357 = arith.addf %340, %356 : vector<4x32xf32>
    %cst_268 = arith.constant 5.000000e-01 : f32
    %358 = vector.broadcast %cst_268 : f32 to vector<4x32xf32>
    %359 = arith.mulf %358, %345 : vector<4x32xf32>
    %360 = math.tanh %359 : vector<4x32xf32>
    %cst_269 = arith.constant 5.000000e-01 : f32
    %361 = vector.broadcast %cst_269 : f32 to vector<4x32xf32>
    %362 = arith.mulf %361, %360 : vector<4x32xf32>
    %cst_270 = arith.constant 5.000000e-01 : f32
    %363 = vector.broadcast %cst_270 : f32 to vector<4x32xf32>
    %364 = arith.addf %362, %363 : vector<4x32xf32>
    %cst_271 = arith.constant 5.000000e-01 : f32
    %365 = vector.broadcast %cst_271 : f32 to vector<4x32xf32>
    %366 = arith.mulf %365, %349 : vector<4x32xf32>
    %367 = math.tanh %366 : vector<4x32xf32>
    %cst_272 = arith.constant 5.000000e-01 : f32
    %368 = vector.broadcast %cst_272 : f32 to vector<4x32xf32>
    %369 = arith.mulf %368, %367 : vector<4x32xf32>
    %cst_273 = arith.constant 5.000000e-01 : f32
    %370 = vector.broadcast %cst_273 : f32 to vector<4x32xf32>
    %371 = arith.addf %369, %370 : vector<4x32xf32>
    %372 = math.tanh %353 : vector<4x32xf32>
    %cst_274 = arith.constant 5.000000e-01 : f32
    %373 = vector.broadcast %cst_274 : f32 to vector<4x32xf32>
    %374 = arith.mulf %373, %357 : vector<4x32xf32>
    %375 = math.tanh %374 : vector<4x32xf32>
    %cst_275 = arith.constant 5.000000e-01 : f32
    %376 = vector.broadcast %cst_275 : f32 to vector<4x32xf32>
    %377 = arith.mulf %376, %375 : vector<4x32xf32>
    %cst_276 = arith.constant 5.000000e-01 : f32
    %378 = vector.broadcast %cst_276 : f32 to vector<4x32xf32>
    %379 = arith.addf %377, %378 : vector<4x32xf32>
    %380 = arith.mulf %371, %273 : vector<4x32xf32>
    %381 = arith.mulf %364, %372 : vector<4x32xf32>
    %382 = arith.addf %380, %381 : vector<4x32xf32>
    %383 = math.tanh %382 : vector<4x32xf32>
    %384 = arith.mulf %379, %383 : vector<4x32xf32>
    %c12 = arith.constant 12 : index
    %c0_277 = arith.constant 0 : index
    %385 = vector.load %arg13[%c12, %c0_277] : memref<32x32xf32, #tpu.memory_space<vmem>>, vector<4x32xf32>
    %c12_278 = arith.constant 12 : index
    %c0_279 = arith.constant 0 : index
    %386 = vector.load %arg14[%c12_278, %c0_279] : memref<32x32xf32, #tpu.memory_space<vmem>>, vector<4x32xf32>
    %c12_280 = arith.constant 12 : index
    %c0_281 = arith.constant 0 : index
    %387 = vector.load %arg15[%c12_280, %c0_281] : memref<32x32xf32, #tpu.memory_space<vmem>>, vector<4x32xf32>
    %c12_282 = arith.constant 12 : index
    %c0_283 = arith.constant 0 : index
    %388 = vector.load %arg16[%c12_282, %c0_283] : memref<32x32xf32, #tpu.memory_space<vmem>>, vector<4x32xf32>
    %389 = arith.truncf %323 : vector<4x32xf32> to vector<4x32xbf16>
    %c0_284 = arith.constant 0 : index
    %c0_285 = arith.constant 0 : index
    %c0_286 = arith.constant 0 : index
    %390 = vector.load %arg3[%c0_284, %c0_285, %c0_286] : memref<4x32x32xbf16, #tpu.memory_space<vmem>>, vector<1x32x32xbf16>
    %391 = vector.shape_cast %390 : vector<1x32x32xbf16> to vector<32x32xbf16>
    %cst_287 = arith.constant dense<0.000000e+00> : vector<4x32xf32>
    %392 = tpu.matmul %389, %391, %cst_287 {dimension_numbers = #tpu.dot_dimension_numbers<[1], [0], [0], [1], [0, 0, 1, 1], [], []>} : vector<4x32xbf16>, vector<32x32xbf16>, vector<4x32xf32> -> vector<4x32xf32>
    %393 = arith.addf %385, %392 : vector<4x32xf32>
    %c1_288 = arith.constant 1 : index
    %c0_289 = arith.constant 0 : index
    %c0_290 = arith.constant 0 : index
    %394 = vector.load %arg3[%c1_288, %c0_289, %c0_290] : memref<4x32x32xbf16, #tpu.memory_space<vmem>>, vector<1x32x32xbf16>
    %395 = vector.shape_cast %394 : vector<1x32x32xbf16> to vector<32x32xbf16>
    %cst_291 = arith.constant dense<0.000000e+00> : vector<4x32xf32>
    %396 = tpu.matmul %389, %395, %cst_291 {dimension_numbers = #tpu.dot_dimension_numbers<[1], [0], [0], [1], [0, 0, 1, 1], [], []>} : vector<4x32xbf16>, vector<32x32xbf16>, vector<4x32xf32> -> vector<4x32xf32>
    %397 = arith.addf %386, %396 : vector<4x32xf32>
    %c2_292 = arith.constant 2 : index
    %c0_293 = arith.constant 0 : index
    %c0_294 = arith.constant 0 : index
    %398 = vector.load %arg3[%c2_292, %c0_293, %c0_294] : memref<4x32x32xbf16, #tpu.memory_space<vmem>>, vector<1x32x32xbf16>
    %399 = vector.shape_cast %398 : vector<1x32x32xbf16> to vector<32x32xbf16>
    %cst_295 = arith.constant dense<0.000000e+00> : vector<4x32xf32>
    %400 = tpu.matmul %389, %399, %cst_295 {dimension_numbers = #tpu.dot_dimension_numbers<[1], [0], [0], [1], [0, 0, 1, 1], [], []>} : vector<4x32xbf16>, vector<32x32xbf16>, vector<4x32xf32> -> vector<4x32xf32>
    %401 = arith.addf %387, %400 : vector<4x32xf32>
    %c3_296 = arith.constant 3 : index
    %c0_297 = arith.constant 0 : index
    %c0_298 = arith.constant 0 : index
    %402 = vector.load %arg3[%c3_296, %c0_297, %c0_298] : memref<4x32x32xbf16, #tpu.memory_space<vmem>>, vector<1x32x32xbf16>
    %403 = vector.shape_cast %402 : vector<1x32x32xbf16> to vector<32x32xbf16>
    %cst_299 = arith.constant dense<0.000000e+00> : vector<4x32xf32>
    %404 = tpu.matmul %389, %403, %cst_299 {dimension_numbers = #tpu.dot_dimension_numbers<[1], [0], [0], [1], [0, 0, 1, 1], [], []>} : vector<4x32xbf16>, vector<32x32xbf16>, vector<4x32xf32> -> vector<4x32xf32>
    %405 = arith.addf %388, %404 : vector<4x32xf32>
    %cst_300 = arith.constant 5.000000e-01 : f32
    %406 = vector.broadcast %cst_300 : f32 to vector<4x32xf32>
    %407 = arith.mulf %406, %393 : vector<4x32xf32>
    %408 = math.tanh %407 : vector<4x32xf32>
    %cst_301 = arith.constant 5.000000e-01 : f32
    %409 = vector.broadcast %cst_301 : f32 to vector<4x32xf32>
    %410 = arith.mulf %409, %408 : vector<4x32xf32>
    %cst_302 = arith.constant 5.000000e-01 : f32
    %411 = vector.broadcast %cst_302 : f32 to vector<4x32xf32>
    %412 = arith.addf %410, %411 : vector<4x32xf32>
    %cst_303 = arith.constant 5.000000e-01 : f32
    %413 = vector.broadcast %cst_303 : f32 to vector<4x32xf32>
    %414 = arith.mulf %413, %397 : vector<4x32xf32>
    %415 = math.tanh %414 : vector<4x32xf32>
    %cst_304 = arith.constant 5.000000e-01 : f32
    %416 = vector.broadcast %cst_304 : f32 to vector<4x32xf32>
    %417 = arith.mulf %416, %415 : vector<4x32xf32>
    %cst_305 = arith.constant 5.000000e-01 : f32
    %418 = vector.broadcast %cst_305 : f32 to vector<4x32xf32>
    %419 = arith.addf %417, %418 : vector<4x32xf32>
    %420 = math.tanh %401 : vector<4x32xf32>
    %cst_306 = arith.constant 5.000000e-01 : f32
    %421 = vector.broadcast %cst_306 : f32 to vector<4x32xf32>
    %422 = arith.mulf %421, %405 : vector<4x32xf32>
    %423 = math.tanh %422 : vector<4x32xf32>
    %cst_307 = arith.constant 5.000000e-01 : f32
    %424 = vector.broadcast %cst_307 : f32 to vector<4x32xf32>
    %425 = arith.mulf %424, %423 : vector<4x32xf32>
    %cst_308 = arith.constant 5.000000e-01 : f32
    %426 = vector.broadcast %cst_308 : f32 to vector<4x32xf32>
    %427 = arith.addf %425, %426 : vector<4x32xf32>
    %428 = arith.mulf %419, %321 : vector<4x32xf32>
    %429 = arith.mulf %412, %420 : vector<4x32xf32>
    %430 = arith.addf %428, %429 : vector<4x32xf32>
    %431 = math.tanh %430 : vector<4x32xf32>
    %432 = arith.mulf %427, %431 : vector<4x32xf32>
    %433 = arith.truncf %432 : vector<4x32xf32> to vector<4x32xbf16>
    %c0_309 = arith.constant 0 : index
    %c0_310 = arith.constant 0 : index
    %c0_311 = arith.constant 0 : index
    %434 = vector.load %arg5[%c0_309, %c0_310, %c0_311] : memref<4x32x32xbf16, #tpu.memory_space<vmem>>, vector<1x32x32xbf16>
    %435 = vector.shape_cast %434 : vector<1x32x32xbf16> to vector<32x32xbf16>
    %cst_312 = arith.constant dense<0.000000e+00> : vector<4x32xf32>
    %436 = tpu.matmul %433, %435, %cst_312 {dimension_numbers = #tpu.dot_dimension_numbers<[1], [0], [0], [1], [0, 0, 1, 1], [], []>} : vector<4x32xbf16>, vector<32x32xbf16>, vector<4x32xf32> -> vector<4x32xf32>
    %437 = arith.addf %436, %37 : vector<4x32xf32>
    %c1_313 = arith.constant 1 : index
    %c0_314 = arith.constant 0 : index
    %c0_315 = arith.constant 0 : index
    %438 = vector.load %arg5[%c1_313, %c0_314, %c0_315] : memref<4x32x32xbf16, #tpu.memory_space<vmem>>, vector<1x32x32xbf16>
    %439 = vector.shape_cast %438 : vector<1x32x32xbf16> to vector<32x32xbf16>
    %cst_316 = arith.constant dense<0.000000e+00> : vector<4x32xf32>
    %440 = tpu.matmul %433, %439, %cst_316 {dimension_numbers = #tpu.dot_dimension_numbers<[1], [0], [0], [1], [0, 0, 1, 1], [], []>} : vector<4x32xbf16>, vector<32x32xbf16>, vector<4x32xf32> -> vector<4x32xf32>
    %441 = arith.addf %440, %41 : vector<4x32xf32>
    %c2_317 = arith.constant 2 : index
    %c0_318 = arith.constant 0 : index
    %c0_319 = arith.constant 0 : index
    %442 = vector.load %arg5[%c2_317, %c0_318, %c0_319] : memref<4x32x32xbf16, #tpu.memory_space<vmem>>, vector<1x32x32xbf16>
    %443 = vector.shape_cast %442 : vector<1x32x32xbf16> to vector<32x32xbf16>
    %cst_320 = arith.constant dense<0.000000e+00> : vector<4x32xf32>
    %444 = tpu.matmul %433, %443, %cst_320 {dimension_numbers = #tpu.dot_dimension_numbers<[1], [0], [0], [1], [0, 0, 1, 1], [], []>} : vector<4x32xbf16>, vector<32x32xbf16>, vector<4x32xf32> -> vector<4x32xf32>
    %445 = arith.addf %444, %45 : vector<4x32xf32>
    %c3_321 = arith.constant 3 : index
    %c0_322 = arith.constant 0 : index
    %c0_323 = arith.constant 0 : index
    %446 = vector.load %arg5[%c3_321, %c0_322, %c0_323] : memref<4x32x32xbf16, #tpu.memory_space<vmem>>, vector<1x32x32xbf16>
    %447 = vector.shape_cast %446 : vector<1x32x32xbf16> to vector<32x32xbf16>
    %cst_324 = arith.constant dense<0.000000e+00> : vector<4x32xf32>
    %448 = tpu.matmul %433, %447, %cst_324 {dimension_numbers = #tpu.dot_dimension_numbers<[1], [0], [0], [1], [0, 0, 1, 1], [], []>} : vector<4x32xbf16>, vector<32x32xbf16>, vector<4x32xf32> -> vector<4x32xf32>
    %449 = arith.addf %448, %49 : vector<4x32xf32>
    %450 = arith.truncf %384 : vector<4x32xf32> to vector<4x32xbf16>
    %c0_325 = arith.constant 0 : index
    %c0_326 = arith.constant 0 : index
    %c0_327 = arith.constant 0 : index
    %451 = vector.load %arg6[%c0_325, %c0_326, %c0_327] : memref<4x32x32xbf16, #tpu.memory_space<vmem>>, vector<1x32x32xbf16>
    %452 = vector.shape_cast %451 : vector<1x32x32xbf16> to vector<32x32xbf16>
    %cst_328 = arith.constant dense<0.000000e+00> : vector<4x32xf32>
    %453 = tpu.matmul %450, %452, %cst_328 {dimension_numbers = #tpu.dot_dimension_numbers<[1], [0], [0], [1], [0, 0, 1, 1], [], []>} : vector<4x32xbf16>, vector<32x32xbf16>, vector<4x32xf32> -> vector<4x32xf32>
    %454 = arith.addf %437, %453 : vector<4x32xf32>
    %c1_329 = arith.constant 1 : index
    %c0_330 = arith.constant 0 : index
    %c0_331 = arith.constant 0 : index
    %455 = vector.load %arg6[%c1_329, %c0_330, %c0_331] : memref<4x32x32xbf16, #tpu.memory_space<vmem>>, vector<1x32x32xbf16>
    %456 = vector.shape_cast %455 : vector<1x32x32xbf16> to vector<32x32xbf16>
    %cst_332 = arith.constant dense<0.000000e+00> : vector<4x32xf32>
    %457 = tpu.matmul %450, %456, %cst_332 {dimension_numbers = #tpu.dot_dimension_numbers<[1], [0], [0], [1], [0, 0, 1, 1], [], []>} : vector<4x32xbf16>, vector<32x32xbf16>, vector<4x32xf32> -> vector<4x32xf32>
    %458 = arith.addf %441, %457 : vector<4x32xf32>
    %c2_333 = arith.constant 2 : index
    %c0_334 = arith.constant 0 : index
    %c0_335 = arith.constant 0 : index
    %459 = vector.load %arg6[%c2_333, %c0_334, %c0_335] : memref<4x32x32xbf16, #tpu.memory_space<vmem>>, vector<1x32x32xbf16>
    %460 = vector.shape_cast %459 : vector<1x32x32xbf16> to vector<32x32xbf16>
    %cst_336 = arith.constant dense<0.000000e+00> : vector<4x32xf32>
    %461 = tpu.matmul %450, %460, %cst_336 {dimension_numbers = #tpu.dot_dimension_numbers<[1], [0], [0], [1], [0, 0, 1, 1], [], []>} : vector<4x32xbf16>, vector<32x32xbf16>, vector<4x32xf32> -> vector<4x32xf32>
    %462 = arith.addf %445, %461 : vector<4x32xf32>
    %c3_337 = arith.constant 3 : index
    %c0_338 = arith.constant 0 : index
    %c0_339 = arith.constant 0 : index
    %463 = vector.load %arg6[%c3_337, %c0_338, %c0_339] : memref<4x32x32xbf16, #tpu.memory_space<vmem>>, vector<1x32x32xbf16>
    %464 = vector.shape_cast %463 : vector<1x32x32xbf16> to vector<32x32xbf16>
    %cst_340 = arith.constant dense<0.000000e+00> : vector<4x32xf32>
    %465 = tpu.matmul %450, %464, %cst_340 {dimension_numbers = #tpu.dot_dimension_numbers<[1], [0], [0], [1], [0, 0, 1, 1], [], []>} : vector<4x32xbf16>, vector<32x32xbf16>, vector<4x32xf32> -> vector<4x32xf32>
    %466 = arith.addf %449, %465 : vector<4x32xf32>
    %cst_341 = arith.constant 5.000000e-01 : f32
    %467 = vector.broadcast %cst_341 : f32 to vector<4x32xf32>
    %468 = arith.mulf %467, %454 : vector<4x32xf32>
    %469 = math.tanh %468 : vector<4x32xf32>
    %cst_342 = arith.constant 5.000000e-01 : f32
    %470 = vector.broadcast %cst_342 : f32 to vector<4x32xf32>
    %471 = arith.mulf %470, %469 : vector<4x32xf32>
    %cst_343 = arith.constant 5.000000e-01 : f32
    %472 = vector.broadcast %cst_343 : f32 to vector<4x32xf32>
    %473 = arith.addf %471, %472 : vector<4x32xf32>
    %cst_344 = arith.constant 5.000000e-01 : f32
    %474 = vector.broadcast %cst_344 : f32 to vector<4x32xf32>
    %475 = arith.mulf %474, %458 : vector<4x32xf32>
    %476 = math.tanh %475 : vector<4x32xf32>
    %cst_345 = arith.constant 5.000000e-01 : f32
    %477 = vector.broadcast %cst_345 : f32 to vector<4x32xf32>
    %478 = arith.mulf %477, %476 : vector<4x32xf32>
    %cst_346 = arith.constant 5.000000e-01 : f32
    %479 = vector.broadcast %cst_346 : f32 to vector<4x32xf32>
    %480 = arith.addf %478, %479 : vector<4x32xf32>
    %481 = math.tanh %462 : vector<4x32xf32>
    %cst_347 = arith.constant 5.000000e-01 : f32
    %482 = vector.broadcast %cst_347 : f32 to vector<4x32xf32>
    %483 = arith.mulf %482, %466 : vector<4x32xf32>
    %484 = math.tanh %483 : vector<4x32xf32>
    %cst_348 = arith.constant 5.000000e-01 : f32
    %485 = vector.broadcast %cst_348 : f32 to vector<4x32xf32>
    %486 = arith.mulf %485, %484 : vector<4x32xf32>
    %cst_349 = arith.constant 5.000000e-01 : f32
    %487 = vector.broadcast %cst_349 : f32 to vector<4x32xf32>
    %488 = arith.addf %486, %487 : vector<4x32xf32>
    %489 = arith.mulf %480, %382 : vector<4x32xf32>
    %490 = arith.mulf %473, %481 : vector<4x32xf32>
    %491 = arith.addf %489, %490 : vector<4x32xf32>
    %492 = math.tanh %491 : vector<4x32xf32>
    %493 = arith.mulf %488, %492 : vector<4x32xf32>
    %c16 = arith.constant 16 : index
    %c0_350 = arith.constant 0 : index
    %494 = vector.load %arg13[%c16, %c0_350] : memref<32x32xf32, #tpu.memory_space<vmem>>, vector<4x32xf32>
    %c16_351 = arith.constant 16 : index
    %c0_352 = arith.constant 0 : index
    %495 = vector.load %arg14[%c16_351, %c0_352] : memref<32x32xf32, #tpu.memory_space<vmem>>, vector<4x32xf32>
    %c16_353 = arith.constant 16 : index
    %c0_354 = arith.constant 0 : index
    %496 = vector.load %arg15[%c16_353, %c0_354] : memref<32x32xf32, #tpu.memory_space<vmem>>, vector<4x32xf32>
    %c16_355 = arith.constant 16 : index
    %c0_356 = arith.constant 0 : index
    %497 = vector.load %arg16[%c16_355, %c0_356] : memref<32x32xf32, #tpu.memory_space<vmem>>, vector<4x32xf32>
    %498 = arith.truncf %432 : vector<4x32xf32> to vector<4x32xbf16>
    %c0_357 = arith.constant 0 : index
    %c0_358 = arith.constant 0 : index
    %c0_359 = arith.constant 0 : index
    %499 = vector.load %arg3[%c0_357, %c0_358, %c0_359] : memref<4x32x32xbf16, #tpu.memory_space<vmem>>, vector<1x32x32xbf16>
    %500 = vector.shape_cast %499 : vector<1x32x32xbf16> to vector<32x32xbf16>
    %cst_360 = arith.constant dense<0.000000e+00> : vector<4x32xf32>
    %501 = tpu.matmul %498, %500, %cst_360 {dimension_numbers = #tpu.dot_dimension_numbers<[1], [0], [0], [1], [0, 0, 1, 1], [], []>} : vector<4x32xbf16>, vector<32x32xbf16>, vector<4x32xf32> -> vector<4x32xf32>
    %502 = arith.addf %494, %501 : vector<4x32xf32>
    %c1_361 = arith.constant 1 : index
    %c0_362 = arith.constant 0 : index
    %c0_363 = arith.constant 0 : index
    %503 = vector.load %arg3[%c1_361, %c0_362, %c0_363] : memref<4x32x32xbf16, #tpu.memory_space<vmem>>, vector<1x32x32xbf16>
    %504 = vector.shape_cast %503 : vector<1x32x32xbf16> to vector<32x32xbf16>
    %cst_364 = arith.constant dense<0.000000e+00> : vector<4x32xf32>
    %505 = tpu.matmul %498, %504, %cst_364 {dimension_numbers = #tpu.dot_dimension_numbers<[1], [0], [0], [1], [0, 0, 1, 1], [], []>} : vector<4x32xbf16>, vector<32x32xbf16>, vector<4x32xf32> -> vector<4x32xf32>
    %506 = arith.addf %495, %505 : vector<4x32xf32>
    %c2_365 = arith.constant 2 : index
    %c0_366 = arith.constant 0 : index
    %c0_367 = arith.constant 0 : index
    %507 = vector.load %arg3[%c2_365, %c0_366, %c0_367] : memref<4x32x32xbf16, #tpu.memory_space<vmem>>, vector<1x32x32xbf16>
    %508 = vector.shape_cast %507 : vector<1x32x32xbf16> to vector<32x32xbf16>
    %cst_368 = arith.constant dense<0.000000e+00> : vector<4x32xf32>
    %509 = tpu.matmul %498, %508, %cst_368 {dimension_numbers = #tpu.dot_dimension_numbers<[1], [0], [0], [1], [0, 0, 1, 1], [], []>} : vector<4x32xbf16>, vector<32x32xbf16>, vector<4x32xf32> -> vector<4x32xf32>
    %510 = arith.addf %496, %509 : vector<4x32xf32>
    %c3_369 = arith.constant 3 : index
    %c0_370 = arith.constant 0 : index
    %c0_371 = arith.constant 0 : index
    %511 = vector.load %arg3[%c3_369, %c0_370, %c0_371] : memref<4x32x32xbf16, #tpu.memory_space<vmem>>, vector<1x32x32xbf16>
    %512 = vector.shape_cast %511 : vector<1x32x32xbf16> to vector<32x32xbf16>
    %cst_372 = arith.constant dense<0.000000e+00> : vector<4x32xf32>
    %513 = tpu.matmul %498, %512, %cst_372 {dimension_numbers = #tpu.dot_dimension_numbers<[1], [0], [0], [1], [0, 0, 1, 1], [], []>} : vector<4x32xbf16>, vector<32x32xbf16>, vector<4x32xf32> -> vector<4x32xf32>
    %514 = arith.addf %497, %513 : vector<4x32xf32>
    %cst_373 = arith.constant 5.000000e-01 : f32
    %515 = vector.broadcast %cst_373 : f32 to vector<4x32xf32>
    %516 = arith.mulf %515, %502 : vector<4x32xf32>
    %517 = math.tanh %516 : vector<4x32xf32>
    %cst_374 = arith.constant 5.000000e-01 : f32
    %518 = vector.broadcast %cst_374 : f32 to vector<4x32xf32>
    %519 = arith.mulf %518, %517 : vector<4x32xf32>
    %cst_375 = arith.constant 5.000000e-01 : f32
    %520 = vector.broadcast %cst_375 : f32 to vector<4x32xf32>
    %521 = arith.addf %519, %520 : vector<4x32xf32>
    %cst_376 = arith.constant 5.000000e-01 : f32
    %522 = vector.broadcast %cst_376 : f32 to vector<4x32xf32>
    %523 = arith.mulf %522, %506 : vector<4x32xf32>
    %524 = math.tanh %523 : vector<4x32xf32>
    %cst_377 = arith.constant 5.000000e-01 : f32
    %525 = vector.broadcast %cst_377 : f32 to vector<4x32xf32>
    %526 = arith.mulf %525, %524 : vector<4x32xf32>
    %cst_378 = arith.constant 5.000000e-01 : f32
    %527 = vector.broadcast %cst_378 : f32 to vector<4x32xf32>
    %528 = arith.addf %526, %527 : vector<4x32xf32>
    %529 = math.tanh %510 : vector<4x32xf32>
    %cst_379 = arith.constant 5.000000e-01 : f32
    %530 = vector.broadcast %cst_379 : f32 to vector<4x32xf32>
    %531 = arith.mulf %530, %514 : vector<4x32xf32>
    %532 = math.tanh %531 : vector<4x32xf32>
    %cst_380 = arith.constant 5.000000e-01 : f32
    %533 = vector.broadcast %cst_380 : f32 to vector<4x32xf32>
    %534 = arith.mulf %533, %532 : vector<4x32xf32>
    %cst_381 = arith.constant 5.000000e-01 : f32
    %535 = vector.broadcast %cst_381 : f32 to vector<4x32xf32>
    %536 = arith.addf %534, %535 : vector<4x32xf32>
    %537 = arith.mulf %528, %430 : vector<4x32xf32>
    %538 = arith.mulf %521, %529 : vector<4x32xf32>
    %539 = arith.addf %537, %538 : vector<4x32xf32>
    %540 = math.tanh %539 : vector<4x32xf32>
    %541 = arith.mulf %536, %540 : vector<4x32xf32>
    %542 = arith.truncf %541 : vector<4x32xf32> to vector<4x32xbf16>
    %c0_382 = arith.constant 0 : index
    %c0_383 = arith.constant 0 : index
    %c0_384 = arith.constant 0 : index
    %543 = vector.load %arg5[%c0_382, %c0_383, %c0_384] : memref<4x32x32xbf16, #tpu.memory_space<vmem>>, vector<1x32x32xbf16>
    %544 = vector.shape_cast %543 : vector<1x32x32xbf16> to vector<32x32xbf16>
    %cst_385 = arith.constant dense<0.000000e+00> : vector<4x32xf32>
    %545 = tpu.matmul %542, %544, %cst_385 {dimension_numbers = #tpu.dot_dimension_numbers<[1], [0], [0], [1], [0, 0, 1, 1], [], []>} : vector<4x32xbf16>, vector<32x32xbf16>, vector<4x32xf32> -> vector<4x32xf32>
    %546 = arith.addf %545, %37 : vector<4x32xf32>
    %c1_386 = arith.constant 1 : index
    %c0_387 = arith.constant 0 : index
    %c0_388 = arith.constant 0 : index
    %547 = vector.load %arg5[%c1_386, %c0_387, %c0_388] : memref<4x32x32xbf16, #tpu.memory_space<vmem>>, vector<1x32x32xbf16>
    %548 = vector.shape_cast %547 : vector<1x32x32xbf16> to vector<32x32xbf16>
    %cst_389 = arith.constant dense<0.000000e+00> : vector<4x32xf32>
    %549 = tpu.matmul %542, %548, %cst_389 {dimension_numbers = #tpu.dot_dimension_numbers<[1], [0], [0], [1], [0, 0, 1, 1], [], []>} : vector<4x32xbf16>, vector<32x32xbf16>, vector<4x32xf32> -> vector<4x32xf32>
    %550 = arith.addf %549, %41 : vector<4x32xf32>
    %c2_390 = arith.constant 2 : index
    %c0_391 = arith.constant 0 : index
    %c0_392 = arith.constant 0 : index
    %551 = vector.load %arg5[%c2_390, %c0_391, %c0_392] : memref<4x32x32xbf16, #tpu.memory_space<vmem>>, vector<1x32x32xbf16>
    %552 = vector.shape_cast %551 : vector<1x32x32xbf16> to vector<32x32xbf16>
    %cst_393 = arith.constant dense<0.000000e+00> : vector<4x32xf32>
    %553 = tpu.matmul %542, %552, %cst_393 {dimension_numbers = #tpu.dot_dimension_numbers<[1], [0], [0], [1], [0, 0, 1, 1], [], []>} : vector<4x32xbf16>, vector<32x32xbf16>, vector<4x32xf32> -> vector<4x32xf32>
    %554 = arith.addf %553, %45 : vector<4x32xf32>
    %c3_394 = arith.constant 3 : index
    %c0_395 = arith.constant 0 : index
    %c0_396 = arith.constant 0 : index
    %555 = vector.load %arg5[%c3_394, %c0_395, %c0_396] : memref<4x32x32xbf16, #tpu.memory_space<vmem>>, vector<1x32x32xbf16>
    %556 = vector.shape_cast %555 : vector<1x32x32xbf16> to vector<32x32xbf16>
    %cst_397 = arith.constant dense<0.000000e+00> : vector<4x32xf32>
    %557 = tpu.matmul %542, %556, %cst_397 {dimension_numbers = #tpu.dot_dimension_numbers<[1], [0], [0], [1], [0, 0, 1, 1], [], []>} : vector<4x32xbf16>, vector<32x32xbf16>, vector<4x32xf32> -> vector<4x32xf32>
    %558 = arith.addf %557, %49 : vector<4x32xf32>
    %559 = arith.truncf %493 : vector<4x32xf32> to vector<4x32xbf16>
    %c0_398 = arith.constant 0 : index
    %c0_399 = arith.constant 0 : index
    %c0_400 = arith.constant 0 : index
    %560 = vector.load %arg6[%c0_398, %c0_399, %c0_400] : memref<4x32x32xbf16, #tpu.memory_space<vmem>>, vector<1x32x32xbf16>
    %561 = vector.shape_cast %560 : vector<1x32x32xbf16> to vector<32x32xbf16>
    %cst_401 = arith.constant dense<0.000000e+00> : vector<4x32xf32>
    %562 = tpu.matmul %559, %561, %cst_401 {dimension_numbers = #tpu.dot_dimension_numbers<[1], [0], [0], [1], [0, 0, 1, 1], [], []>} : vector<4x32xbf16>, vector<32x32xbf16>, vector<4x32xf32> -> vector<4x32xf32>
    %563 = arith.addf %546, %562 : vector<4x32xf32>
    %c1_402 = arith.constant 1 : index
    %c0_403 = arith.constant 0 : index
    %c0_404 = arith.constant 0 : index
    %564 = vector.load %arg6[%c1_402, %c0_403, %c0_404] : memref<4x32x32xbf16, #tpu.memory_space<vmem>>, vector<1x32x32xbf16>
    %565 = vector.shape_cast %564 : vector<1x32x32xbf16> to vector<32x32xbf16>
    %cst_405 = arith.constant dense<0.000000e+00> : vector<4x32xf32>
    %566 = tpu.matmul %559, %565, %cst_405 {dimension_numbers = #tpu.dot_dimension_numbers<[1], [0], [0], [1], [0, 0, 1, 1], [], []>} : vector<4x32xbf16>, vector<32x32xbf16>, vector<4x32xf32> -> vector<4x32xf32>
    %567 = arith.addf %550, %566 : vector<4x32xf32>
    %c2_406 = arith.constant 2 : index
    %c0_407 = arith.constant 0 : index
    %c0_408 = arith.constant 0 : index
    %568 = vector.load %arg6[%c2_406, %c0_407, %c0_408] : memref<4x32x32xbf16, #tpu.memory_space<vmem>>, vector<1x32x32xbf16>
    %569 = vector.shape_cast %568 : vector<1x32x32xbf16> to vector<32x32xbf16>
    %cst_409 = arith.constant dense<0.000000e+00> : vector<4x32xf32>
    %570 = tpu.matmul %559, %569, %cst_409 {dimension_numbers = #tpu.dot_dimension_numbers<[1], [0], [0], [1], [0, 0, 1, 1], [], []>} : vector<4x32xbf16>, vector<32x32xbf16>, vector<4x32xf32> -> vector<4x32xf32>
    %571 = arith.addf %554, %570 : vector<4x32xf32>
    %c3_410 = arith.constant 3 : index
    %c0_411 = arith.constant 0 : index
    %c0_412 = arith.constant 0 : index
    %572 = vector.load %arg6[%c3_410, %c0_411, %c0_412] : memref<4x32x32xbf16, #tpu.memory_space<vmem>>, vector<1x32x32xbf16>
    %573 = vector.shape_cast %572 : vector<1x32x32xbf16> to vector<32x32xbf16>
    %cst_413 = arith.constant dense<0.000000e+00> : vector<4x32xf32>
    %574 = tpu.matmul %559, %573, %cst_413 {dimension_numbers = #tpu.dot_dimension_numbers<[1], [0], [0], [1], [0, 0, 1, 1], [], []>} : vector<4x32xbf16>, vector<32x32xbf16>, vector<4x32xf32> -> vector<4x32xf32>
    %575 = arith.addf %558, %574 : vector<4x32xf32>
    %cst_414 = arith.constant 5.000000e-01 : f32
    %576 = vector.broadcast %cst_414 : f32 to vector<4x32xf32>
    %577 = arith.mulf %576, %563 : vector<4x32xf32>
    %578 = math.tanh %577 : vector<4x32xf32>
    %cst_415 = arith.constant 5.000000e-01 : f32
    %579 = vector.broadcast %cst_415 : f32 to vector<4x32xf32>
    %580 = arith.mulf %579, %578 : vector<4x32xf32>
    %cst_416 = arith.constant 5.000000e-01 : f32
    %581 = vector.broadcast %cst_416 : f32 to vector<4x32xf32>
    %582 = arith.addf %580, %581 : vector<4x32xf32>
    %cst_417 = arith.constant 5.000000e-01 : f32
    %583 = vector.broadcast %cst_417 : f32 to vector<4x32xf32>
    %584 = arith.mulf %583, %567 : vector<4x32xf32>
    %585 = math.tanh %584 : vector<4x32xf32>
    %cst_418 = arith.constant 5.000000e-01 : f32
    %586 = vector.broadcast %cst_418 : f32 to vector<4x32xf32>
    %587 = arith.mulf %586, %585 : vector<4x32xf32>
    %cst_419 = arith.constant 5.000000e-01 : f32
    %588 = vector.broadcast %cst_419 : f32 to vector<4x32xf32>
    %589 = arith.addf %587, %588 : vector<4x32xf32>
    %590 = math.tanh %571 : vector<4x32xf32>
    %cst_420 = arith.constant 5.000000e-01 : f32
    %591 = vector.broadcast %cst_420 : f32 to vector<4x32xf32>
    %592 = arith.mulf %591, %575 : vector<4x32xf32>
    %593 = math.tanh %592 : vector<4x32xf32>
    %cst_421 = arith.constant 5.000000e-01 : f32
    %594 = vector.broadcast %cst_421 : f32 to vector<4x32xf32>
    %595 = arith.mulf %594, %593 : vector<4x32xf32>
    %cst_422 = arith.constant 5.000000e-01 : f32
    %596 = vector.broadcast %cst_422 : f32 to vector<4x32xf32>
    %597 = arith.addf %595, %596 : vector<4x32xf32>
    %598 = arith.mulf %589, %491 : vector<4x32xf32>
    %599 = arith.mulf %582, %590 : vector<4x32xf32>
    %600 = arith.addf %598, %599 : vector<4x32xf32>
    %601 = math.tanh %600 : vector<4x32xf32>
    %602 = arith.mulf %597, %601 : vector<4x32xf32>
    %c20 = arith.constant 20 : index
    %c0_423 = arith.constant 0 : index
    %603 = vector.load %arg13[%c20, %c0_423] : memref<32x32xf32, #tpu.memory_space<vmem>>, vector<4x32xf32>
    %c20_424 = arith.constant 20 : index
    %c0_425 = arith.constant 0 : index
    %604 = vector.load %arg14[%c20_424, %c0_425] : memref<32x32xf32, #tpu.memory_space<vmem>>, vector<4x32xf32>
    %c20_426 = arith.constant 20 : index
    %c0_427 = arith.constant 0 : index
    %605 = vector.load %arg15[%c20_426, %c0_427] : memref<32x32xf32, #tpu.memory_space<vmem>>, vector<4x32xf32>
    %c20_428 = arith.constant 20 : index
    %c0_429 = arith.constant 0 : index
    %606 = vector.load %arg16[%c20_428, %c0_429] : memref<32x32xf32, #tpu.memory_space<vmem>>, vector<4x32xf32>
    %607 = arith.truncf %541 : vector<4x32xf32> to vector<4x32xbf16>
    %c0_430 = arith.constant 0 : index
    %c0_431 = arith.constant 0 : index
    %c0_432 = arith.constant 0 : index
    %608 = vector.load %arg3[%c0_430, %c0_431, %c0_432] : memref<4x32x32xbf16, #tpu.memory_space<vmem>>, vector<1x32x32xbf16>
    %609 = vector.shape_cast %608 : vector<1x32x32xbf16> to vector<32x32xbf16>
    %cst_433 = arith.constant dense<0.000000e+00> : vector<4x32xf32>
    %610 = tpu.matmul %607, %609, %cst_433 {dimension_numbers = #tpu.dot_dimension_numbers<[1], [0], [0], [1], [0, 0, 1, 1], [], []>} : vector<4x32xbf16>, vector<32x32xbf16>, vector<4x32xf32> -> vector<4x32xf32>
    %611 = arith.addf %603, %610 : vector<4x32xf32>
    %c1_434 = arith.constant 1 : index
    %c0_435 = arith.constant 0 : index
    %c0_436 = arith.constant 0 : index
    %612 = vector.load %arg3[%c1_434, %c0_435, %c0_436] : memref<4x32x32xbf16, #tpu.memory_space<vmem>>, vector<1x32x32xbf16>
    %613 = vector.shape_cast %612 : vector<1x32x32xbf16> to vector<32x32xbf16>
    %cst_437 = arith.constant dense<0.000000e+00> : vector<4x32xf32>
    %614 = tpu.matmul %607, %613, %cst_437 {dimension_numbers = #tpu.dot_dimension_numbers<[1], [0], [0], [1], [0, 0, 1, 1], [], []>} : vector<4x32xbf16>, vector<32x32xbf16>, vector<4x32xf32> -> vector<4x32xf32>
    %615 = arith.addf %604, %614 : vector<4x32xf32>
    %c2_438 = arith.constant 2 : index
    %c0_439 = arith.constant 0 : index
    %c0_440 = arith.constant 0 : index
    %616 = vector.load %arg3[%c2_438, %c0_439, %c0_440] : memref<4x32x32xbf16, #tpu.memory_space<vmem>>, vector<1x32x32xbf16>
    %617 = vector.shape_cast %616 : vector<1x32x32xbf16> to vector<32x32xbf16>
    %cst_441 = arith.constant dense<0.000000e+00> : vector<4x32xf32>
    %618 = tpu.matmul %607, %617, %cst_441 {dimension_numbers = #tpu.dot_dimension_numbers<[1], [0], [0], [1], [0, 0, 1, 1], [], []>} : vector<4x32xbf16>, vector<32x32xbf16>, vector<4x32xf32> -> vector<4x32xf32>
    %619 = arith.addf %605, %618 : vector<4x32xf32>
    %c3_442 = arith.constant 3 : index
    %c0_443 = arith.constant 0 : index
    %c0_444 = arith.constant 0 : index
    %620 = vector.load %arg3[%c3_442, %c0_443, %c0_444] : memref<4x32x32xbf16, #tpu.memory_space<vmem>>, vector<1x32x32xbf16>
    %621 = vector.shape_cast %620 : vector<1x32x32xbf16> to vector<32x32xbf16>
    %cst_445 = arith.constant dense<0.000000e+00> : vector<4x32xf32>
    %622 = tpu.matmul %607, %621, %cst_445 {dimension_numbers = #tpu.dot_dimension_numbers<[1], [0], [0], [1], [0, 0, 1, 1], [], []>} : vector<4x32xbf16>, vector<32x32xbf16>, vector<4x32xf32> -> vector<4x32xf32>
    %623 = arith.addf %606, %622 : vector<4x32xf32>
    %cst_446 = arith.constant 5.000000e-01 : f32
    %624 = vector.broadcast %cst_446 : f32 to vector<4x32xf32>
    %625 = arith.mulf %624, %611 : vector<4x32xf32>
    %626 = math.tanh %625 : vector<4x32xf32>
    %cst_447 = arith.constant 5.000000e-01 : f32
    %627 = vector.broadcast %cst_447 : f32 to vector<4x32xf32>
    %628 = arith.mulf %627, %626 : vector<4x32xf32>
    %cst_448 = arith.constant 5.000000e-01 : f32
    %629 = vector.broadcast %cst_448 : f32 to vector<4x32xf32>
    %630 = arith.addf %628, %629 : vector<4x32xf32>
    %cst_449 = arith.constant 5.000000e-01 : f32
    %631 = vector.broadcast %cst_449 : f32 to vector<4x32xf32>
    %632 = arith.mulf %631, %615 : vector<4x32xf32>
    %633 = math.tanh %632 : vector<4x32xf32>
    %cst_450 = arith.constant 5.000000e-01 : f32
    %634 = vector.broadcast %cst_450 : f32 to vector<4x32xf32>
    %635 = arith.mulf %634, %633 : vector<4x32xf32>
    %cst_451 = arith.constant 5.000000e-01 : f32
    %636 = vector.broadcast %cst_451 : f32 to vector<4x32xf32>
    %637 = arith.addf %635, %636 : vector<4x32xf32>
    %638 = math.tanh %619 : vector<4x32xf32>
    %cst_452 = arith.constant 5.000000e-01 : f32
    %639 = vector.broadcast %cst_452 : f32 to vector<4x32xf32>
    %640 = arith.mulf %639, %623 : vector<4x32xf32>
    %641 = math.tanh %640 : vector<4x32xf32>
    %cst_453 = arith.constant 5.000000e-01 : f32
    %642 = vector.broadcast %cst_453 : f32 to vector<4x32xf32>
    %643 = arith.mulf %642, %641 : vector<4x32xf32>
    %cst_454 = arith.constant 5.000000e-01 : f32
    %644 = vector.broadcast %cst_454 : f32 to vector<4x32xf32>
    %645 = arith.addf %643, %644 : vector<4x32xf32>
    %646 = arith.mulf %637, %539 : vector<4x32xf32>
    %647 = arith.mulf %630, %638 : vector<4x32xf32>
    %648 = arith.addf %646, %647 : vector<4x32xf32>
    %649 = math.tanh %648 : vector<4x32xf32>
    %650 = arith.mulf %645, %649 : vector<4x32xf32>
    %651 = arith.truncf %650 : vector<4x32xf32> to vector<4x32xbf16>
    %c0_455 = arith.constant 0 : index
    %c0_456 = arith.constant 0 : index
    %c0_457 = arith.constant 0 : index
    %652 = vector.load %arg5[%c0_455, %c0_456, %c0_457] : memref<4x32x32xbf16, #tpu.memory_space<vmem>>, vector<1x32x32xbf16>
    %653 = vector.shape_cast %652 : vector<1x32x32xbf16> to vector<32x32xbf16>
    %cst_458 = arith.constant dense<0.000000e+00> : vector<4x32xf32>
    %654 = tpu.matmul %651, %653, %cst_458 {dimension_numbers = #tpu.dot_dimension_numbers<[1], [0], [0], [1], [0, 0, 1, 1], [], []>} : vector<4x32xbf16>, vector<32x32xbf16>, vector<4x32xf32> -> vector<4x32xf32>
    %655 = arith.addf %654, %37 : vector<4x32xf32>
    %c1_459 = arith.constant 1 : index
    %c0_460 = arith.constant 0 : index
    %c0_461 = arith.constant 0 : index
    %656 = vector.load %arg5[%c1_459, %c0_460, %c0_461] : memref<4x32x32xbf16, #tpu.memory_space<vmem>>, vector<1x32x32xbf16>
    %657 = vector.shape_cast %656 : vector<1x32x32xbf16> to vector<32x32xbf16>
    %cst_462 = arith.constant dense<0.000000e+00> : vector<4x32xf32>
    %658 = tpu.matmul %651, %657, %cst_462 {dimension_numbers = #tpu.dot_dimension_numbers<[1], [0], [0], [1], [0, 0, 1, 1], [], []>} : vector<4x32xbf16>, vector<32x32xbf16>, vector<4x32xf32> -> vector<4x32xf32>
    %659 = arith.addf %658, %41 : vector<4x32xf32>
    %c2_463 = arith.constant 2 : index
    %c0_464 = arith.constant 0 : index
    %c0_465 = arith.constant 0 : index
    %660 = vector.load %arg5[%c2_463, %c0_464, %c0_465] : memref<4x32x32xbf16, #tpu.memory_space<vmem>>, vector<1x32x32xbf16>
    %661 = vector.shape_cast %660 : vector<1x32x32xbf16> to vector<32x32xbf16>
    %cst_466 = arith.constant dense<0.000000e+00> : vector<4x32xf32>
    %662 = tpu.matmul %651, %661, %cst_466 {dimension_numbers = #tpu.dot_dimension_numbers<[1], [0], [0], [1], [0, 0, 1, 1], [], []>} : vector<4x32xbf16>, vector<32x32xbf16>, vector<4x32xf32> -> vector<4x32xf32>
    %663 = arith.addf %662, %45 : vector<4x32xf32>
    %c3_467 = arith.constant 3 : index
    %c0_468 = arith.constant 0 : index
    %c0_469 = arith.constant 0 : index
    %664 = vector.load %arg5[%c3_467, %c0_468, %c0_469] : memref<4x32x32xbf16, #tpu.memory_space<vmem>>, vector<1x32x32xbf16>
    %665 = vector.shape_cast %664 : vector<1x32x32xbf16> to vector<32x32xbf16>
    %cst_470 = arith.constant dense<0.000000e+00> : vector<4x32xf32>
    %666 = tpu.matmul %651, %665, %cst_470 {dimension_numbers = #tpu.dot_dimension_numbers<[1], [0], [0], [1], [0, 0, 1, 1], [], []>} : vector<4x32xbf16>, vector<32x32xbf16>, vector<4x32xf32> -> vector<4x32xf32>
    %667 = arith.addf %666, %49 : vector<4x32xf32>
    %668 = arith.truncf %602 : vector<4x32xf32> to vector<4x32xbf16>
    %c0_471 = arith.constant 0 : index
    %c0_472 = arith.constant 0 : index
    %c0_473 = arith.constant 0 : index
    %669 = vector.load %arg6[%c0_471, %c0_472, %c0_473] : memref<4x32x32xbf16, #tpu.memory_space<vmem>>, vector<1x32x32xbf16>
    %670 = vector.shape_cast %669 : vector<1x32x32xbf16> to vector<32x32xbf16>
    %cst_474 = arith.constant dense<0.000000e+00> : vector<4x32xf32>
    %671 = tpu.matmul %668, %670, %cst_474 {dimension_numbers = #tpu.dot_dimension_numbers<[1], [0], [0], [1], [0, 0, 1, 1], [], []>} : vector<4x32xbf16>, vector<32x32xbf16>, vector<4x32xf32> -> vector<4x32xf32>
    %672 = arith.addf %655, %671 : vector<4x32xf32>
    %c1_475 = arith.constant 1 : index
    %c0_476 = arith.constant 0 : index
    %c0_477 = arith.constant 0 : index
    %673 = vector.load %arg6[%c1_475, %c0_476, %c0_477] : memref<4x32x32xbf16, #tpu.memory_space<vmem>>, vector<1x32x32xbf16>
    %674 = vector.shape_cast %673 : vector<1x32x32xbf16> to vector<32x32xbf16>
    %cst_478 = arith.constant dense<0.000000e+00> : vector<4x32xf32>
    %675 = tpu.matmul %668, %674, %cst_478 {dimension_numbers = #tpu.dot_dimension_numbers<[1], [0], [0], [1], [0, 0, 1, 1], [], []>} : vector<4x32xbf16>, vector<32x32xbf16>, vector<4x32xf32> -> vector<4x32xf32>
    %676 = arith.addf %659, %675 : vector<4x32xf32>
    %c2_479 = arith.constant 2 : index
    %c0_480 = arith.constant 0 : index
    %c0_481 = arith.constant 0 : index
    %677 = vector.load %arg6[%c2_479, %c0_480, %c0_481] : memref<4x32x32xbf16, #tpu.memory_space<vmem>>, vector<1x32x32xbf16>
    %678 = vector.shape_cast %677 : vector<1x32x32xbf16> to vector<32x32xbf16>
    %cst_482 = arith.constant dense<0.000000e+00> : vector<4x32xf32>
    %679 = tpu.matmul %668, %678, %cst_482 {dimension_numbers = #tpu.dot_dimension_numbers<[1], [0], [0], [1], [0, 0, 1, 1], [], []>} : vector<4x32xbf16>, vector<32x32xbf16>, vector<4x32xf32> -> vector<4x32xf32>
    %680 = arith.addf %663, %679 : vector<4x32xf32>
    %c3_483 = arith.constant 3 : index
    %c0_484 = arith.constant 0 : index
    %c0_485 = arith.constant 0 : index
    %681 = vector.load %arg6[%c3_483, %c0_484, %c0_485] : memref<4x32x32xbf16, #tpu.memory_space<vmem>>, vector<1x32x32xbf16>
    %682 = vector.shape_cast %681 : vector<1x32x32xbf16> to vector<32x32xbf16>
    %cst_486 = arith.constant dense<0.000000e+00> : vector<4x32xf32>
    %683 = tpu.matmul %668, %682, %cst_486 {dimension_numbers = #tpu.dot_dimension_numbers<[1], [0], [0], [1], [0, 0, 1, 1], [], []>} : vector<4x32xbf16>, vector<32x32xbf16>, vector<4x32xf32> -> vector<4x32xf32>
    %684 = arith.addf %667, %683 : vector<4x32xf32>
    %cst_487 = arith.constant 5.000000e-01 : f32
    %685 = vector.broadcast %cst_487 : f32 to vector<4x32xf32>
    %686 = arith.mulf %685, %672 : vector<4x32xf32>
    %687 = math.tanh %686 : vector<4x32xf32>
    %cst_488 = arith.constant 5.000000e-01 : f32
    %688 = vector.broadcast %cst_488 : f32 to vector<4x32xf32>
    %689 = arith.mulf %688, %687 : vector<4x32xf32>
    %cst_489 = arith.constant 5.000000e-01 : f32
    %690 = vector.broadcast %cst_489 : f32 to vector<4x32xf32>
    %691 = arith.addf %689, %690 : vector<4x32xf32>
    %cst_490 = arith.constant 5.000000e-01 : f32
    %692 = vector.broadcast %cst_490 : f32 to vector<4x32xf32>
    %693 = arith.mulf %692, %676 : vector<4x32xf32>
    %694 = math.tanh %693 : vector<4x32xf32>
    %cst_491 = arith.constant 5.000000e-01 : f32
    %695 = vector.broadcast %cst_491 : f32 to vector<4x32xf32>
    %696 = arith.mulf %695, %694 : vector<4x32xf32>
    %cst_492 = arith.constant 5.000000e-01 : f32
    %697 = vector.broadcast %cst_492 : f32 to vector<4x32xf32>
    %698 = arith.addf %696, %697 : vector<4x32xf32>
    %699 = math.tanh %680 : vector<4x32xf32>
    %cst_493 = arith.constant 5.000000e-01 : f32
    %700 = vector.broadcast %cst_493 : f32 to vector<4x32xf32>
    %701 = arith.mulf %700, %684 : vector<4x32xf32>
    %702 = math.tanh %701 : vector<4x32xf32>
    %cst_494 = arith.constant 5.000000e-01 : f32
    %703 = vector.broadcast %cst_494 : f32 to vector<4x32xf32>
    %704 = arith.mulf %703, %702 : vector<4x32xf32>
    %cst_495 = arith.constant 5.000000e-01 : f32
    %705 = vector.broadcast %cst_495 : f32 to vector<4x32xf32>
    %706 = arith.addf %704, %705 : vector<4x32xf32>
    %707 = arith.mulf %698, %600 : vector<4x32xf32>
    %708 = arith.mulf %691, %699 : vector<4x32xf32>
    %709 = arith.addf %707, %708 : vector<4x32xf32>
    %710 = math.tanh %709 : vector<4x32xf32>
    %711 = arith.mulf %706, %710 : vector<4x32xf32>
    %c24 = arith.constant 24 : index
    %c0_496 = arith.constant 0 : index
    %712 = vector.load %arg13[%c24, %c0_496] : memref<32x32xf32, #tpu.memory_space<vmem>>, vector<4x32xf32>
    %c24_497 = arith.constant 24 : index
    %c0_498 = arith.constant 0 : index
    %713 = vector.load %arg14[%c24_497, %c0_498] : memref<32x32xf32, #tpu.memory_space<vmem>>, vector<4x32xf32>
    %c24_499 = arith.constant 24 : index
    %c0_500 = arith.constant 0 : index
    %714 = vector.load %arg15[%c24_499, %c0_500] : memref<32x32xf32, #tpu.memory_space<vmem>>, vector<4x32xf32>
    %c24_501 = arith.constant 24 : index
    %c0_502 = arith.constant 0 : index
    %715 = vector.load %arg16[%c24_501, %c0_502] : memref<32x32xf32, #tpu.memory_space<vmem>>, vector<4x32xf32>
    %716 = arith.truncf %650 : vector<4x32xf32> to vector<4x32xbf16>
    %c0_503 = arith.constant 0 : index
    %c0_504 = arith.constant 0 : index
    %c0_505 = arith.constant 0 : index
    %717 = vector.load %arg3[%c0_503, %c0_504, %c0_505] : memref<4x32x32xbf16, #tpu.memory_space<vmem>>, vector<1x32x32xbf16>
    %718 = vector.shape_cast %717 : vector<1x32x32xbf16> to vector<32x32xbf16>
    %cst_506 = arith.constant dense<0.000000e+00> : vector<4x32xf32>
    %719 = tpu.matmul %716, %718, %cst_506 {dimension_numbers = #tpu.dot_dimension_numbers<[1], [0], [0], [1], [0, 0, 1, 1], [], []>} : vector<4x32xbf16>, vector<32x32xbf16>, vector<4x32xf32> -> vector<4x32xf32>
    %720 = arith.addf %712, %719 : vector<4x32xf32>
    %c1_507 = arith.constant 1 : index
    %c0_508 = arith.constant 0 : index
    %c0_509 = arith.constant 0 : index
    %721 = vector.load %arg3[%c1_507, %c0_508, %c0_509] : memref<4x32x32xbf16, #tpu.memory_space<vmem>>, vector<1x32x32xbf16>
    %722 = vector.shape_cast %721 : vector<1x32x32xbf16> to vector<32x32xbf16>
    %cst_510 = arith.constant dense<0.000000e+00> : vector<4x32xf32>
    %723 = tpu.matmul %716, %722, %cst_510 {dimension_numbers = #tpu.dot_dimension_numbers<[1], [0], [0], [1], [0, 0, 1, 1], [], []>} : vector<4x32xbf16>, vector<32x32xbf16>, vector<4x32xf32> -> vector<4x32xf32>
    %724 = arith.addf %713, %723 : vector<4x32xf32>
    %c2_511 = arith.constant 2 : index
    %c0_512 = arith.constant 0 : index
    %c0_513 = arith.constant 0 : index
    %725 = vector.load %arg3[%c2_511, %c0_512, %c0_513] : memref<4x32x32xbf16, #tpu.memory_space<vmem>>, vector<1x32x32xbf16>
    %726 = vector.shape_cast %725 : vector<1x32x32xbf16> to vector<32x32xbf16>
    %cst_514 = arith.constant dense<0.000000e+00> : vector<4x32xf32>
    %727 = tpu.matmul %716, %726, %cst_514 {dimension_numbers = #tpu.dot_dimension_numbers<[1], [0], [0], [1], [0, 0, 1, 1], [], []>} : vector<4x32xbf16>, vector<32x32xbf16>, vector<4x32xf32> -> vector<4x32xf32>
    %728 = arith.addf %714, %727 : vector<4x32xf32>
    %c3_515 = arith.constant 3 : index
    %c0_516 = arith.constant 0 : index
    %c0_517 = arith.constant 0 : index
    %729 = vector.load %arg3[%c3_515, %c0_516, %c0_517] : memref<4x32x32xbf16, #tpu.memory_space<vmem>>, vector<1x32x32xbf16>
    %730 = vector.shape_cast %729 : vector<1x32x32xbf16> to vector<32x32xbf16>
    %cst_518 = arith.constant dense<0.000000e+00> : vector<4x32xf32>
    %731 = tpu.matmul %716, %730, %cst_518 {dimension_numbers = #tpu.dot_dimension_numbers<[1], [0], [0], [1], [0, 0, 1, 1], [], []>} : vector<4x32xbf16>, vector<32x32xbf16>, vector<4x32xf32> -> vector<4x32xf32>
    %732 = arith.addf %715, %731 : vector<4x32xf32>
    %cst_519 = arith.constant 5.000000e-01 : f32
    %733 = vector.broadcast %cst_519 : f32 to vector<4x32xf32>
    %734 = arith.mulf %733, %720 : vector<4x32xf32>
    %735 = math.tanh %734 : vector<4x32xf32>
    %cst_520 = arith.constant 5.000000e-01 : f32
    %736 = vector.broadcast %cst_520 : f32 to vector<4x32xf32>
    %737 = arith.mulf %736, %735 : vector<4x32xf32>
    %cst_521 = arith.constant 5.000000e-01 : f32
    %738 = vector.broadcast %cst_521 : f32 to vector<4x32xf32>
    %739 = arith.addf %737, %738 : vector<4x32xf32>
    %cst_522 = arith.constant 5.000000e-01 : f32
    %740 = vector.broadcast %cst_522 : f32 to vector<4x32xf32>
    %741 = arith.mulf %740, %724 : vector<4x32xf32>
    %742 = math.tanh %741 : vector<4x32xf32>
    %cst_523 = arith.constant 5.000000e-01 : f32
    %743 = vector.broadcast %cst_523 : f32 to vector<4x32xf32>
    %744 = arith.mulf %743, %742 : vector<4x32xf32>
    %cst_524 = arith.constant 5.000000e-01 : f32
    %745 = vector.broadcast %cst_524 : f32 to vector<4x32xf32>
    %746 = arith.addf %744, %745 : vector<4x32xf32>
    %747 = math.tanh %728 : vector<4x32xf32>
    %cst_525 = arith.constant 5.000000e-01 : f32
    %748 = vector.broadcast %cst_525 : f32 to vector<4x32xf32>
    %749 = arith.mulf %748, %732 : vector<4x32xf32>
    %750 = math.tanh %749 : vector<4x32xf32>
    %cst_526 = arith.constant 5.000000e-01 : f32
    %751 = vector.broadcast %cst_526 : f32 to vector<4x32xf32>
    %752 = arith.mulf %751, %750 : vector<4x32xf32>
    %cst_527 = arith.constant 5.000000e-01 : f32
    %753 = vector.broadcast %cst_527 : f32 to vector<4x32xf32>
    %754 = arith.addf %752, %753 : vector<4x32xf32>
    %755 = arith.mulf %746, %648 : vector<4x32xf32>
    %756 = arith.mulf %739, %747 : vector<4x32xf32>
    %757 = arith.addf %755, %756 : vector<4x32xf32>
    %758 = math.tanh %757 : vector<4x32xf32>
    %759 = arith.mulf %754, %758 : vector<4x32xf32>
    %760 = arith.truncf %759 : vector<4x32xf32> to vector<4x32xbf16>
    %c0_528 = arith.constant 0 : index
    %c0_529 = arith.constant 0 : index
    %c0_530 = arith.constant 0 : index
    %761 = vector.load %arg5[%c0_528, %c0_529, %c0_530] : memref<4x32x32xbf16, #tpu.memory_space<vmem>>, vector<1x32x32xbf16>
    %762 = vector.shape_cast %761 : vector<1x32x32xbf16> to vector<32x32xbf16>
    %cst_531 = arith.constant dense<0.000000e+00> : vector<4x32xf32>
    %763 = tpu.matmul %760, %762, %cst_531 {dimension_numbers = #tpu.dot_dimension_numbers<[1], [0], [0], [1], [0, 0, 1, 1], [], []>} : vector<4x32xbf16>, vector<32x32xbf16>, vector<4x32xf32> -> vector<4x32xf32>
    %764 = arith.addf %763, %37 : vector<4x32xf32>
    %c1_532 = arith.constant 1 : index
    %c0_533 = arith.constant 0 : index
    %c0_534 = arith.constant 0 : index
    %765 = vector.load %arg5[%c1_532, %c0_533, %c0_534] : memref<4x32x32xbf16, #tpu.memory_space<vmem>>, vector<1x32x32xbf16>
    %766 = vector.shape_cast %765 : vector<1x32x32xbf16> to vector<32x32xbf16>
    %cst_535 = arith.constant dense<0.000000e+00> : vector<4x32xf32>
    %767 = tpu.matmul %760, %766, %cst_535 {dimension_numbers = #tpu.dot_dimension_numbers<[1], [0], [0], [1], [0, 0, 1, 1], [], []>} : vector<4x32xbf16>, vector<32x32xbf16>, vector<4x32xf32> -> vector<4x32xf32>
    %768 = arith.addf %767, %41 : vector<4x32xf32>
    %c2_536 = arith.constant 2 : index
    %c0_537 = arith.constant 0 : index
    %c0_538 = arith.constant 0 : index
    %769 = vector.load %arg5[%c2_536, %c0_537, %c0_538] : memref<4x32x32xbf16, #tpu.memory_space<vmem>>, vector<1x32x32xbf16>
    %770 = vector.shape_cast %769 : vector<1x32x32xbf16> to vector<32x32xbf16>
    %cst_539 = arith.constant dense<0.000000e+00> : vector<4x32xf32>
    %771 = tpu.matmul %760, %770, %cst_539 {dimension_numbers = #tpu.dot_dimension_numbers<[1], [0], [0], [1], [0, 0, 1, 1], [], []>} : vector<4x32xbf16>, vector<32x32xbf16>, vector<4x32xf32> -> vector<4x32xf32>
    %772 = arith.addf %771, %45 : vector<4x32xf32>
    %c3_540 = arith.constant 3 : index
    %c0_541 = arith.constant 0 : index
    %c0_542 = arith.constant 0 : index
    %773 = vector.load %arg5[%c3_540, %c0_541, %c0_542] : memref<4x32x32xbf16, #tpu.memory_space<vmem>>, vector<1x32x32xbf16>
    %774 = vector.shape_cast %773 : vector<1x32x32xbf16> to vector<32x32xbf16>
    %cst_543 = arith.constant dense<0.000000e+00> : vector<4x32xf32>
    %775 = tpu.matmul %760, %774, %cst_543 {dimension_numbers = #tpu.dot_dimension_numbers<[1], [0], [0], [1], [0, 0, 1, 1], [], []>} : vector<4x32xbf16>, vector<32x32xbf16>, vector<4x32xf32> -> vector<4x32xf32>
    %776 = arith.addf %775, %49 : vector<4x32xf32>
    %777 = arith.truncf %711 : vector<4x32xf32> to vector<4x32xbf16>
    %c0_544 = arith.constant 0 : index
    %c0_545 = arith.constant 0 : index
    %c0_546 = arith.constant 0 : index
    %778 = vector.load %arg6[%c0_544, %c0_545, %c0_546] : memref<4x32x32xbf16, #tpu.memory_space<vmem>>, vector<1x32x32xbf16>
    %779 = vector.shape_cast %778 : vector<1x32x32xbf16> to vector<32x32xbf16>
    %cst_547 = arith.constant dense<0.000000e+00> : vector<4x32xf32>
    %780 = tpu.matmul %777, %779, %cst_547 {dimension_numbers = #tpu.dot_dimension_numbers<[1], [0], [0], [1], [0, 0, 1, 1], [], []>} : vector<4x32xbf16>, vector<32x32xbf16>, vector<4x32xf32> -> vector<4x32xf32>
    %781 = arith.addf %764, %780 : vector<4x32xf32>
    %c1_548 = arith.constant 1 : index
    %c0_549 = arith.constant 0 : index
    %c0_550 = arith.constant 0 : index
    %782 = vector.load %arg6[%c1_548, %c0_549, %c0_550] : memref<4x32x32xbf16, #tpu.memory_space<vmem>>, vector<1x32x32xbf16>
    %783 = vector.shape_cast %782 : vector<1x32x32xbf16> to vector<32x32xbf16>
    %cst_551 = arith.constant dense<0.000000e+00> : vector<4x32xf32>
    %784 = tpu.matmul %777, %783, %cst_551 {dimension_numbers = #tpu.dot_dimension_numbers<[1], [0], [0], [1], [0, 0, 1, 1], [], []>} : vector<4x32xbf16>, vector<32x32xbf16>, vector<4x32xf32> -> vector<4x32xf32>
    %785 = arith.addf %768, %784 : vector<4x32xf32>
    %c2_552 = arith.constant 2 : index
    %c0_553 = arith.constant 0 : index
    %c0_554 = arith.constant 0 : index
    %786 = vector.load %arg6[%c2_552, %c0_553, %c0_554] : memref<4x32x32xbf16, #tpu.memory_space<vmem>>, vector<1x32x32xbf16>
    %787 = vector.shape_cast %786 : vector<1x32x32xbf16> to vector<32x32xbf16>
    %cst_555 = arith.constant dense<0.000000e+00> : vector<4x32xf32>
    %788 = tpu.matmul %777, %787, %cst_555 {dimension_numbers = #tpu.dot_dimension_numbers<[1], [0], [0], [1], [0, 0, 1, 1], [], []>} : vector<4x32xbf16>, vector<32x32xbf16>, vector<4x32xf32> -> vector<4x32xf32>
    %789 = arith.addf %772, %788 : vector<4x32xf32>
    %c3_556 = arith.constant 3 : index
    %c0_557 = arith.constant 0 : index
    %c0_558 = arith.constant 0 : index
    %790 = vector.load %arg6[%c3_556, %c0_557, %c0_558] : memref<4x32x32xbf16, #tpu.memory_space<vmem>>, vector<1x32x32xbf16>
    %791 = vector.shape_cast %790 : vector<1x32x32xbf16> to vector<32x32xbf16>
    %cst_559 = arith.constant dense<0.000000e+00> : vector<4x32xf32>
    %792 = tpu.matmul %777, %791, %cst_559 {dimension_numbers = #tpu.dot_dimension_numbers<[1], [0], [0], [1], [0, 0, 1, 1], [], []>} : vector<4x32xbf16>, vector<32x32xbf16>, vector<4x32xf32> -> vector<4x32xf32>
    %793 = arith.addf %776, %792 : vector<4x32xf32>
    %cst_560 = arith.constant 5.000000e-01 : f32
    %794 = vector.broadcast %cst_560 : f32 to vector<4x32xf32>
    %795 = arith.mulf %794, %781 : vector<4x32xf32>
    %796 = math.tanh %795 : vector<4x32xf32>
    %cst_561 = arith.constant 5.000000e-01 : f32
    %797 = vector.broadcast %cst_561 : f32 to vector<4x32xf32>
    %798 = arith.mulf %797, %796 : vector<4x32xf32>
    %cst_562 = arith.constant 5.000000e-01 : f32
    %799 = vector.broadcast %cst_562 : f32 to vector<4x32xf32>
    %800 = arith.addf %798, %799 : vector<4x32xf32>
    %cst_563 = arith.constant 5.000000e-01 : f32
    %801 = vector.broadcast %cst_563 : f32 to vector<4x32xf32>
    %802 = arith.mulf %801, %785 : vector<4x32xf32>
    %803 = math.tanh %802 : vector<4x32xf32>
    %cst_564 = arith.constant 5.000000e-01 : f32
    %804 = vector.broadcast %cst_564 : f32 to vector<4x32xf32>
    %805 = arith.mulf %804, %803 : vector<4x32xf32>
    %cst_565 = arith.constant 5.000000e-01 : f32
    %806 = vector.broadcast %cst_565 : f32 to vector<4x32xf32>
    %807 = arith.addf %805, %806 : vector<4x32xf32>
    %808 = math.tanh %789 : vector<4x32xf32>
    %cst_566 = arith.constant 5.000000e-01 : f32
    %809 = vector.broadcast %cst_566 : f32 to vector<4x32xf32>
    %810 = arith.mulf %809, %793 : vector<4x32xf32>
    %811 = math.tanh %810 : vector<4x32xf32>
    %cst_567 = arith.constant 5.000000e-01 : f32
    %812 = vector.broadcast %cst_567 : f32 to vector<4x32xf32>
    %813 = arith.mulf %812, %811 : vector<4x32xf32>
    %cst_568 = arith.constant 5.000000e-01 : f32
    %814 = vector.broadcast %cst_568 : f32 to vector<4x32xf32>
    %815 = arith.addf %813, %814 : vector<4x32xf32>
    %816 = arith.mulf %807, %709 : vector<4x32xf32>
    %817 = arith.mulf %800, %808 : vector<4x32xf32>
    %818 = arith.addf %816, %817 : vector<4x32xf32>
    %819 = math.tanh %818 : vector<4x32xf32>
    %820 = arith.mulf %815, %819 : vector<4x32xf32>
    %c28 = arith.constant 28 : index
    %c0_569 = arith.constant 0 : index
    %821 = vector.load %arg13[%c28, %c0_569] : memref<32x32xf32, #tpu.memory_space<vmem>>, vector<4x32xf32>
    %c28_570 = arith.constant 28 : index
    %c0_571 = arith.constant 0 : index
    %822 = vector.load %arg14[%c28_570, %c0_571] : memref<32x32xf32, #tpu.memory_space<vmem>>, vector<4x32xf32>
    %c28_572 = arith.constant 28 : index
    %c0_573 = arith.constant 0 : index
    %823 = vector.load %arg15[%c28_572, %c0_573] : memref<32x32xf32, #tpu.memory_space<vmem>>, vector<4x32xf32>
    %c28_574 = arith.constant 28 : index
    %c0_575 = arith.constant 0 : index
    %824 = vector.load %arg16[%c28_574, %c0_575] : memref<32x32xf32, #tpu.memory_space<vmem>>, vector<4x32xf32>
    %825 = arith.truncf %759 : vector<4x32xf32> to vector<4x32xbf16>
    %c0_576 = arith.constant 0 : index
    %c0_577 = arith.constant 0 : index
    %c0_578 = arith.constant 0 : index
    %826 = vector.load %arg3[%c0_576, %c0_577, %c0_578] : memref<4x32x32xbf16, #tpu.memory_space<vmem>>, vector<1x32x32xbf16>
    %827 = vector.shape_cast %826 : vector<1x32x32xbf16> to vector<32x32xbf16>
    %cst_579 = arith.constant dense<0.000000e+00> : vector<4x32xf32>
    %828 = tpu.matmul %825, %827, %cst_579 {dimension_numbers = #tpu.dot_dimension_numbers<[1], [0], [0], [1], [0, 0, 1, 1], [], []>} : vector<4x32xbf16>, vector<32x32xbf16>, vector<4x32xf32> -> vector<4x32xf32>
    %829 = arith.addf %821, %828 : vector<4x32xf32>
    %c1_580 = arith.constant 1 : index
    %c0_581 = arith.constant 0 : index
    %c0_582 = arith.constant 0 : index
    %830 = vector.load %arg3[%c1_580, %c0_581, %c0_582] : memref<4x32x32xbf16, #tpu.memory_space<vmem>>, vector<1x32x32xbf16>
    %831 = vector.shape_cast %830 : vector<1x32x32xbf16> to vector<32x32xbf16>
    %cst_583 = arith.constant dense<0.000000e+00> : vector<4x32xf32>
    %832 = tpu.matmul %825, %831, %cst_583 {dimension_numbers = #tpu.dot_dimension_numbers<[1], [0], [0], [1], [0, 0, 1, 1], [], []>} : vector<4x32xbf16>, vector<32x32xbf16>, vector<4x32xf32> -> vector<4x32xf32>
    %833 = arith.addf %822, %832 : vector<4x32xf32>
    %c2_584 = arith.constant 2 : index
    %c0_585 = arith.constant 0 : index
    %c0_586 = arith.constant 0 : index
    %834 = vector.load %arg3[%c2_584, %c0_585, %c0_586] : memref<4x32x32xbf16, #tpu.memory_space<vmem>>, vector<1x32x32xbf16>
    %835 = vector.shape_cast %834 : vector<1x32x32xbf16> to vector<32x32xbf16>
    %cst_587 = arith.constant dense<0.000000e+00> : vector<4x32xf32>
    %836 = tpu.matmul %825, %835, %cst_587 {dimension_numbers = #tpu.dot_dimension_numbers<[1], [0], [0], [1], [0, 0, 1, 1], [], []>} : vector<4x32xbf16>, vector<32x32xbf16>, vector<4x32xf32> -> vector<4x32xf32>
    %837 = arith.addf %823, %836 : vector<4x32xf32>
    %c3_588 = arith.constant 3 : index
    %c0_589 = arith.constant 0 : index
    %c0_590 = arith.constant 0 : index
    %838 = vector.load %arg3[%c3_588, %c0_589, %c0_590] : memref<4x32x32xbf16, #tpu.memory_space<vmem>>, vector<1x32x32xbf16>
    %839 = vector.shape_cast %838 : vector<1x32x32xbf16> to vector<32x32xbf16>
    %cst_591 = arith.constant dense<0.000000e+00> : vector<4x32xf32>
    %840 = tpu.matmul %825, %839, %cst_591 {dimension_numbers = #tpu.dot_dimension_numbers<[1], [0], [0], [1], [0, 0, 1, 1], [], []>} : vector<4x32xbf16>, vector<32x32xbf16>, vector<4x32xf32> -> vector<4x32xf32>
    %841 = arith.addf %824, %840 : vector<4x32xf32>
    %cst_592 = arith.constant 5.000000e-01 : f32
    %842 = vector.broadcast %cst_592 : f32 to vector<4x32xf32>
    %843 = arith.mulf %842, %829 : vector<4x32xf32>
    %844 = math.tanh %843 : vector<4x32xf32>
    %cst_593 = arith.constant 5.000000e-01 : f32
    %845 = vector.broadcast %cst_593 : f32 to vector<4x32xf32>
    %846 = arith.mulf %845, %844 : vector<4x32xf32>
    %cst_594 = arith.constant 5.000000e-01 : f32
    %847 = vector.broadcast %cst_594 : f32 to vector<4x32xf32>
    %848 = arith.addf %846, %847 : vector<4x32xf32>
    %cst_595 = arith.constant 5.000000e-01 : f32
    %849 = vector.broadcast %cst_595 : f32 to vector<4x32xf32>
    %850 = arith.mulf %849, %833 : vector<4x32xf32>
    %851 = math.tanh %850 : vector<4x32xf32>
    %cst_596 = arith.constant 5.000000e-01 : f32
    %852 = vector.broadcast %cst_596 : f32 to vector<4x32xf32>
    %853 = arith.mulf %852, %851 : vector<4x32xf32>
    %cst_597 = arith.constant 5.000000e-01 : f32
    %854 = vector.broadcast %cst_597 : f32 to vector<4x32xf32>
    %855 = arith.addf %853, %854 : vector<4x32xf32>
    %856 = math.tanh %837 : vector<4x32xf32>
    %cst_598 = arith.constant 5.000000e-01 : f32
    %857 = vector.broadcast %cst_598 : f32 to vector<4x32xf32>
    %858 = arith.mulf %857, %841 : vector<4x32xf32>
    %859 = math.tanh %858 : vector<4x32xf32>
    %cst_599 = arith.constant 5.000000e-01 : f32
    %860 = vector.broadcast %cst_599 : f32 to vector<4x32xf32>
    %861 = arith.mulf %860, %859 : vector<4x32xf32>
    %cst_600 = arith.constant 5.000000e-01 : f32
    %862 = vector.broadcast %cst_600 : f32 to vector<4x32xf32>
    %863 = arith.addf %861, %862 : vector<4x32xf32>
    %864 = arith.mulf %855, %757 : vector<4x32xf32>
    %865 = arith.mulf %848, %856 : vector<4x32xf32>
    %866 = arith.addf %864, %865 : vector<4x32xf32>
    %867 = math.tanh %866 : vector<4x32xf32>
    %868 = arith.mulf %863, %867 : vector<4x32xf32>
    %869 = arith.truncf %868 : vector<4x32xf32> to vector<4x32xbf16>
    %c0_601 = arith.constant 0 : index
    %c0_602 = arith.constant 0 : index
    %c0_603 = arith.constant 0 : index
    %870 = vector.load %arg5[%c0_601, %c0_602, %c0_603] : memref<4x32x32xbf16, #tpu.memory_space<vmem>>, vector<1x32x32xbf16>
    %871 = vector.shape_cast %870 : vector<1x32x32xbf16> to vector<32x32xbf16>
    %cst_604 = arith.constant dense<0.000000e+00> : vector<4x32xf32>
    %872 = tpu.matmul %869, %871, %cst_604 {dimension_numbers = #tpu.dot_dimension_numbers<[1], [0], [0], [1], [0, 0, 1, 1], [], []>} : vector<4x32xbf16>, vector<32x32xbf16>, vector<4x32xf32> -> vector<4x32xf32>
    %873 = arith.addf %872, %37 : vector<4x32xf32>
    %c1_605 = arith.constant 1 : index
    %c0_606 = arith.constant 0 : index
    %c0_607 = arith.constant 0 : index
    %874 = vector.load %arg5[%c1_605, %c0_606, %c0_607] : memref<4x32x32xbf16, #tpu.memory_space<vmem>>, vector<1x32x32xbf16>
    %875 = vector.shape_cast %874 : vector<1x32x32xbf16> to vector<32x32xbf16>
    %cst_608 = arith.constant dense<0.000000e+00> : vector<4x32xf32>
    %876 = tpu.matmul %869, %875, %cst_608 {dimension_numbers = #tpu.dot_dimension_numbers<[1], [0], [0], [1], [0, 0, 1, 1], [], []>} : vector<4x32xbf16>, vector<32x32xbf16>, vector<4x32xf32> -> vector<4x32xf32>
    %877 = arith.addf %876, %41 : vector<4x32xf32>
    %c2_609 = arith.constant 2 : index
    %c0_610 = arith.constant 0 : index
    %c0_611 = arith.constant 0 : index
    %878 = vector.load %arg5[%c2_609, %c0_610, %c0_611] : memref<4x32x32xbf16, #tpu.memory_space<vmem>>, vector<1x32x32xbf16>
    %879 = vector.shape_cast %878 : vector<1x32x32xbf16> to vector<32x32xbf16>
    %cst_612 = arith.constant dense<0.000000e+00> : vector<4x32xf32>
    %880 = tpu.matmul %869, %879, %cst_612 {dimension_numbers = #tpu.dot_dimension_numbers<[1], [0], [0], [1], [0, 0, 1, 1], [], []>} : vector<4x32xbf16>, vector<32x32xbf16>, vector<4x32xf32> -> vector<4x32xf32>
    %881 = arith.addf %880, %45 : vector<4x32xf32>
    %c3_613 = arith.constant 3 : index
    %c0_614 = arith.constant 0 : index
    %c0_615 = arith.constant 0 : index
    %882 = vector.load %arg5[%c3_613, %c0_614, %c0_615] : memref<4x32x32xbf16, #tpu.memory_space<vmem>>, vector<1x32x32xbf16>
    %883 = vector.shape_cast %882 : vector<1x32x32xbf16> to vector<32x32xbf16>
    %cst_616 = arith.constant dense<0.000000e+00> : vector<4x32xf32>
    %884 = tpu.matmul %869, %883, %cst_616 {dimension_numbers = #tpu.dot_dimension_numbers<[1], [0], [0], [1], [0, 0, 1, 1], [], []>} : vector<4x32xbf16>, vector<32x32xbf16>, vector<4x32xf32> -> vector<4x32xf32>
    %885 = arith.addf %884, %49 : vector<4x32xf32>
    %886 = arith.truncf %820 : vector<4x32xf32> to vector<4x32xbf16>
    %c0_617 = arith.constant 0 : index
    %c0_618 = arith.constant 0 : index
    %c0_619 = arith.constant 0 : index
    %887 = vector.load %arg6[%c0_617, %c0_618, %c0_619] : memref<4x32x32xbf16, #tpu.memory_space<vmem>>, vector<1x32x32xbf16>
    %888 = vector.shape_cast %887 : vector<1x32x32xbf16> to vector<32x32xbf16>
    %cst_620 = arith.constant dense<0.000000e+00> : vector<4x32xf32>
    %889 = tpu.matmul %886, %888, %cst_620 {dimension_numbers = #tpu.dot_dimension_numbers<[1], [0], [0], [1], [0, 0, 1, 1], [], []>} : vector<4x32xbf16>, vector<32x32xbf16>, vector<4x32xf32> -> vector<4x32xf32>
    %890 = arith.addf %873, %889 : vector<4x32xf32>
    %c1_621 = arith.constant 1 : index
    %c0_622 = arith.constant 0 : index
    %c0_623 = arith.constant 0 : index
    %891 = vector.load %arg6[%c1_621, %c0_622, %c0_623] : memref<4x32x32xbf16, #tpu.memory_space<vmem>>, vector<1x32x32xbf16>
    %892 = vector.shape_cast %891 : vector<1x32x32xbf16> to vector<32x32xbf16>
    %cst_624 = arith.constant dense<0.000000e+00> : vector<4x32xf32>
    %893 = tpu.matmul %886, %892, %cst_624 {dimension_numbers = #tpu.dot_dimension_numbers<[1], [0], [0], [1], [0, 0, 1, 1], [], []>} : vector<4x32xbf16>, vector<32x32xbf16>, vector<4x32xf32> -> vector<4x32xf32>
    %894 = arith.addf %877, %893 : vector<4x32xf32>
    %c2_625 = arith.constant 2 : index
    %c0_626 = arith.constant 0 : index
    %c0_627 = arith.constant 0 : index
    %895 = vector.load %arg6[%c2_625, %c0_626, %c0_627] : memref<4x32x32xbf16, #tpu.memory_space<vmem>>, vector<1x32x32xbf16>
    %896 = vector.shape_cast %895 : vector<1x32x32xbf16> to vector<32x32xbf16>
    %cst_628 = arith.constant dense<0.000000e+00> : vector<4x32xf32>
    %897 = tpu.matmul %886, %896, %cst_628 {dimension_numbers = #tpu.dot_dimension_numbers<[1], [0], [0], [1], [0, 0, 1, 1], [], []>} : vector<4x32xbf16>, vector<32x32xbf16>, vector<4x32xf32> -> vector<4x32xf32>
    %898 = arith.addf %881, %897 : vector<4x32xf32>
    %c3_629 = arith.constant 3 : index
    %c0_630 = arith.constant 0 : index
    %c0_631 = arith.constant 0 : index
    %899 = vector.load %arg6[%c3_629, %c0_630, %c0_631] : memref<4x32x32xbf16, #tpu.memory_space<vmem>>, vector<1x32x32xbf16>
    %900 = vector.shape_cast %899 : vector<1x32x32xbf16> to vector<32x32xbf16>
    %cst_632 = arith.constant dense<0.000000e+00> : vector<4x32xf32>
    %901 = tpu.matmul %886, %900, %cst_632 {dimension_numbers = #tpu.dot_dimension_numbers<[1], [0], [0], [1], [0, 0, 1, 1], [], []>} : vector<4x32xbf16>, vector<32x32xbf16>, vector<4x32xf32> -> vector<4x32xf32>
    %902 = arith.addf %885, %901 : vector<4x32xf32>
    %cst_633 = arith.constant 5.000000e-01 : f32
    %903 = vector.broadcast %cst_633 : f32 to vector<4x32xf32>
    %904 = arith.mulf %903, %890 : vector<4x32xf32>
    %905 = math.tanh %904 : vector<4x32xf32>
    %cst_634 = arith.constant 5.000000e-01 : f32
    %906 = vector.broadcast %cst_634 : f32 to vector<4x32xf32>
    %907 = arith.mulf %906, %905 : vector<4x32xf32>
    %cst_635 = arith.constant 5.000000e-01 : f32
    %908 = vector.broadcast %cst_635 : f32 to vector<4x32xf32>
    %909 = arith.addf %907, %908 : vector<4x32xf32>
    %cst_636 = arith.constant 5.000000e-01 : f32
    %910 = vector.broadcast %cst_636 : f32 to vector<4x32xf32>
    %911 = arith.mulf %910, %894 : vector<4x32xf32>
    %912 = math.tanh %911 : vector<4x32xf32>
    %cst_637 = arith.constant 5.000000e-01 : f32
    %913 = vector.broadcast %cst_637 : f32 to vector<4x32xf32>
    %914 = arith.mulf %913, %912 : vector<4x32xf32>
    %cst_638 = arith.constant 5.000000e-01 : f32
    %915 = vector.broadcast %cst_638 : f32 to vector<4x32xf32>
    %916 = arith.addf %914, %915 : vector<4x32xf32>
    %917 = math.tanh %898 : vector<4x32xf32>
    %cst_639 = arith.constant 5.000000e-01 : f32
    %918 = vector.broadcast %cst_639 : f32 to vector<4x32xf32>
    %919 = arith.mulf %918, %902 : vector<4x32xf32>
    %920 = math.tanh %919 : vector<4x32xf32>
    %cst_640 = arith.constant 5.000000e-01 : f32
    %921 = vector.broadcast %cst_640 : f32 to vector<4x32xf32>
    %922 = arith.mulf %921, %920 : vector<4x32xf32>
    %cst_641 = arith.constant 5.000000e-01 : f32
    %923 = vector.broadcast %cst_641 : f32 to vector<4x32xf32>
    %924 = arith.addf %922, %923 : vector<4x32xf32>
    %925 = arith.mulf %916, %818 : vector<4x32xf32>
    %926 = arith.mulf %909, %917 : vector<4x32xf32>
    %927 = arith.addf %925, %926 : vector<4x32xf32>
    %928 = math.tanh %927 : vector<4x32xf32>
    %929 = arith.mulf %924, %928 : vector<4x32xf32>
    %cst_642 = arith.constant 0.000000e+00 : f32
    %930 = vector.broadcast %cst_642 : f32 to vector<4x32xf32>
    %931 = arith.maximumf %929, %930 : vector<4x32xf32>
    %932 = arith.truncf %931 : vector<4x32xf32> to vector<4x32xbf16>
    %c0_643 = arith.constant 0 : index
    %c0_644 = arith.constant 0 : index
    %933 = vector.load %arg10[%c0_643, %c0_644] : memref<32x8xbf16, #tpu.memory_space<vmem>>, vector<32x8xbf16>
    %cst_645 = arith.constant dense<0.000000e+00> : vector<4x8xf32>
    %934 = tpu.matmul %932, %933, %cst_645 {dimension_numbers = #tpu.dot_dimension_numbers<[1], [0], [0], [1], [0, 0, 1, 1], [], []>} : vector<4x32xbf16>, vector<32x8xbf16>, vector<4x8xf32> -> vector<4x8xf32>
    %c0_646 = arith.constant 0 : index
    %c0_647 = arith.constant 0 : index
    %935 = vector.load %arg11[%c0_646, %c0_647] : memref<1x8xf32, #tpu.memory_space<vmem>>, vector<1x8xf32>
    %936 = vector.broadcast %935 : vector<1x8xf32> to vector<4x8xf32>
    %937 = arith.addf %934, %936 : vector<4x8xf32>
    %c0_648 = arith.constant 0 : index
    %c0_649 = arith.constant 0 : index
    %938 = vector.load %arg12[%c0_648, %c0_649] : memref<4x8xf32, #tpu.memory_space<vmem>>, vector<4x8xf32>
    tpu.vector_store %arg12[%c0_648, %c0_649], %937 {strides = array<i32>} : memref<4x8xf32, #tpu.memory_space<vmem>>, vector<4x8xf32>,
    return
  }
  func.func @transform_0(%arg0: i32) -> (i32, i32) {
    %c0_i32 = arith.constant 0 : i32
    %c0_i32_0 = arith.constant 0 : i32
    %c0_i32_1 = arith.constant 0 : i32
    return %c0_i32, %c0_i32_0 : i32, i32
  }
  func.func @transform_1(%arg0: i32) -> (i32, i32, i32) {
    %c0_i32 = arith.constant 0 : i32
    %c0_i32_0 = arith.constant 0 : i32
    %c0_i32_1 = arith.constant 0 : i32
    %c0_i32_2 = arith.constant 0 : i32
    return %c0_i32, %c0_i32_0, %c0_i32_1 : i32, i32, i32
  }
  func.func @transform_2(%arg0: i32) -> (i32, i32, i32) {
    %c0_i32 = arith.constant 0 : i32
    %c0_i32_0 = arith.constant 0 : i32
    %c0_i32_1 = arith.constant 0 : i32
    %c0_i32_2 = arith.constant 0 : i32
    return %c0_i32, %c0_i32_0, %c0_i32_1 : i32, i32, i32
  }
  func.func @transform_3(%arg0: i32) -> (i32, i32, i32) {
    %c0_i32 = arith.constant 0 : i32
    %c0_i32_0 = arith.constant 0 : i32
    %c0_i32_1 = arith.constant 0 : i32
    %c0_i32_2 = arith.constant 0 : i32
    return %c0_i32, %c0_i32_0, %c0_i32_1 : i32, i32, i32
  }
  func.func @transform_4(%arg0: i32) -> (i32, i32, i32) {
    %c0_i32 = arith.constant 0 : i32
    %c0_i32_0 = arith.constant 0 : i32
    %c0_i32_1 = arith.constant 0 : i32
    %c0_i32_2 = arith.constant 0 : i32
    return %c0_i32, %c0_i32_0, %c0_i32_1 : i32, i32, i32
  }
  func.func @transform_5(%arg0: i32) -> (i32, i32, i32) {
    %c0_i32 = arith.constant 0 : i32
    %c0_i32_0 = arith.constant 0 : i32
    %c0_i32_1 = arith.constant 0 : i32
    %c0_i32_2 = arith.constant 0 : i32
    return %c0_i32, %c0_i32_0, %c0_i32_1 : i32, i32, i32
  }
  func.func @transform_6(%arg0: i32) -> (i32, i32, i32) {
    %c0_i32 = arith.constant 0 : i32
    %c0_i32_0 = arith.constant 0 : i32
    %c0_i32_1 = arith.constant 0 : i32
    %c0_i32_2 = arith.constant 0 : i32
    return %c0_i32, %c0_i32_0, %c0_i32_1 : i32, i32, i32
  }
  func.func @transform_7(%arg0: i32) -> (i32, i32, i32) {
    %c0_i32 = arith.constant 0 : i32
    %c0_i32_0 = arith.constant 0 : i32
    %c0_i32_1 = arith.constant 0 : i32
    %c0_i32_2 = arith.constant 0 : i32
    return %c0_i32, %c0_i32_0, %c0_i32_1 : i32, i32, i32
  }
  func.func @transform_8(%arg0: i32) -> (i32, i32, i32) {
    %c0_i32 = arith.constant 0 : i32
    %c0_i32_0 = arith.constant 0 : i32
    %c0_i32_1 = arith.constant 0 : i32
    %c0_i32_2 = arith.constant 0 : i32
    return %c0_i32, %c0_i32_0, %c0_i32_1 : i32, i32, i32
  }
  func.func @transform_9(%arg0: i32) -> (i32, i32) {
    %c0_i32 = arith.constant 0 : i32
    %c0_i32_0 = arith.constant 0 : i32
    %c0_i32_1 = arith.constant 0 : i32
    return %c0_i32, %c0_i32_0 : i32, i32
  }
  func.func @transform_10(%arg0: i32) -> (i32, i32) {
    %c0_i32 = arith.constant 0 : i32
    %c0_i32_0 = arith.constant 0 : i32
    %c0_i32_1 = arith.constant 0 : i32
    return %c0_i32, %c0_i32_0 : i32, i32
  }
  func.func @transform_11(%arg0: i32) -> (i32, i32) {
    %c0_i32 = arith.constant 0 : i32
    %c0_i32_0 = arith.constant 0 : i32
    %c0_i32_1 = arith.constant 0 : i32
    return %c0_i32, %c0_i32_0 : i32, i32
  }
}

</mosaic_0001>

<llo_original>
// kernel: lstm_forward_pallas.1
$region0: #{lstm_forward_pallas.1}
  #allocation0 [shape = 'u32[]', space=smem, size = 0x4, offset = 0x4, fixed_abs, tag = 'smem constant byte address 0x4 - core index']
  #allocation1 [shape = 'u32[144,128]{1,0:T(1,128)}', space=vmem, size = 0x12000, scoped, tag = 'internal scratch']
  #allocation2 [shape = 'f32[32,32]{1,0:T(8,128)}', space=vmem, size = 0x4000, scoped, tag = 'scratch operand']
  #allocation3 [shape = 'f32[32,32]{1,0:T(8,128)}', space=vmem, size = 0x4000, scoped, tag = 'scratch operand']
  #allocation4 [shape = 'f32[32,32]{1,0:T(8,128)}', space=vmem, size = 0x4000, scoped, tag = 'scratch operand']
  #allocation5 [shape = 'f32[32,32]{1,0:T(8,128)}', space=vmem, size = 0x4000, scoped, tag = 'scratch operand']
  %s0 = inlined_call_operand.vmem [shape: f32[32,16], index: 0, kind: input, shape index: {}]
  %s1 = inlined_call_operand.vmem [shape: bf16[4,16,32], index: 1, kind: input, shape index: {}]
  %s2 = inlined_call_operand.vmem [shape: bf16[4,32,32], index: 2, kind: input, shape index: {}]
  %s3 = inlined_call_operand.hbm [shape: f32[4,1,32], index: 3, kind: input, shape index: {}]
  %s4 = inlined_call_operand.hbm [shape: bf16[4,32,32], index: 4, kind: input, shape index: {}]
  %s5 = inlined_call_operand.hbm [shape: bf16[4,32,32], index: 5, kind: input, shape index: {}]
  %s6 = inlined_call_operand.hbm [shape: f32[4,1,32], index: 6, kind: input, shape index: {}]
  %s7 = inlined_call_operand.vmem [shape: f32[2,4,32], index: 7, kind: input, shape index: {}]
  %s8 = inlined_call_operand.hbm [shape: f32[2,4,32], index: 8, kind: input, shape index: {}]
  %s9 = inlined_call_operand.vmem [shape: bf16[32,8], index: 9, kind: input, shape index: {}]
  %s10 = inlined_call_operand.hbm [shape: f32[1,8], index: 10, kind: input, shape index: {}]
  %s11 = inlined_call_operand.hbm [shape: f32[4,8], index: 11, kind: output, shape index: {}]
  %s12 = sld [smem:[#allocation0]]
  $region78: #{lstm_forward_pallas.1} parent=0
    _
  %s14 = ssub.s32 1, %s12
  %s15 = scalar_select 0, %s14, %s12
  $region1: #{lstm_forward_pallas.1} parent=0
    #allocation6 [shape = 'u8[2048]{0}', space=vmem, size = 0x800, scoped, tag = 'input window, operand 3, single buffered']
    #allocation7 [shape = 's32[1]{0}', space=sflag, size = 0x4, scoped, tag = 'scoped memory for lstm_forward_pallas.1']
    #allocation8 [shape = 's32[1]{0}', space=sflag, size = 0x4, scoped, tag = 'scoped memory for lstm_forward_pallas.1']
    #allocation9 [shape = 'u8[32768]{0}', space=vmem, size = 0x8000, scoped, tag = 'input window, operand 4, single buffered']
    #allocation10 [shape = 's32[1]{0}', space=sflag, size = 0x4, scoped, tag = 'scoped memory for lstm_forward_pallas.1']
    #allocation11 [shape = 'u8[32768]{0}', space=vmem, size = 0x8000, scoped, tag = 'input window, operand 5, single buffered']
    #allocation12 [shape = 'u8[2048]{0}', space=vmem, size = 0x800, scoped, tag = 'input window, operand 6, single buffered']
    #allocation13 [shape = 's32[1]{0}', space=sflag, size = 0x4, scoped, tag = 'scoped memory for lstm_forward_pallas.1']
    #allocation14 [shape = 'u8[4096]{0}', space=vmem, size = 0x1000, scoped, tag = 'input window, operand 8, single buffered']
    #allocation15 [shape = 'u8[512]{0}', space=vmem, size = 0x400, scoped, tag = 'input window, operand 10, single buffered']
    #allocation16 [shape = 's32[1]{0}', space=sflag, size = 0x4, scoped, tag = 'scoped memory for lstm_forward_pallas.1']
    #allocation17 [shape = 'u8[2048]{0}', space=vmem, size = 0x800, scoped, tag = 'output window, operand 0, single buffered']
    %16 = vsyncpa [#allocation7], 0
    %17 = vsyncpa [#allocation10], 0
    %18 = vsyncpa [#allocation13], 0
    %19 = vsyncpa [#allocation16], 0
    %20 = vsyncpa [#allocation8], 0
    // Predicated region
    $region2: #{lstm_forward_pallas.1} parent=1 // pred_check
      _
    $region3: #{lstm_forward_pallas.1} parent=1 // pred_check_branch
      %22 = sbr.rel (0) target = $region5
    $region4: #{lstm_forward_pallas.1} parent=1 // pred_region
      _
    $region5: #{lstm_forward_pallas.1} parent=1 // pred_fallthru
      _
    // Predicated region
    $region6: #{lstm_forward_pallas.1} parent=1 // pred_check
      _
    $region7: #{lstm_forward_pallas.1} parent=1 // pred_check_branch
      %24 = sbr.rel (0) target = $region9
    $region8: #{lstm_forward_pallas.1} parent=1 // pred_region
      _
    $region9: #{lstm_forward_pallas.1} parent=1 // pred_fallthru
      _
    // Predicated region
    $region10: #{lstm_forward_pallas.1} parent=1 // pred_check
      _
    $region11: #{lstm_forward_pallas.1} parent=1 // pred_check_branch
      %26 = sbr.rel (0) target = $region13
    $region12: #{lstm_forward_pallas.1} parent=1 // pred_region
      _
    $region13: #{lstm_forward_pallas.1} parent=1 // pred_fallthru
      _
    // Predicated region
    $region14: #{lstm_forward_pallas.1} parent=1 // pred_check
      _
    $region15: #{lstm_forward_pallas.1} parent=1 // pred_check_branch
      %28 = sbr.rel (0) target = $region17
    $region16: #{lstm_forward_pallas.1} parent=1 // pred_region
      %s30 = ssub.s32 64, 64
      %31 = vsyncadd [#allocation7], %s30
      %s32 = sshll.u32 [#allocation6], 4
      %s33 = int_to_ptr.vmem [resolvable:$true] %s32
      %38 = dma.hbm_to_vmem [thread:$0]  %s3, 64, %s33, [#allocation7], 16, 16, 1
    $region17: #{lstm_forward_pallas.1} parent=1 // pred_fallthru
      _
    // Predicated region
    $region18: #{lstm_forward_pallas.1} parent=1 // pred_check
      _
    $region19: #{lstm_forward_pallas.1} parent=1 // pred_check_branch
      %40 = sbr.rel (0) target = $region21
    $region20: #{lstm_forward_pallas.1} parent=1 // pred_region
      %s42 = ssub.s32 1024, 1024
      %43 = vsyncadd [#allocation10], %s42
      %s44 = sshll.u32 [#allocation9], 4
      %s45 = int_to_ptr.vmem [resolvable:$true] %s44
      %50 = dma.hbm_to_vmem [thread:$0]  %s4, 1024, %s45, [#allocation10], 64, 64, 4
    $region21: #{lstm_forward_pallas.1} parent=1 // pred_fallthru
      _
    // Predicated region
    $region22: #{lstm_forward_pallas.1} parent=1 // pred_check
      _
    $region23: #{lstm_forward_pallas.1} parent=1 // pred_check_branch
      %52 = sbr.rel (0) target = $region25
    $region24: #{lstm_forward_pallas.1} parent=1 // pred_region
      %s54 = ssub.s32 1024, 1024
      %55 = vsyncadd [#allocation10], %s54
      %s56 = sshll.u32 [#allocation11], 4
      %s57 = int_to_ptr.vmem [resolvable:$true] %s56
      %62 = dma.hbm_to_vmem [thread:$0]  %s5, 1024, %s57, [#allocation10], 64, 64, 4
    $region25: #{lstm_forward_pallas.1} parent=1 // pred_fallthru
      _
    // Predicated region
    $region26: #{lstm_forward_pallas.1} parent=1 // pred_check
      _
    $region27: #{lstm_forward_pallas.1} parent=1 // pred_check_branch
      %64 = sbr.rel (0) target = $region29
    $region28: #{lstm_forward_pallas.1} parent=1 // pred_region
      %s66 = ssub.s32 64, 64
      %67 = vsyncadd [#allocation13], %s66
      %s68 = sshll.u32 [#allocation12], 4
      %s69 = int_to_ptr.vmem [resolvable:$true] %s68
      %74 = dma.hbm_to_vmem [thread:$0]  %s6, 64, %s69, [#allocation13], 16, 16, 1
    $region29: #{lstm_forward_pallas.1} parent=1 // pred_fallthru
      _
    // Predicated region
    $region30: #{lstm_forward_pallas.1} parent=1 // pred_check
      _
    $region31: #{lstm_forward_pallas.1} parent=1 // pred_check_branch
      %76 = sbr.rel (0) target = $region33
    $region32: #{lstm_forward_pallas.1} parent=1 // pred_region
      _
    $region33: #{lstm_forward_pallas.1} parent=1 // pred_fallthru
      _
    // Predicated region
    $region34: #{lstm_forward_pallas.1} parent=1 // pred_check
      _
    $region35: #{lstm_forward_pallas.1} parent=1 // pred_check_branch
      %78 = sbr.rel (0) target = $region37
    $region36: #{lstm_forward_pallas.1} parent=1 // pred_region
      %s80 = ssub.s32 128, 128
      %81 = vsyncadd [#allocation13], %s80
      %s82 = sshll.u32 [#allocation14], 4
      %s83 = int_to_ptr.vmem [resolvable:$true] %s82
      %88 = dma.hbm_to_vmem [thread:$0]  %s8, 128, %s83, [#allocation13], 64, 64, 4
    $region37: #{lstm_forward_pallas.1} parent=1 // pred_fallthru
      _
    // Predicated region
    $region38: #{lstm_forward_pallas.1} parent=1 // pred_check
      _
    $region39: #{lstm_forward_pallas.1} parent=1 // pred_check_branch
      %90 = sbr.rel (0) target = $region41
    $region40: #{lstm_forward_pallas.1} parent=1 // pred_region
      _
    $region41: #{lstm_forward_pallas.1} parent=1 // pred_fallthru
      _
    // Predicated region
    $region42: #{lstm_forward_pallas.1} parent=1 // pred_check
      _
    $region43: #{lstm_forward_pallas.1} parent=1 // pred_check_branch
      %92 = sbr.rel (0) target = $region45
    $region44: #{lstm_forward_pallas.1} parent=1 // pred_region
      %s94 = ssub.s32 16, 16
      %95 = vsyncadd [#allocation16], %s94
      %s97 = sshll.u32 [#allocation15], 4
      %s98 = int_to_ptr.vmem [resolvable:$true] %s97
      %100 = dma.hbm_to_vmem [thread:$0]  %s10, 16, %s98, [#allocation16]
    $region45: #{lstm_forward_pallas.1} parent=1 // pred_fallthru
      _
    // Predicated region
    $region46: #{lstm_forward_pallas.1} parent=1 // pred_check
      _
    $region47: #{lstm_forward_pallas.1} parent=1 // pred_check_branch
      %102 = sbr.rel (0) target = $region49
    $region48: #{lstm_forward_pallas.1} parent=1 // pred_region
      %103 = dma.done [#allocation7], 64
    $region49: #{lstm_forward_pallas.1} parent=1 // pred_fallthru
      _
    // Predicated region
    $region50: #{lstm_forward_pallas.1} parent=1 // pred_check
      _
    $region51: #{lstm_forward_pallas.1} parent=1 // pred_check_branch
      %105 = sbr.rel (0) target = $region53
    $region52: #{lstm_forward_pallas.1} parent=1 // pred_region
      %106 = dma.done [#allocation10], 1024
    $region53: #{lstm_forward_pallas.1} parent=1 // pred_fallthru
      _
    // Predicated region
    $region54: #{lstm_forward_pallas.1} parent=1 // pred_check
      _
    $region55: #{lstm_forward_pallas.1} parent=1 // pred_check_branch
      %108 = sbr.rel (0) target = $region57
    $region56: #{lstm_forward_pallas.1} parent=1 // pred_region
      %109 = dma.done [#allocation10], 1024
    $region57: #{lstm_forward_pallas.1} parent=1 // pred_fallthru
      _
    // Predicated region
    $region58: #{lstm_forward_pallas.1} parent=1 // pred_check
      _
    $region59: #{lstm_forward_pallas.1} parent=1 // pred_check_branch
      %111 = sbr.rel (0) target = $region61
    $region60: #{lstm_forward_pallas.1} parent=1 // pred_region
      %112 = dma.done [#allocation13], 64
    $region61: #{lstm_forward_pallas.1} parent=1 // pred_fallthru
      _
    // Predicated region
    $region62: #{lstm_forward_pallas.1} parent=1 // pred_check
      _
    $region63: #{lstm_forward_pallas.1} parent=1 // pred_check_branch
      %114 = sbr.rel (0) target = $region65
    $region64: #{lstm_forward_pallas.1} parent=1 // pred_region
      %115 = dma.done [#allocation13], 128
    $region65: #{lstm_forward_pallas.1} parent=1 // pred_fallthru
      _
    // Predicated region
    $region66: #{lstm_forward_pallas.1} parent=1 // pred_check
      _
    $region67: #{lstm_forward_pallas.1} parent=1 // pred_check_branch
      %117 = sbr.rel (0) target = $region69
    $region68: #{lstm_forward_pallas.1} parent=1 // pred_region
      %118 = dma.done [#allocation16], 16
    $region69: #{lstm_forward_pallas.1} parent=1 // pred_fallthru
      _
    %v120 = vld [vmem:[%s0] sm:$0xff]
    %v121 = vld [vmem:[%s0 + $0x8] sm:$0xff]
    %v122 = vld [vmem:[%s0 + $0x10] sm:$0xff]
    %v123 = vld [vmem:[%s0 + $0x18] sm:$0xff]
    %v124 = vpack.c.bf16 %v121, %v120
    %v125 = vpack.c.bf16 %v123, %v122
    %v126 = vld [vmem:[%s1] sm:$0xf]
    %v127 = vld [vmem:[%s1 + $0x4] sm:$0xf]
    %v128 = vld [vmem:[#allocation6] sm:$0x1]
    %v130 = vlaneseq
    %v131 = vshrl.u32 %v130, 7
    %v132 = vsub.s32 0, %v131
    %v133 = vrot.slane %v128, %v132
    %v137 = vunpack.c.l.b16 %v126
    %v138 = vunpack.c.l.b16 %v127
    %v139 = vpack.c.b16 %v138, %v137
    %vm141 = vcmask 130048
    %v143 = vsel %vm141, %v124, 0
    %v146 = vsel %vm141, %v125, 0
    %148 = vmatprep.subr.bf16.mxu0 0
    %149 = vmatpush1.bf16.msra.mxu0 0
    %150 = vmatprep.subr.bf16.mxu0 0
    %151 = vmatpush1.bf16.msra.mxu0 0
    %152 = vmatprep.subr.bf16.mxu0 0
    %153 = vmatpush1.bf16.msra.mxu0 0
    %154 = vmatprep.subr.bf16.mxu0 0
    %155 = vmatpush1.bf16.msra.mxu0 0
    %156 = vmatprep.subr.bf16.mxu0 0
    %157 = vmatpush1.bf16.msra.mxu0 0
    %158 = vmatprep.subr.bf16.mxu0 0
    %159 = vmatpush1.bf16.msra.mxu0 0
    %160 = vmatprep.subr.bf16.mxu0 0
    %161 = vmatpush1.bf16.msra.mxu0 0
    %162 = vmatprep.subr.bf16.mxu0 0
    %163 = vmatpush1.bf16.msra.mxu0 %v139
    %164 = vmatprep.subr.bf16.mxu0 0
    %165 = vmatpush2.bf16.msra.mxu0 0
    %166 = vmatprep.subr.bf16.mxu0 0
    %167 = vmatpush2.bf16.msra.mxu0 0
    %168 = vmatprep.subr.bf16.mxu0 0
    %169 = vmatpush2.bf16.msra.mxu0 0
    %170 = vmatprep.subr.bf16.mxu0 0
    %171 = vmatpush2.bf16.msra.mxu0 0
    %172 = vmatprep.subr.bf16.mxu0 0
    %173 = vmatpush2.bf16.msra.mxu0 0
    %174 = vmatprep.subr.bf16.mxu0 0
    %175 = vmatpush2.bf16.msra.mxu0 0
    %176 = vmatprep.subr.bf16.mxu0 0
    %177 = vmatpush2.bf16.msra.mxu0 0
    %178 = vmatprep.subr.bf16.mxu0 0
    %179 = vmatpush2.bf16.msra.mxu0 0
    %180 = vmatprep.mubr.bf16.mxu0 0
    %181 = vmatmul.mubr.bf16.gmra.mxu0 %v143
    %v182 = vpop.f32.mrf.mxu0
    %v183 = vadd.f32 %v133, %v182
    %v184 = vpop.f32.mrf.mxu0
    %v185 = vpop.f32.mrf.mxu0
    %v186 = vadd.f32 %v133, %v185
    %v187 = vpop.f32.mrf.mxu0
    %188 = vmatprep.mubr.bf16.mxu0 0
    %189 = vmatmul.mubr.bf16.gmra.mxu0 %v146
    %v190 = vpop.f32.mrf.mxu0
    %v191 = vadd.f32 %v133, %v190
    %v192 = vpop.f32.mrf.mxu0
    %v193 = vpop.f32.mrf.mxu0
    %v194 = vadd.f32 %v133, %v193
    %v195 = vpop.f32.mrf.mxu0
    %196 = vdwg.mxu0
    %vm197 = vcmask 261120
    %198 = vst.msk [vmem:[#allocation2] sm:$0xff] %vm197, %v183
    %199 = vst.msk [vmem:[#allocation2 + $0x8] sm:$0xff] %vm197, %v186
    %200 = vst.msk [vmem:[#allocation2 + $0x10] sm:$0xff] %vm197, %v191
    %201 = vst.msk [vmem:[#allocation2 + $0x18] sm:$0xff] %vm197, %v194
    %s202 = scalar_lea.vmem %s1, 8
    %v203 = vld [vmem:[%s202] sm:$0xf]
    %v204 = vld [vmem:[%s202 + $0x4] sm:$0xf]
    %s205 = scalar_lea.vmem [#allocation6], 1
    %v206 = vld [vmem:[%s205] sm:$0x1]
    %v208 = vlaneseq
    %v209 = vshrl.u32 %v208, 7
    %v210 = vsub.s32 0, %v209
    %v211 = vrot.slane %v206, %v210
    %v215 = vunpack.c.l.b16 %v203
    %v216 = vunpack.c.l.b16 %v204
    %v217 = vpack.c.b16 %v216, %v215
    %219 = vmatprep.subr.bf16.mxu0 0
    %220 = vmatpush1.bf16.msra.mxu0 0
    %221 = vmatprep.subr.bf16.mxu0 0
    %222 = vmatpush1.bf16.msra.mxu0 0
    %223 = vmatprep.subr.bf16.mxu0 0
    %224 = vmatpush1.bf16.msra.mxu0 0
    %225 = vmatprep.subr.bf16.mxu0 0
    %226 = vmatpush1.bf16.msra.mxu0 0
    %227 = vmatprep.subr.bf16.mxu0 0
    %228 = vmatpush1.bf16.msra.mxu0 0
    %229 = vmatprep.subr.bf16.mxu0 0
    %230 = vmatpush1.bf16.msra.mxu0 0
    %231 = vmatprep.subr.bf16.mxu0 0
    %232 = vmatpush1.bf16.msra.mxu0 0
    %233 = vmatprep.subr.bf16.mxu0 0
    %234 = vmatpush1.bf16.msra.mxu0 %v217
    %235 = vmatprep.subr.bf16.mxu0 0
    %236 = vmatpush2.bf16.msra.mxu0 0
    %237 = vmatprep.subr.bf16.mxu0 0
    %238 = vmatpush2.bf16.msra.mxu0 0
    %239 = vmatprep.subr.bf16.mxu0 0
    %240 = vmatpush2.bf16.msra.mxu0 0
    %241 = vmatprep.subr.bf16.mxu0 0
    %242 = vmatpush2.bf16.msra.mxu0 0
    %243 = vmatprep.subr.bf16.mxu0 0
    %244 = vmatpush2.bf16.msra.mxu0 0
    %245 = vmatprep.subr.bf16.mxu0 0
    %246 = vmatpush2.bf16.msra.mxu0 0
    %247 = vmatprep.subr.bf16.mxu0 0
    %248 = vmatpush2.bf16.msra.mxu0 0
    %249 = vmatprep.subr.bf16.mxu0 0
    %250 = vmatpush2.bf16.msra.mxu0 0
    %251 = vmatprep.mubr.bf16.mxu0 0
    %252 = vmatmul.mubr.bf16.gmra.mxu0 %v143
    %v253 = vpop.f32.mrf.mxu0
    %v254 = vadd.f32 %v211, %v253
    %v255 = vpop.f32.mrf.mxu0
    %v256 = vpop.f32.mrf.mxu0
    %v257 = vadd.f32 %v211, %v256
    %v258 = vpop.f32.mrf.mxu0
    %259 = vmatprep.mubr.bf16.mxu0 0
    %260 = vmatmul.mubr.bf16.gmra.mxu0 %v146
    %v261 = vpop.f32.mrf.mxu0
    %v262 = vadd.f32 %v211, %v261
    %v263 = vpop.f32.mrf.mxu0
    %v264 = vpop.f32.mrf.mxu0
    %v265 = vadd.f32 %v211, %v264
    %v266 = vpop.f32.mrf.mxu0
    %267 = vdwg.mxu0
    %268 = vst.msk [vmem:[#allocation3] sm:$0xff] %vm197, %v254
    %269 = vst.msk [vmem:[#allocation3 + $0x8] sm:$0xff] %vm197, %v257
    %270 = vst.msk [vmem:[#allocation3 + $0x10] sm:$0xff] %vm197, %v262
    %271 = vst.msk [vmem:[#allocation3 + $0x18] sm:$0xff] %vm197, %v265
    %s272 = scalar_lea.vmem %s1, 16
    %v273 = vld [vmem:[%s272] sm:$0xf]
    %v274 = vld [vmem:[%s272 + $0x4] sm:$0xf]
    %s275 = scalar_lea.vmem [#allocation6], 2
    %v276 = vld [vmem:[%s275] sm:$0x1]
    %v278 = vlaneseq
    %v279 = vshrl.u32 %v278, 7
    %v280 = vsub.s32 0, %v279
    %v281 = vrot.slane %v276, %v280
    %v285 = vunpack.c.l.b16 %v273
    %v286 = vunpack.c.l.b16 %v274
    %v287 = vpack.c.b16 %v286, %v285
    %289 = vmatprep.subr.bf16.mxu0 0
    %290 = vmatpush1.bf16.msra.mxu0 0
    %291 = vmatprep.subr.bf16.mxu0 0
    %292 = vmatpush1.bf16.msra.mxu0 0
    %293 = vmatprep.subr.bf16.mxu0 0
    %294 = vmatpush1.bf16.msra.mxu0 0
    %295 = vmatprep.subr.bf16.mxu0 0
    %296 = vmatpush1.bf16.msra.mxu0 0
    %297 = vmatprep.subr.bf16.mxu0 0
    %298 = vmatpush1.bf16.msra.mxu0 0
    %299 = vmatprep.subr.bf16.mxu0 0
    %300 = vmatpush1.bf16.msra.mxu0 0
    %301 = vmatprep.subr.bf16.mxu0 0
    %302 = vmatpush1.bf16.msra.mxu0 0
    %303 = vmatprep.subr.bf16.mxu0 0
    %304 = vmatpush1.bf16.msra.mxu0 %v287
    %305 = vmatprep.subr.bf16.mxu0 0
    %306 = vmatpush2.bf16.msra.mxu0 0
    %307 = vmatprep.subr.bf16.mxu0 0
    %308 = vmatpush2.bf16.msra.mxu0 0
    %309 = vmatprep.subr.bf16.mxu0 0
    %310 = vmatpush2.bf16.msra.mxu0 0
    %311 = vmatprep.subr.bf16.mxu0 0
    %312 = vmatpush2.bf16.msra.mxu0 0
    %313 = vmatprep.subr.bf16.mxu0 0
    %314 = vmatpush2.bf16.msra.mxu0 0
    %315 = vmatprep.subr.bf16.mxu0 0
    %316 = vmatpush2.bf16.msra.mxu0 0
    %317 = vmatprep.subr.bf16.mxu0 0
    %318 = vmatpush2.bf16.msra.mxu0 0
    %319 = vmatprep.subr.bf16.mxu0 0
    %320 = vmatpush2.bf16.msra.mxu0 0
    %321 = vmatprep.mubr.bf16.mxu0 0
    %322 = vmatmul.mubr.bf16.gmra.mxu0 %v143
    %v323 = vpop.f32.mrf.mxu0
    %v324 = vadd.f32 %v281, %v323
    %v325 = vpop.f32.mrf.mxu0
    %v326 = vpop.f32.mrf.mxu0
    %v327 = vadd.f32 %v281, %v326
    %v328 = vpop.f32.mrf.mxu0
    %329 = vmatprep.mubr.bf16.mxu0 0
    %330 = vmatmul.mubr.bf16.gmra.mxu0 %v146
    %v331 = vpop.f32.mrf.mxu0
    %v332 = vadd.f32 %v281, %v331
    %v333 = vpop.f32.mrf.mxu0
    %v334 = vpop.f32.mrf.mxu0
    %v335 = vadd.f32 %v281, %v334
    %v336 = vpop.f32.mrf.mxu0
    %337 = vdwg.mxu0
    %338 = vst.msk [vmem:[#allocation4] sm:$0xff] %vm197, %v324
    %339 = vst.msk [vmem:[#allocation4 + $0x8] sm:$0xff] %vm197, %v327
    %340 = vst.msk [vmem:[#allocation4 + $0x10] sm:$0xff] %vm197, %v332
    %341 = vst.msk [vmem:[#allocation4 + $0x18] sm:$0xff] %vm197, %v335
    %s342 = scalar_lea.vmem %s1, 24
    %v343 = vld [vmem:[%s342] sm:$0xf]
    %v344 = vld [vmem:[%s342 + $0x4] sm:$0xf]
    %s345 = scalar_lea.vmem [#allocation6], 3
    %v346 = vld [vmem:[%s345] sm:$0x1]
    %v348 = vlaneseq
    %v349 = vshrl.u32 %v348, 7
    %v350 = vsub.s32 0, %v349
    %v351 = vrot.slane %v346, %v350
    %v355 = vunpack.c.l.b16 %v343
    %v356 = vunpack.c.l.b16 %v344
    %v357 = vpack.c.b16 %v356, %v355
    %359 = vmatprep.subr.bf16.mxu0 0
    %360 = vmatpush1.bf16.msra.mxu0 0
    %361 = vmatprep.subr.bf16.mxu0 0
    %362 = vmatpush1.bf16.msra.mxu0 0
    %363 = vmatprep.subr.bf16.mxu0 0
    %364 = vmatpush1.bf16.msra.mxu0 0
    %365 = vmatprep.subr.bf16.mxu0 0
    %366 = vmatpush1.bf16.msra.mxu0 0
    %367 = vmatprep.subr.bf16.mxu0 0
    %368 = vmatpush1.bf16.msra.mxu0 0
    %369 = vmatprep.subr.bf16.mxu0 0
    %370 = vmatpush1.bf16.msra.mxu0 0
    %371 = vmatprep.subr.bf16.mxu0 0
    %372 = vmatpush1.bf16.msra.mxu0 0
    %373 = vmatprep.subr.bf16.mxu0 0
    %374 = vmatpush1.bf16.msra.mxu0 %v357
    %375 = vmatprep.subr.bf16.mxu0 0
    %376 = vmatpush2.bf16.msra.mxu0 0
    %377 = vmatprep.subr.bf16.mxu0 0
    %378 = vmatpush2.bf16.msra.mxu0 0
    %379 = vmatprep.subr.bf16.mxu0 0
    %380 = vmatpush2.bf16.msra.mxu0 0
    %381 = vmatprep.subr.bf16.mxu0 0
    %382 = vmatpush2.bf16.msra.mxu0 0
    %383 = vmatprep.subr.bf16.mxu0 0
    %384 = vmatpush2.bf16.msra.mxu0 0
    %385 = vmatprep.subr.bf16.mxu0 0
    %386 = vmatpush2.bf16.msra.mxu0 0
    %387 = vmatprep.subr.bf16.mxu0 0
    %388 = vmatpush2.bf16.msra.mxu0 0
    %389 = vmatprep.subr.bf16.mxu0 0
    %390 = vmatpush2.bf16.msra.mxu0 0
    %391 = vmatprep.mubr.bf16.mxu0 0
    %392 = vmatmul.mubr.bf16.gmra.mxu0 %v143
    %v393 = vpop.f32.mrf.mxu0
    %v394 = vadd.f32 %v351, %v393
    %v395 = vpop.f32.mrf.mxu0
    %v396 = vpop.f32.mrf.mxu0
    %v397 = vadd.f32 %v351, %v396
    %v398 = vpop.f32.mrf.mxu0
    %399 = vmatprep.mubr.bf16.mxu0 0
    %400 = vmatmul.mubr.bf16.gmra.mxu0 %v146
    %v401 = vpop.f32.mrf.mxu0
    %v402 = vadd.f32 %v351, %v401
    %v403 = vpop.f32.mrf.mxu0
    %v404 = vpop.f32.mrf.mxu0
    %v405 = vadd.f32 %v351, %v404
    %v406 = vpop.f32.mrf.mxu0
    %407 = vdwg.mxu0
    %408 = vst.msk [vmem:[#allocation5] sm:$0xff] %vm197, %v394
    %409 = vst.msk [vmem:[#allocation5 + $0x8] sm:$0xff] %vm197, %v397
    %410 = vst.msk [vmem:[#allocation5 + $0x10] sm:$0xff] %vm197, %v402
    %411 = vst.msk [vmem:[#allocation5 + $0x18] sm:$0xff] %vm197, %v405
    %v412 = vld [vmem:[#allocation12] sm:$0x1]
    %v414 = vlaneseq
    %v415 = vshrl.u32 %v414, 7
    %v416 = vsub.s32 0, %v415
    %v417 = vrot.slane %v412, %v416
    %s419 = scalar_lea.vmem [#allocation12], 1
    %v420 = vld [vmem:[%s419] sm:$0x1]
    %v422 = vlaneseq
    %v423 = vshrl.u32 %v422, 7
    %v424 = vsub.s32 0, %v423
    %v425 = vrot.slane %v420, %v424
    %s427 = scalar_lea.vmem [#allocation12], 2
    %v428 = vld [vmem:[%s427] sm:$0x1]
    %v430 = vlaneseq
    %v431 = vshrl.u32 %v430, 7
    %v432 = vsub.s32 0, %v431
    %v433 = vrot.slane %v428, %v432
    %s435 = scalar_lea.vmem [#allocation12], 3
    %v436 = vld [vmem:[%s435] sm:$0x1]
    %v438 = vlaneseq
    %v439 = vshrl.u32 %v438, 7
    %v440 = vsub.s32 0, %v439
    %v441 = vrot.slane %v436, %v440
    %v443 = vld [vmem:[%s7] sm:$0xf]
    %s444 = scalar_lea.vmem %s7, 4
    %v445 = vld [vmem:[%s444] sm:$0xf]
    %v446 = vld [vmem:[#allocation14] sm:$0xf]
    %s447 = scalar_lea.vmem [#allocation14], 4
    %v448 = vld [vmem:[%s447] sm:$0xf]
    %v449 = vld [vmem:[#allocation2] sm:$0xf]
    %v450 = vld [vmem:[#allocation3] sm:$0xf]
    %v451 = vld [vmem:[#allocation4] sm:$0xf]
    %v452 = vld [vmem:[#allocation5] sm:$0xf]
    %v453 = vpack.c.bf16 %v443, %v443
    %v454 = vld [vmem:[%s2] sm:$0xf]
    %v455 = vld [vmem:[%s2 + $0x4] sm:$0xf]
    %v456 = vld [vmem:[%s2 + $0x8] sm:$0xf]
    %v457 = vld [vmem:[%s2 + $0xc] sm:$0xf]
    %v462 = vunpack.c.l.b16 %v454
    %v463 = vunpack.c.l.b16 %v455
    %v464 = vunpack.c.l.b16 %v456
    %v465 = vunpack.c.l.b16 %v457
    %v466 = vpack.c.b16 %v463, %v462
    %v467 = vpack.c.b16 %v465, %v464
    %v471 = vsel %vm197, %v453, 0
    %473 = vmatprep.subr.bf16.mxu0 0
    %474 = vmatpush1.bf16.msra.mxu0 0
    %475 = vmatprep.subr.bf16.mxu0 0
    %476 = vmatpush1.bf16.msra.mxu0 0
    %477 = vmatprep.subr.bf16.mxu0 0
    %478 = vmatpush1.bf16.msra.mxu0 0
    %479 = vmatprep.subr.bf16.mxu0 0
    %480 = vmatpush1.bf16.msra.mxu0 0
    %481 = vmatprep.subr.bf16.mxu0 0
    %482 = vmatpush1.bf16.msra.mxu0 0
    %483 = vmatprep.subr.bf16.mxu0 0
    %484 = vmatpush1.bf16.msra.mxu0 0
    %485 = vmatprep.subr.bf16.mxu0 0
    %486 = vmatpush1.bf16.msra.mxu0 %v467
    %487 = vmatprep.subr.bf16.mxu0 0
    %488 = vmatpush1.bf16.msra.mxu0 %v466
    %489 = vmatprep.subr.bf16.mxu0 0
    %490 = vmatpush2.bf16.msra.mxu0 0
    %491 = vmatprep.subr.bf16.mxu0 0
    %492 = vmatpush2.bf16.msra.mxu0 0
    %493 = vmatprep.subr.bf16.mxu0 0
    %494 = vmatpush2.bf16.msra.mxu0 0
    %495 = vmatprep.subr.bf16.mxu0 0
    %496 = vmatpush2.bf16.msra.mxu0 0
    %497 = vmatprep.subr.bf16.mxu0 0
    %498 = vmatpush2.bf16.msra.mxu0 0
    %499 = vmatprep.subr.bf16.mxu0 0
    %500 = vmatpush2.bf16.msra.mxu0 0
    %501 = vmatprep.subr.bf16.mxu0 0
    %502 = vmatpush2.bf16.msra.mxu0 0
    %503 = vmatprep.subr.bf16.mxu0 0
    %504 = vmatpush2.bf16.msra.mxu0 0
    %505 = vmatprep.mubr.bf16.mxu0 0
    %506 = vmatmul.mubr.bf16.gmra.mxu0 %v471
    %v507 = vpop.f32.mrf.mxu0
    %v508 = vadd.f32 0.0, %v507
    %v509 = vpop.f32.mrf.mxu0
    %v510 = vpop.f32.mrf.mxu0
    %v511 = vpop.f32.mrf.mxu0
    %512 = vdwg.mxu0
    %v513 = vadd.f32 %v449, %v508
    %s514 = scalar_lea.vmem %s2, 16
    %v515 = vld [vmem:[%s514] sm:$0xf]
    %v516 = vld [vmem:[%s514 + $0x4] sm:$0xf]
    %v517 = vld [vmem:[%s514 + $0x8] sm:$0xf]
    %v518 = vld [vmem:[%s514 + $0xc] sm:$0xf]
    %v523 = vunpack.c.l.b16 %v515
    %v524 = vunpack.c.l.b16 %v516
    %v525 = vunpack.c.l.b16 %v517
    %v526 = vunpack.c.l.b16 %v518
    %v527 = vpack.c.b16 %v524, %v523
    %v528 = vpack.c.b16 %v526, %v525
    %531 = vmatprep.subr.bf16.mxu0 0
    %532 = vmatpush1.bf16.msra.mxu0 0
    %533 = vmatprep.subr.bf16.mxu0 0
    %534 = vmatpush1.bf16.msra.mxu0 0
    %535 = vmatprep.subr.bf16.mxu0 0
    %536 = vmatpush1.bf16.msra.mxu0 0
    %537 = vmatprep.subr.bf16.mxu0 0
    %538 = vmatpush1.bf16.msra.mxu0 0
    %539 = vmatprep.subr.bf16.mxu0 0
    %540 = vmatpush1.bf16.msra.mxu0 0
    %541 = vmatprep.subr.bf16.mxu0 0
    %542 = vmatpush1.bf16.msra.mxu0 0
    %543 = vmatprep.subr.bf16.mxu0 0
    %544 = vmatpush1.bf16.msra.mxu0 %v528
    %545 = vmatprep.subr.bf16.mxu0 0
    %546 = vmatpush1.bf16.msra.mxu0 %v527
    %547 = vmatprep.subr.bf16.mxu0 0
    %548 = vmatpush2.bf16.msra.mxu0 0
    %549 = vmatprep.subr.bf16.mxu0 0
    %550 = vmatpush2.bf16.msra.mxu0 0
    %551 = vmatprep.subr.bf16.mxu0 0
    %552 = vmatpush2.bf16.msra.mxu0 0
    %553 = vmatprep.subr.bf16.mxu0 0
    %554 = vmatpush2.bf16.msra.mxu0 0
    %555 = vmatprep.subr.bf16.mxu0 0
    %556 = vmatpush2.bf16.msra.mxu0 0
    %557 = vmatprep.subr.bf16.mxu0 0
    %558 = vmatpush2.bf16.msra.mxu0 0
    %559 = vmatprep.subr.bf16.mxu0 0
    %560 = vmatpush2.bf16.msra.mxu0 0
    %561 = vmatprep.subr.bf16.mxu0 0
    %562 = vmatpush2.bf16.msra.mxu0 0
    %563 = vmatprep.mubr.bf16.mxu0 0
    %564 = vmatmul.mubr.bf16.gmra.mxu0 %v471
    %v565 = vpop.f32.mrf.mxu0
    %v566 = vadd.f32 0.0, %v565
    %v567 = vpop.f32.mrf.mxu0
    %v568 = vpop.f32.mrf.mxu0
    %v569 = vpop.f32.mrf.mxu0
    %570 = vdwg.mxu0
    %v571 = vadd.f32 %v450, %v566
    %s572 = scalar_lea.vmem %s2, 32
    %v573 = vld [vmem:[%s572] sm:$0xf]
    %v574 = vld [vmem:[%s572 + $0x4] sm:$0xf]
    %v575 = vld [vmem:[%s572 + $0x8] sm:$0xf]
    %v576 = vld [vmem:[%s572 + $0xc] sm:$0xf]
    %v581 = vunpack.c.l.b16 %v573
    %v582 = vunpack.c.l.b16 %v574
    %v583 = vunpack.c.l.b16 %v575
    %v584 = vunpack.c.l.b16 %v576
    %v585 = vpack.c.b16 %v582, %v581
    %v586 = vpack.c.b16 %v584, %v583
    %589 = vmatprep.subr.bf16.mxu0 0
    %590 = vmatpush1.bf16.msra.mxu0 0
    %591 = vmatprep.subr.bf16.mxu0 0
    %592 = vmatpush1.bf16.msra.mxu0 0
    %593 = vmatprep.subr.bf16.mxu0 0
    %594 = vmatpush1.bf16.msra.mxu0 0
    %595 = vmatprep.subr.bf16.mxu0 0
    %596 = vmatpush1.bf16.msra.mxu0 0
    %597 = vmatprep.subr.bf16.mxu0 0
    %598 = vmatpush1.bf16.msra.mxu0 0
    %599 = vmatprep.subr.bf16.mxu0 0
    %600 = vmatpush1.bf16.msra.mxu0 0
    %601 = vmatprep.subr.bf16.mxu0 0
    %602 = vmatpush1.bf16.msra.mxu0 %v586
    %603 = vmatprep.subr.bf16.mxu0 0
    %604 = vmatpush1.bf16.msra.mxu0 %v585
    %605 = vmatprep.subr.bf16.mxu0 0
    %606 = vmatpush2.bf16.msra.mxu0 0
    %607 = vmatprep.subr.bf16.mxu0 0
    %608 = vmatpush2.bf16.msra.mxu0 0
    %609 = vmatprep.subr.bf16.mxu0 0
    %610 = vmatpush2.bf16.msra.mxu0 0
    %611 = vmatprep.subr.bf16.mxu0 0
    %612 = vmatpush2.bf16.msra.mxu0 0
    %613 = vmatprep.subr.bf16.mxu0 0
    %614 = vmatpush2.bf16.msra.mxu0 0
    %615 = vmatprep.subr.bf16.mxu0 0
    %616 = vmatpush2.bf16.msra.mxu0 0
    %617 = vmatprep.subr.bf16.mxu0 0
    %618 = vmatpush2.bf16.msra.mxu0 0
    %619 = vmatprep.subr.bf16.mxu0 0
    %620 = vmatpush2.bf16.msra.mxu0 0
    %621 = vmatprep.mubr.bf16.mxu0 0
    %622 = vmatmul.mubr.bf16.gmra.mxu0 %v471
    %v623 = vpop.f32.mrf.mxu0
    %v624 = vadd.f32 0.0, %v623
    %v625 = vpop.f32.mrf.mxu0
    %v626 = vpop.f32.mrf.mxu0
    %v627 = vpop.f32.mrf.mxu0
    %628 = vdwg.mxu0
    %v629 = vadd.f32 %v451, %v624
    %s630 = scalar_lea.vmem %s2, 48
    %v631 = vld [vmem:[%s630] sm:$0xf]
    %v632 = vld [vmem:[%s630 + $0x4] sm:$0xf]
    %v633 = vld [vmem:[%s630 + $0x8] sm:$0xf]
    %v634 = vld [vmem:[%s630 + $0xc] sm:$0xf]
    %v639 = vunpack.c.l.b16 %v631
    %v640 = vunpack.c.l.b16 %v632
    %v641 = vunpack.c.l.b16 %v633
    %v642 = vunpack.c.l.b16 %v634
    %v643 = vpack.c.b16 %v640, %v639
    %v644 = vpack.c.b16 %v642, %v641
    %647 = vmatprep.subr.bf16.mxu0 0
    %648 = vmatpush1.bf16.msra.mxu0 0
    %649 = vmatprep.subr.bf16.mxu0 0
    %650 = vmatpush1.bf16.msra.mxu0 0
    %651 = vmatprep.subr.bf16.mxu0 0
    %652 = vmatpush1.bf16.msra.mxu0 0
    %653 = vmatprep.subr.bf16.mxu0 0
    %654 = vmatpush1.bf16.msra.mxu0 0
    %655 = vmatprep.subr.bf16.mxu0 0
    %656 = vmatpush1.bf16.msra.mxu0 0
    %657 = vmatprep.subr.bf16.mxu0 0
    %658 = vmatpush1.bf16.msra.mxu0 0
    %659 = vmatprep.subr.bf16.mxu0 0
    %660 = vmatpush1.bf16.msra.mxu0 %v644
    %661 = vmatprep.subr.bf16.mxu0 0
    %662 = vmatpush1.bf16.msra.mxu0 %v643
    %663 = vmatprep.subr.bf16.mxu0 0
    %664 = vmatpush2.bf16.msra.mxu0 0
    %665 = vmatprep.subr.bf16.mxu0 0
    %666 = vmatpush2.bf16.msra.mxu0 0
    %667 = vmatprep.subr.bf16.mxu0 0
    %668 = vmatpush2.bf16.msra.mxu0 0
    %669 = vmatprep.subr.bf16.mxu0 0
    %670 = vmatpush2.bf16.msra.mxu0 0
    %671 = vmatprep.subr.bf16.mxu0 0
    %672 = vmatpush2.bf16.msra.mxu0 0
    %673 = vmatprep.subr.bf16.mxu0 0
    %674 = vmatpush2.bf16.msra.mxu0 0
    %675 = vmatprep.subr.bf16.mxu0 0
    %676 = vmatpush2.bf16.msra.mxu0 0
    %677 = vmatprep.subr.bf16.mxu0 0
    %678 = vmatpush2.bf16.msra.mxu0 0
    %679 = vmatprep.mubr.bf16.mxu0 0
    %680 = vmatmul.mubr.bf16.gmra.mxu0 %v471
    %v681 = vpop.f32.mrf.mxu0
    %v682 = vadd.f32 0.0, %v681
    %v683 = vpop.f32.mrf.mxu0
    %v684 = vpop.f32.mrf.mxu0
    %v685 = vpop.f32.mrf.mxu0
    %686 = vdwg.mxu0
    %v687 = vadd.f32 %v452, %v682
    %v688 = vmul.f32 %v513, 0.5
    %v689 = vtanh.pop %v688
    %v690 = vmul.f32 %v689, 0.5
    %v691 = vadd.f32 %v690, 0.5
    %v692 = vmul.f32 %v571, 0.5
    %v693 = vtanh.pop %v692
    %v694 = vmul.f32 %v693, 0.5
    %v695 = vadd.f32 %v694, 0.5
    %v696 = vtanh.pop %v629
    %v697 = vmul.f32 %v687, 0.5
    %v698 = vtanh.pop %v697
    %v699 = vmul.f32 %v698, 0.5
    %v700 = vadd.f32 %v699, 0.5
    %v701 = vmul.f32 %v695, %v446
    %v702 = vmul.f32 %v691, %v696
    %v703 = vadd.f32 %v701, %v702
    %v704 = vtanh.pop %v703
    %v705 = vmul.f32 %v700, %v704
    %v706 = vpack.c.bf16 %v705, %v705
    %v707 = vld [vmem:[#allocation9] sm:$0xf]
    %v708 = vld [vmem:[#allocation9 + $0x4] sm:$0xf]
    %v709 = vld [vmem:[#allocation9 + $0x8] sm:$0xf]
    %v710 = vld [vmem:[#allocation9 + $0xc] sm:$0xf]
    %v715 = vunpack.c.l.b16 %v707
    %v716 = vunpack.c.l.b16 %v708
    %v717 = vunpack.c.l.b16 %v709
    %v718 = vunpack.c.l.b16 %v710
    %v719 = vpack.c.b16 %v716, %v715
    %v720 = vpack.c.b16 %v718, %v717
    %v724 = vsel %vm197, %v706, 0
    %726 = vmatprep.subr.bf16.mxu0 0
    %727 = vmatpush1.bf16.msra.mxu0 0
    %728 = vmatprep.subr.bf16.mxu0 0
    %729 = vmatpush1.bf16.msra.mxu0 0
    %730 = vmatprep.subr.bf16.mxu0 0
    %731 = vmatpush1.bf16.msra.mxu0 0
    %732 = vmatprep.subr.bf16.mxu0 0
    %733 = vmatpush1.bf16.msra.mxu0 0
    %734 = vmatprep.subr.bf16.mxu0 0
    %735 = vmatpush1.bf16.msra.mxu0 0
    %736 = vmatprep.subr.bf16.mxu0 0
    %737 = vmatpush1.bf16.msra.mxu0 0
    %738 = vmatprep.subr.bf16.mxu0 0
    %739 = vmatpush1.bf16.msra.mxu0 %v720
    %740 = vmatprep.subr.bf16.mxu0 0
    %741 = vmatpush1.bf16.msra.mxu0 %v719
    %742 = vmatprep.subr.bf16.mxu0 0
    %743 = vmatpush2.bf16.msra.mxu0 0
    %744 = vmatprep.subr.bf16.mxu0 0
    %745 = vmatpush2.bf16.msra.mxu0 0
    %746 = vmatprep.subr.bf16.mxu0 0
    %747 = vmatpush2.bf16.msra.mxu0 0
    %748 = vmatprep.subr.bf16.mxu0 0
    %749 = vmatpush2.bf16.msra.mxu0 0
    %750 = vmatprep.subr.bf16.mxu0 0
    %751 = vmatpush2.bf16.msra.mxu0 0
    %752 = vmatprep.subr.bf16.mxu0 0
    %753 = vmatpush2.bf16.msra.mxu0 0
    %754 = vmatprep.subr.bf16.mxu0 0
    %755 = vmatpush2.bf16.msra.mxu0 0
    %756 = vmatprep.subr.bf16.mxu0 0
    %757 = vmatpush2.bf16.msra.mxu0 0
    %758 = vmatprep.mubr.bf16.mxu0 0
    %759 = vmatmul.mubr.bf16.gmra.mxu0 %v724
    %v760 = vpop.f32.mrf.mxu0
    %v761 = vadd.f32 %v417, %v760
    %v762 = vpop.f32.mrf.mxu0
    %v763 = vpop.f32.mrf.mxu0
    %v764 = vpop.f32.mrf.mxu0
    %765 = vdwg.mxu0
    %s766 = scalar_lea.vmem [#allocation9], 16
    %v767 = vld [vmem:[%s766] sm:$0xf]
    %v768 = vld [vmem:[%s766 + $0x4] sm:$0xf]
    %v769 = vld [vmem:[%s766 + $0x8] sm:$0xf]
    %v770 = vld [vmem:[%s766 + $0xc] sm:$0xf]
    %v775 = vunpack.c.l.b16 %v767
    %v776 = vunpack.c.l.b16 %v768
    %v777 = vunpack.c.l.b16 %v769
    %v778 = vunpack.c.l.b16 %v770
    %v779 = vpack.c.b16 %v776, %v775
    %v780 = vpack.c.b16 %v778, %v777
    %783 = vmatprep.subr.bf16.mxu0 0
    %784 = vmatpush1.bf16.msra.mxu0 0
    %785 = vmatprep.subr.bf16.mxu0 0
    %786 = vmatpush1.bf16.msra.mxu0 0
    %787 = vmatprep.subr.bf16.mxu0 0
    %788 = vmatpush1.bf16.msra.mxu0 0
    %789 = vmatprep.subr.bf16.mxu0 0
    %790 = vmatpush1.bf16.msra.mxu0 0
    %791 = vmatprep.subr.bf16.mxu0 0
    %792 = vmatpush1.bf16.msra.mxu0 0
    %793 = vmatprep.subr.bf16.mxu0 0
    %794 = vmatpush1.bf16.msra.mxu0 0
    %795 = vmatprep.subr.bf16.mxu0 0
    %796 = vmatpush1.bf16.msra.mxu0 %v780
    %797 = vmatprep.subr.bf16.mxu0 0
    %798 = vmatpush1.bf16.msra.mxu0 %v779
    %799 = vmatprep.subr.bf16.mxu0 0
    %800 = vmatpush2.bf16.msra.mxu0 0
    %801 = vmatprep.subr.bf16.mxu0 0
    %802 = vmatpush2.bf16.msra.mxu0 0
    %803 = vmatprep.subr.bf16.mxu0 0
    %804 = vmatpush2.bf16.msra.mxu0 0
    %805 = vmatprep.subr.bf16.mxu0 0
    %806 = vmatpush2.bf16.msra.mxu0 0
    %807 = vmatprep.subr.bf16.mxu0 0
    %808 = vmatpush2.bf16.msra.mxu0 0
    %809 = vmatprep.subr.bf16.mxu0 0
    %810 = vmatpush2.bf16.msra.mxu0 0
    %811 = vmatprep.subr.bf16.mxu0 0
    %812 = vmatpush2.bf16.msra.mxu0 0
    %813 = vmatprep.subr.bf16.mxu0 0
    %814 = vmatpush2.bf16.msra.mxu0 0
    %815 = vmatprep.mubr.bf16.mxu0 0
    %816 = vmatmul.mubr.bf16.gmra.mxu0 %v724
    %v817 = vpop.f32.mrf.mxu0
    %v818 = vadd.f32 %v425, %v817
    %v819 = vpop.f32.mrf.mxu0
    %v820 = vpop.f32.mrf.mxu0
    %v821 = vpop.f32.mrf.mxu0
    %822 = vdwg.mxu0
    %s823 = scalar_lea.vmem [#allocation9], 32
    %v824 = vld [vmem:[%s823] sm:$0xf]
    %v825 = vld [vmem:[%s823 + $0x4] sm:$0xf]
    %v826 = vld [vmem:[%s823 + $0x8] sm:$0xf]
    %v827 = vld [vmem:[%s823 + $0xc] sm:$0xf]
    %v832 = vunpack.c.l.b16 %v824
    %v833 = vunpack.c.l.b16 %v825
    %v834 = vunpack.c.l.b16 %v826
    %v835 = vunpack.c.l.b16 %v827
    %v836 = vpack.c.b16 %v833, %v832
    %v837 = vpack.c.b16 %v835, %v834
    %840 = vmatprep.subr.bf16.mxu0 0
    %841 = vmatpush1.bf16.msra.mxu0 0
    %842 = vmatprep.subr.bf16.mxu0 0
    %843 = vmatpush1.bf16.msra.mxu0 0
    %844 = vmatprep.subr.bf16.mxu0 0
    %845 = vmatpush1.bf16.msra.mxu0 0
    %846 = vmatprep.subr.bf16.mxu0 0
    %847 = vmatpush1.bf16.msra.mxu0 0
    %848 = vmatprep.subr.bf16.mxu0 0
    %849 = vmatpush1.bf16.msra.mxu0 0
    %850 = vmatprep.subr.bf16.mxu0 0
    %851 = vmatpush1.bf16.msra.mxu0 0
    %852 = vmatprep.subr.bf16.mxu0 0
    %853 = vmatpush1.bf16.msra.mxu0 %v837
    %854 = vmatprep.subr.bf16.mxu0 0
    %855 = vmatpush1.bf16.msra.mxu0 %v836
    %856 = vmatprep.subr.bf16.mxu0 0
    %857 = vmatpush2.bf16.msra.mxu0 0
    %858 = vmatprep.subr.bf16.mxu0 0
    %859 = vmatpush2.bf16.msra.mxu0 0
    %860 = vmatprep.subr.bf16.mxu0 0
    %861 = vmatpush2.bf16.msra.mxu0 0
    %862 = vmatprep.subr.bf16.mxu0 0
    %863 = vmatpush2.bf16.msra.mxu0 0
    %864 = vmatprep.subr.bf16.mxu0 0
    %865 = vmatpush2.bf16.msra.mxu0 0
    %866 = vmatprep.subr.bf16.mxu0 0
    %867 = vmatpush2.bf16.msra.mxu0 0
    %868 = vmatprep.subr.bf16.mxu0 0
    %869 = vmatpush2.bf16.msra.mxu0 0
    %870 = vmatprep.subr.bf16.mxu0 0
    %871 = vmatpush2.bf16.msra.mxu0 0
    %872 = vmatprep.mubr.bf16.mxu0 0
    %873 = vmatmul.mubr.bf16.gmra.mxu0 %v724
    %v874 = vpop.f32.mrf.mxu0
    %v875 = vadd.f32 %v433, %v874
    %v876 = vpop.f32.mrf.mxu0
    %v877 = vpop.f32.mrf.mxu0
    %v878 = vpop.f32.mrf.mxu0
    %879 = vdwg.mxu0
    %s880 = scalar_lea.vmem [#allocation9], 48
    %v881 = vld [vmem:[%s880] sm:$0xf]
    %v882 = vld [vmem:[%s880 + $0x4] sm:$0xf]
    %v883 = vld [vmem:[%s880 + $0x8] sm:$0xf]
    %v884 = vld [vmem:[%s880 + $0xc] sm:$0xf]
    %v889 = vunpack.c.l.b16 %v881
    %v890 = vunpack.c.l.b16 %v882
    %v891 = vunpack.c.l.b16 %v883
    %v892 = vunpack.c.l.b16 %v884
    %v893 = vpack.c.b16 %v890, %v889
    %v894 = vpack.c.b16 %v892, %v891
    %897 = vmatprep.subr.bf16.mxu0 0
    %898 = vmatpush1.bf16.msra.mxu0 0
    %899 = vmatprep.subr.bf16.mxu0 0
    %900 = vmatpush1.bf16.msra.mxu0 0
    %901 = vmatprep.subr.bf16.mxu0 0
    %902 = vmatpush1.bf16.msra.mxu0 0
    %903 = vmatprep.subr.bf16.mxu0 0
    %904 = vmatpush1.bf16.msra.mxu0 0
    %905 = vmatprep.subr.bf16.mxu0 0
    %906 = vmatpush1.bf16.msra.mxu0 0
    %907 = vmatprep.subr.bf16.mxu0 0
    %908 = vmatpush1.bf16.msra.mxu0 0
    %909 = vmatprep.subr.bf16.mxu0 0
    %910 = vmatpush1.bf16.msra.mxu0 %v894
    %911 = vmatprep.subr.bf16.mxu0 0
    %912 = vmatpush1.bf16.msra.mxu0 %v893
    %913 = vmatprep.subr.bf16.mxu0 0
    %914 = vmatpush2.bf16.msra.mxu0 0
    %915 = vmatprep.subr.bf16.mxu0 0
    %916 = vmatpush2.bf16.msra.mxu0 0
    %917 = vmatprep.subr.bf16.mxu0 0
    %918 = vmatpush2.bf16.msra.mxu0 0
    %919 = vmatprep.subr.bf16.mxu0 0
    %920 = vmatpush2.bf16.msra.mxu0 0
    %921 = vmatprep.subr.bf16.mxu0 0
    %922 = vmatpush2.bf16.msra.mxu0 0
    %923 = vmatprep.subr.bf16.mxu0 0
    %924 = vmatpush2.bf16.msra.mxu0 0
    %925 = vmatprep.subr.bf16.mxu0 0
    %926 = vmatpush2.bf16.msra.mxu0 0
    %927 = vmatprep.subr.bf16.mxu0 0
    %928 = vmatpush2.bf16.msra.mxu0 0
    %929 = vmatprep.mubr.bf16.mxu0 0
    %930 = vmatmul.mubr.bf16.gmra.mxu0 %v724
    %v931 = vpop.f32.mrf.mxu0
    %v932 = vadd.f32 %v441, %v931
    %v933 = vpop.f32.mrf.mxu0
    %v934 = vpop.f32.mrf.mxu0
    %v935 = vpop.f32.mrf.mxu0
    %936 = vdwg.mxu0
    %v937 = vpack.c.bf16 %v445, %v445
    %v938 = vld [vmem:[#allocation11] sm:$0xf]
    %v939 = vld [vmem:[#allocation11 + $0x4] sm:$0xf]
    %v940 = vld [vmem:[#allocation11 + $0x8] sm:$0xf]
    %v941 = vld [vmem:[#allocation11 + $0xc] sm:$0xf]
    %v946 = vunpack.c.l.b16 %v938
    %v947 = vunpack.c.l.b16 %v939
    %v948 = vunpack.c.l.b16 %v940
    %v949 = vunpack.c.l.b16 %v941
    %v950 = vpack.c.b16 %v947, %v946
    %v951 = vpack.c.b16 %v949, %v948
    %v955 = vsel %vm197, %v937, 0
    %957 = vmatprep.subr.bf16.mxu0 0
    %958 = vmatpush1.bf16.msra.mxu0 0
    %959 = vmatprep.subr.bf16.mxu0 0
    %960 = vmatpush1.bf16.msra.mxu0 0
    %961 = vmatprep.subr.bf16.mxu0 0
    %962 = vmatpush1.bf16.msra.mxu0 0
    %963 = vmatprep.subr.bf16.mxu0 0
    %964 = vmatpush1.bf16.msra.mxu0 0
    %965 = vmatprep.subr.bf16.mxu0 0
    %966 = vmatpush1.bf16.msra.mxu0 0
    %967 = vmatprep.subr.bf16.mxu0 0
    %968 = vmatpush1.bf16.msra.mxu0 0
    %969 = vmatprep.subr.bf16.mxu0 0
    %970 = vmatpush1.bf16.msra.mxu0 %v951
    %971 = vmatprep.subr.bf16.mxu0 0
    %972 = vmatpush1.bf16.msra.mxu0 %v950
    %973 = vmatprep.subr.bf16.mxu0 0
    %974 = vmatpush2.bf16.msra.mxu0 0
    %975 = vmatprep.subr.bf16.mxu0 0
    %976 = vmatpush2.bf16.msra.mxu0 0
    %977 = vmatprep.subr.bf16.mxu0 0
    %978 = vmatpush2.bf16.msra.mxu0 0
    %979 = vmatprep.subr.bf16.mxu0 0
    %980 = vmatpush2.bf16.msra.mxu0 0
    %981 = vmatprep.subr.bf16.mxu0 0
    %982 = vmatpush2.bf16.msra.mxu0 0
    %983 = vmatprep.subr.bf16.mxu0 0
    %984 = vmatpush2.bf16.msra.mxu0 0
    %985 = vmatprep.subr.bf16.mxu0 0
    %986 = vmatpush2.bf16.msra.mxu0 0
    %987 = vmatprep.subr.bf16.mxu0 0
    %988 = vmatpush2.bf16.msra.mxu0 0
    %989 = vmatprep.mubr.bf16.mxu0 0
    %990 = vmatmul.mubr.bf16.gmra.mxu0 %v955
    %v991 = vpop.f32.mrf.mxu0
    %v992 = vadd.f32 0.0, %v991
    %v993 = vpop.f32.mrf.mxu0
    %v994 = vpop.f32.mrf.mxu0
    %v995 = vpop.f32.mrf.mxu0
    %996 = vdwg.mxu0
    %v997 = vadd.f32 %v761, %v992
    %s998 = scalar_lea.vmem [#allocation11], 16
    %v999 = vld [vmem:[%s998] sm:$0xf]
    %v1000 = vld [vmem:[%s998 + $0x4] sm:$0xf]
    %v1001 = vld [vmem:[%s998 + $0x8] sm:$0xf]
    %v1002 = vld [vmem:[%s998 + $0xc] sm:$0xf]
    %v1007 = vunpack.c.l.b16 %v999
    %v1008 = vunpack.c.l.b16 %v1000
    %v1009 = vunpack.c.l.b16 %v1001
    %v1010 = vunpack.c.l.b16 %v1002
    %v1011 = vpack.c.b16 %v1008, %v1007
    %v1012 = vpack.c.b16 %v1010, %v1009
    %1015 = vmatprep.subr.bf16.mxu0 0
    %1016 = vmatpush1.bf16.msra.mxu0 0
    %1017 = vmatprep.subr.bf16.mxu0 0
    %1018 = vmatpush1.bf16.msra.mxu0 0
    %1019 = vmatprep.subr.bf16.mxu0 0
    %1020 = vmatpush1.bf16.msra.mxu0 0
    %1021 = vmatprep.subr.bf16.mxu0 0
    %1022 = vmatpush1.bf16.msra.mxu0 0
    %1023 = vmatprep.subr.bf16.mxu0 0
    %1024 = vmatpush1.bf16.msra.mxu0 0
    %1025 = vmatprep.subr.bf16.mxu0 0
    %1026 = vmatpush1.bf16.msra.mxu0 0
    %1027 = vmatprep.subr.bf16.mxu0 0
    %1028 = vmatpush1.bf16.msra.mxu0 %v1012
    %1029 = vmatprep.subr.bf16.mxu0 0
    %1030 = vmatpush1.bf16.msra.mxu0 %v1011
    %1031 = vmatprep.subr.bf16.mxu0 0
    %1032 = vmatpush2.bf16.msra.mxu0 0
    %1033 = vmatprep.subr.bf16.mxu0 0
    %1034 = vmatpush2.bf16.msra.mxu0 0
    %1035 = vmatprep.subr.bf16.mxu0 0
    %1036 = vmatpush2.bf16.msra.mxu0 0
    %1037 = vmatprep.subr.bf16.mxu0 0
    %1038 = vmatpush2.bf16.msra.mxu0 0
    %1039 = vmatprep.subr.bf16.mxu0 0
    %1040 = vmatpush2.bf16.msra.mxu0 0
    %1041 = vmatprep.subr.bf16.mxu0 0
    %1042 = vmatpush2.bf16.msra.mxu0 0
    %1043 = vmatprep.subr.bf16.mxu0 0
    %1044 = vmatpush2.bf16.msra.mxu0 0
    %1045 = vmatprep.subr.bf16.mxu0 0
    %1046 = vmatpush2.bf16.msra.mxu0 0
    %1047 = vmatprep.mubr.bf16.mxu0 0
    %1048 = vmatmul.mubr.bf16.gmra.mxu0 %v955
    %v1049 = vpop.f32.mrf.mxu0
    %v1050 = vadd.f32 0.0, %v1049
    %v1051 = vpop.f32.mrf.mxu0
    %v1052 = vpop.f32.mrf.mxu0
    %v1053 = vpop.f32.mrf.mxu0
    %1054 = vdwg.mxu0
    %v1055 = vadd.f32 %v818, %v1050
    %s1056 = scalar_lea.vmem [#allocation11], 32
    %v1057 = vld [vmem:[%s1056] sm:$0xf]
    %v1058 = vld [vmem:[%s1056 + $0x4] sm:$0xf]
    %v1059 = vld [vmem:[%s1056 + $0x8] sm:$0xf]
    %v1060 = vld [vmem:[%s1056 + $0xc] sm:$0xf]
    %v1065 = vunpack.c.l.b16 %v1057
    %v1066 = vunpack.c.l.b16 %v1058
    %v1067 = vunpack.c.l.b16 %v1059
    %v1068 = vunpack.c.l.b16 %v1060
    %v1069 = vpack.c.b16 %v1066, %v1065
    %v1070 = vpack.c.b16 %v1068, %v1067
    %1073 = vmatprep.subr.bf16.mxu0 0
    %1074 = vmatpush1.bf16.msra.mxu0 0
    %1075 = vmatprep.subr.bf16.mxu0 0
    %1076 = vmatpush1.bf16.msra.mxu0 0
    %1077 = vmatprep.subr.bf16.mxu0 0
    %1078 = vmatpush1.bf16.msra.mxu0 0
    %1079 = vmatprep.subr.bf16.mxu0 0
    %1080 = vmatpush1.bf16.msra.mxu0 0
    %1081 = vmatprep.subr.bf16.mxu0 0
    %1082 = vmatpush1.bf16.msra.mxu0 0
    %1083 = vmatprep.subr.bf16.mxu0 0
    %1084 = vmatpush1.bf16.msra.mxu0 0
    %1085 = vmatprep.subr.bf16.mxu0 0
    %1086 = vmatpush1.bf16.msra.mxu0 %v1070
    %1087 = vmatprep.subr.bf16.mxu0 0
    %1088 = vmatpush1.bf16.msra.mxu0 %v1069
    %1089 = vmatprep.subr.bf16.mxu0 0
    %1090 = vmatpush2.bf16.msra.mxu0 0
    %1091 = vmatprep.subr.bf16.mxu0 0
    %1092 = vmatpush2.bf16.msra.mxu0 0
    %1093 = vmatprep.subr.bf16.mxu0 0
    %1094 = vmatpush2.bf16.msra.mxu0 0
    %1095 = vmatprep.subr.bf16.mxu0 0
    %1096 = vmatpush2.bf16.msra.mxu0 0
    %1097 = vmatprep.subr.bf16.mxu0 0
    %1098 = vmatpush2.bf16.msra.mxu0 0
    %1099 = vmatprep.subr.bf16.mxu0 0
    %1100 = vmatpush2.bf16.msra.mxu0 0
    %1101 = vmatprep.subr.bf16.mxu0 0
    %1102 = vmatpush2.bf16.msra.mxu0 0
    %1103 = vmatprep.subr.bf16.mxu0 0
    %1104 = vmatpush2.bf16.msra.mxu0 0
    %1105 = vmatprep.mubr.bf16.mxu0 0
    %1106 = vmatmul.mubr.bf16.gmra.mxu0 %v955
    %v1107 = vpop.f32.mrf.mxu0
    %v1108 = vadd.f32 0.0, %v1107
    %v1109 = vpop.f32.mrf.mxu0
    %v1110 = vpop.f32.mrf.mxu0
    %v1111 = vpop.f32.mrf.mxu0
    %1112 = vdwg.mxu0
    %v1113 = vadd.f32 %v875, %v1108
    %s1114 = scalar_lea.vmem [#allocation11], 48
    %v1115 = vld [vmem:[%s1114] sm:$0xf]
    %v1116 = vld [vmem:[%s1114 + $0x4] sm:$0xf]
    %v1117 = vld [vmem:[%s1114 + $0x8] sm:$0xf]
    %v1118 = vld [vmem:[%s1114 + $0xc] sm:$0xf]
    %v1123 = vunpack.c.l.b16 %v1115
    %v1124 = vunpack.c.l.b16 %v1116
    %v1125 = vunpack.c.l.b16 %v1117
    %v1126 = vunpack.c.l.b16 %v1118
    %v1127 = vpack.c.b16 %v1124, %v1123
    %v1128 = vpack.c.b16 %v1126, %v1125
    %1131 = vmatprep.subr.bf16.mxu0 0
    %1132 = vmatpush1.bf16.msra.mxu0 0
    %1133 = vmatprep.subr.bf16.mxu0 0
    %1134 = vmatpush1.bf16.msra.mxu0 0
    %1135 = vmatprep.subr.bf16.mxu0 0
    %1136 = vmatpush1.bf16.msra.mxu0 0
    %1137 = vmatprep.subr.bf16.mxu0 0
    %1138 = vmatpush1.bf16.msra.mxu0 0
    %1139 = vmatprep.subr.bf16.mxu0 0
    %1140 = vmatpush1.bf16.msra.mxu0 0
    %1141 = vmatprep.subr.bf16.mxu0 0
    %1142 = vmatpush1.bf16.msra.mxu0 0
    %1143 = vmatprep.subr.bf16.mxu0 0
    %1144 = vmatpush1.bf16.msra.mxu0 %v1128
    %1145 = vmatprep.subr.bf16.mxu0 0
    %1146 = vmatpush1.bf16.msra.mxu0 %v1127
    %1147 = vmatprep.subr.bf16.mxu0 0
    %1148 = vmatpush2.bf16.msra.mxu0 0
    %1149 = vmatprep.subr.bf16.mxu0 0
    %1150 = vmatpush2.bf16.msra.mxu0 0
    %1151 = vmatprep.subr.bf16.mxu0 0
    %1152 = vmatpush2.bf16.msra.mxu0 0
    %1153 = vmatprep.subr.bf16.mxu0 0
    %1154 = vmatpush2.bf16.msra.mxu0 0
    %1155 = vmatprep.subr.bf16.mxu0 0
    %1156 = vmatpush2.bf16.msra.mxu0 0
    %1157 = vmatprep.subr.bf16.mxu0 0
    %1158 = vmatpush2.bf16.msra.mxu0 0
    %1159 = vmatprep.subr.bf16.mxu0 0
    %1160 = vmatpush2.bf16.msra.mxu0 0
    %1161 = vmatprep.subr.bf16.mxu0 0
    %1162 = vmatpush2.bf16.msra.mxu0 0
    %1163 = vmatprep.mubr.bf16.mxu0 0
    %1164 = vmatmul.mubr.bf16.gmra.mxu0 %v955
    %v1165 = vpop.f32.mrf.mxu0
    %v1166 = vadd.f32 0.0, %v1165
    %v1167 = vpop.f32.mrf.mxu0
    %v1168 = vpop.f32.mrf.mxu0
    %v1169 = vpop.f32.mrf.mxu0
    %1170 = vdwg.mxu0
    %v1171 = vadd.f32 %v932, %v1166
    %v1172 = vmul.f32 %v997, 0.5
    %v1173 = vtanh.pop %v1172
    %v1174 = vmul.f32 %v1173, 0.5
    %v1175 = vadd.f32 %v1174, 0.5
    %v1176 = vmul.f32 %v1055, 0.5
    %v1177 = vtanh.pop %v1176
    %v1178 = vmul.f32 %v1177, 0.5
    %v1179 = vadd.f32 %v1178, 0.5
    %v1180 = vtanh.pop %v1113
    %v1181 = vmul.f32 %v1171, 0.5
    %v1182 = vtanh.pop %v1181
    %v1183 = vmul.f32 %v1182, 0.5
    %v1184 = vadd.f32 %v1183, 0.5
    %v1185 = vmul.f32 %v1179, %v448
    %v1186 = vmul.f32 %v1175, %v1180
    %v1187 = vadd.f32 %v1185, %v1186
    %v1188 = vtanh.pop %v1187
    %v1189 = vmul.f32 %v1184, %v1188
    %v1190 = vld [vmem:[#allocation2 + $0x4] sm:$0xf]
    %v1191 = vld [vmem:[#allocation3 + $0x4] sm:$0xf]
    %v1192 = vld [vmem:[#allocation4 + $0x4] sm:$0xf]
    %v1193 = vld [vmem:[#allocation5 + $0x4] sm:$0xf]
    %1194 = vmatprep.subr.bf16.mxu0 0
    %1195 = vmatpush1.bf16.msra.mxu0 0
    %1196 = vmatprep.subr.bf16.mxu0 0
    %1197 = vmatpush1.bf16.msra.mxu0 0
    %1198 = vmatprep.subr.bf16.mxu0 0
    %1199 = vmatpush1.bf16.msra.mxu0 0
    %1200 = vmatprep.subr.bf16.mxu0 0
    %1201 = vmatpush1.bf16.msra.mxu0 0
    %1202 = vmatprep.subr.bf16.mxu0 0
    %1203 = vmatpush1.bf16.msra.mxu0 0
    %1204 = vmatprep.subr.bf16.mxu0 0
    %1205 = vmatpush1.bf16.msra.mxu0 0
    %1206 = vmatprep.subr.bf16.mxu0 0
    %1207 = vmatpush1.bf16.msra.mxu0 %v467
    %1208 = vmatprep.subr.bf16.mxu0 0
    %1209 = vmatpush1.bf16.msra.mxu0 %v466
    %1210 = vmatprep.subr.bf16.mxu0 0
    %1211 = vmatpush2.bf16.msra.mxu0 0
    %1212 = vmatprep.subr.bf16.mxu0 0
    %1213 = vmatpush2.bf16.msra.mxu0 0
    %1214 = vmatprep.subr.bf16.mxu0 0
    %1215 = vmatpush2.bf16.msra.mxu0 0
    %1216 = vmatprep.subr.bf16.mxu0 0
    %1217 = vmatpush2.bf16.msra.mxu0 0
    %1218 = vmatprep.subr.bf16.mxu0 0
    %1219 = vmatpush2.bf16.msra.mxu0 0
    %1220 = vmatprep.subr.bf16.mxu0 0
    %1221 = vmatpush2.bf16.msra.mxu0 0
    %1222 = vmatprep.subr.bf16.mxu0 0
    %1223 = vmatpush2.bf16.msra.mxu0 0
    %1224 = vmatprep.subr.bf16.mxu0 0
    %1225 = vmatpush2.bf16.msra.mxu0 0
    %1226 = vmatprep.mubr.bf16.mxu0 0
    %1227 = vmatmul.mubr.bf16.gmra.mxu0 %v724
    %v1228 = vpop.f32.mrf.mxu0
    %v1229 = vadd.f32 0.0, %v1228
    %v1230 = vpop.f32.mrf.mxu0
    %v1231 = vpop.f32.mrf.mxu0
    %v1232 = vpop.f32.mrf.mxu0
    %1233 = vdwg.mxu0
    %v1234 = vadd.f32 %v1190, %v1229
    %1235 = vmatprep.subr.bf16.mxu0 0
    %1236 = vmatpush1.bf16.msra.mxu0 0
    %1237 = vmatprep.subr.bf16.mxu0 0
    %1238 = vmatpush1.bf16.msra.mxu0 0
    %1239 = vmatprep.subr.bf16.mxu0 0
    %1240 = vmatpush1.bf16.msra.mxu0 0
    %1241 = vmatprep.subr.bf16.mxu0 0
    %1242 = vmatpush1.bf16.msra.mxu0 0
    %1243 = vmatprep.subr.bf16.mxu0 0
    %1244 = vmatpush1.bf16.msra.mxu0 0
    %1245 = vmatprep.subr.bf16.mxu0 0
    %1246 = vmatpush1.bf16.msra.mxu0 0
    %1247 = vmatprep.subr.bf16.mxu0 0
    %1248 = vmatpush1.bf16.msra.mxu0 %v528
    %1249 = vmatprep.subr.bf16.mxu0 0
    %1250 = vmatpush1.bf16.msra.mxu0 %v527
    %1251 = vmatprep.subr.bf16.mxu0 0
    %1252 = vmatpush2.bf16.msra.mxu0 0
    %1253 = vmatprep.subr.bf16.mxu0 0
    %1254 = vmatpush2.bf16.msra.mxu0 0
    %1255 = vmatprep.subr.bf16.mxu0 0
    %1256 = vmatpush2.bf16.msra.mxu0 0
    %1257 = vmatprep.subr.bf16.mxu0 0
    %1258 = vmatpush2.bf16.msra.mxu0 0
    %1259 = vmatprep.subr.bf16.mxu0 0
    %1260 = vmatpush2.bf16.msra.mxu0 0
    %1261 = vmatprep.subr.bf16.mxu0 0
    %1262 = vmatpush2.bf16.msra.mxu0 0
    %1263 = vmatprep.subr.bf16.mxu0 0
    %1264 = vmatpush2.bf16.msra.mxu0 0
    %1265 = vmatprep.subr.bf16.mxu0 0
    %1266 = vmatpush2.bf16.msra.mxu0 0
    %1267 = vmatprep.mubr.bf16.mxu0 0
    %1268 = vmatmul.mubr.bf16.gmra.mxu0 %v724
    %v1269 = vpop.f32.mrf.mxu0
    %v1270 = vadd.f32 0.0, %v1269
    %v1271 = vpop.f32.mrf.mxu0
    %v1272 = vpop.f32.mrf.mxu0
    %v1273 = vpop.f32.mrf.mxu0
    %1274 = vdwg.mxu0
    %v1275 = vadd.f32 %v1191, %v1270
    %1276 = vmatprep.subr.bf16.mxu0 0
    %1277 = vmatpush1.bf16.msra.mxu0 0
    %1278 = vmatprep.subr.bf16.mxu0 0
    %1279 = vmatpush1.bf16.msra.mxu0 0
    %1280 = vmatprep.subr.bf16.mxu0 0
    %1281 = vmatpush1.bf16.msra.mxu0 0
    %1282 = vmatprep.subr.bf16.mxu0 0
    %1283 = vmatpush1.bf16.msra.mxu0 0
    %1284 = vmatprep.subr.bf16.mxu0 0
    %1285 = vmatpush1.bf16.msra.mxu0 0
    %1286 = vmatprep.subr.bf16.mxu0 0
    %1287 = vmatpush1.bf16.msra.mxu0 0
    %1288 = vmatprep.subr.bf16.mxu0 0
    %1289 = vmatpush1.bf16.msra.mxu0 %v586
    %1290 = vmatprep.subr.bf16.mxu0 0
    %1291 = vmatpush1.bf16.msra.mxu0 %v585
    %1292 = vmatprep.subr.bf16.mxu0 0
    %1293 = vmatpush2.bf16.msra.mxu0 0
    %1294 = vmatprep.subr.bf16.mxu0 0
    %1295 = vmatpush2.bf16.msra.mxu0 0
    %1296 = vmatprep.subr.bf16.mxu0 0
    %1297 = vmatpush2.bf16.msra.mxu0 0
    %1298 = vmatprep.subr.bf16.mxu0 0
    %1299 = vmatpush2.bf16.msra.mxu0 0
    %1300 = vmatprep.subr.bf16.mxu0 0
    %1301 = vmatpush2.bf16.msra.mxu0 0
    %1302 = vmatprep.subr.bf16.mxu0 0
    %1303 = vmatpush2.bf16.msra.mxu0 0
    %1304 = vmatprep.subr.bf16.mxu0 0
    %1305 = vmatpush2.bf16.msra.mxu0 0
    %1306 = vmatprep.subr.bf16.mxu0 0
    %1307 = vmatpush2.bf16.msra.mxu0 0
    %1308 = vmatprep.mubr.bf16.mxu0 0
    %1309 = vmatmul.mubr.bf16.gmra.mxu0 %v724
    %v1310 = vpop.f32.mrf.mxu0
    %v1311 = vadd.f32 0.0, %v1310
    %v1312 = vpop.f32.mrf.mxu0
    %v1313 = vpop.f32.mrf.mxu0
    %v1314 = vpop.f32.mrf.mxu0
    %1315 = vdwg.mxu0
    %v1316 = vadd.f32 %v1192, %v1311
    %1317 = vmatprep.subr.bf16.mxu0 0
    %1318 = vmatpush1.bf16.msra.mxu0 0
    %1319 = vmatprep.subr.bf16.mxu0 0
    %1320 = vmatpush1.bf16.msra.mxu0 0
    %1321 = vmatprep.subr.bf16.mxu0 0
    %1322 = vmatpush1.bf16.msra.mxu0 0
    %1323 = vmatprep.subr.bf16.mxu0 0
    %1324 = vmatpush1.bf16.msra.mxu0 0
    %1325 = vmatprep.subr.bf16.mxu0 0
    %1326 = vmatpush1.bf16.msra.mxu0 0
    %1327 = vmatprep.subr.bf16.mxu0 0
    %1328 = vmatpush1.bf16.msra.mxu0 0
    %1329 = vmatprep.subr.bf16.mxu0 0
    %1330 = vmatpush1.bf16.msra.mxu0 %v644
    %1331 = vmatprep.subr.bf16.mxu0 0
    %1332 = vmatpush1.bf16.msra.mxu0 %v643
    %1333 = vmatprep.subr.bf16.mxu0 0
    %1334 = vmatpush2.bf16.msra.mxu0 0
    %1335 = vmatprep.subr.bf16.mxu0 0
    %1336 = vmatpush2.bf16.msra.mxu0 0
    %1337 = vmatprep.subr.bf16.mxu0 0
    %1338 = vmatpush2.bf16.msra.mxu0 0
    %1339 = vmatprep.subr.bf16.mxu0 0
    %1340 = vmatpush2.bf16.msra.mxu0 0
    %1341 = vmatprep.subr.bf16.mxu0 0
    %1342 = vmatpush2.bf16.msra.mxu0 0
    %1343 = vmatprep.subr.bf16.mxu0 0
    %1344 = vmatpush2.bf16.msra.mxu0 0
    %1345 = vmatprep.subr.bf16.mxu0 0
    %1346 = vmatpush2.bf16.msra.mxu0 0
    %1347 = vmatprep.subr.bf16.mxu0 0
    %1348 = vmatpush2.bf16.msra.mxu0 0
    %1349 = vmatprep.mubr.bf16.mxu0 0
    %1350 = vmatmul.mubr.bf16.gmra.mxu0 %v724
    %v1351 = vpop.f32.mrf.mxu0
    %v1352 = vadd.f32 0.0, %v1351
    %v1353 = vpop.f32.mrf.mxu0
    %v1354 = vpop.f32.mrf.mxu0
    %v1355 = vpop.f32.mrf.mxu0
    %1356 = vdwg.mxu0
    %v1357 = vadd.f32 %v1193, %v1352
    %v1358 = vmul.f32 %v1234, 0.5
    %v1359 = vtanh.pop %v1358
    %v1360 = vmul.f32 %v1359, 0.5
    %v1361 = vadd.f32 %v1360, 0.5
    %v1362 = vmul.f32 %v1275, 0.5
    %v1363 = vtanh.pop %v1362
    %v1364 = vmul.f32 %v1363, 0.5
    %v1365 = vadd.f32 %v1364, 0.5
    %v1366 = vtanh.pop %v1316
    %v1367 = vmul.f32 %v1357, 0.5
    %v1368 = vtanh.pop %v1367
    %v1369 = vmul.f32 %v1368, 0.5
    %v1370 = vadd.f32 %v1369, 0.5
    %v1371 = vmul.f32 %v1365, %v703
    %v1372 = vmul.f32 %v1361, %v1366
    %v1373 = vadd.f32 %v1371, %v1372
    %v1374 = vtanh.pop %v1373
    %v1375 = vmul.f32 %v1370, %v1374
    %v1376 = vpack.c.bf16 %v1375, %v1375
    %v1378 = vsel %vm197, %v1376, 0
    %1380 = vmatprep.subr.bf16.mxu0 0
    %1381 = vmatpush1.bf16.msra.mxu0 0
    %1382 = vmatprep.subr.bf16.mxu0 0
    %1383 = vmatpush1.bf16.msra.mxu0 0
    %1384 = vmatprep.subr.bf16.mxu0 0
    %1385 = vmatpush1.bf16.msra.mxu0 0
    %1386 = vmatprep.subr.bf16.mxu0 0
    %1387 = vmatpush1.bf16.msra.mxu0 0
    %1388 = vmatprep.subr.bf16.mxu0 0
    %1389 = vmatpush1.bf16.msra.mxu0 0
    %1390 = vmatprep.subr.bf16.mxu0 0
    %1391 = vmatpush1.bf16.msra.mxu0 0
    %1392 = vmatprep.subr.bf16.mxu0 0
    %1393 = vmatpush1.bf16.msra.mxu0 %v720
    %1394 = vmatprep.subr.bf16.mxu0 0
    %1395 = vmatpush1.bf16.msra.mxu0 %v719
    %1396 = vmatprep.subr.bf16.mxu0 0
    %1397 = vmatpush2.bf16.msra.mxu0 0
    %1398 = vmatprep.subr.bf16.mxu0 0
    %1399 = vmatpush2.bf16.msra.mxu0 0
    %1400 = vmatprep.subr.bf16.mxu0 0
    %1401 = vmatpush2.bf16.msra.mxu0 0
    %1402 = vmatprep.subr.bf16.mxu0 0
    %1403 = vmatpush2.bf16.msra.mxu0 0
    %1404 = vmatprep.subr.bf16.mxu0 0
    %1405 = vmatpush2.bf16.msra.mxu0 0
    %1406 = vmatprep.subr.bf16.mxu0 0
    %1407 = vmatpush2.bf16.msra.mxu0 0
    %1408 = vmatprep.subr.bf16.mxu0 0
    %1409 = vmatpush2.bf16.msra.mxu0 0
    %1410 = vmatprep.subr.bf16.mxu0 0
    %1411 = vmatpush2.bf16.msra.mxu0 0
    %1412 = vmatprep.mubr.bf16.mxu0 0
    %1413 = vmatmul.mubr.bf16.gmra.mxu0 %v1378
    %v1414 = vpop.f32.mrf.mxu0
    %v1415 = vadd.f32 %v417, %v1414
    %v1416 = vpop.f32.mrf.mxu0
    %v1417 = vpop.f32.mrf.mxu0
    %v1418 = vpop.f32.mrf.mxu0
    %1419 = vdwg.mxu0
    %1420 = vmatprep.subr.bf16.mxu0 0
    %1421 = vmatpush1.bf16.msra.mxu0 0
    %1422 = vmatprep.subr.bf16.mxu0 0
    %1423 = vmatpush1.bf16.msra.mxu0 0
    %1424 = vmatprep.subr.bf16.mxu0 0
    %1425 = vmatpush1.bf16.msra.mxu0 0
    %1426 = vmatprep.subr.bf16.mxu0 0
    %1427 = vmatpush1.bf16.msra.mxu0 0
    %1428 = vmatprep.subr.bf16.mxu0 0
    %1429 = vmatpush1.bf16.msra.mxu0 0
    %1430 = vmatprep.subr.bf16.mxu0 0
    %1431 = vmatpush1.bf16.msra.mxu0 0
    %1432 = vmatprep.subr.bf16.mxu0 0
    %1433 = vmatpush1.bf16.msra.mxu0 %v780
    %1434 = vmatprep.subr.bf16.mxu0 0
    %1435 = vmatpush1.bf16.msra.mxu0 %v779
    %1436 = vmatprep.subr.bf16.mxu0 0
    %1437 = vmatpush2.bf16.msra.mxu0 0
    %1438 = vmatprep.subr.bf16.mxu0 0
    %1439 = vmatpush2.bf16.msra.mxu0 0
    %1440 = vmatprep.subr.bf16.mxu0 0
    %1441 = vmatpush2.bf16.msra.mxu0 0
    %1442 = vmatprep.subr.bf16.mxu0 0
    %1443 = vmatpush2.bf16.msra.mxu0 0
    %1444 = vmatprep.subr.bf16.mxu0 0
    %1445 = vmatpush2.bf16.msra.mxu0 0
    %1446 = vmatprep.subr.bf16.mxu0 0
    %1447 = vmatpush2.bf16.msra.mxu0 0
    %1448 = vmatprep.subr.bf16.mxu0 0
    %1449 = vmatpush2.bf16.msra.mxu0 0
    %1450 = vmatprep.subr.bf16.mxu0 0
    %1451 = vmatpush2.bf16.msra.mxu0 0
    %1452 = vmatprep.mubr.bf16.mxu0 0
    %1453 = vmatmul.mubr.bf16.gmra.mxu0 %v1378
    %v1454 = vpop.f32.mrf.mxu0
    %v1455 = vadd.f32 %v425, %v1454
    %v1456 = vpop.f32.mrf.mxu0
    %v1457 = vpop.f32.mrf.mxu0
    %v1458 = vpop.f32.mrf.mxu0
    %1459 = vdwg.mxu0
    %1460 = vmatprep.subr.bf16.mxu0 0
    %1461 = vmatpush1.bf16.msra.mxu0 0
    %1462 = vmatprep.subr.bf16.mxu0 0
    %1463 = vmatpush1.bf16.msra.mxu0 0
    %1464 = vmatprep.subr.bf16.mxu0 0
    %1465 = vmatpush1.bf16.msra.mxu0 0
    %1466 = vmatprep.subr.bf16.mxu0 0
    %1467 = vmatpush1.bf16.msra.mxu0 0
    %1468 = vmatprep.subr.bf16.mxu0 0
    %1469 = vmatpush1.bf16.msra.mxu0 0
    %1470 = vmatprep.subr.bf16.mxu0 0
    %1471 = vmatpush1.bf16.msra.mxu0 0
    %1472 = vmatprep.subr.bf16.mxu0 0
    %1473 = vmatpush1.bf16.msra.mxu0 %v837
    %1474 = vmatprep.subr.bf16.mxu0 0
    %1475 = vmatpush1.bf16.msra.mxu0 %v836
    %1476 = vmatprep.subr.bf16.mxu0 0
    %1477 = vmatpush2.bf16.msra.mxu0 0
    %1478 = vmatprep.subr.bf16.mxu0 0
    %1479 = vmatpush2.bf16.msra.mxu0 0
    %1480 = vmatprep.subr.bf16.mxu0 0
    %1481 = vmatpush2.bf16.msra.mxu0 0
    %1482 = vmatprep.subr.bf16.mxu0 0
    %1483 = vmatpush2.bf16.msra.mxu0 0
    %1484 = vmatprep.subr.bf16.mxu0 0
    %1485 = vmatpush2.bf16.msra.mxu0 0
    %1486 = vmatprep.subr.bf16.mxu0 0
    %1487 = vmatpush2.bf16.msra.mxu0 0
    %1488 = vmatprep.subr.bf16.mxu0 0
    %1489 = vmatpush2.bf16.msra.mxu0 0
    %1490 = vmatprep.subr.bf16.mxu0 0
    %1491 = vmatpush2.bf16.msra.mxu0 0
    %1492 = vmatprep.mubr.bf16.mxu0 0
    %1493 = vmatmul.mubr.bf16.gmra.mxu0 %v1378
    %v1494 = vpop.f32.mrf.mxu0
    %v1495 = vadd.f32 %v433, %v1494
    %v1496 = vpop.f32.mrf.mxu0
    %v1497 = vpop.f32.mrf.mxu0
    %v1498 = vpop.f32.mrf.mxu0
    %1499 = vdwg.mxu0
    %1500 = vmatprep.subr.bf16.mxu0 0
    %1501 = vmatpush1.bf16.msra.mxu0 0
    %1502 = vmatprep.subr.bf16.mxu0 0
    %1503 = vmatpush1.bf16.msra.mxu0 0
    %1504 = vmatprep.subr.bf16.mxu0 0
    %1505 = vmatpush1.bf16.msra.mxu0 0
    %1506 = vmatprep.subr.bf16.mxu0 0
    %1507 = vmatpush1.bf16.msra.mxu0 0
    %1508 = vmatprep.subr.bf16.mxu0 0
    %1509 = vmatpush1.bf16.msra.mxu0 0
    %1510 = vmatprep.subr.bf16.mxu0 0
    %1511 = vmatpush1.bf16.msra.mxu0 0
    %1512 = vmatprep.subr.bf16.mxu0 0
    %1513 = vmatpush1.bf16.msra.mxu0 %v894
    %1514 = vmatprep.subr.bf16.mxu0 0
    %1515 = vmatpush1.bf16.msra.mxu0 %v893
    %1516 = vmatprep.subr.bf16.mxu0 0
    %1517 = vmatpush2.bf16.msra.mxu0 0
    %1518 = vmatprep.subr.bf16.mxu0 0
    %1519 = vmatpush2.bf16.msra.mxu0 0
    %1520 = vmatprep.subr.bf16.mxu0 0
    %1521 = vmatpush2.bf16.msra.mxu0 0
    %1522 = vmatprep.subr.bf16.mxu0 0
    %1523 = vmatpush2.bf16.msra.mxu0 0
    %1524 = vmatprep.subr.bf16.mxu0 0
    %1525 = vmatpush2.bf16.msra.mxu0 0
    %1526 = vmatprep.subr.bf16.mxu0 0
    %1527 = vmatpush2.bf16.msra.mxu0 0
    %1528 = vmatprep.subr.bf16.mxu0 0
    %1529 = vmatpush2.bf16.msra.mxu0 0
    %1530 = vmatprep.subr.bf16.mxu0 0
    %1531 = vmatpush2.bf16.msra.mxu0 0
    %1532 = vmatprep.mubr.bf16.mxu0 0
    %1533 = vmatmul.mubr.bf16.gmra.mxu0 %v1378
    %v1534 = vpop.f32.mrf.mxu0
    %v1535 = vadd.f32 %v441, %v1534
    %v1536 = vpop.f32.mrf.mxu0
    %v1537 = vpop.f32.mrf.mxu0
    %v1538 = vpop.f32.mrf.mxu0
    %1539 = vdwg.mxu0
    %v1540 = vpack.c.bf16 %v1189, %v1189
    %v1542 = vsel %vm197, %v1540, 0
    %1544 = vmatprep.subr.bf16.mxu0 0
    %1545 = vmatpush1.bf16.msra.mxu0 0
    %1546 = vmatprep.subr.bf16.mxu0 0
    %1547 = vmatpush1.bf16.msra.mxu0 0
    %1548 = vmatprep.subr.bf16.mxu0 0
    %1549 = vmatpush1.bf16.msra.mxu0 0
    %1550 = vmatprep.subr.bf16.mxu0 0
    %1551 = vmatpush1.bf16.msra.mxu0 0
    %1552 = vmatprep.subr.bf16.mxu0 0
    %1553 = vmatpush1.bf16.msra.mxu0 0
    %1554 = vmatprep.subr.bf16.mxu0 0
    %1555 = vmatpush1.bf16.msra.mxu0 0
    %1556 = vmatprep.subr.bf16.mxu0 0
    %1557 = vmatpush1.bf16.msra.mxu0 %v951
    %1558 = vmatprep.subr.bf16.mxu0 0
    %1559 = vmatpush1.bf16.msra.mxu0 %v950
    %1560 = vmatprep.subr.bf16.mxu0 0
    %1561 = vmatpush2.bf16.msra.mxu0 0
    %1562 = vmatprep.subr.bf16.mxu0 0
    %1563 = vmatpush2.bf16.msra.mxu0 0
    %1564 = vmatprep.subr.bf16.mxu0 0
    %1565 = vmatpush2.bf16.msra.mxu0 0
    %1566 = vmatprep.subr.bf16.mxu0 0
    %1567 = vmatpush2.bf16.msra.mxu0 0
    %1568 = vmatprep.subr.bf16.mxu0 0
    %1569 = vmatpush2.bf16.msra.mxu0 0
    %1570 = vmatprep.subr.bf16.mxu0 0
    %1571 = vmatpush2.bf16.msra.mxu0 0
    %1572 = vmatprep.subr.bf16.mxu0 0
    %1573 = vmatpush2.bf16.msra.mxu0 0
    %1574 = vmatprep.subr.bf16.mxu0 0
    %1575 = vmatpush2.bf16.msra.mxu0 0
    %1576 = vmatprep.mubr.bf16.mxu0 0
    %1577 = vmatmul.mubr.bf16.gmra.mxu0 %v1542
    %v1578 = vpop.f32.mrf.mxu0
    %v1579 = vadd.f32 0.0, %v1578
    %v1580 = vpop.f32.mrf.mxu0
    %v1581 = vpop.f32.mrf.mxu0
    %v1582 = vpop.f32.mrf.mxu0
    %1583 = vdwg.mxu0
    %v1584 = vadd.f32 %v1415, %v1579
    %1585 = vmatprep.subr.bf16.mxu0 0
    %1586 = vmatpush1.bf16.msra.mxu0 0
    %1587 = vmatprep.subr.bf16.mxu0 0
    %1588 = vmatpush1.bf16.msra.mxu0 0
    %1589 = vmatprep.subr.bf16.mxu0 0
    %1590 = vmatpush1.bf16.msra.mxu0 0
    %1591 = vmatprep.subr.bf16.mxu0 0
    %1592 = vmatpush1.bf16.msra.mxu0 0
    %1593 = vmatprep.subr.bf16.mxu0 0
    %1594 = vmatpush1.bf16.msra.mxu0 0
    %1595 = vmatprep.subr.bf16.mxu0 0
    %1596 = vmatpush1.bf16.msra.mxu0 0
    %1597 = vmatprep.subr.bf16.mxu0 0
    %1598 = vmatpush1.bf16.msra.mxu0 %v1012
    %1599 = vmatprep.subr.bf16.mxu0 0
    %1600 = vmatpush1.bf16.msra.mxu0 %v1011
    %1601 = vmatprep.subr.bf16.mxu0 0
    %1602 = vmatpush2.bf16.msra.mxu0 0
    %1603 = vmatprep.subr.bf16.mxu0 0
    %1604 = vmatpush2.bf16.msra.mxu0 0
    %1605 = vmatprep.subr.bf16.mxu0 0
    %1606 = vmatpush2.bf16.msra.mxu0 0
    %1607 = vmatprep.subr.bf16.mxu0 0
    %1608 = vmatpush2.bf16.msra.mxu0 0
    %1609 = vmatprep.subr.bf16.mxu0 0
    %1610 = vmatpush2.bf16.msra.mxu0 0
    %1611 = vmatprep.subr.bf16.mxu0 0
    %1612 = vmatpush2.bf16.msra.mxu0 0
    %1613 = vmatprep.subr.bf16.mxu0 0
    %1614 = vmatpush2.bf16.msra.mxu0 0
    %1615 = vmatprep.subr.bf16.mxu0 0
    %1616 = vmatpush2.bf16.msra.mxu0 0
    %1617 = vmatprep.mubr.bf16.mxu0 0
    %1618 = vmatmul.mubr.bf16.gmra.mxu0 %v1542
    %v1619 = vpop.f32.mrf.mxu0
    %v1620 = vadd.f32 0.0, %v1619
    %v1621 = vpop.f32.mrf.mxu0
    %v1622 = vpop.f32.mrf.mxu0
    %v1623 = vpop.f32.mrf.mxu0
    %1624 = vdwg.mxu0
    %v1625 = vadd.f32 %v1455, %v1620
    %1626 = vmatprep.subr.bf16.mxu0 0
    %1627 = vmatpush1.bf16.msra.mxu0 0
    %1628 = vmatprep.subr.bf16.mxu0 0
    %1629 = vmatpush1.bf16.msra.mxu0 0
    %1630 = vmatprep.subr.bf16.mxu0 0
    %1631 = vmatpush1.bf16.msra.mxu0 0
    %1632 = vmatprep.subr.bf16.mxu0 0
    %1633 = vmatpush1.bf16.msra.mxu0 0
    %1634 = vmatprep.subr.bf16.mxu0 0
    %1635 = vmatpush1.bf16.msra.mxu0 0
    %1636 = vmatprep.subr.bf16.mxu0 0
    %1637 = vmatpush1.bf16.msra.mxu0 0
    %1638 = vmatprep.subr.bf16.mxu0 0
    %1639 = vmatpush1.bf16.msra.mxu0 %v1070
    %1640 = vmatprep.subr.bf16.mxu0 0
    %1641 = vmatpush1.bf16.msra.mxu0 %v1069
    %1642 = vmatprep.subr.bf16.mxu0 0
    %1643 = vmatpush2.bf16.msra.mxu0 0
    %1644 = vmatprep.subr.bf16.mxu0 0
    %1645 = vmatpush2.bf16.msra.mxu0 0
    %1646 = vmatprep.subr.bf16.mxu0 0
    %1647 = vmatpush2.bf16.msra.mxu0 0
    %1648 = vmatprep.subr.bf16.mxu0 0
    %1649 = vmatpush2.bf16.msra.mxu0 0
    %1650 = vmatprep.subr.bf16.mxu0 0
    %1651 = vmatpush2.bf16.msra.mxu0 0
    %1652 = vmatprep.subr.bf16.mxu0 0
    %1653 = vmatpush2.bf16.msra.mxu0 0
    %1654 = vmatprep.subr.bf16.mxu0 0
    %1655 = vmatpush2.bf16.msra.mxu0 0
    %1656 = vmatprep.subr.bf16.mxu0 0
    %1657 = vmatpush2.bf16.msra.mxu0 0
    %1658 = vmatprep.mubr.bf16.mxu0 0
    %1659 = vmatmul.mubr.bf16.gmra.mxu0 %v1542
    %v1660 = vpop.f32.mrf.mxu0
    %v1661 = vadd.f32 0.0, %v1660
    %v1662 = vpop.f32.mrf.mxu0
    %v1663 = vpop.f32.mrf.mxu0
    %v1664 = vpop.f32.mrf.mxu0
    %1665 = vdwg.mxu0
    %v1666 = vadd.f32 %v1495, %v1661
    %1667 = vmatprep.subr.bf16.mxu0 0
    %1668 = vmatpush1.bf16.msra.mxu0 0
    %1669 = vmatprep.subr.bf16.mxu0 0
    %1670 = vmatpush1.bf16.msra.mxu0 0
    %1671 = vmatprep.subr.bf16.mxu0 0
    %1672 = vmatpush1.bf16.msra.mxu0 0
    %1673 = vmatprep.subr.bf16.mxu0 0
    %1674 = vmatpush1.bf16.msra.mxu0 0
    %1675 = vmatprep.subr.bf16.mxu0 0
    %1676 = vmatpush1.bf16.msra.mxu0 0
    %1677 = vmatprep.subr.bf16.mxu0 0
    %1678 = vmatpush1.bf16.msra.mxu0 0
    %1679 = vmatprep.subr.bf16.mxu0 0
    %1680 = vmatpush1.bf16.msra.mxu0 %v1128
    %1681 = vmatprep.subr.bf16.mxu0 0
    %1682 = vmatpush1.bf16.msra.mxu0 %v1127
    %1683 = vmatprep.subr.bf16.mxu0 0
    %1684 = vmatpush2.bf16.msra.mxu0 0
    %1685 = vmatprep.subr.bf16.mxu0 0
    %1686 = vmatpush2.bf16.msra.mxu0 0
    %1687 = vmatprep.subr.bf16.mxu0 0
    %1688 = vmatpush2.bf16.msra.mxu0 0
    %1689 = vmatprep.subr.bf16.mxu0 0
    %1690 = vmatpush2.bf16.msra.mxu0 0
    %1691 = vmatprep.subr.bf16.mxu0 0
    %1692 = vmatpush2.bf16.msra.mxu0 0
    %1693 = vmatprep.subr.bf16.mxu0 0
    %1694 = vmatpush2.bf16.msra.mxu0 0
    %1695 = vmatprep.subr.bf16.mxu0 0
    %1696 = vmatpush2.bf16.msra.mxu0 0
    %1697 = vmatprep.subr.bf16.mxu0 0
    %1698 = vmatpush2.bf16.msra.mxu0 0
    %1699 = vmatprep.mubr.bf16.mxu0 0
    %1700 = vmatmul.mubr.bf16.gmra.mxu0 %v1542
    %v1701 = vpop.f32.mrf.mxu0
    %v1702 = vadd.f32 0.0, %v1701
    %v1703 = vpop.f32.mrf.mxu0
    %v1704 = vpop.f32.mrf.mxu0
    %v1705 = vpop.f32.mrf.mxu0
    %1706 = vdwg.mxu0
    %v1707 = vadd.f32 %v1535, %v1702
    %v1708 = vmul.f32 %v1584, 0.5
    %v1709 = vtanh.pop %v1708
    %v1710 = vmul.f32 %v1709, 0.5
    %v1711 = vadd.f32 %v1710, 0.5
    %v1712 = vmul.f32 %v1625, 0.5
    %v1713 = vtanh.pop %v1712
    %v1714 = vmul.f32 %v1713, 0.5
    %v1715 = vadd.f32 %v1714, 0.5
    %v1716 = vtanh.pop %v1666
    %v1717 = vmul.f32 %v1707, 0.5
    %v1718 = vtanh.pop %v1717
    %v1719 = vmul.f32 %v1718, 0.5
    %v1720 = vadd.f32 %v1719, 0.5
    %v1721 = vmul.f32 %v1715, %v1187
    %v1722 = vmul.f32 %v1711, %v1716
    %v1723 = vadd.f32 %v1721, %v1722
    %v1724 = vtanh.pop %v1723
    %v1725 = vmul.f32 %v1720, %v1724
    %v1726 = vld [vmem:[#allocation2 + $0x8] sm:$0xf]
    %v1727 = vld [vmem:[#allocation3 + $0x8] sm:$0xf]
    %v1728 = vld [vmem:[#allocation4 + $0x8] sm:$0xf]
    %v1729 = vld [vmem:[#allocation5 + $0x8] sm:$0xf]
    %1730 = vmatprep.subr.bf16.mxu0 0
    %1731 = vmatpush1.bf16.msra.mxu0 0
    %1732 = vmatprep.subr.bf16.mxu0 0
    %1733 = vmatpush1.bf16.msra.mxu0 0
    %1734 = vmatprep.subr.bf16.mxu0 0
    %1735 = vmatpush1.bf16.msra.mxu0 0
    %1736 = vmatprep.subr.bf16.mxu0 0
    %1737 = vmatpush1.bf16.msra.mxu0 0
    %1738 = vmatprep.subr.bf16.mxu0 0
    %1739 = vmatpush1.bf16.msra.mxu0 0
    %1740 = vmatprep.subr.bf16.mxu0 0
    %1741 = vmatpush1.bf16.msra.mxu0 0
    %1742 = vmatprep.subr.bf16.mxu0 0
    %1743 = vmatpush1.bf16.msra.mxu0 %v467
    %1744 = vmatprep.subr.bf16.mxu0 0
    %1745 = vmatpush1.bf16.msra.mxu0 %v466
    %1746 = vmatprep.subr.bf16.mxu0 0
    %1747 = vmatpush2.bf16.msra.mxu0 0
    %1748 = vmatprep.subr.bf16.mxu0 0
    %1749 = vmatpush2.bf16.msra.mxu0 0
    %1750 = vmatprep.subr.bf16.mxu0 0
    %1751 = vmatpush2.bf16.msra.mxu0 0
    %1752 = vmatprep.subr.bf16.mxu0 0
    %1753 = vmatpush2.bf16.msra.mxu0 0
    %1754 = vmatprep.subr.bf16.mxu0 0
    %1755 = vmatpush2.bf16.msra.mxu0 0
    %1756 = vmatprep.subr.bf16.mxu0 0
    %1757 = vmatpush2.bf16.msra.mxu0 0
    %1758 = vmatprep.subr.bf16.mxu0 0
    %1759 = vmatpush2.bf16.msra.mxu0 0
    %1760 = vmatprep.subr.bf16.mxu0 0
    %1761 = vmatpush2.bf16.msra.mxu0 0
    %1762 = vmatprep.mubr.bf16.mxu0 0
    %1763 = vmatmul.mubr.bf16.gmra.mxu0 %v1378
    %v1764 = vpop.f32.mrf.mxu0
    %v1765 = vadd.f32 0.0, %v1764
    %v1766 = vpop.f32.mrf.mxu0
    %v1767 = vpop.f32.mrf.mxu0
    %v1768 = vpop.f32.mrf.mxu0
    %1769 = vdwg.mxu0
    %v1770 = vadd.f32 %v1726, %v1765
    %1771 = vmatprep.subr.bf16.mxu0 0
    %1772 = vmatpush1.bf16.msra.mxu0 0
    %1773 = vmatprep.subr.bf16.mxu0 0
    %1774 = vmatpush1.bf16.msra.mxu0 0
    %1775 = vmatprep.subr.bf16.mxu0 0
    %1776 = vmatpush1.bf16.msra.mxu0 0
    %1777 = vmatprep.subr.bf16.mxu0 0
    %1778 = vmatpush1.bf16.msra.mxu0 0
    %1779 = vmatprep.subr.bf16.mxu0 0
    %1780 = vmatpush1.bf16.msra.mxu0 0
    %1781 = vmatprep.subr.bf16.mxu0 0
    %1782 = vmatpush1.bf16.msra.mxu0 0
    %1783 = vmatprep.subr.bf16.mxu0 0
    %1784 = vmatpush1.bf16.msra.mxu0 %v528
    %1785 = vmatprep.subr.bf16.mxu0 0
    %1786 = vmatpush1.bf16.msra.mxu0 %v527
    %1787 = vmatprep.subr.bf16.mxu0 0
    %1788 = vmatpush2.bf16.msra.mxu0 0
    %1789 = vmatprep.subr.bf16.mxu0 0
    %1790 = vmatpush2.bf16.msra.mxu0 0
    %1791 = vmatprep.subr.bf16.mxu0 0
    %1792 = vmatpush2.bf16.msra.mxu0 0
    %1793 = vmatprep.subr.bf16.mxu0 0
    %1794 = vmatpush2.bf16.msra.mxu0 0
    %1795 = vmatprep.subr.bf16.mxu0 0
    %1796 = vmatpush2.bf16.msra.mxu0 0
    %1797 = vmatprep.subr.bf16.mxu0 0
    %1798 = vmatpush2.bf16.msra.mxu0 0
    %1799 = vmatprep.subr.bf16.mxu0 0
    %1800 = vmatpush2.bf16.msra.mxu0 0
    %1801 = vmatprep.subr.bf16.mxu0 0
    %1802 = vmatpush2.bf16.msra.mxu0 0
    %1803 = vmatprep.mubr.bf16.mxu0 0
    %1804 = vmatmul.mubr.bf16.gmra.mxu0 %v1378
    %v1805 = vpop.f32.mrf.mxu0
    %v1806 = vadd.f32 0.0, %v1805
    %v1807 = vpop.f32.mrf.mxu0
    %v1808 = vpop.f32.mrf.mxu0
    %v1809 = vpop.f32.mrf.mxu0
    %1810 = vdwg.mxu0
    %v1811 = vadd.f32 %v1727, %v1806
    %1812 = vmatprep.subr.bf16.mxu0 0
    %1813 = vmatpush1.bf16.msra.mxu0 0
    %1814 = vmatprep.subr.bf16.mxu0 0
    %1815 = vmatpush1.bf16.msra.mxu0 0
    %1816 = vmatprep.subr.bf16.mxu0 0
    %1817 = vmatpush1.bf16.msra.mxu0 0
    %1818 = vmatprep.subr.bf16.mxu0 0
    %1819 = vmatpush1.bf16.msra.mxu0 0
    %1820 = vmatprep.subr.bf16.mxu0 0
    %1821 = vmatpush1.bf16.msra.mxu0 0
    %1822 = vmatprep.subr.bf16.mxu0 0
    %1823 = vmatpush1.bf16.msra.mxu0 0
    %1824 = vmatprep.subr.bf16.mxu0 0
    %1825 = vmatpush1.bf16.msra.mxu0 %v586
    %1826 = vmatprep.subr.bf16.mxu0 0
    %1827 = vmatpush1.bf16.msra.mxu0 %v585
    %1828 = vmatprep.subr.bf16.mxu0 0
    %1829 = vmatpush2.bf16.msra.mxu0 0
    %1830 = vmatprep.subr.bf16.mxu0 0
    %1831 = vmatpush2.bf16.msra.mxu0 0
    %1832 = vmatprep.subr.bf16.mxu0 0
    %1833 = vmatpush2.bf16.msra.mxu0 0
    %1834 = vmatprep.subr.bf16.mxu0 0
    %1835 = vmatpush2.bf16.msra.mxu0 0
    %1836 = vmatprep.subr.bf16.mxu0 0
    %1837 = vmatpush2.bf16.msra.mxu0 0
    %1838 = vmatprep.subr.bf16.mxu0 0
    %1839 = vmatpush2.bf16.msra.mxu0 0
    %1840 = vmatprep.subr.bf16.mxu0 0
    %1841 = vmatpush2.bf16.msra.mxu0 0
    %1842 = vmatprep.subr.bf16.mxu0 0
    %1843 = vmatpush2.bf16.msra.mxu0 0
    %1844 = vmatprep.mubr.bf16.mxu0 0
    %1845 = vmatmul.mubr.bf16.gmra.mxu0 %v1378
    %v1846 = vpop.f32.mrf.mxu0
    %v1847 = vadd.f32 0.0, %v1846
    %v1848 = vpop.f32.mrf.mxu0
    %v1849 = vpop.f32.mrf.mxu0
    %v1850 = vpop.f32.mrf.mxu0
    %1851 = vdwg.mxu0
    %v1852 = vadd.f32 %v1728, %v1847
    %1853 = vmatprep.subr.bf16.mxu0 0
    %1854 = vmatpush1.bf16.msra.mxu0 0
    %1855 = vmatprep.subr.bf16.mxu0 0
    %1856 = vmatpush1.bf16.msra.mxu0 0
    %1857 = vmatprep.subr.bf16.mxu0 0
    %1858 = vmatpush1.bf16.msra.mxu0 0
    %1859 = vmatprep.subr.bf16.mxu0 0
    %1860 = vmatpush1.bf16.msra.mxu0 0
    %1861 = vmatprep.subr.bf16.mxu0 0
    %1862 = vmatpush1.bf16.msra.mxu0 0
    %1863 = vmatprep.subr.bf16.mxu0 0
    %1864 = vmatpush1.bf16.msra.mxu0 0
    %1865 = vmatprep.subr.bf16.mxu0 0
    %1866 = vmatpush1.bf16.msra.mxu0 %v644
    %1867 = vmatprep.subr.bf16.mxu0 0
    %1868 = vmatpush1.bf16.msra.mxu0 %v643
    %1869 = vmatprep.subr.bf16.mxu0 0
    %1870 = vmatpush2.bf16.msra.mxu0 0
    %1871 = vmatprep.subr.bf16.mxu0 0
    %1872 = vmatpush2.bf16.msra.mxu0 0
    %1873 = vmatprep.subr.bf16.mxu0 0
    %1874 = vmatpush2.bf16.msra.mxu0 0
    %1875 = vmatprep.subr.bf16.mxu0 0
    %1876 = vmatpush2.bf16.msra.mxu0 0
    %1877 = vmatprep.subr.bf16.mxu0 0
    %1878 = vmatpush2.bf16.msra.mxu0 0
    %1879 = vmatprep.subr.bf16.mxu0 0
    %1880 = vmatpush2.bf16.msra.mxu0 0
    %1881 = vmatprep.subr.bf16.mxu0 0
    %1882 = vmatpush2.bf16.msra.mxu0 0
    %1883 = vmatprep.subr.bf16.mxu0 0
    %1884 = vmatpush2.bf16.msra.mxu0 0
    %1885 = vmatprep.mubr.bf16.mxu0 0
    %1886 = vmatmul.mubr.bf16.gmra.mxu0 %v1378
    %v1887 = vpop.f32.mrf.mxu0
    %v1888 = vadd.f32 0.0, %v1887
    %v1889 = vpop.f32.mrf.mxu0
    %v1890 = vpop.f32.mrf.mxu0
    %v1891 = vpop.f32.mrf.mxu0
    %1892 = vdwg.mxu0
    %v1893 = vadd.f32 %v1729, %v1888
    %v1894 = vmul.f32 %v1770, 0.5
    %v1895 = vtanh.pop %v1894
    %v1896 = vmul.f32 %v1895, 0.5
    %v1897 = vadd.f32 %v1896, 0.5
    %v1898 = vmul.f32 %v1811, 0.5
    %v1899 = vtanh.pop %v1898
    %v1900 = vmul.f32 %v1899, 0.5
    %v1901 = vadd.f32 %v1900, 0.5
    %v1902 = vtanh.pop %v1852
    %v1903 = vmul.f32 %v1893, 0.5
    %v1904 = vtanh.pop %v1903
    %v1905 = vmul.f32 %v1904, 0.5
    %v1906 = vadd.f32 %v1905, 0.5
    %v1907 = vmul.f32 %v1901, %v1373
    %v1908 = vmul.f32 %v1897, %v1902
    %v1909 = vadd.f32 %v1907, %v1908
    %v1910 = vtanh.pop %v1909
    %v1911 = vmul.f32 %v1906, %v1910
    %v1912 = vpack.c.bf16 %v1911, %v1911
    %v1914 = vsel %vm197, %v1912, 0
    %1916 = vmatprep.subr.bf16.mxu0 0
    %1917 = vmatpush1.bf16.msra.mxu0 0
    %1918 = vmatprep.subr.bf16.mxu0 0
    %1919 = vmatpush1.bf16.msra.mxu0 0
    %1920 = vmatprep.subr.bf16.mxu0 0
    %1921 = vmatpush1.bf16.msra.mxu0 0
    %1922 = vmatprep.subr.bf16.mxu0 0
    %1923 = vmatpush1.bf16.msra.mxu0 0
    %1924 = vmatprep.subr.bf16.mxu0 0
    %1925 = vmatpush1.bf16.msra.mxu0 0
    %1926 = vmatprep.subr.bf16.mxu0 0
    %1927 = vmatpush1.bf16.msra.mxu0 0
    %1928 = vmatprep.subr.bf16.mxu0 0
    %1929 = vmatpush1.bf16.msra.mxu0 %v720
    %1930 = vmatprep.subr.bf16.mxu0 0
    %1931 = vmatpush1.bf16.msra.mxu0 %v719
    %1932 = vmatprep.subr.bf16.mxu0 0
    %1933 = vmatpush2.bf16.msra.mxu0 0
    %1934 = vmatprep.subr.bf16.mxu0 0
    %1935 = vmatpush2.bf16.msra.mxu0 0
    %1936 = vmatprep.subr.bf16.mxu0 0
    %1937 = vmatpush2.bf16.msra.mxu0 0
    %1938 = vmatprep.subr.bf16.mxu0 0
    %1939 = vmatpush2.bf16.msra.mxu0 0
    %1940 = vmatprep.subr.bf16.mxu0 0
    %1941 = vmatpush2.bf16.msra.mxu0 0
    %1942 = vmatprep.subr.bf16.mxu0 0
    %1943 = vmatpush2.bf16.msra.mxu0 0
    %1944 = vmatprep.subr.bf16.mxu0 0
    %1945 = vmatpush2.bf16.msra.mxu0 0
    %1946 = vmatprep.subr.bf16.mxu0 0
    %1947 = vmatpush2.bf16.msra.mxu0 0
    %1948 = vmatprep.mubr.bf16.mxu0 0
    %1949 = vmatmul.mubr.bf16.gmra.mxu0 %v1914
    %v1950 = vpop.f32.mrf.mxu0
    %v1951 = vadd.f32 %v417, %v1950
    %v1952 = vpop.f32.mrf.mxu0
    %v1953 = vpop.f32.mrf.mxu0
    %v1954 = vpop.f32.mrf.mxu0
    %1955 = vdwg.mxu0
    %1956 = vmatprep.subr.bf16.mxu0 0
    %1957 = vmatpush1.bf16.msra.mxu0 0
    %1958 = vmatprep.subr.bf16.mxu0 0
    %1959 = vmatpush1.bf16.msra.mxu0 0
    %1960 = vmatprep.subr.bf16.mxu0 0
    %1961 = vmatpush1.bf16.msra.mxu0 0
    %1962 = vmatprep.subr.bf16.mxu0 0
    %1963 = vmatpush1.bf16.msra.mxu0 0
    %1964 = vmatprep.subr.bf16.mxu0 0
    %1965 = vmatpush1.bf16.msra.mxu0 0
    %1966 = vmatprep.subr.bf16.mxu0 0
    %1967 = vmatpush1.bf16.msra.mxu0 0
    %1968 = vmatprep.subr.bf16.mxu0 0
    %1969 = vmatpush1.bf16.msra.mxu0 %v780
    %1970 = vmatprep.subr.bf16.mxu0 0
    %1971 = vmatpush1.bf16.msra.mxu0 %v779
    %1972 = vmatprep.subr.bf16.mxu0 0
    %1973 = vmatpush2.bf16.msra.mxu0 0
    %1974 = vmatprep.subr.bf16.mxu0 0
    %1975 = vmatpush2.bf16.msra.mxu0 0
    %1976 = vmatprep.subr.bf16.mxu0 0
    %1977 = vmatpush2.bf16.msra.mxu0 0
    %1978 = vmatprep.subr.bf16.mxu0 0
    %1979 = vmatpush2.bf16.msra.mxu0 0
    %1980 = vmatprep.subr.bf16.mxu0 0
    %1981 = vmatpush2.bf16.msra.mxu0 0
    %1982 = vmatprep.subr.bf16.mxu0 0
    %1983 = vmatpush2.bf16.msra.mxu0 0
    %1984 = vmatprep.subr.bf16.mxu0 0
    %1985 = vmatpush2.bf16.msra.mxu0 0
    %1986 = vmatprep.subr.bf16.mxu0 0
    %1987 = vmatpush2.bf16.msra.mxu0 0
    %1988 = vmatprep.mubr.bf16.mxu0 0
    %1989 = vmatmul.mubr.bf16.gmra.mxu0 %v1914
    %v1990 = vpop.f32.mrf.mxu0
    %v1991 = vadd.f32 %v425, %v1990
    %v1992 = vpop.f32.mrf.mxu0
    %v1993 = vpop.f32.mrf.mxu0
    %v1994 = vpop.f32.mrf.mxu0
    %1995 = vdwg.mxu0
    %1996 = vmatprep.subr.bf16.mxu0 0
    %1997 = vmatpush1.bf16.msra.mxu0 0
    %1998 = vmatprep.subr.bf16.mxu0 0
    %1999 = vmatpush1.bf16.msra.mxu0 0
    %2000 = vmatprep.subr.bf16.mxu0 0
    %2001 = vmatpush1.bf16.msra.mxu0 0
    %2002 = vmatprep.subr.bf16.mxu0 0
    %2003 = vmatpush1.bf16.msra.mxu0 0
    %2004 = vmatprep.subr.bf16.mxu0 0
    %2005 = vmatpush1.bf16.msra.mxu0 0
    %2006 = vmatprep.subr.bf16.mxu0 0
    %2007 = vmatpush1.bf16.msra.mxu0 0
    %2008 = vmatprep.subr.bf16.mxu0 0
    %2009 = vmatpush1.bf16.msra.mxu0 %v837
    %2010 = vmatprep.subr.bf16.mxu0 0
    %2011 = vmatpush1.bf16.msra.mxu0 %v836
    %2012 = vmatprep.subr.bf16.mxu0 0
    %2013 = vmatpush2.bf16.msra.mxu0 0
    %2014 = vmatprep.subr.bf16.mxu0 0
    %2015 = vmatpush2.bf16.msra.mxu0 0
    %2016 = vmatprep.subr.bf16.mxu0 0
    %2017 = vmatpush2.bf16.msra.mxu0 0
    %2018 = vmatprep.subr.bf16.mxu0 0
    %2019 = vmatpush2.bf16.msra.mxu0 0
    %2020 = vmatprep.subr.bf16.mxu0 0
    %2021 = vmatpush2.bf16.msra.mxu0 0
    %2022 = vmatprep.subr.bf16.mxu0 0
    %2023 = vmatpush2.bf16.msra.mxu0 0
    %2024 = vmatprep.subr.bf16.mxu0 0
    %2025 = vmatpush2.bf16.msra.mxu0 0
    %2026 = vmatprep.subr.bf16.mxu0 0
    %2027 = vmatpush2.bf16.msra.mxu0 0
    %2028 = vmatprep.mubr.bf16.mxu0 0
    %2029 = vmatmul.mubr.bf16.gmra.mxu0 %v1914
    %v2030 = vpop.f32.mrf.mxu0
    %v2031 = vadd.f32 %v433, %v2030
    %v2032 = vpop.f32.mrf.mxu0
    %v2033 = vpop.f32.mrf.mxu0
    %v2034 = vpop.f32.mrf.mxu0
    %2035 = vdwg.mxu0
    %2036 = vmatprep.subr.bf16.mxu0 0
    %2037 = vmatpush1.bf16.msra.mxu0 0
    %2038 = vmatprep.subr.bf16.mxu0 0
    %2039 = vmatpush1.bf16.msra.mxu0 0
    %2040 = vmatprep.subr.bf16.mxu0 0
    %2041 = vmatpush1.bf16.msra.mxu0 0
    %2042 = vmatprep.subr.bf16.mxu0 0
    %2043 = vmatpush1.bf16.msra.mxu0 0
    %2044 = vmatprep.subr.bf16.mxu0 0
    %2045 = vmatpush1.bf16.msra.mxu0 0
    %2046 = vmatprep.subr.bf16.mxu0 0
    %2047 = vmatpush1.bf16.msra.mxu0 0
    %2048 = vmatprep.subr.bf16.mxu0 0
    %2049 = vmatpush1.bf16.msra.mxu0 %v894
    %2050 = vmatprep.subr.bf16.mxu0 0
    %2051 = vmatpush1.bf16.msra.mxu0 %v893
    %2052 = vmatprep.subr.bf16.mxu0 0
    %2053 = vmatpush2.bf16.msra.mxu0 0
    %2054 = vmatprep.subr.bf16.mxu0 0
    %2055 = vmatpush2.bf16.msra.mxu0 0
    %2056 = vmatprep.subr.bf16.mxu0 0
    %2057 = vmatpush2.bf16.msra.mxu0 0
    %2058 = vmatprep.subr.bf16.mxu0 0
    %2059 = vmatpush2.bf16.msra.mxu0 0
    %2060 = vmatprep.subr.bf16.mxu0 0
    %2061 = vmatpush2.bf16.msra.mxu0 0
    %2062 = vmatprep.subr.bf16.mxu0 0
    %2063 = vmatpush2.bf16.msra.mxu0 0
    %2064 = vmatprep.subr.bf16.mxu0 0
    %2065 = vmatpush2.bf16.msra.mxu0 0
    %2066 = vmatprep.subr.bf16.mxu0 0
    %2067 = vmatpush2.bf16.msra.mxu0 0
    %2068 = vmatprep.mubr.bf16.mxu0 0
    %2069 = vmatmul.mubr.bf16.gmra.mxu0 %v1914
    %v2070 = vpop.f32.mrf.mxu0
    %v2071 = vadd.f32 %v441, %v2070
    %v2072 = vpop.f32.mrf.mxu0
    %v2073 = vpop.f32.mrf.mxu0
    %v2074 = vpop.f32.mrf.mxu0
    %2075 = vdwg.mxu0
    %v2076 = vpack.c.bf16 %v1725, %v1725
    %v2078 = vsel %vm197, %v2076, 0
    %2080 = vmatprep.subr.bf16.mxu0 0
    %2081 = vmatpush1.bf16.msra.mxu0 0
    %2082 = vmatprep.subr.bf16.mxu0 0
    %2083 = vmatpush1.bf16.msra.mxu0 0
    %2084 = vmatprep.subr.bf16.mxu0 0
    %2085 = vmatpush1.bf16.msra.mxu0 0
    %2086 = vmatprep.subr.bf16.mxu0 0
    %2087 = vmatpush1.bf16.msra.mxu0 0
    %2088 = vmatprep.subr.bf16.mxu0 0
    %2089 = vmatpush1.bf16.msra.mxu0 0
    %2090 = vmatprep.subr.bf16.mxu0 0
    %2091 = vmatpush1.bf16.msra.mxu0 0
    %2092 = vmatprep.subr.bf16.mxu0 0
    %2093 = vmatpush1.bf16.msra.mxu0 %v951
    %2094 = vmatprep.subr.bf16.mxu0 0
    %2095 = vmatpush1.bf16.msra.mxu0 %v950
    %2096 = vmatprep.subr.bf16.mxu0 0
    %2097 = vmatpush2.bf16.msra.mxu0 0
    %2098 = vmatprep.subr.bf16.mxu0 0
    %2099 = vmatpush2.bf16.msra.mxu0 0
    %2100 = vmatprep.subr.bf16.mxu0 0
    %2101 = vmatpush2.bf16.msra.mxu0 0
    %2102 = vmatprep.subr.bf16.mxu0 0
    %2103 = vmatpush2.bf16.msra.mxu0 0
    %2104 = vmatprep.subr.bf16.mxu0 0
    %2105 = vmatpush2.bf16.msra.mxu0 0
    %2106 = vmatprep.subr.bf16.mxu0 0
    %2107 = vmatpush2.bf16.msra.mxu0 0
    %2108 = vmatprep.subr.bf16.mxu0 0
    %2109 = vmatpush2.bf16.msra.mxu0 0
    %2110 = vmatprep.subr.bf16.mxu0 0
    %2111 = vmatpush2.bf16.msra.mxu0 0
    %2112 = vmatprep.mubr.bf16.mxu0 0
    %2113 = vmatmul.mubr.bf16.gmra.mxu0 %v2078
    %v2114 = vpop.f32.mrf.mxu0
    %v2115 = vadd.f32 0.0, %v2114
    %v2116 = vpop.f32.mrf.mxu0
    %v2117 = vpop.f32.mrf.mxu0
    %v2118 = vpop.f32.mrf.mxu0
    %2119 = vdwg.mxu0
    %v2120 = vadd.f32 %v1951, %v2115
    %2121 = vmatprep.subr.bf16.mxu0 0
    %2122 = vmatpush1.bf16.msra.mxu0 0
    %2123 = vmatprep.subr.bf16.mxu0 0
    %2124 = vmatpush1.bf16.msra.mxu0 0
    %2125 = vmatprep.subr.bf16.mxu0 0
    %2126 = vmatpush1.bf16.msra.mxu0 0
    %2127 = vmatprep.subr.bf16.mxu0 0
    %2128 = vmatpush1.bf16.msra.mxu0 0
    %2129 = vmatprep.subr.bf16.mxu0 0
    %2130 = vmatpush1.bf16.msra.mxu0 0
    %2131 = vmatprep.subr.bf16.mxu0 0
    %2132 = vmatpush1.bf16.msra.mxu0 0
    %2133 = vmatprep.subr.bf16.mxu0 0
    %2134 = vmatpush1.bf16.msra.mxu0 %v1012
    %2135 = vmatprep.subr.bf16.mxu0 0
    %2136 = vmatpush1.bf16.msra.mxu0 %v1011
    %2137 = vmatprep.subr.bf16.mxu0 0
    %2138 = vmatpush2.bf16.msra.mxu0 0
    %2139 = vmatprep.subr.bf16.mxu0 0
    %2140 = vmatpush2.bf16.msra.mxu0 0
    %2141 = vmatprep.subr.bf16.mxu0 0
    %2142 = vmatpush2.bf16.msra.mxu0 0
    %2143 = vmatprep.subr.bf16.mxu0 0
    %2144 = vmatpush2.bf16.msra.mxu0 0
    %2145 = vmatprep.subr.bf16.mxu0 0
    %2146 = vmatpush2.bf16.msra.mxu0 0
    %2147 = vmatprep.subr.bf16.mxu0 0
    %2148 = vmatpush2.bf16.msra.mxu0 0
    %2149 = vmatprep.subr.bf16.mxu0 0
    %2150 = vmatpush2.bf16.msra.mxu0 0
    %2151 = vmatprep.subr.bf16.mxu0 0
    %2152 = vmatpush2.bf16.msra.mxu0 0
    %2153 = vmatprep.mubr.bf16.mxu0 0
    %2154 = vmatmul.mubr.bf16.gmra.mxu0 %v2078
    %v2155 = vpop.f32.mrf.mxu0
    %v2156 = vadd.f32 0.0, %v2155
    %v2157 = vpop.f32.mrf.mxu0
    %v2158 = vpop.f32.mrf.mxu0
    %v2159 = vpop.f32.mrf.mxu0
    %2160 = vdwg.mxu0
    %v2161 = vadd.f32 %v1991, %v2156
    %2162 = vmatprep.subr.bf16.mxu0 0
    %2163 = vmatpush1.bf16.msra.mxu0 0
    %2164 = vmatprep.subr.bf16.mxu0 0
    %2165 = vmatpush1.bf16.msra.mxu0 0
    %2166 = vmatprep.subr.bf16.mxu0 0
    %2167 = vmatpush1.bf16.msra.mxu0 0
    %2168 = vmatprep.subr.bf16.mxu0 0
    %2169 = vmatpush1.bf16.msra.mxu0 0
    %2170 = vmatprep.subr.bf16.mxu0 0
    %2171 = vmatpush1.bf16.msra.mxu0 0
    %2172 = vmatprep.subr.bf16.mxu0 0
    %2173 = vmatpush1.bf16.msra.mxu0 0
    %2174 = vmatprep.subr.bf16.mxu0 0
    %2175 = vmatpush1.bf16.msra.mxu0 %v1070
    %2176 = vmatprep.subr.bf16.mxu0 0
    %2177 = vmatpush1.bf16.msra.mxu0 %v1069
    %2178 = vmatprep.subr.bf16.mxu0 0
    %2179 = vmatpush2.bf16.msra.mxu0 0
    %2180 = vmatprep.subr.bf16.mxu0 0
    %2181 = vmatpush2.bf16.msra.mxu0 0
    %2182 = vmatprep.subr.bf16.mxu0 0
    %2183 = vmatpush2.bf16.msra.mxu0 0
    %2184 = vmatprep.subr.bf16.mxu0 0
    %2185 = vmatpush2.bf16.msra.mxu0 0
    %2186 = vmatprep.subr.bf16.mxu0 0
    %2187 = vmatpush2.bf16.msra.mxu0 0
    %2188 = vmatprep.subr.bf16.mxu0 0
    %2189 = vmatpush2.bf16.msra.mxu0 0
    %2190 = vmatprep.subr.bf16.mxu0 0
    %2191 = vmatpush2.bf16.msra.mxu0 0
    %2192 = vmatprep.subr.bf16.mxu0 0
    %2193 = vmatpush2.bf16.msra.mxu0 0
    %2194 = vmatprep.mubr.bf16.mxu0 0
    %2195 = vmatmul.mubr.bf16.gmra.mxu0 %v2078
    %v2196 = vpop.f32.mrf.mxu0
    %v2197 = vadd.f32 0.0, %v2196
    %v2198 = vpop.f32.mrf.mxu0
    %v2199 = vpop.f32.mrf.mxu0
    %v2200 = vpop.f32.mrf.mxu0
    %2201 = vdwg.mxu0
    %v2202 = vadd.f32 %v2031, %v2197
    %2203 = vmatprep.subr.bf16.mxu0 0
    %2204 = vmatpush1.bf16.msra.mxu0 0
    %2205 = vmatprep.subr.bf16.mxu0 0
    %2206 = vmatpush1.bf16.msra.mxu0 0
    %2207 = vmatprep.subr.bf16.mxu0 0
    %2208 = vmatpush1.bf16.msra.mxu0 0
    %2209 = vmatprep.subr.bf16.mxu0 0
    %2210 = vmatpush1.bf16.msra.mxu0 0
    %2211 = vmatprep.subr.bf16.mxu0 0
    %2212 = vmatpush1.bf16.msra.mxu0 0
    %2213 = vmatprep.subr.bf16.mxu0 0
    %2214 = vmatpush1.bf16.msra.mxu0 0
    %2215 = vmatprep.subr.bf16.mxu0 0
    %2216 = vmatpush1.bf16.msra.mxu0 %v1128
    %2217 = vmatprep.subr.bf16.mxu0 0
    %2218 = vmatpush1.bf16.msra.mxu0 %v1127
    %2219 = vmatprep.subr.bf16.mxu0 0
    %2220 = vmatpush2.bf16.msra.mxu0 0
    %2221 = vmatprep.subr.bf16.mxu0 0
    %2222 = vmatpush2.bf16.msra.mxu0 0
    %2223 = vmatprep.subr.bf16.mxu0 0
    %2224 = vmatpush2.bf16.msra.mxu0 0
    %2225 = vmatprep.subr.bf16.mxu0 0
    %2226 = vmatpush2.bf16.msra.mxu0 0
    %2227 = vmatprep.subr.bf16.mxu0 0
    %2228 = vmatpush2.bf16.msra.mxu0 0
    %2229 = vmatprep.subr.bf16.mxu0 0
    %2230 = vmatpush2.bf16.msra.mxu0 0
    %2231 = vmatprep.subr.bf16.mxu0 0
    %2232 = vmatpush2.bf16.msra.mxu0 0
    %2233 = vmatprep.subr.bf16.mxu0 0
    %2234 = vmatpush2.bf16.msra.mxu0 0
    %2235 = vmatprep.mubr.bf16.mxu0 0
    %2236 = vmatmul.mubr.bf16.gmra.mxu0 %v2078
    %v2237 = vpop.f32.mrf.mxu0
    %v2238 = vadd.f32 0.0, %v2237
    %v2239 = vpop.f32.mrf.mxu0
    %v2240 = vpop.f32.mrf.mxu0
    %v2241 = vpop.f32.mrf.mxu0
    %2242 = vdwg.mxu0
    %v2243 = vadd.f32 %v2071, %v2238
    %v2244 = vmul.f32 %v2120, 0.5
    %v2245 = vtanh.pop %v2244
    %v2246 = vmul.f32 %v2245, 0.5
    %v2247 = vadd.f32 %v2246, 0.5
    %v2248 = vmul.f32 %v2161, 0.5
    %v2249 = vtanh.pop %v2248
    %v2250 = vmul.f32 %v2249, 0.5
    %v2251 = vadd.f32 %v2250, 0.5
    %v2252 = vtanh.pop %v2202
    %v2253 = vmul.f32 %v2243, 0.5
    %v2254 = vtanh.pop %v2253
    %v2255 = vmul.f32 %v2254, 0.5
    %v2256 = vadd.f32 %v2255, 0.5
    %v2257 = vmul.f32 %v2251, %v1723
    %v2258 = vmul.f32 %v2247, %v2252
    %v2259 = vadd.f32 %v2257, %v2258
    %v2260 = vtanh.pop %v2259
    %v2261 = vmul.f32 %v2256, %v2260
    %v2262 = vld [vmem:[#allocation2 + $0xc] sm:$0xf]
    %v2263 = vld [vmem:[#allocation3 + $0xc] sm:$0xf]
    %v2264 = vld [vmem:[#allocation4 + $0xc] sm:$0xf]
    %v2265 = vld [vmem:[#allocation5 + $0xc] sm:$0xf]
    %2266 = vmatprep.subr.bf16.mxu0 0
    %2267 = vmatpush1.bf16.msra.mxu0 0
    %2268 = vmatprep.subr.bf16.mxu0 0
    %2269 = vmatpush1.bf16.msra.mxu0 0
    %2270 = vmatprep.subr.bf16.mxu0 0
    %2271 = vmatpush1.bf16.msra.mxu0 0
    %2272 = vmatprep.subr.bf16.mxu0 0
    %2273 = vmatpush1.bf16.msra.mxu0 0
    %2274 = vmatprep.subr.bf16.mxu0 0
    %2275 = vmatpush1.bf16.msra.mxu0 0
    %2276 = vmatprep.subr.bf16.mxu0 0
    %2277 = vmatpush1.bf16.msra.mxu0 0
    %2278 = vmatprep.subr.bf16.mxu0 0
    %2279 = vmatpush1.bf16.msra.mxu0 %v467
    %2280 = vmatprep.subr.bf16.mxu0 0
    %2281 = vmatpush1.bf16.msra.mxu0 %v466
    %2282 = vmatprep.subr.bf16.mxu0 0
    %2283 = vmatpush2.bf16.msra.mxu0 0
    %2284 = vmatprep.subr.bf16.mxu0 0
    %2285 = vmatpush2.bf16.msra.mxu0 0
    %2286 = vmatprep.subr.bf16.mxu0 0
    %2287 = vmatpush2.bf16.msra.mxu0 0
    %2288 = vmatprep.subr.bf16.mxu0 0
    %2289 = vmatpush2.bf16.msra.mxu0 0
    %2290 = vmatprep.subr.bf16.mxu0 0
    %2291 = vmatpush2.bf16.msra.mxu0 0
    %2292 = vmatprep.subr.bf16.mxu0 0
    %2293 = vmatpush2.bf16.msra.mxu0 0
    %2294 = vmatprep.subr.bf16.mxu0 0
    %2295 = vmatpush2.bf16.msra.mxu0 0
    %2296 = vmatprep.subr.bf16.mxu0 0
    %2297 = vmatpush2.bf16.msra.mxu0 0
    %2298 = vmatprep.mubr.bf16.mxu0 0
    %2299 = vmatmul.mubr.bf16.gmra.mxu0 %v1914
    %v2300 = vpop.f32.mrf.mxu0
    %v2301 = vadd.f32 0.0, %v2300
    %v2302 = vpop.f32.mrf.mxu0
    %v2303 = vpop.f32.mrf.mxu0
    %v2304 = vpop.f32.mrf.mxu0
    %2305 = vdwg.mxu0
    %v2306 = vadd.f32 %v2262, %v2301
    %2307 = vmatprep.subr.bf16.mxu0 0
    %2308 = vmatpush1.bf16.msra.mxu0 0
    %2309 = vmatprep.subr.bf16.mxu0 0
    %2310 = vmatpush1.bf16.msra.mxu0 0
    %2311 = vmatprep.subr.bf16.mxu0 0
    %2312 = vmatpush1.bf16.msra.mxu0 0
    %2313 = vmatprep.subr.bf16.mxu0 0
    %2314 = vmatpush1.bf16.msra.mxu0 0
    %2315 = vmatprep.subr.bf16.mxu0 0
    %2316 = vmatpush1.bf16.msra.mxu0 0
    %2317 = vmatprep.subr.bf16.mxu0 0
    %2318 = vmatpush1.bf16.msra.mxu0 0
    %2319 = vmatprep.subr.bf16.mxu0 0
    %2320 = vmatpush1.bf16.msra.mxu0 %v528
    %2321 = vmatprep.subr.bf16.mxu0 0
    %2322 = vmatpush1.bf16.msra.mxu0 %v527
    %2323 = vmatprep.subr.bf16.mxu0 0
    %2324 = vmatpush2.bf16.msra.mxu0 0
    %2325 = vmatprep.subr.bf16.mxu0 0
    %2326 = vmatpush2.bf16.msra.mxu0 0
    %2327 = vmatprep.subr.bf16.mxu0 0
    %2328 = vmatpush2.bf16.msra.mxu0 0
    %2329 = vmatprep.subr.bf16.mxu0 0
    %2330 = vmatpush2.bf16.msra.mxu0 0
    %2331 = vmatprep.subr.bf16.mxu0 0
    %2332 = vmatpush2.bf16.msra.mxu0 0
    %2333 = vmatprep.subr.bf16.mxu0 0
    %2334 = vmatpush2.bf16.msra.mxu0 0
    %2335 = vmatprep.subr.bf16.mxu0 0
    %2336 = vmatpush2.bf16.msra.mxu0 0
    %2337 = vmatprep.subr.bf16.mxu0 0
    %2338 = vmatpush2.bf16.msra.mxu0 0
    %2339 = vmatprep.mubr.bf16.mxu0 0
    %2340 = vmatmul.mubr.bf16.gmra.mxu0 %v1914
    %v2341 = vpop.f32.mrf.mxu0
    %v2342 = vadd.f32 0.0, %v2341
    %v2343 = vpop.f32.mrf.mxu0
    %v2344 = vpop.f32.mrf.mxu0
    %v2345 = vpop.f32.mrf.mxu0
    %2346 = vdwg.mxu0
    %v2347 = vadd.f32 %v2263, %v2342
    %2348 = vmatprep.subr.bf16.mxu0 0
    %2349 = vmatpush1.bf16.msra.mxu0 0
    %2350 = vmatprep.subr.bf16.mxu0 0
    %2351 = vmatpush1.bf16.msra.mxu0 0
    %2352 = vmatprep.subr.bf16.mxu0 0
    %2353 = vmatpush1.bf16.msra.mxu0 0
    %2354 = vmatprep.subr.bf16.mxu0 0
    %2355 = vmatpush1.bf16.msra.mxu0 0
    %2356 = vmatprep.subr.bf16.mxu0 0
    %2357 = vmatpush1.bf16.msra.mxu0 0
    %2358 = vmatprep.subr.bf16.mxu0 0
    %2359 = vmatpush1.bf16.msra.mxu0 0
    %2360 = vmatprep.subr.bf16.mxu0 0
    %2361 = vmatpush1.bf16.msra.mxu0 %v586
    %2362 = vmatprep.subr.bf16.mxu0 0
    %2363 = vmatpush1.bf16.msra.mxu0 %v585
    %2364 = vmatprep.subr.bf16.mxu0 0
    %2365 = vmatpush2.bf16.msra.mxu0 0
    %2366 = vmatprep.subr.bf16.mxu0 0
    %2367 = vmatpush2.bf16.msra.mxu0 0
    %2368 = vmatprep.subr.bf16.mxu0 0
    %2369 = vmatpush2.bf16.msra.mxu0 0
    %2370 = vmatprep.subr.bf16.mxu0 0
    %2371 = vmatpush2.bf16.msra.mxu0 0
    %2372 = vmatprep.subr.bf16.mxu0 0
    %2373 = vmatpush2.bf16.msra.mxu0 0
    %2374 = vmatprep.subr.bf16.mxu0 0
    %2375 = vmatpush2.bf16.msra.mxu0 0
    %2376 = vmatprep.subr.bf16.mxu0 0
    %2377 = vmatpush2.bf16.msra.mxu0 0
    %2378 = vmatprep.subr.bf16.mxu0 0
    %2379 = vmatpush2.bf16.msra.mxu0 0
    %2380 = vmatprep.mubr.bf16.mxu0 0
    %2381 = vmatmul.mubr.bf16.gmra.mxu0 %v1914
    %v2382 = vpop.f32.mrf.mxu0
    %v2383 = vadd.f32 0.0, %v2382
    %v2384 = vpop.f32.mrf.mxu0
    %v2385 = vpop.f32.mrf.mxu0
    %v2386 = vpop.f32.mrf.mxu0
    %2387 = vdwg.mxu0
    %v2388 = vadd.f32 %v2264, %v2383
    %2389 = vmatprep.subr.bf16.mxu0 0
    %2390 = vmatpush1.bf16.msra.mxu0 0
    %2391 = vmatprep.subr.bf16.mxu0 0
    %2392 = vmatpush1.bf16.msra.mxu0 0
    %2393 = vmatprep.subr.bf16.mxu0 0
    %2394 = vmatpush1.bf16.msra.mxu0 0
    %2395 = vmatprep.subr.bf16.mxu0 0
    %2396 = vmatpush1.bf16.msra.mxu0 0
    %2397 = vmatprep.subr.bf16.mxu0 0
    %2398 = vmatpush1.bf16.msra.mxu0 0
    %2399 = vmatprep.subr.bf16.mxu0 0
    %2400 = vmatpush1.bf16.msra.mxu0 0
    %2401 = vmatprep.subr.bf16.mxu0 0
    %2402 = vmatpush1.bf16.msra.mxu0 %v644
    %2403 = vmatprep.subr.bf16.mxu0 0
    %2404 = vmatpush1.bf16.msra.mxu0 %v643
    %2405 = vmatprep.subr.bf16.mxu0 0
    %2406 = vmatpush2.bf16.msra.mxu0 0
    %2407 = vmatprep.subr.bf16.mxu0 0
    %2408 = vmatpush2.bf16.msra.mxu0 0
    %2409 = vmatprep.subr.bf16.mxu0 0
    %2410 = vmatpush2.bf16.msra.mxu0 0
    %2411 = vmatprep.subr.bf16.mxu0 0
    %2412 = vmatpush2.bf16.msra.mxu0 0
    %2413 = vmatprep.subr.bf16.mxu0 0
    %2414 = vmatpush2.bf16.msra.mxu0 0
    %2415 = vmatprep.subr.bf16.mxu0 0
    %2416 = vmatpush2.bf16.msra.mxu0 0
    %2417 = vmatprep.subr.bf16.mxu0 0
    %2418 = vmatpush2.bf16.msra.mxu0 0
    %2419 = vmatprep.subr.bf16.mxu0 0
    %2420 = vmatpush2.bf16.msra.mxu0 0
    %2421 = vmatprep.mubr.bf16.mxu0 0
    %2422 = vmatmul.mubr.bf16.gmra.mxu0 %v1914
    %v2423 = vpop.f32.mrf.mxu0
    %v2424 = vadd.f32 0.0, %v2423
    %v2425 = vpop.f32.mrf.mxu0
    %v2426 = vpop.f32.mrf.mxu0
    %v2427 = vpop.f32.mrf.mxu0
    %2428 = vdwg.mxu0
    %v2429 = vadd.f32 %v2265, %v2424
    %v2430 = vmul.f32 %v2306, 0.5
    %v2431 = vtanh.pop %v2430
    %v2432 = vmul.f32 %v2431, 0.5
    %v2433 = vadd.f32 %v2432, 0.5
    %v2434 = vmul.f32 %v2347, 0.5
    %v2435 = vtanh.pop %v2434
    %v2436 = vmul.f32 %v2435, 0.5
    %v2437 = vadd.f32 %v2436, 0.5
    %v2438 = vtanh.pop %v2388
    %v2439 = vmul.f32 %v2429, 0.5
    %v2440 = vtanh.pop %v2439
    %v2441 = vmul.f32 %v2440, 0.5
    %v2442 = vadd.f32 %v2441, 0.5
    %v2443 = vmul.f32 %v2437, %v1909
    %v2444 = vmul.f32 %v2433, %v2438
    %v2445 = vadd.f32 %v2443, %v2444
    %v2446 = vtanh.pop %v2445
    %v2447 = vmul.f32 %v2442, %v2446
    %v2448 = vpack.c.bf16 %v2447, %v2447
    %v2450 = vsel %vm197, %v2448, 0
    %2452 = vmatprep.subr.bf16.mxu0 0
    %2453 = vmatpush1.bf16.msra.mxu0 0
    %2454 = vmatprep.subr.bf16.mxu0 0
    %2455 = vmatpush1.bf16.msra.mxu0 0
    %2456 = vmatprep.subr.bf16.mxu0 0
    %2457 = vmatpush1.bf16.msra.mxu0 0
    %2458 = vmatprep.subr.bf16.mxu0 0
    %2459 = vmatpush1.bf16.msra.mxu0 0
    %2460 = vmatprep.subr.bf16.mxu0 0
    %2461 = vmatpush1.bf16.msra.mxu0 0
    %2462 = vmatprep.subr.bf16.mxu0 0
    %2463 = vmatpush1.bf16.msra.mxu0 0
    %2464 = vmatprep.subr.bf16.mxu0 0
    %2465 = vmatpush1.bf16.msra.mxu0 %v720
    %2466 = vmatprep.subr.bf16.mxu0 0
    %2467 = vmatpush1.bf16.msra.mxu0 %v719
    %2468 = vmatprep.subr.bf16.mxu0 0
    %2469 = vmatpush2.bf16.msra.mxu0 0
    %2470 = vmatprep.subr.bf16.mxu0 0
    %2471 = vmatpush2.bf16.msra.mxu0 0
    %2472 = vmatprep.subr.bf16.mxu0 0
    %2473 = vmatpush2.bf16.msra.mxu0 0
    %2474 = vmatprep.subr.bf16.mxu0 0
    %2475 = vmatpush2.bf16.msra.mxu0 0
    %2476 = vmatprep.subr.bf16.mxu0 0
    %2477 = vmatpush2.bf16.msra.mxu0 0
    %2478 = vmatprep.subr.bf16.mxu0 0
    %2479 = vmatpush2.bf16.msra.mxu0 0
    %2480 = vmatprep.subr.bf16.mxu0 0
    %2481 = vmatpush2.bf16.msra.mxu0 0
    %2482 = vmatprep.subr.bf16.mxu0 0
    %2483 = vmatpush2.bf16.msra.mxu0 0
    %2484 = vmatprep.mubr.bf16.mxu0 0
    %2485 = vmatmul.mubr.bf16.gmra.mxu0 %v2450
    %v2486 = vpop.f32.mrf.mxu0
    %v2487 = vadd.f32 %v417, %v2486
    %v2488 = vpop.f32.mrf.mxu0
    %v2489 = vpop.f32.mrf.mxu0
    %v2490 = vpop.f32.mrf.mxu0
    %2491 = vdwg.mxu0
    %2492 = vmatprep.subr.bf16.mxu0 0
    %2493 = vmatpush1.bf16.msra.mxu0 0
    %2494 = vmatprep.subr.bf16.mxu0 0
    %2495 = vmatpush1.bf16.msra.mxu0 0
    %2496 = vmatprep.subr.bf16.mxu0 0
    %2497 = vmatpush1.bf16.msra.mxu0 0
    %2498 = vmatprep.subr.bf16.mxu0 0
    %2499 = vmatpush1.bf16.msra.mxu0 0
    %2500 = vmatprep.subr.bf16.mxu0 0
    %2501 = vmatpush1.bf16.msra.mxu0 0
    %2502 = vmatprep.subr.bf16.mxu0 0
    %2503 = vmatpush1.bf16.msra.mxu0 0
    %2504 = vmatprep.subr.bf16.mxu0 0
    %2505 = vmatpush1.bf16.msra.mxu0 %v780
    %2506 = vmatprep.subr.bf16.mxu0 0
    %2507 = vmatpush1.bf16.msra.mxu0 %v779
    %2508 = vmatprep.subr.bf16.mxu0 0
    %2509 = vmatpush2.bf16.msra.mxu0 0
    %2510 = vmatprep.subr.bf16.mxu0 0
    %2511 = vmatpush2.bf16.msra.mxu0 0
    %2512 = vmatprep.subr.bf16.mxu0 0
    %2513 = vmatpush2.bf16.msra.mxu0 0
    %2514 = vmatprep.subr.bf16.mxu0 0
    %2515 = vmatpush2.bf16.msra.mxu0 0
    %2516 = vmatprep.subr.bf16.mxu0 0
    %2517 = vmatpush2.bf16.msra.mxu0 0
    %2518 = vmatprep.subr.bf16.mxu0 0
    %2519 = vmatpush2.bf16.msra.mxu0 0
    %2520 = vmatprep.subr.bf16.mxu0 0
    %2521 = vmatpush2.bf16.msra.mxu0 0
    %2522 = vmatprep.subr.bf16.mxu0 0
    %2523 = vmatpush2.bf16.msra.mxu0 0
    %2524 = vmatprep.mubr.bf16.mxu0 0
    %2525 = vmatmul.mubr.bf16.gmra.mxu0 %v2450
    %v2526 = vpop.f32.mrf.mxu0
    %v2527 = vadd.f32 %v425, %v2526
    %v2528 = vpop.f32.mrf.mxu0
    %v2529 = vpop.f32.mrf.mxu0
    %v2530 = vpop.f32.mrf.mxu0
    %2531 = vdwg.mxu0
    %2532 = vmatprep.subr.bf16.mxu0 0
    %2533 = vmatpush1.bf16.msra.mxu0 0
    %2534 = vmatprep.subr.bf16.mxu0 0
    %2535 = vmatpush1.bf16.msra.mxu0 0
    %2536 = vmatprep.subr.bf16.mxu0 0
    %2537 = vmatpush1.bf16.msra.mxu0 0
    %2538 = vmatprep.subr.bf16.mxu0 0
    %2539 = vmatpush1.bf16.msra.mxu0 0
    %2540 = vmatprep.subr.bf16.mxu0 0
    %2541 = vmatpush1.bf16.msra.mxu0 0
    %2542 = vmatprep.subr.bf16.mxu0 0
    %2543 = vmatpush1.bf16.msra.mxu0 0
    %2544 = vmatprep.subr.bf16.mxu0 0
    %2545 = vmatpush1.bf16.msra.mxu0 %v837
    %2546 = vmatprep.subr.bf16.mxu0 0
    %2547 = vmatpush1.bf16.msra.mxu0 %v836
    %2548 = vmatprep.subr.bf16.mxu0 0
    %2549 = vmatpush2.bf16.msra.mxu0 0
    %2550 = vmatprep.subr.bf16.mxu0 0
    %2551 = vmatpush2.bf16.msra.mxu0 0
    %2552 = vmatprep.subr.bf16.mxu0 0
    %2553 = vmatpush2.bf16.msra.mxu0 0
    %2554 = vmatprep.subr.bf16.mxu0 0
    %2555 = vmatpush2.bf16.msra.mxu0 0
    %2556 = vmatprep.subr.bf16.mxu0 0
    %2557 = vmatpush2.bf16.msra.mxu0 0
    %2558 = vmatprep.subr.bf16.mxu0 0
    %2559 = vmatpush2.bf16.msra.mxu0 0
    %2560 = vmatprep.subr.bf16.mxu0 0
    %2561 = vmatpush2.bf16.msra.mxu0 0
    %2562 = vmatprep.subr.bf16.mxu0 0
    %2563 = vmatpush2.bf16.msra.mxu0 0
    %2564 = vmatprep.mubr.bf16.mxu0 0
    %2565 = vmatmul.mubr.bf16.gmra.mxu0 %v2450
    %v2566 = vpop.f32.mrf.mxu0
    %v2567 = vadd.f32 %v433, %v2566
    %v2568 = vpop.f32.mrf.mxu0
    %v2569 = vpop.f32.mrf.mxu0
    %v2570 = vpop.f32.mrf.mxu0
    %2571 = vdwg.mxu0
    %2572 = vmatprep.subr.bf16.mxu0 0
    %2573 = vmatpush1.bf16.msra.mxu0 0
    %2574 = vmatprep.subr.bf16.mxu0 0
    %2575 = vmatpush1.bf16.msra.mxu0 0
    %2576 = vmatprep.subr.bf16.mxu0 0
    %2577 = vmatpush1.bf16.msra.mxu0 0
    %2578 = vmatprep.subr.bf16.mxu0 0
    %2579 = vmatpush1.bf16.msra.mxu0 0
    %2580 = vmatprep.subr.bf16.mxu0 0
    %2581 = vmatpush1.bf16.msra.mxu0 0
    %2582 = vmatprep.subr.bf16.mxu0 0
    %2583 = vmatpush1.bf16.msra.mxu0 0
    %2584 = vmatprep.subr.bf16.mxu0 0
    %2585 = vmatpush1.bf16.msra.mxu0 %v894
    %2586 = vmatprep.subr.bf16.mxu0 0
    %2587 = vmatpush1.bf16.msra.mxu0 %v893
    %2588 = vmatprep.subr.bf16.mxu0 0
    %2589 = vmatpush2.bf16.msra.mxu0 0
    %2590 = vmatprep.subr.bf16.mxu0 0
    %2591 = vmatpush2.bf16.msra.mxu0 0
    %2592 = vmatprep.subr.bf16.mxu0 0
    %2593 = vmatpush2.bf16.msra.mxu0 0
    %2594 = vmatprep.subr.bf16.mxu0 0
    %2595 = vmatpush2.bf16.msra.mxu0 0
    %2596 = vmatprep.subr.bf16.mxu0 0
    %2597 = vmatpush2.bf16.msra.mxu0 0
    %2598 = vmatprep.subr.bf16.mxu0 0
    %2599 = vmatpush2.bf16.msra.mxu0 0
    %2600 = vmatprep.subr.bf16.mxu0 0
    %2601 = vmatpush2.bf16.msra.mxu0 0
    %2602 = vmatprep.subr.bf16.mxu0 0
    %2603 = vmatpush2.bf16.msra.mxu0 0
    %2604 = vmatprep.mubr.bf16.mxu0 0
    %2605 = vmatmul.mubr.bf16.gmra.mxu0 %v2450
    %v2606 = vpop.f32.mrf.mxu0
    %v2607 = vadd.f32 %v441, %v2606
    %v2608 = vpop.f32.mrf.mxu0
    %v2609 = vpop.f32.mrf.mxu0
    %v2610 = vpop.f32.mrf.mxu0
    %2611 = vdwg.mxu0
    %v2612 = vpack.c.bf16 %v2261, %v2261
    %v2614 = vsel %vm197, %v2612, 0
    %2616 = vmatprep.subr.bf16.mxu0 0
    %2617 = vmatpush1.bf16.msra.mxu0 0
    %2618 = vmatprep.subr.bf16.mxu0 0
    %2619 = vmatpush1.bf16.msra.mxu0 0
    %2620 = vmatprep.subr.bf16.mxu0 0
    %2621 = vmatpush1.bf16.msra.mxu0 0
    %2622 = vmatprep.subr.bf16.mxu0 0
    %2623 = vmatpush1.bf16.msra.mxu0 0
    %2624 = vmatprep.subr.bf16.mxu0 0
    %2625 = vmatpush1.bf16.msra.mxu0 0
    %2626 = vmatprep.subr.bf16.mxu0 0
    %2627 = vmatpush1.bf16.msra.mxu0 0
    %2628 = vmatprep.subr.bf16.mxu0 0
    %2629 = vmatpush1.bf16.msra.mxu0 %v951
    %2630 = vmatprep.subr.bf16.mxu0 0
    %2631 = vmatpush1.bf16.msra.mxu0 %v950
    %2632 = vmatprep.subr.bf16.mxu0 0
    %2633 = vmatpush2.bf16.msra.mxu0 0
    %2634 = vmatprep.subr.bf16.mxu0 0
    %2635 = vmatpush2.bf16.msra.mxu0 0
    %2636 = vmatprep.subr.bf16.mxu0 0
    %2637 = vmatpush2.bf16.msra.mxu0 0
    %2638 = vmatprep.subr.bf16.mxu0 0
    %2639 = vmatpush2.bf16.msra.mxu0 0
    %2640 = vmatprep.subr.bf16.mxu0 0
    %2641 = vmatpush2.bf16.msra.mxu0 0
    %2642 = vmatprep.subr.bf16.mxu0 0
    %2643 = vmatpush2.bf16.msra.mxu0 0
    %2644 = vmatprep.subr.bf16.mxu0 0
    %2645 = vmatpush2.bf16.msra.mxu0 0
    %2646 = vmatprep.subr.bf16.mxu0 0
    %2647 = vmatpush2.bf16.msra.mxu0 0
    %2648 = vmatprep.mubr.bf16.mxu0 0
    %2649 = vmatmul.mubr.bf16.gmra.mxu0 %v2614
    %v2650 = vpop.f32.mrf.mxu0
    %v2651 = vadd.f32 0.0, %v2650
    %v2652 = vpop.f32.mrf.mxu0
    %v2653 = vpop.f32.mrf.mxu0
    %v2654 = vpop.f32.mrf.mxu0
    %2655 = vdwg.mxu0
    %v2656 = vadd.f32 %v2487, %v2651
    %2657 = vmatprep.subr.bf16.mxu0 0
    %2658 = vmatpush1.bf16.msra.mxu0 0
    %2659 = vmatprep.subr.bf16.mxu0 0
    %2660 = vmatpush1.bf16.msra.mxu0 0
    %2661 = vmatprep.subr.bf16.mxu0 0
    %2662 = vmatpush1.bf16.msra.mxu0 0
    %2663 = vmatprep.subr.bf16.mxu0 0
    %2664 = vmatpush1.bf16.msra.mxu0 0
    %2665 = vmatprep.subr.bf16.mxu0 0
    %2666 = vmatpush1.bf16.msra.mxu0 0
    %2667 = vmatprep.subr.bf16.mxu0 0
    %2668 = vmatpush1.bf16.msra.mxu0 0
    %2669 = vmatprep.subr.bf16.mxu0 0
    %2670 = vmatpush1.bf16.msra.mxu0 %v1012
    %2671 = vmatprep.subr.bf16.mxu0 0
    %2672 = vmatpush1.bf16.msra.mxu0 %v1011
    %2673 = vmatprep.subr.bf16.mxu0 0
    %2674 = vmatpush2.bf16.msra.mxu0 0
    %2675 = vmatprep.subr.bf16.mxu0 0
    %2676 = vmatpush2.bf16.msra.mxu0 0
    %2677 = vmatprep.subr.bf16.mxu0 0
    %2678 = vmatpush2.bf16.msra.mxu0 0
    %2679 = vmatprep.subr.bf16.mxu0 0
    %2680 = vmatpush2.bf16.msra.mxu0 0
    %2681 = vmatprep.subr.bf16.mxu0 0
    %2682 = vmatpush2.bf16.msra.mxu0 0
    %2683 = vmatprep.subr.bf16.mxu0 0
    %2684 = vmatpush2.bf16.msra.mxu0 0
    %2685 = vmatprep.subr.bf16.mxu0 0
    %2686 = vmatpush2.bf16.msra.mxu0 0
    %2687 = vmatprep.subr.bf16.mxu0 0
    %2688 = vmatpush2.bf16.msra.mxu0 0
    %2689 = vmatprep.mubr.bf16.mxu0 0
    %2690 = vmatmul.mubr.bf16.gmra.mxu0 %v2614
    %v2691 = vpop.f32.mrf.mxu0
    %v2692 = vadd.f32 0.0, %v2691
    %v2693 = vpop.f32.mrf.mxu0
    %v2694 = vpop.f32.mrf.mxu0
    %v2695 = vpop.f32.mrf.mxu0
    %2696 = vdwg.mxu0
    %v2697 = vadd.f32 %v2527, %v2692
    %2698 = vmatprep.subr.bf16.mxu0 0
    %2699 = vmatpush1.bf16.msra.mxu0 0
    %2700 = vmatprep.subr.bf16.mxu0 0
    %2701 = vmatpush1.bf16.msra.mxu0 0
    %2702 = vmatprep.subr.bf16.mxu0 0
    %2703 = vmatpush1.bf16.msra.mxu0 0
    %2704 = vmatprep.subr.bf16.mxu0 0
    %2705 = vmatpush1.bf16.msra.mxu0 0
    %2706 = vmatprep.subr.bf16.mxu0 0
    %2707 = vmatpush1.bf16.msra.mxu0 0
    %2708 = vmatprep.subr.bf16.mxu0 0
    %2709 = vmatpush1.bf16.msra.mxu0 0
    %2710 = vmatprep.subr.bf16.mxu0 0
    %2711 = vmatpush1.bf16.msra.mxu0 %v1070
    %2712 = vmatprep.subr.bf16.mxu0 0
    %2713 = vmatpush1.bf16.msra.mxu0 %v1069
    %2714 = vmatprep.subr.bf16.mxu0 0
    %2715 = vmatpush2.bf16.msra.mxu0 0
    %2716 = vmatprep.subr.bf16.mxu0 0
    %2717 = vmatpush2.bf16.msra.mxu0 0
    %2718 = vmatprep.subr.bf16.mxu0 0
    %2719 = vmatpush2.bf16.msra.mxu0 0
    %2720 = vmatprep.subr.bf16.mxu0 0
    %2721 = vmatpush2.bf16.msra.mxu0 0
    %2722 = vmatprep.subr.bf16.mxu0 0
    %2723 = vmatpush2.bf16.msra.mxu0 0
    %2724 = vmatprep.subr.bf16.mxu0 0
    %2725 = vmatpush2.bf16.msra.mxu0 0
    %2726 = vmatprep.subr.bf16.mxu0 0
    %2727 = vmatpush2.bf16.msra.mxu0 0
    %2728 = vmatprep.subr.bf16.mxu0 0
    %2729 = vmatpush2.bf16.msra.mxu0 0
    %2730 = vmatprep.mubr.bf16.mxu0 0
    %2731 = vmatmul.mubr.bf16.gmra.mxu0 %v2614
    %v2732 = vpop.f32.mrf.mxu0
    %v2733 = vadd.f32 0.0, %v2732
    %v2734 = vpop.f32.mrf.mxu0
    %v2735 = vpop.f32.mrf.mxu0
    %v2736 = vpop.f32.mrf.mxu0
    %2737 = vdwg.mxu0
    %v2738 = vadd.f32 %v2567, %v2733
    %2739 = vmatprep.subr.bf16.mxu0 0
    %2740 = vmatpush1.bf16.msra.mxu0 0
    %2741 = vmatprep.subr.bf16.mxu0 0
    %2742 = vmatpush1.bf16.msra.mxu0 0
    %2743 = vmatprep.subr.bf16.mxu0 0
    %2744 = vmatpush1.bf16.msra.mxu0 0
    %2745 = vmatprep.subr.bf16.mxu0 0
    %2746 = vmatpush1.bf16.msra.mxu0 0
    %2747 = vmatprep.subr.bf16.mxu0 0
    %2748 = vmatpush1.bf16.msra.mxu0 0
    %2749 = vmatprep.subr.bf16.mxu0 0
    %2750 = vmatpush1.bf16.msra.mxu0 0
    %2751 = vmatprep.subr.bf16.mxu0 0
    %2752 = vmatpush1.bf16.msra.mxu0 %v1128
    %2753 = vmatprep.subr.bf16.mxu0 0
    %2754 = vmatpush1.bf16.msra.mxu0 %v1127
    %2755 = vmatprep.subr.bf16.mxu0 0
    %2756 = vmatpush2.bf16.msra.mxu0 0
    %2757 = vmatprep.subr.bf16.mxu0 0
    %2758 = vmatpush2.bf16.msra.mxu0 0
    %2759 = vmatprep.subr.bf16.mxu0 0
    %2760 = vmatpush2.bf16.msra.mxu0 0
    %2761 = vmatprep.subr.bf16.mxu0 0
    %2762 = vmatpush2.bf16.msra.mxu0 0
    %2763 = vmatprep.subr.bf16.mxu0 0
    %2764 = vmatpush2.bf16.msra.mxu0 0
    %2765 = vmatprep.subr.bf16.mxu0 0
    %2766 = vmatpush2.bf16.msra.mxu0 0
    %2767 = vmatprep.subr.bf16.mxu0 0
    %2768 = vmatpush2.bf16.msra.mxu0 0
    %2769 = vmatprep.subr.bf16.mxu0 0
    %2770 = vmatpush2.bf16.msra.mxu0 0
    %2771 = vmatprep.mubr.bf16.mxu0 0
    %2772 = vmatmul.mubr.bf16.gmra.mxu0 %v2614
    %v2773 = vpop.f32.mrf.mxu0
    %v2774 = vadd.f32 0.0, %v2773
    %v2775 = vpop.f32.mrf.mxu0
    %v2776 = vpop.f32.mrf.mxu0
    %v2777 = vpop.f32.mrf.mxu0
    %2778 = vdwg.mxu0
    %v2779 = vadd.f32 %v2607, %v2774
    %v2780 = vmul.f32 %v2656, 0.5
    %v2781 = vtanh.pop %v2780
    %v2782 = vmul.f32 %v2781, 0.5
    %v2783 = vadd.f32 %v2782, 0.5
    %v2784 = vmul.f32 %v2697, 0.5
    %v2785 = vtanh.pop %v2784
    %v2786 = vmul.f32 %v2785, 0.5
    %v2787 = vadd.f32 %v2786, 0.5
    %v2788 = vtanh.pop %v2738
    %v2789 = vmul.f32 %v2779, 0.5
    %v2790 = vtanh.pop %v2789
    %v2791 = vmul.f32 %v2790, 0.5
    %v2792 = vadd.f32 %v2791, 0.5
    %v2793 = vmul.f32 %v2787, %v2259
    %v2794 = vmul.f32 %v2783, %v2788
    %v2795 = vadd.f32 %v2793, %v2794
    %v2796 = vtanh.pop %v2795
    %v2797 = vmul.f32 %v2792, %v2796
    %v2798 = vld [vmem:[#allocation2 + $0x10] sm:$0xf]
    %v2799 = vld [vmem:[#allocation3 + $0x10] sm:$0xf]
    %v2800 = vld [vmem:[#allocation4 + $0x10] sm:$0xf]
    %v2801 = vld [vmem:[#allocation5 + $0x10] sm:$0xf]
    %2802 = vmatprep.subr.bf16.mxu0 0
    %2803 = vmatpush1.bf16.msra.mxu0 0
    %2804 = vmatprep.subr.bf16.mxu0 0
    %2805 = vmatpush1.bf16.msra.mxu0 0
    %2806 = vmatprep.subr.bf16.mxu0 0
    %2807 = vmatpush1.bf16.msra.mxu0 0
    %2808 = vmatprep.subr.bf16.mxu0 0
    %2809 = vmatpush1.bf16.msra.mxu0 0
    %2810 = vmatprep.subr.bf16.mxu0 0
    %2811 = vmatpush1.bf16.msra.mxu0 0
    %2812 = vmatprep.subr.bf16.mxu0 0
    %2813 = vmatpush1.bf16.msra.mxu0 0
    %2814 = vmatprep.subr.bf16.mxu0 0
    %2815 = vmatpush1.bf16.msra.mxu0 %v467
    %2816 = vmatprep.subr.bf16.mxu0 0
    %2817 = vmatpush1.bf16.msra.mxu0 %v466
    %2818 = vmatprep.subr.bf16.mxu0 0
    %2819 = vmatpush2.bf16.msra.mxu0 0
    %2820 = vmatprep.subr.bf16.mxu0 0
    %2821 = vmatpush2.bf16.msra.mxu0 0
    %2822 = vmatprep.subr.bf16.mxu0 0
    %2823 = vmatpush2.bf16.msra.mxu0 0
    %2824 = vmatprep.subr.bf16.mxu0 0
    %2825 = vmatpush2.bf16.msra.mxu0 0
    %2826 = vmatprep.subr.bf16.mxu0 0
    %2827 = vmatpush2.bf16.msra.mxu0 0
    %2828 = vmatprep.subr.bf16.mxu0 0
    %2829 = vmatpush2.bf16.msra.mxu0 0
    %2830 = vmatprep.subr.bf16.mxu0 0
    %2831 = vmatpush2.bf16.msra.mxu0 0
    %2832 = vmatprep.subr.bf16.mxu0 0
    %2833 = vmatpush2.bf16.msra.mxu0 0
    %2834 = vmatprep.mubr.bf16.mxu0 0
    %2835 = vmatmul.mubr.bf16.gmra.mxu0 %v2450
    %v2836 = vpop.f32.mrf.mxu0
    %v2837 = vadd.f32 0.0, %v2836
    %v2838 = vpop.f32.mrf.mxu0
    %v2839 = vpop.f32.mrf.mxu0
    %v2840 = vpop.f32.mrf.mxu0
    %2841 = vdwg.mxu0
    %v2842 = vadd.f32 %v2798, %v2837
    %2843 = vmatprep.subr.bf16.mxu0 0
    %2844 = vmatpush1.bf16.msra.mxu0 0
    %2845 = vmatprep.subr.bf16.mxu0 0
    %2846 = vmatpush1.bf16.msra.mxu0 0
    %2847 = vmatprep.subr.bf16.mxu0 0
    %2848 = vmatpush1.bf16.msra.mxu0 0
    %2849 = vmatprep.subr.bf16.mxu0 0
    %2850 = vmatpush1.bf16.msra.mxu0 0
    %2851 = vmatprep.subr.bf16.mxu0 0
    %2852 = vmatpush1.bf16.msra.mxu0 0
    %2853 = vmatprep.subr.bf16.mxu0 0
    %2854 = vmatpush1.bf16.msra.mxu0 0
    %2855 = vmatprep.subr.bf16.mxu0 0
    %2856 = vmatpush1.bf16.msra.mxu0 %v528
    %2857 = vmatprep.subr.bf16.mxu0 0
    %2858 = vmatpush1.bf16.msra.mxu0 %v527
    %2859 = vmatprep.subr.bf16.mxu0 0
    %2860 = vmatpush2.bf16.msra.mxu0 0
    %2861 = vmatprep.subr.bf16.mxu0 0
    %2862 = vmatpush2.bf16.msra.mxu0 0
    %2863 = vmatprep.subr.bf16.mxu0 0
    %2864 = vmatpush2.bf16.msra.mxu0 0
    %2865 = vmatprep.subr.bf16.mxu0 0
    %2866 = vmatpush2.bf16.msra.mxu0 0
    %2867 = vmatprep.subr.bf16.mxu0 0
    %2868 = vmatpush2.bf16.msra.mxu0 0
    %2869 = vmatprep.subr.bf16.mxu0 0
    %2870 = vmatpush2.bf16.msra.mxu0 0
    %2871 = vmatprep.subr.bf16.mxu0 0
    %2872 = vmatpush2.bf16.msra.mxu0 0
    %2873 = vmatprep.subr.bf16.mxu0 0
    %2874 = vmatpush2.bf16.msra.mxu0 0
    %2875 = vmatprep.mubr.bf16.mxu0 0
    %2876 = vmatmul.mubr.bf16.gmra.mxu0 %v2450
    %v2877 = vpop.f32.mrf.mxu0
    %v2878 = vadd.f32 0.0, %v2877
    %v2879 = vpop.f32.mrf.mxu0
    %v2880 = vpop.f32.mrf.mxu0
    %v2881 = vpop.f32.mrf.mxu0
    %2882 = vdwg.mxu0
    %v2883 = vadd.f32 %v2799, %v2878
    %2884 = vmatprep.subr.bf16.mxu0 0
    %2885 = vmatpush1.bf16.msra.mxu0 0
    %2886 = vmatprep.subr.bf16.mxu0 0
    %2887 = vmatpush1.bf16.msra.mxu0 0
    %2888 = vmatprep.subr.bf16.mxu0 0
    %2889 = vmatpush1.bf16.msra.mxu0 0
    %2890 = vmatprep.subr.bf16.mxu0 0
    %2891 = vmatpush1.bf16.msra.mxu0 0
    %2892 = vmatprep.subr.bf16.mxu0 0
    %2893 = vmatpush1.bf16.msra.mxu0 0
    %2894 = vmatprep.subr.bf16.mxu0 0
    %2895 = vmatpush1.bf16.msra.mxu0 0
    %2896 = vmatprep.subr.bf16.mxu0 0
    %2897 = vmatpush1.bf16.msra.mxu0 %v586
    %2898 = vmatprep.subr.bf16.mxu0 0
    %2899 = vmatpush1.bf16.msra.mxu0 %v585
    %2900 = vmatprep.subr.bf16.mxu0 0
    %2901 = vmatpush2.bf16.msra.mxu0 0
    %2902 = vmatprep.subr.bf16.mxu0 0
    %2903 = vmatpush2.bf16.msra.mxu0 0
    %2904 = vmatprep.subr.bf16.mxu0 0
    %2905 = vmatpush2.bf16.msra.mxu0 0
    %2906 = vmatprep.subr.bf16.mxu0 0
    %2907 = vmatpush2.bf16.msra.mxu0 0
    %2908 = vmatprep.subr.bf16.mxu0 0
    %2909 = vmatpush2.bf16.msra.mxu0 0
    %2910 = vmatprep.subr.bf16.mxu0 0
    %2911 = vmatpush2.bf16.msra.mxu0 0
    %2912 = vmatprep.subr.bf16.mxu0 0
    %2913 = vmatpush2.bf16.msra.mxu0 0
    %2914 = vmatprep.subr.bf16.mxu0 0
    %2915 = vmatpush2.bf16.msra.mxu0 0
    %2916 = vmatprep.mubr.bf16.mxu0 0
    %2917 = vmatmul.mubr.bf16.gmra.mxu0 %v2450
    %v2918 = vpop.f32.mrf.mxu0
    %v2919 = vadd.f32 0.0, %v2918
    %v2920 = vpop.f32.mrf.mxu0
    %v2921 = vpop.f32.mrf.mxu0
    %v2922 = vpop.f32.mrf.mxu0
    %2923 = vdwg.mxu0
    %v2924 = vadd.f32 %v2800, %v2919
    %2925 = vmatprep.subr.bf16.mxu0 0
    %2926 = vmatpush1.bf16.msra.mxu0 0
    %2927 = vmatprep.subr.bf16.mxu0 0
    %2928 = vmatpush1.bf16.msra.mxu0 0
    %2929 = vmatprep.subr.bf16.mxu0 0
    %2930 = vmatpush1.bf16.msra.mxu0 0
    %2931 = vmatprep.subr.bf16.mxu0 0
    %2932 = vmatpush1.bf16.msra.mxu0 0
    %2933 = vmatprep.subr.bf16.mxu0 0
    %2934 = vmatpush1.bf16.msra.mxu0 0
    %2935 = vmatprep.subr.bf16.mxu0 0
    %2936 = vmatpush1.bf16.msra.mxu0 0
    %2937 = vmatprep.subr.bf16.mxu0 0
    %2938 = vmatpush1.bf16.msra.mxu0 %v644
    %2939 = vmatprep.subr.bf16.mxu0 0
    %2940 = vmatpush1.bf16.msra.mxu0 %v643
    %2941 = vmatprep.subr.bf16.mxu0 0
    %2942 = vmatpush2.bf16.msra.mxu0 0
    %2943 = vmatprep.subr.bf16.mxu0 0
    %2944 = vmatpush2.bf16.msra.mxu0 0
    %2945 = vmatprep.subr.bf16.mxu0 0
    %2946 = vmatpush2.bf16.msra.mxu0 0
    %2947 = vmatprep.subr.bf16.mxu0 0
    %2948 = vmatpush2.bf16.msra.mxu0 0
    %2949 = vmatprep.subr.bf16.mxu0 0
    %2950 = vmatpush2.bf16.msra.mxu0 0
    %2951 = vmatprep.subr.bf16.mxu0 0
    %2952 = vmatpush2.bf16.msra.mxu0 0
    %2953 = vmatprep.subr.bf16.mxu0 0
    %2954 = vmatpush2.bf16.msra.mxu0 0
    %2955 = vmatprep.subr.bf16.mxu0 0
    %2956 = vmatpush2.bf16.msra.mxu0 0
    %2957 = vmatprep.mubr.bf16.mxu0 0
    %2958 = vmatmul.mubr.bf16.gmra.mxu0 %v2450
    %v2959 = vpop.f32.mrf.mxu0
    %v2960 = vadd.f32 0.0, %v2959
    %v2961 = vpop.f32.mrf.mxu0
    %v2962 = vpop.f32.mrf.mxu0
    %v2963 = vpop.f32.mrf.mxu0
    %2964 = vdwg.mxu0
    %v2965 = vadd.f32 %v2801, %v2960
    %v2966 = vmul.f32 %v2842, 0.5
    %v2967 = vtanh.pop %v2966
    %v2968 = vmul.f32 %v2967, 0.5
    %v2969 = vadd.f32 %v2968, 0.5
    %v2970 = vmul.f32 %v2883, 0.5
    %v2971 = vtanh.pop %v2970
    %v2972 = vmul.f32 %v2971, 0.5
    %v2973 = vadd.f32 %v2972, 0.5
    %v2974 = vtanh.pop %v2924
    %v2975 = vmul.f32 %v2965, 0.5
    %v2976 = vtanh.pop %v2975
    %v2977 = vmul.f32 %v2976, 0.5
    %v2978 = vadd.f32 %v2977, 0.5
    %v2979 = vmul.f32 %v2973, %v2445
    %v2980 = vmul.f32 %v2969, %v2974
    %v2981 = vadd.f32 %v2979, %v2980
    %v2982 = vtanh.pop %v2981
    %v2983 = vmul.f32 %v2978, %v2982
    %v2984 = vpack.c.bf16 %v2983, %v2983
    %v2986 = vsel %vm197, %v2984, 0
    %2988 = vmatprep.subr.bf16.mxu0 0
    %2989 = vmatpush1.bf16.msra.mxu0 0
    %2990 = vmatprep.subr.bf16.mxu0 0
    %2991 = vmatpush1.bf16.msra.mxu0 0
    %2992 = vmatprep.subr.bf16.mxu0 0
    %2993 = vmatpush1.bf16.msra.mxu0 0
    %2994 = vmatprep.subr.bf16.mxu0 0
    %2995 = vmatpush1.bf16.msra.mxu0 0
    %2996 = vmatprep.subr.bf16.mxu0 0
    %2997 = vmatpush1.bf16.msra.mxu0 0
    %2998 = vmatprep.subr.bf16.mxu0 0
    %2999 = vmatpush1.bf16.msra.mxu0 0
    %3000 = vmatprep.subr.bf16.mxu0 0
    %3001 = vmatpush1.bf16.msra.mxu0 %v720
    %3002 = vmatprep.subr.bf16.mxu0 0
    %3003 = vmatpush1.bf16.msra.mxu0 %v719
    %3004 = vmatprep.subr.bf16.mxu0 0
    %3005 = vmatpush2.bf16.msra.mxu0 0
    %3006 = vmatprep.subr.bf16.mxu0 0
    %3007 = vmatpush2.bf16.msra.mxu0 0
    %3008 = vmatprep.subr.bf16.mxu0 0
    %3009 = vmatpush2.bf16.msra.mxu0 0
    %3010 = vmatprep.subr.bf16.mxu0 0
    %3011 = vmatpush2.bf16.msra.mxu0 0
    %3012 = vmatprep.subr.bf16.mxu0 0
    %3013 = vmatpush2.bf16.msra.mxu0 0
    %3014 = vmatprep.subr.bf16.mxu0 0
    %3015 = vmatpush2.bf16.msra.mxu0 0
    %3016 = vmatprep.subr.bf16.mxu0 0
    %3017 = vmatpush2.bf16.msra.mxu0 0
    %3018 = vmatprep.subr.bf16.mxu0 0
    %3019 = vmatpush2.bf16.msra.mxu0 0
    %3020 = vmatprep.mubr.bf16.mxu0 0
    %3021 = vmatmul.mubr.bf16.gmra.mxu0 %v2986
    %v3022 = vpop.f32.mrf.mxu0
    %v3023 = vadd.f32 %v417, %v3022
    %v3024 = vpop.f32.mrf.mxu0
    %v3025 = vpop.f32.mrf.mxu0
    %v3026 = vpop.f32.mrf.mxu0
    %3027 = vdwg.mxu0
    %3028 = vmatprep.subr.bf16.mxu0 0
    %3029 = vmatpush1.bf16.msra.mxu0 0
    %3030 = vmatprep.subr.bf16.mxu0 0
    %3031 = vmatpush1.bf16.msra.mxu0 0
    %3032 = vmatprep.subr.bf16.mxu0 0
    %3033 = vmatpush1.bf16.msra.mxu0 0
    %3034 = vmatprep.subr.bf16.mxu0 0
    %3035 = vmatpush1.bf16.msra.mxu0 0
    %3036 = vmatprep.subr.bf16.mxu0 0
    %3037 = vmatpush1.bf16.msra.mxu0 0
    %3038 = vmatprep.subr.bf16.mxu0 0
    %3039 = vmatpush1.bf16.msra.mxu0 0
    %3040 = vmatprep.subr.bf16.mxu0 0
    %3041 = vmatpush1.bf16.msra.mxu0 %v780
    %3042 = vmatprep.subr.bf16.mxu0 0
    %3043 = vmatpush1.bf16.msra.mxu0 %v779
    %3044 = vmatprep.subr.bf16.mxu0 0
    %3045 = vmatpush2.bf16.msra.mxu0 0
    %3046 = vmatprep.subr.bf16.mxu0 0
    %3047 = vmatpush2.bf16.msra.mxu0 0
    %3048 = vmatprep.subr.bf16.mxu0 0
    %3049 = vmatpush2.bf16.msra.mxu0 0
    %3050 = vmatprep.subr.bf16.mxu0 0
    %3051 = vmatpush2.bf16.msra.mxu0 0
    %3052 = vmatprep.subr.bf16.mxu0 0
    %3053 = vmatpush2.bf16.msra.mxu0 0
    %3054 = vmatprep.subr.bf16.mxu0 0
    %3055 = vmatpush2.bf16.msra.mxu0 0
    %3056 = vmatprep.subr.bf16.mxu0 0
    %3057 = vmatpush2.bf16.msra.mxu0 0
    %3058 = vmatprep.subr.bf16.mxu0 0
    %3059 = vmatpush2.bf16.msra.mxu0 0
    %3060 = vmatprep.mubr.bf16.mxu0 0
    %3061 = vmatmul.mubr.bf16.gmra.mxu0 %v2986
    %v3062 = vpop.f32.mrf.mxu0
    %v3063 = vadd.f32 %v425, %v3062
    %v3064 = vpop.f32.mrf.mxu0
    %v3065 = vpop.f32.mrf.mxu0
    %v3066 = vpop.f32.mrf.mxu0
    %3067 = vdwg.mxu0
    %3068 = vmatprep.subr.bf16.mxu0 0
    %3069 = vmatpush1.bf16.msra.mxu0 0
    %3070 = vmatprep.subr.bf16.mxu0 0
    %3071 = vmatpush1.bf16.msra.mxu0 0
    %3072 = vmatprep.subr.bf16.mxu0 0
    %3073 = vmatpush1.bf16.msra.mxu0 0
    %3074 = vmatprep.subr.bf16.mxu0 0
    %3075 = vmatpush1.bf16.msra.mxu0 0
    %3076 = vmatprep.subr.bf16.mxu0 0
    %3077 = vmatpush1.bf16.msra.mxu0 0
    %3078 = vmatprep.subr.bf16.mxu0 0
    %3079 = vmatpush1.bf16.msra.mxu0 0
    %3080 = vmatprep.subr.bf16.mxu0 0
    %3081 = vmatpush1.bf16.msra.mxu0 %v837
    %3082 = vmatprep.subr.bf16.mxu0 0
    %3083 = vmatpush1.bf16.msra.mxu0 %v836
    %3084 = vmatprep.subr.bf16.mxu0 0
    %3085 = vmatpush2.bf16.msra.mxu0 0
    %3086 = vmatprep.subr.bf16.mxu0 0
    %3087 = vmatpush2.bf16.msra.mxu0 0
    %3088 = vmatprep.subr.bf16.mxu0 0
    %3089 = vmatpush2.bf16.msra.mxu0 0
    %3090 = vmatprep.subr.bf16.mxu0 0
    %3091 = vmatpush2.bf16.msra.mxu0 0
    %3092 = vmatprep.subr.bf16.mxu0 0
    %3093 = vmatpush2.bf16.msra.mxu0 0
    %3094 = vmatprep.subr.bf16.mxu0 0
    %3095 = vmatpush2.bf16.msra.mxu0 0
    %3096 = vmatprep.subr.bf16.mxu0 0
    %3097 = vmatpush2.bf16.msra.mxu0 0
    %3098 = vmatprep.subr.bf16.mxu0 0
    %3099 = vmatpush2.bf16.msra.mxu0 0
    %3100 = vmatprep.mubr.bf16.mxu0 0
    %3101 = vmatmul.mubr.bf16.gmra.mxu0 %v2986
    %v3102 = vpop.f32.mrf.mxu0
    %v3103 = vadd.f32 %v433, %v3102
    %v3104 = vpop.f32.mrf.mxu0
    %v3105 = vpop.f32.mrf.mxu0
    %v3106 = vpop.f32.mrf.mxu0
    %3107 = vdwg.mxu0
    %3108 = vmatprep.subr.bf16.mxu0 0
    %3109 = vmatpush1.bf16.msra.mxu0 0
    %3110 = vmatprep.subr.bf16.mxu0 0
    %3111 = vmatpush1.bf16.msra.mxu0 0
    %3112 = vmatprep.subr.bf16.mxu0 0
    %3113 = vmatpush1.bf16.msra.mxu0 0
    %3114 = vmatprep.subr.bf16.mxu0 0
    %3115 = vmatpush1.bf16.msra.mxu0 0
    %3116 = vmatprep.subr.bf16.mxu0 0
    %3117 = vmatpush1.bf16.msra.mxu0 0
    %3118 = vmatprep.subr.bf16.mxu0 0
    %3119 = vmatpush1.bf16.msra.mxu0 0
    %3120 = vmatprep.subr.bf16.mxu0 0
    %3121 = vmatpush1.bf16.msra.mxu0 %v894
    %3122 = vmatprep.subr.bf16.mxu0 0
    %3123 = vmatpush1.bf16.msra.mxu0 %v893
    %3124 = vmatprep.subr.bf16.mxu0 0
    %3125 = vmatpush2.bf16.msra.mxu0 0
    %3126 = vmatprep.subr.bf16.mxu0 0
    %3127 = vmatpush2.bf16.msra.mxu0 0
    %3128 = vmatprep.subr.bf16.mxu0 0
    %3129 = vmatpush2.bf16.msra.mxu0 0
    %3130 = vmatprep.subr.bf16.mxu0 0
    %3131 = vmatpush2.bf16.msra.mxu0 0
    %3132 = vmatprep.subr.bf16.mxu0 0
    %3133 = vmatpush2.bf16.msra.mxu0 0
    %3134 = vmatprep.subr.bf16.mxu0 0
    %3135 = vmatpush2.bf16.msra.mxu0 0
    %3136 = vmatprep.subr.bf16.mxu0 0
    %3137 = vmatpush2.bf16.msra.mxu0 0
    %3138 = vmatprep.subr.bf16.mxu0 0
    %3139 = vmatpush2.bf16.msra.mxu0 0
    %3140 = vmatprep.mubr.bf16.mxu0 0
    %3141 = vmatmul.mubr.bf16.gmra.mxu0 %v2986
    %v3142 = vpop.f32.mrf.mxu0
    %v3143 = vadd.f32 %v441, %v3142
    %v3144 = vpop.f32.mrf.mxu0
    %v3145 = vpop.f32.mrf.mxu0
    %v3146 = vpop.f32.mrf.mxu0
    %3147 = vdwg.mxu0
    %v3148 = vpack.c.bf16 %v2797, %v2797
    %v3150 = vsel %vm197, %v3148, 0
    %3152 = vmatprep.subr.bf16.mxu0 0
    %3153 = vmatpush1.bf16.msra.mxu0 0
    %3154 = vmatprep.subr.bf16.mxu0 0
    %3155 = vmatpush1.bf16.msra.mxu0 0
    %3156 = vmatprep.subr.bf16.mxu0 0
    %3157 = vmatpush1.bf16.msra.mxu0 0
    %3158 = vmatprep.subr.bf16.mxu0 0
    %3159 = vmatpush1.bf16.msra.mxu0 0
    %3160 = vmatprep.subr.bf16.mxu0 0
    %3161 = vmatpush1.bf16.msra.mxu0 0
    %3162 = vmatprep.subr.bf16.mxu0 0
    %3163 = vmatpush1.bf16.msra.mxu0 0
    %3164 = vmatprep.subr.bf16.mxu0 0
    %3165 = vmatpush1.bf16.msra.mxu0 %v951
    %3166 = vmatprep.subr.bf16.mxu0 0
    %3167 = vmatpush1.bf16.msra.mxu0 %v950
    %3168 = vmatprep.subr.bf16.mxu0 0
    %3169 = vmatpush2.bf16.msra.mxu0 0
    %3170 = vmatprep.subr.bf16.mxu0 0
    %3171 = vmatpush2.bf16.msra.mxu0 0
    %3172 = vmatprep.subr.bf16.mxu0 0
    %3173 = vmatpush2.bf16.msra.mxu0 0
    %3174 = vmatprep.subr.bf16.mxu0 0
    %3175 = vmatpush2.bf16.msra.mxu0 0
    %3176 = vmatprep.subr.bf16.mxu0 0
    %3177 = vmatpush2.bf16.msra.mxu0 0
    %3178 = vmatprep.subr.bf16.mxu0 0
    %3179 = vmatpush2.bf16.msra.mxu0 0
    %3180 = vmatprep.subr.bf16.mxu0 0
    %3181 = vmatpush2.bf16.msra.mxu0 0
    %3182 = vmatprep.subr.bf16.mxu0 0
    %3183 = vmatpush2.bf16.msra.mxu0 0
    %3184 = vmatprep.mubr.bf16.mxu0 0
    %3185 = vmatmul.mubr.bf16.gmra.mxu0 %v3150
    %v3186 = vpop.f32.mrf.mxu0
    %v3187 = vadd.f32 0.0, %v3186
    %v3188 = vpop.f32.mrf.mxu0
    %v3189 = vpop.f32.mrf.mxu0
    %v3190 = vpop.f32.mrf.mxu0
    %3191 = vdwg.mxu0
    %v3192 = vadd.f32 %v3023, %v3187
    %3193 = vmatprep.subr.bf16.mxu0 0
    %3194 = vmatpush1.bf16.msra.mxu0 0
    %3195 = vmatprep.subr.bf16.mxu0 0
    %3196 = vmatpush1.bf16.msra.mxu0 0
    %3197 = vmatprep.subr.bf16.mxu0 0
    %3198 = vmatpush1.bf16.msra.mxu0 0
    %3199 = vmatprep.subr.bf16.mxu0 0
    %3200 = vmatpush1.bf16.msra.mxu0 0
    %3201 = vmatprep.subr.bf16.mxu0 0
    %3202 = vmatpush1.bf16.msra.mxu0 0
    %3203 = vmatprep.subr.bf16.mxu0 0
    %3204 = vmatpush1.bf16.msra.mxu0 0
    %3205 = vmatprep.subr.bf16.mxu0 0
    %3206 = vmatpush1.bf16.msra.mxu0 %v1012
    %3207 = vmatprep.subr.bf16.mxu0 0
    %3208 = vmatpush1.bf16.msra.mxu0 %v1011
    %3209 = vmatprep.subr.bf16.mxu0 0
    %3210 = vmatpush2.bf16.msra.mxu0 0
    %3211 = vmatprep.subr.bf16.mxu0 0
    %3212 = vmatpush2.bf16.msra.mxu0 0
    %3213 = vmatprep.subr.bf16.mxu0 0
    %3214 = vmatpush2.bf16.msra.mxu0 0
    %3215 = vmatprep.subr.bf16.mxu0 0
    %3216 = vmatpush2.bf16.msra.mxu0 0
    %3217 = vmatprep.subr.bf16.mxu0 0
    %3218 = vmatpush2.bf16.msra.mxu0 0
    %3219 = vmatprep.subr.bf16.mxu0 0
    %3220 = vmatpush2.bf16.msra.mxu0 0
    %3221 = vmatprep.subr.bf16.mxu0 0
    %3222 = vmatpush2.bf16.msra.mxu0 0
    %3223 = vmatprep.subr.bf16.mxu0 0
    %3224 = vmatpush2.bf16.msra.mxu0 0
    %3225 = vmatprep.mubr.bf16.mxu0 0
    %3226 = vmatmul.mubr.bf16.gmra.mxu0 %v3150
    %v3227 = vpop.f32.mrf.mxu0
    %v3228 = vadd.f32 0.0, %v3227
    %v3229 = vpop.f32.mrf.mxu0
    %v3230 = vpop.f32.mrf.mxu0
    %v3231 = vpop.f32.mrf.mxu0
    %3232 = vdwg.mxu0
    %v3233 = vadd.f32 %v3063, %v3228
    %3234 = vmatprep.subr.bf16.mxu0 0
    %3235 = vmatpush1.bf16.msra.mxu0 0
    %3236 = vmatprep.subr.bf16.mxu0 0
    %3237 = vmatpush1.bf16.msra.mxu0 0
    %3238 = vmatprep.subr.bf16.mxu0 0
    %3239 = vmatpush1.bf16.msra.mxu0 0
    %3240 = vmatprep.subr.bf16.mxu0 0
    %3241 = vmatpush1.bf16.msra.mxu0 0
    %3242 = vmatprep.subr.bf16.mxu0 0
    %3243 = vmatpush1.bf16.msra.mxu0 0
    %3244 = vmatprep.subr.bf16.mxu0 0
    %3245 = vmatpush1.bf16.msra.mxu0 0
    %3246 = vmatprep.subr.bf16.mxu0 0
    %3247 = vmatpush1.bf16.msra.mxu0 %v1070
    %3248 = vmatprep.subr.bf16.mxu0 0
    %3249 = vmatpush1.bf16.msra.mxu0 %v1069
    %3250 = vmatprep.subr.bf16.mxu0 0
    %3251 = vmatpush2.bf16.msra.mxu0 0
    %3252 = vmatprep.subr.bf16.mxu0 0
    %3253 = vmatpush2.bf16.msra.mxu0 0
    %3254 = vmatprep.subr.bf16.mxu0 0
    %3255 = vmatpush2.bf16.msra.mxu0 0
    %3256 = vmatprep.subr.bf16.mxu0 0
    %3257 = vmatpush2.bf16.msra.mxu0 0
    %3258 = vmatprep.subr.bf16.mxu0 0
    %3259 = vmatpush2.bf16.msra.mxu0 0
    %3260 = vmatprep.subr.bf16.mxu0 0
    %3261 = vmatpush2.bf16.msra.mxu0 0
    %3262 = vmatprep.subr.bf16.mxu0 0
    %3263 = vmatpush2.bf16.msra.mxu0 0
    %3264 = vmatprep.subr.bf16.mxu0 0
    %3265 = vmatpush2.bf16.msra.mxu0 0
    %3266 = vmatprep.mubr.bf16.mxu0 0
    %3267 = vmatmul.mubr.bf16.gmra.mxu0 %v3150
    %v3268 = vpop.f32.mrf.mxu0
    %v3269 = vadd.f32 0.0, %v3268
    %v3270 = vpop.f32.mrf.mxu0
    %v3271 = vpop.f32.mrf.mxu0
    %v3272 = vpop.f32.mrf.mxu0
    %3273 = vdwg.mxu0
    %v3274 = vadd.f32 %v3103, %v3269
    %3275 = vmatprep.subr.bf16.mxu0 0
    %3276 = vmatpush1.bf16.msra.mxu0 0
    %3277 = vmatprep.subr.bf16.mxu0 0
    %3278 = vmatpush1.bf16.msra.mxu0 0
    %3279 = vmatprep.subr.bf16.mxu0 0
    %3280 = vmatpush1.bf16.msra.mxu0 0
    %3281 = vmatprep.subr.bf16.mxu0 0
    %3282 = vmatpush1.bf16.msra.mxu0 0
    %3283 = vmatprep.subr.bf16.mxu0 0
    %3284 = vmatpush1.bf16.msra.mxu0 0
    %3285 = vmatprep.subr.bf16.mxu0 0
    %3286 = vmatpush1.bf16.msra.mxu0 0
    %3287 = vmatprep.subr.bf16.mxu0 0
    %3288 = vmatpush1.bf16.msra.mxu0 %v1128
    %3289 = vmatprep.subr.bf16.mxu0 0
    %3290 = vmatpush1.bf16.msra.mxu0 %v1127
    %3291 = vmatprep.subr.bf16.mxu0 0
    %3292 = vmatpush2.bf16.msra.mxu0 0
    %3293 = vmatprep.subr.bf16.mxu0 0
    %3294 = vmatpush2.bf16.msra.mxu0 0
    %3295 = vmatprep.subr.bf16.mxu0 0
    %3296 = vmatpush2.bf16.msra.mxu0 0
    %3297 = vmatprep.subr.bf16.mxu0 0
    %3298 = vmatpush2.bf16.msra.mxu0 0
    %3299 = vmatprep.subr.bf16.mxu0 0
    %3300 = vmatpush2.bf16.msra.mxu0 0
    %3301 = vmatprep.subr.bf16.mxu0 0
    %3302 = vmatpush2.bf16.msra.mxu0 0
    %3303 = vmatprep.subr.bf16.mxu0 0
    %3304 = vmatpush2.bf16.msra.mxu0 0
    %3305 = vmatprep.subr.bf16.mxu0 0
    %3306 = vmatpush2.bf16.msra.mxu0 0
    %3307 = vmatprep.mubr.bf16.mxu0 0
    %3308 = vmatmul.mubr.bf16.gmra.mxu0 %v3150
    %v3309 = vpop.f32.mrf.mxu0
    %v3310 = vadd.f32 0.0, %v3309
    %v3311 = vpop.f32.mrf.mxu0
    %v3312 = vpop.f32.mrf.mxu0
    %v3313 = vpop.f32.mrf.mxu0
    %3314 = vdwg.mxu0
    %v3315 = vadd.f32 %v3143, %v3310
    %v3316 = vmul.f32 %v3192, 0.5
    %v3317 = vtanh.pop %v3316
    %v3318 = vmul.f32 %v3317, 0.5
    %v3319 = vadd.f32 %v3318, 0.5
    %v3320 = vmul.f32 %v3233, 0.5
    %v3321 = vtanh.pop %v3320
    %v3322 = vmul.f32 %v3321, 0.5
    %v3323 = vadd.f32 %v3322, 0.5
    %v3324 = vtanh.pop %v3274
    %v3325 = vmul.f32 %v3315, 0.5
    %v3326 = vtanh.pop %v3325
    %v3327 = vmul.f32 %v3326, 0.5
    %v3328 = vadd.f32 %v3327, 0.5
    %v3329 = vmul.f32 %v3323, %v2795
    %v3330 = vmul.f32 %v3319, %v3324
    %v3331 = vadd.f32 %v3329, %v3330
    %v3332 = vtanh.pop %v3331
    %v3333 = vmul.f32 %v3328, %v3332
    %v3334 = vld [vmem:[#allocation2 + $0x14] sm:$0xf]
    %v3335 = vld [vmem:[#allocation3 + $0x14] sm:$0xf]
    %v3336 = vld [vmem:[#allocation4 + $0x14] sm:$0xf]
    %v3337 = vld [vmem:[#allocation5 + $0x14] sm:$0xf]
    %3338 = vmatprep.subr.bf16.mxu0 0
    %3339 = vmatpush1.bf16.msra.mxu0 0
    %3340 = vmatprep.subr.bf16.mxu0 0
    %3341 = vmatpush1.bf16.msra.mxu0 0
    %3342 = vmatprep.subr.bf16.mxu0 0
    %3343 = vmatpush1.bf16.msra.mxu0 0
    %3344 = vmatprep.subr.bf16.mxu0 0
    %3345 = vmatpush1.bf16.msra.mxu0 0
    %3346 = vmatprep.subr.bf16.mxu0 0
    %3347 = vmatpush1.bf16.msra.mxu0 0
    %3348 = vmatprep.subr.bf16.mxu0 0
    %3349 = vmatpush1.bf16.msra.mxu0 0
    %3350 = vmatprep.subr.bf16.mxu0 0
    %3351 = vmatpush1.bf16.msra.mxu0 %v467
    %3352 = vmatprep.subr.bf16.mxu0 0
    %3353 = vmatpush1.bf16.msra.mxu0 %v466
    %3354 = vmatprep.subr.bf16.mxu0 0
    %3355 = vmatpush2.bf16.msra.mxu0 0
    %3356 = vmatprep.subr.bf16.mxu0 0
    %3357 = vmatpush2.bf16.msra.mxu0 0
    %3358 = vmatprep.subr.bf16.mxu0 0
    %3359 = vmatpush2.bf16.msra.mxu0 0
    %3360 = vmatprep.subr.bf16.mxu0 0
    %3361 = vmatpush2.bf16.msra.mxu0 0
    %3362 = vmatprep.subr.bf16.mxu0 0
    %3363 = vmatpush2.bf16.msra.mxu0 0
    %3364 = vmatprep.subr.bf16.mxu0 0
    %3365 = vmatpush2.bf16.msra.mxu0 0
    %3366 = vmatprep.subr.bf16.mxu0 0
    %3367 = vmatpush2.bf16.msra.mxu0 0
    %3368 = vmatprep.subr.bf16.mxu0 0
    %3369 = vmatpush2.bf16.msra.mxu0 0
    %3370 = vmatprep.mubr.bf16.mxu0 0
    %3371 = vmatmul.mubr.bf16.gmra.mxu0 %v2986
    %v3372 = vpop.f32.mrf.mxu0
    %v3373 = vadd.f32 0.0, %v3372
    %v3374 = vpop.f32.mrf.mxu0
    %v3375 = vpop.f32.mrf.mxu0
    %v3376 = vpop.f32.mrf.mxu0
    %3377 = vdwg.mxu0
    %v3378 = vadd.f32 %v3334, %v3373
    %3379 = vmatprep.subr.bf16.mxu0 0
    %3380 = vmatpush1.bf16.msra.mxu0 0
    %3381 = vmatprep.subr.bf16.mxu0 0
    %3382 = vmatpush1.bf16.msra.mxu0 0
    %3383 = vmatprep.subr.bf16.mxu0 0
    %3384 = vmatpush1.bf16.msra.mxu0 0
    %3385 = vmatprep.subr.bf16.mxu0 0
    %3386 = vmatpush1.bf16.msra.mxu0 0
    %3387 = vmatprep.subr.bf16.mxu0 0
    %3388 = vmatpush1.bf16.msra.mxu0 0
    %3389 = vmatprep.subr.bf16.mxu0 0
    %3390 = vmatpush1.bf16.msra.mxu0 0
    %3391 = vmatprep.subr.bf16.mxu0 0
    %3392 = vmatpush1.bf16.msra.mxu0 %v528
    %3393 = vmatprep.subr.bf16.mxu0 0
    %3394 = vmatpush1.bf16.msra.mxu0 %v527
    %3395 = vmatprep.subr.bf16.mxu0 0
    %3396 = vmatpush2.bf16.msra.mxu0 0
    %3397 = vmatprep.subr.bf16.mxu0 0
    %3398 = vmatpush2.bf16.msra.mxu0 0
    %3399 = vmatprep.subr.bf16.mxu0 0
    %3400 = vmatpush2.bf16.msra.mxu0 0
    %3401 = vmatprep.subr.bf16.mxu0 0
    %3402 = vmatpush2.bf16.msra.mxu0 0
    %3403 = vmatprep.subr.bf16.mxu0 0
    %3404 = vmatpush2.bf16.msra.mxu0 0
    %3405 = vmatprep.subr.bf16.mxu0 0
    %3406 = vmatpush2.bf16.msra.mxu0 0
    %3407 = vmatprep.subr.bf16.mxu0 0
    %3408 = vmatpush2.bf16.msra.mxu0 0
    %3409 = vmatprep.subr.bf16.mxu0 0
    %3410 = vmatpush2.bf16.msra.mxu0 0
    %3411 = vmatprep.mubr.bf16.mxu0 0
    %3412 = vmatmul.mubr.bf16.gmra.mxu0 %v2986
    %v3413 = vpop.f32.mrf.mxu0
    %v3414 = vadd.f32 0.0, %v3413
    %v3415 = vpop.f32.mrf.mxu0
    %v3416 = vpop.f32.mrf.mxu0
    %v3417 = vpop.f32.mrf.mxu0
    %3418 = vdwg.mxu0
    %v3419 = vadd.f32 %v3335, %v3414
    %3420 = vmatprep.subr.bf16.mxu0 0
    %3421 = vmatpush1.bf16.msra.mxu0 0
    %3422 = vmatprep.subr.bf16.mxu0 0
    %3423 = vmatpush1.bf16.msra.mxu0 0
    %3424 = vmatprep.subr.bf16.mxu0 0
    %3425 = vmatpush1.bf16.msra.mxu0 0
    %3426 = vmatprep.subr.bf16.mxu0 0
    %3427 = vmatpush1.bf16.msra.mxu0 0
    %3428 = vmatprep.subr.bf16.mxu0 0
    %3429 = vmatpush1.bf16.msra.mxu0 0
    %3430 = vmatprep.subr.bf16.mxu0 0
    %3431 = vmatpush1.bf16.msra.mxu0 0
    %3432 = vmatprep.subr.bf16.mxu0 0
    %3433 = vmatpush1.bf16.msra.mxu0 %v586
    %3434 = vmatprep.subr.bf16.mxu0 0
    %3435 = vmatpush1.bf16.msra.mxu0 %v585
    %3436 = vmatprep.subr.bf16.mxu0 0
    %3437 = vmatpush2.bf16.msra.mxu0 0
    %3438 = vmatprep.subr.bf16.mxu0 0
    %3439 = vmatpush2.bf16.msra.mxu0 0
    %3440 = vmatprep.subr.bf16.mxu0 0
    %3441 = vmatpush2.bf16.msra.mxu0 0
    %3442 = vmatprep.subr.bf16.mxu0 0
    %3443 = vmatpush2.bf16.msra.mxu0 0
    %3444 = vmatprep.subr.bf16.mxu0 0
    %3445 = vmatpush2.bf16.msra.mxu0 0
    %3446 = vmatprep.subr.bf16.mxu0 0
    %3447 = vmatpush2.bf16.msra.mxu0 0
    %3448 = vmatprep.subr.bf16.mxu0 0
    %3449 = vmatpush2.bf16.msra.mxu0 0
    %3450 = vmatprep.subr.bf16.mxu0 0
    %3451 = vmatpush2.bf16.msra.mxu0 0
    %3452 = vmatprep.mubr.bf16.mxu0 0
    %3453 = vmatmul.mubr.bf16.gmra.mxu0 %v2986
    %v3454 = vpop.f32.mrf.mxu0
    %v3455 = vadd.f32 0.0, %v3454
    %v3456 = vpop.f32.mrf.mxu0
    %v3457 = vpop.f32.mrf.mxu0
    %v3458 = vpop.f32.mrf.mxu0
    %3459 = vdwg.mxu0
    %v3460 = vadd.f32 %v3336, %v3455
    %3461 = vmatprep.subr.bf16.mxu0 0
    %3462 = vmatpush1.bf16.msra.mxu0 0
    %3463 = vmatprep.subr.bf16.mxu0 0
    %3464 = vmatpush1.bf16.msra.mxu0 0
    %3465 = vmatprep.subr.bf16.mxu0 0
    %3466 = vmatpush1.bf16.msra.mxu0 0
    %3467 = vmatprep.subr.bf16.mxu0 0
    %3468 = vmatpush1.bf16.msra.mxu0 0
    %3469 = vmatprep.subr.bf16.mxu0 0
    %3470 = vmatpush1.bf16.msra.mxu0 0
    %3471 = vmatprep.subr.bf16.mxu0 0
    %3472 = vmatpush1.bf16.msra.mxu0 0
    %3473 = vmatprep.subr.bf16.mxu0 0
    %3474 = vmatpush1.bf16.msra.mxu0 %v644
    %3475 = vmatprep.subr.bf16.mxu0 0
    %3476 = vmatpush1.bf16.msra.mxu0 %v643
    %3477 = vmatprep.subr.bf16.mxu0 0
    %3478 = vmatpush2.bf16.msra.mxu0 0
    %3479 = vmatprep.subr.bf16.mxu0 0
    %3480 = vmatpush2.bf16.msra.mxu0 0
    %3481 = vmatprep.subr.bf16.mxu0 0
    %3482 = vmatpush2.bf16.msra.mxu0 0
    %3483 = vmatprep.subr.bf16.mxu0 0
    %3484 = vmatpush2.bf16.msra.mxu0 0
    %3485 = vmatprep.subr.bf16.mxu0 0
    %3486 = vmatpush2.bf16.msra.mxu0 0
    %3487 = vmatprep.subr.bf16.mxu0 0
    %3488 = vmatpush2.bf16.msra.mxu0 0
    %3489 = vmatprep.subr.bf16.mxu0 0
    %3490 = vmatpush2.bf16.msra.mxu0 0
    %3491 = vmatprep.subr.bf16.mxu0 0
    %3492 = vmatpush2.bf16.msra.mxu0 0
    %3493 = vmatprep.mubr.bf16.mxu0 0
    %3494 = vmatmul.mubr.bf16.gmra.mxu0 %v2986
    %v3495 = vpop.f32.mrf.mxu0
    %v3496 = vadd.f32 0.0, %v3495
    %v3497 = vpop.f32.mrf.mxu0
    %v3498 = vpop.f32.mrf.mxu0
    %v3499 = vpop.f32.mrf.mxu0
    %3500 = vdwg.mxu0
    %v3501 = vadd.f32 %v3337, %v3496
    %v3502 = vmul.f32 %v3378, 0.5
    %v3503 = vtanh.pop %v3502
    %v3504 = vmul.f32 %v3503, 0.5
    %v3505 = vadd.f32 %v3504, 0.5
    %v3506 = vmul.f32 %v3419, 0.5
    %v3507 = vtanh.pop %v3506
    %v3508 = vmul.f32 %v3507, 0.5
    %v3509 = vadd.f32 %v3508, 0.5
    %v3510 = vtanh.pop %v3460
    %v3511 = vmul.f32 %v3501, 0.5
    %v3512 = vtanh.pop %v3511
    %v3513 = vmul.f32 %v3512, 0.5
    %v3514 = vadd.f32 %v3513, 0.5
    %v3515 = vmul.f32 %v3509, %v2981
    %v3516 = vmul.f32 %v3505, %v3510
    %v3517 = vadd.f32 %v3515, %v3516
    %v3518 = vtanh.pop %v3517
    %v3519 = vmul.f32 %v3514, %v3518
    %v3520 = vpack.c.bf16 %v3519, %v3519
    %v3522 = vsel %vm197, %v3520, 0
    %3524 = vmatprep.subr.bf16.mxu0 0
    %3525 = vmatpush1.bf16.msra.mxu0 0
    %3526 = vmatprep.subr.bf16.mxu0 0
    %3527 = vmatpush1.bf16.msra.mxu0 0
    %3528 = vmatprep.subr.bf16.mxu0 0
    %3529 = vmatpush1.bf16.msra.mxu0 0
    %3530 = vmatprep.subr.bf16.mxu0 0
    %3531 = vmatpush1.bf16.msra.mxu0 0
    %3532 = vmatprep.subr.bf16.mxu0 0
    %3533 = vmatpush1.bf16.msra.mxu0 0
    %3534 = vmatprep.subr.bf16.mxu0 0
    %3535 = vmatpush1.bf16.msra.mxu0 0
    %3536 = vmatprep.subr.bf16.mxu0 0
    %3537 = vmatpush1.bf16.msra.mxu0 %v720
    %3538 = vmatprep.subr.bf16.mxu0 0
    %3539 = vmatpush1.bf16.msra.mxu0 %v719
    %3540 = vmatprep.subr.bf16.mxu0 0
    %3541 = vmatpush2.bf16.msra.mxu0 0
    %3542 = vmatprep.subr.bf16.mxu0 0
    %3543 = vmatpush2.bf16.msra.mxu0 0
    %3544 = vmatprep.subr.bf16.mxu0 0
    %3545 = vmatpush2.bf16.msra.mxu0 0
    %3546 = vmatprep.subr.bf16.mxu0 0
    %3547 = vmatpush2.bf16.msra.mxu0 0
    %3548 = vmatprep.subr.bf16.mxu0 0
    %3549 = vmatpush2.bf16.msra.mxu0 0
    %3550 = vmatprep.subr.bf16.mxu0 0
    %3551 = vmatpush2.bf16.msra.mxu0 0
    %3552 = vmatprep.subr.bf16.mxu0 0
    %3553 = vmatpush2.bf16.msra.mxu0 0
    %3554 = vmatprep.subr.bf16.mxu0 0
    %3555 = vmatpush2.bf16.msra.mxu0 0
    %3556 = vmatprep.mubr.bf16.mxu0 0
    %3557 = vmatmul.mubr.bf16.gmra.mxu0 %v3522
    %v3558 = vpop.f32.mrf.mxu0
    %v3559 = vadd.f32 %v417, %v3558
    %v3560 = vpop.f32.mrf.mxu0
    %v3561 = vpop.f32.mrf.mxu0
    %v3562 = vpop.f32.mrf.mxu0
    %3563 = vdwg.mxu0
    %3564 = vmatprep.subr.bf16.mxu0 0
    %3565 = vmatpush1.bf16.msra.mxu0 0
    %3566 = vmatprep.subr.bf16.mxu0 0
    %3567 = vmatpush1.bf16.msra.mxu0 0
    %3568 = vmatprep.subr.bf16.mxu0 0
    %3569 = vmatpush1.bf16.msra.mxu0 0
    %3570 = vmatprep.subr.bf16.mxu0 0
    %3571 = vmatpush1.bf16.msra.mxu0 0
    %3572 = vmatprep.subr.bf16.mxu0 0
    %3573 = vmatpush1.bf16.msra.mxu0 0
    %3574 = vmatprep.subr.bf16.mxu0 0
    %3575 = vmatpush1.bf16.msra.mxu0 0
    %3576 = vmatprep.subr.bf16.mxu0 0
    %3577 = vmatpush1.bf16.msra.mxu0 %v780
    %3578 = vmatprep.subr.bf16.mxu0 0
    %3579 = vmatpush1.bf16.msra.mxu0 %v779
    %3580 = vmatprep.subr.bf16.mxu0 0
    %3581 = vmatpush2.bf16.msra.mxu0 0
    %3582 = vmatprep.subr.bf16.mxu0 0
    %3583 = vmatpush2.bf16.msra.mxu0 0
    %3584 = vmatprep.subr.bf16.mxu0 0
    %3585 = vmatpush2.bf16.msra.mxu0 0
    %3586 = vmatprep.subr.bf16.mxu0 0
    %3587 = vmatpush2.bf16.msra.mxu0 0
    %3588 = vmatprep.subr.bf16.mxu0 0
    %3589 = vmatpush2.bf16.msra.mxu0 0
    %3590 = vmatprep.subr.bf16.mxu0 0
    %3591 = vmatpush2.bf16.msra.mxu0 0
    %3592 = vmatprep.subr.bf16.mxu0 0
    %3593 = vmatpush2.bf16.msra.mxu0 0
    %3594 = vmatprep.subr.bf16.mxu0 0
    %3595 = vmatpush2.bf16.msra.mxu0 0
    %3596 = vmatprep.mubr.bf16.mxu0 0
    %3597 = vmatmul.mubr.bf16.gmra.mxu0 %v3522
    %v3598 = vpop.f32.mrf.mxu0
    %v3599 = vadd.f32 %v425, %v3598
    %v3600 = vpop.f32.mrf.mxu0
    %v3601 = vpop.f32.mrf.mxu0
    %v3602 = vpop.f32.mrf.mxu0
    %3603 = vdwg.mxu0
    %3604 = vmatprep.subr.bf16.mxu0 0
    %3605 = vmatpush1.bf16.msra.mxu0 0
    %3606 = vmatprep.subr.bf16.mxu0 0
    %3607 = vmatpush1.bf16.msra.mxu0 0
    %3608 = vmatprep.subr.bf16.mxu0 0
    %3609 = vmatpush1.bf16.msra.mxu0 0
    %3610 = vmatprep.subr.bf16.mxu0 0
    %3611 = vmatpush1.bf16.msra.mxu0 0
    %3612 = vmatprep.subr.bf16.mxu0 0
    %3613 = vmatpush1.bf16.msra.mxu0 0
    %3614 = vmatprep.subr.bf16.mxu0 0
    %3615 = vmatpush1.bf16.msra.mxu0 0
    %3616 = vmatprep.subr.bf16.mxu0 0
    %3617 = vmatpush1.bf16.msra.mxu0 %v837
    %3618 = vmatprep.subr.bf16.mxu0 0
    %3619 = vmatpush1.bf16.msra.mxu0 %v836
    %3620 = vmatprep.subr.bf16.mxu0 0
    %3621 = vmatpush2.bf16.msra.mxu0 0
    %3622 = vmatprep.subr.bf16.mxu0 0
    %3623 = vmatpush2.bf16.msra.mxu0 0
    %3624 = vmatprep.subr.bf16.mxu0 0
    %3625 = vmatpush2.bf16.msra.mxu0 0
    %3626 = vmatprep.subr.bf16.mxu0 0
    %3627 = vmatpush2.bf16.msra.mxu0 0
    %3628 = vmatprep.subr.bf16.mxu0 0
    %3629 = vmatpush2.bf16.msra.mxu0 0
    %3630 = vmatprep.subr.bf16.mxu0 0
    %3631 = vmatpush2.bf16.msra.mxu0 0
    %3632 = vmatprep.subr.bf16.mxu0 0
    %3633 = vmatpush2.bf16.msra.mxu0 0
    %3634 = vmatprep.subr.bf16.mxu0 0
    %3635 = vmatpush2.bf16.msra.mxu0 0
    %3636 = vmatprep.mubr.bf16.mxu0 0
    %3637 = vmatmul.mubr.bf16.gmra.mxu0 %v3522
    %v3638 = vpop.f32.mrf.mxu0
    %v3639 = vadd.f32 %v433, %v3638
    %v3640 = vpop.f32.mrf.mxu0
    %v3641 = vpop.f32.mrf.mxu0
    %v3642 = vpop.f32.mrf.mxu0
    %3643 = vdwg.mxu0
    %3644 = vmatprep.subr.bf16.mxu0 0
    %3645 = vmatpush1.bf16.msra.mxu0 0
    %3646 = vmatprep.subr.bf16.mxu0 0
    %3647 = vmatpush1.bf16.msra.mxu0 0
    %3648 = vmatprep.subr.bf16.mxu0 0
    %3649 = vmatpush1.bf16.msra.mxu0 0
    %3650 = vmatprep.subr.bf16.mxu0 0
    %3651 = vmatpush1.bf16.msra.mxu0 0
    %3652 = vmatprep.subr.bf16.mxu0 0
    %3653 = vmatpush1.bf16.msra.mxu0 0
    %3654 = vmatprep.subr.bf16.mxu0 0
    %3655 = vmatpush1.bf16.msra.mxu0 0
    %3656 = vmatprep.subr.bf16.mxu0 0
    %3657 = vmatpush1.bf16.msra.mxu0 %v894
    %3658 = vmatprep.subr.bf16.mxu0 0
    %3659 = vmatpush1.bf16.msra.mxu0 %v893
    %3660 = vmatprep.subr.bf16.mxu0 0
    %3661 = vmatpush2.bf16.msra.mxu0 0
    %3662 = vmatprep.subr.bf16.mxu0 0
    %3663 = vmatpush2.bf16.msra.mxu0 0
    %3664 = vmatprep.subr.bf16.mxu0 0
    %3665 = vmatpush2.bf16.msra.mxu0 0
    %3666 = vmatprep.subr.bf16.mxu0 0
    %3667 = vmatpush2.bf16.msra.mxu0 0
    %3668 = vmatprep.subr.bf16.mxu0 0
    %3669 = vmatpush2.bf16.msra.mxu0 0
    %3670 = vmatprep.subr.bf16.mxu0 0
    %3671 = vmatpush2.bf16.msra.mxu0 0
    %3672 = vmatprep.subr.bf16.mxu0 0
    %3673 = vmatpush2.bf16.msra.mxu0 0
    %3674 = vmatprep.subr.bf16.mxu0 0
    %3675 = vmatpush2.bf16.msra.mxu0 0
    %3676 = vmatprep.mubr.bf16.mxu0 0
    %3677 = vmatmul.mubr.bf16.gmra.mxu0 %v3522
    %v3678 = vpop.f32.mrf.mxu0
    %v3679 = vadd.f32 %v441, %v3678
    %v3680 = vpop.f32.mrf.mxu0
    %v3681 = vpop.f32.mrf.mxu0
    %v3682 = vpop.f32.mrf.mxu0
    %3683 = vdwg.mxu0
    %v3684 = vpack.c.bf16 %v3333, %v3333
    %v3686 = vsel %vm197, %v3684, 0
    %3688 = vmatprep.subr.bf16.mxu0 0
    %3689 = vmatpush1.bf16.msra.mxu0 0
    %3690 = vmatprep.subr.bf16.mxu0 0
    %3691 = vmatpush1.bf16.msra.mxu0 0
    %3692 = vmatprep.subr.bf16.mxu0 0
    %3693 = vmatpush1.bf16.msra.mxu0 0
    %3694 = vmatprep.subr.bf16.mxu0 0
    %3695 = vmatpush1.bf16.msra.mxu0 0
    %3696 = vmatprep.subr.bf16.mxu0 0
    %3697 = vmatpush1.bf16.msra.mxu0 0
    %3698 = vmatprep.subr.bf16.mxu0 0
    %3699 = vmatpush1.bf16.msra.mxu0 0
    %3700 = vmatprep.subr.bf16.mxu0 0
    %3701 = vmatpush1.bf16.msra.mxu0 %v951
    %3702 = vmatprep.subr.bf16.mxu0 0
    %3703 = vmatpush1.bf16.msra.mxu0 %v950
    %3704 = vmatprep.subr.bf16.mxu0 0
    %3705 = vmatpush2.bf16.msra.mxu0 0
    %3706 = vmatprep.subr.bf16.mxu0 0
    %3707 = vmatpush2.bf16.msra.mxu0 0
    %3708 = vmatprep.subr.bf16.mxu0 0
    %3709 = vmatpush2.bf16.msra.mxu0 0
    %3710 = vmatprep.subr.bf16.mxu0 0
    %3711 = vmatpush2.bf16.msra.mxu0 0
    %3712 = vmatprep.subr.bf16.mxu0 0
    %3713 = vmatpush2.bf16.msra.mxu0 0
    %3714 = vmatprep.subr.bf16.mxu0 0
    %3715 = vmatpush2.bf16.msra.mxu0 0
    %3716 = vmatprep.subr.bf16.mxu0 0
    %3717 = vmatpush2.bf16.msra.mxu0 0
    %3718 = vmatprep.subr.bf16.mxu0 0
    %3719 = vmatpush2.bf16.msra.mxu0 0
    %3720 = vmatprep.mubr.bf16.mxu0 0
    %3721 = vmatmul.mubr.bf16.gmra.mxu0 %v3686
    %v3722 = vpop.f32.mrf.mxu0
    %v3723 = vadd.f32 0.0, %v3722
    %v3724 = vpop.f32.mrf.mxu0
    %v3725 = vpop.f32.mrf.mxu0
    %v3726 = vpop.f32.mrf.mxu0
    %3727 = vdwg.mxu0
    %v3728 = vadd.f32 %v3559, %v3723
    %3729 = vmatprep.subr.bf16.mxu0 0
    %3730 = vmatpush1.bf16.msra.mxu0 0
    %3731 = vmatprep.subr.bf16.mxu0 0
    %3732 = vmatpush1.bf16.msra.mxu0 0
    %3733 = vmatprep.subr.bf16.mxu0 0
    %3734 = vmatpush1.bf16.msra.mxu0 0
    %3735 = vmatprep.subr.bf16.mxu0 0
    %3736 = vmatpush1.bf16.msra.mxu0 0
    %3737 = vmatprep.subr.bf16.mxu0 0
    %3738 = vmatpush1.bf16.msra.mxu0 0
    %3739 = vmatprep.subr.bf16.mxu0 0
    %3740 = vmatpush1.bf16.msra.mxu0 0
    %3741 = vmatprep.subr.bf16.mxu0 0
    %3742 = vmatpush1.bf16.msra.mxu0 %v1012
    %3743 = vmatprep.subr.bf16.mxu0 0
    %3744 = vmatpush1.bf16.msra.mxu0 %v1011
    %3745 = vmatprep.subr.bf16.mxu0 0
    %3746 = vmatpush2.bf16.msra.mxu0 0
    %3747 = vmatprep.subr.bf16.mxu0 0
    %3748 = vmatpush2.bf16.msra.mxu0 0
    %3749 = vmatprep.subr.bf16.mxu0 0
    %3750 = vmatpush2.bf16.msra.mxu0 0
    %3751 = vmatprep.subr.bf16.mxu0 0
    %3752 = vmatpush2.bf16.msra.mxu0 0
    %3753 = vmatprep.subr.bf16.mxu0 0
    %3754 = vmatpush2.bf16.msra.mxu0 0
    %3755 = vmatprep.subr.bf16.mxu0 0
    %3756 = vmatpush2.bf16.msra.mxu0 0
    %3757 = vmatprep.subr.bf16.mxu0 0
    %3758 = vmatpush2.bf16.msra.mxu0 0
    %3759 = vmatprep.subr.bf16.mxu0 0
    %3760 = vmatpush2.bf16.msra.mxu0 0
    %3761 = vmatprep.mubr.bf16.mxu0 0
    %3762 = vmatmul.mubr.bf16.gmra.mxu0 %v3686
    %v3763 = vpop.f32.mrf.mxu0
    %v3764 = vadd.f32 0.0, %v3763
    %v3765 = vpop.f32.mrf.mxu0
    %v3766 = vpop.f32.mrf.mxu0
    %v3767 = vpop.f32.mrf.mxu0
    %3768 = vdwg.mxu0
    %v3769 = vadd.f32 %v3599, %v3764
    %3770 = vmatprep.subr.bf16.mxu0 0
    %3771 = vmatpush1.bf16.msra.mxu0 0
    %3772 = vmatprep.subr.bf16.mxu0 0
    %3773 = vmatpush1.bf16.msra.mxu0 0
    %3774 = vmatprep.subr.bf16.mxu0 0
    %3775 = vmatpush1.bf16.msra.mxu0 0
    %3776 = vmatprep.subr.bf16.mxu0 0
    %3777 = vmatpush1.bf16.msra.mxu0 0
    %3778 = vmatprep.subr.bf16.mxu0 0
    %3779 = vmatpush1.bf16.msra.mxu0 0
    %3780 = vmatprep.subr.bf16.mxu0 0
    %3781 = vmatpush1.bf16.msra.mxu0 0
    %3782 = vmatprep.subr.bf16.mxu0 0
    %3783 = vmatpush1.bf16.msra.mxu0 %v1070
    %3784 = vmatprep.subr.bf16.mxu0 0
    %3785 = vmatpush1.bf16.msra.mxu0 %v1069
    %3786 = vmatprep.subr.bf16.mxu0 0
    %3787 = vmatpush2.bf16.msra.mxu0 0
    %3788 = vmatprep.subr.bf16.mxu0 0
    %3789 = vmatpush2.bf16.msra.mxu0 0
    %3790 = vmatprep.subr.bf16.mxu0 0
    %3791 = vmatpush2.bf16.msra.mxu0 0
    %3792 = vmatprep.subr.bf16.mxu0 0
    %3793 = vmatpush2.bf16.msra.mxu0 0
    %3794 = vmatprep.subr.bf16.mxu0 0
    %3795 = vmatpush2.bf16.msra.mxu0 0
    %3796 = vmatprep.subr.bf16.mxu0 0
    %3797 = vmatpush2.bf16.msra.mxu0 0
    %3798 = vmatprep.subr.bf16.mxu0 0
    %3799 = vmatpush2.bf16.msra.mxu0 0
    %3800 = vmatprep.subr.bf16.mxu0 0
    %3801 = vmatpush2.bf16.msra.mxu0 0
    %3802 = vmatprep.mubr.bf16.mxu0 0
    %3803 = vmatmul.mubr.bf16.gmra.mxu0 %v3686
    %v3804 = vpop.f32.mrf.mxu0
    %v3805 = vadd.f32 0.0, %v3804
    %v3806 = vpop.f32.mrf.mxu0
    %v3807 = vpop.f32.mrf.mxu0
    %v3808 = vpop.f32.mrf.mxu0
    %3809 = vdwg.mxu0
    %v3810 = vadd.f32 %v3639, %v3805
    %3811 = vmatprep.subr.bf16.mxu0 0
    %3812 = vmatpush1.bf16.msra.mxu0 0
    %3813 = vmatprep.subr.bf16.mxu0 0
    %3814 = vmatpush1.bf16.msra.mxu0 0
    %3815 = vmatprep.subr.bf16.mxu0 0
    %3816 = vmatpush1.bf16.msra.mxu0 0
    %3817 = vmatprep.subr.bf16.mxu0 0
    %3818 = vmatpush1.bf16.msra.mxu0 0
    %3819 = vmatprep.subr.bf16.mxu0 0
    %3820 = vmatpush1.bf16.msra.mxu0 0
    %3821 = vmatprep.subr.bf16.mxu0 0
    %3822 = vmatpush1.bf16.msra.mxu0 0
    %3823 = vmatprep.subr.bf16.mxu0 0
    %3824 = vmatpush1.bf16.msra.mxu0 %v1128
    %3825 = vmatprep.subr.bf16.mxu0 0
    %3826 = vmatpush1.bf16.msra.mxu0 %v1127
    %3827 = vmatprep.subr.bf16.mxu0 0
    %3828 = vmatpush2.bf16.msra.mxu0 0
    %3829 = vmatprep.subr.bf16.mxu0 0
    %3830 = vmatpush2.bf16.msra.mxu0 0
    %3831 = vmatprep.subr.bf16.mxu0 0
    %3832 = vmatpush2.bf16.msra.mxu0 0
    %3833 = vmatprep.subr.bf16.mxu0 0
    %3834 = vmatpush2.bf16.msra.mxu0 0
    %3835 = vmatprep.subr.bf16.mxu0 0
    %3836 = vmatpush2.bf16.msra.mxu0 0
    %3837 = vmatprep.subr.bf16.mxu0 0
    %3838 = vmatpush2.bf16.msra.mxu0 0
    %3839 = vmatprep.subr.bf16.mxu0 0
    %3840 = vmatpush2.bf16.msra.mxu0 0
    %3841 = vmatprep.subr.bf16.mxu0 0
    %3842 = vmatpush2.bf16.msra.mxu0 0
    %3843 = vmatprep.mubr.bf16.mxu0 0
    %3844 = vmatmul.mubr.bf16.gmra.mxu0 %v3686
    %v3845 = vpop.f32.mrf.mxu0
    %v3846 = vadd.f32 0.0, %v3845
    %v3847 = vpop.f32.mrf.mxu0
    %v3848 = vpop.f32.mrf.mxu0
    %v3849 = vpop.f32.mrf.mxu0
    %3850 = vdwg.mxu0
    %v3851 = vadd.f32 %v3679, %v3846
    %v3852 = vmul.f32 %v3728, 0.5
    %v3853 = vtanh.pop %v3852
    %v3854 = vmul.f32 %v3853, 0.5
    %v3855 = vadd.f32 %v3854, 0.5
    %v3856 = vmul.f32 %v3769, 0.5
    %v3857 = vtanh.pop %v3856
    %v3858 = vmul.f32 %v3857, 0.5
    %v3859 = vadd.f32 %v3858, 0.5
    %v3860 = vtanh.pop %v3810
    %v3861 = vmul.f32 %v3851, 0.5
    %v3862 = vtanh.pop %v3861
    %v3863 = vmul.f32 %v3862, 0.5
    %v3864 = vadd.f32 %v3863, 0.5
    %v3865 = vmul.f32 %v3859, %v3331
    %v3866 = vmul.f32 %v3855, %v3860
    %v3867 = vadd.f32 %v3865, %v3866
    %v3868 = vtanh.pop %v3867
    %v3869 = vmul.f32 %v3864, %v3868
    %v3870 = vld [vmem:[#allocation2 + $0x18] sm:$0xf]
    %v3871 = vld [vmem:[#allocation3 + $0x18] sm:$0xf]
    %v3872 = vld [vmem:[#allocation4 + $0x18] sm:$0xf]
    %v3873 = vld [vmem:[#allocation5 + $0x18] sm:$0xf]
    %3874 = vmatprep.subr.bf16.mxu0 0
    %3875 = vmatpush1.bf16.msra.mxu0 0
    %3876 = vmatprep.subr.bf16.mxu0 0
    %3877 = vmatpush1.bf16.msra.mxu0 0
    %3878 = vmatprep.subr.bf16.mxu0 0
    %3879 = vmatpush1.bf16.msra.mxu0 0
    %3880 = vmatprep.subr.bf16.mxu0 0
    %3881 = vmatpush1.bf16.msra.mxu0 0
    %3882 = vmatprep.subr.bf16.mxu0 0
    %3883 = vmatpush1.bf16.msra.mxu0 0
    %3884 = vmatprep.subr.bf16.mxu0 0
    %3885 = vmatpush1.bf16.msra.mxu0 0
    %3886 = vmatprep.subr.bf16.mxu0 0
    %3887 = vmatpush1.bf16.msra.mxu0 %v467
    %3888 = vmatprep.subr.bf16.mxu0 0
    %3889 = vmatpush1.bf16.msra.mxu0 %v466
    %3890 = vmatprep.subr.bf16.mxu0 0
    %3891 = vmatpush2.bf16.msra.mxu0 0
    %3892 = vmatprep.subr.bf16.mxu0 0
    %3893 = vmatpush2.bf16.msra.mxu0 0
    %3894 = vmatprep.subr.bf16.mxu0 0
    %3895 = vmatpush2.bf16.msra.mxu0 0
    %3896 = vmatprep.subr.bf16.mxu0 0
    %3897 = vmatpush2.bf16.msra.mxu0 0
    %3898 = vmatprep.subr.bf16.mxu0 0
    %3899 = vmatpush2.bf16.msra.mxu0 0
    %3900 = vmatprep.subr.bf16.mxu0 0
    %3901 = vmatpush2.bf16.msra.mxu0 0
    %3902 = vmatprep.subr.bf16.mxu0 0
    %3903 = vmatpush2.bf16.msra.mxu0 0
    %3904 = vmatprep.subr.bf16.mxu0 0
    %3905 = vmatpush2.bf16.msra.mxu0 0
    %3906 = vmatprep.mubr.bf16.mxu0 0
    %3907 = vmatmul.mubr.bf16.gmra.mxu0 %v3522
    %v3908 = vpop.f32.mrf.mxu0
    %v3909 = vadd.f32 0.0, %v3908
    %v3910 = vpop.f32.mrf.mxu0
    %v3911 = vpop.f32.mrf.mxu0
    %v3912 = vpop.f32.mrf.mxu0
    %3913 = vdwg.mxu0
    %v3914 = vadd.f32 %v3870, %v3909
    %3915 = vmatprep.subr.bf16.mxu0 0
    %3916 = vmatpush1.bf16.msra.mxu0 0
    %3917 = vmatprep.subr.bf16.mxu0 0
    %3918 = vmatpush1.bf16.msra.mxu0 0
    %3919 = vmatprep.subr.bf16.mxu0 0
    %3920 = vmatpush1.bf16.msra.mxu0 0
    %3921 = vmatprep.subr.bf16.mxu0 0
    %3922 = vmatpush1.bf16.msra.mxu0 0
    %3923 = vmatprep.subr.bf16.mxu0 0
    %3924 = vmatpush1.bf16.msra.mxu0 0
    %3925 = vmatprep.subr.bf16.mxu0 0
    %3926 = vmatpush1.bf16.msra.mxu0 0
    %3927 = vmatprep.subr.bf16.mxu0 0
    %3928 = vmatpush1.bf16.msra.mxu0 %v528
    %3929 = vmatprep.subr.bf16.mxu0 0
    %3930 = vmatpush1.bf16.msra.mxu0 %v527
    %3931 = vmatprep.subr.bf16.mxu0 0
    %3932 = vmatpush2.bf16.msra.mxu0 0
    %3933 = vmatprep.subr.bf16.mxu0 0
    %3934 = vmatpush2.bf16.msra.mxu0 0
    %3935 = vmatprep.subr.bf16.mxu0 0
    %3936 = vmatpush2.bf16.msra.mxu0 0
    %3937 = vmatprep.subr.bf16.mxu0 0
    %3938 = vmatpush2.bf16.msra.mxu0 0
    %3939 = vmatprep.subr.bf16.mxu0 0
    %3940 = vmatpush2.bf16.msra.mxu0 0
    %3941 = vmatprep.subr.bf16.mxu0 0
    %3942 = vmatpush2.bf16.msra.mxu0 0
    %3943 = vmatprep.subr.bf16.mxu0 0
    %3944 = vmatpush2.bf16.msra.mxu0 0
    %3945 = vmatprep.subr.bf16.mxu0 0
    %3946 = vmatpush2.bf16.msra.mxu0 0
    %3947 = vmatprep.mubr.bf16.mxu0 0
    %3948 = vmatmul.mubr.bf16.gmra.mxu0 %v3522
    %v3949 = vpop.f32.mrf.mxu0
    %v3950 = vadd.f32 0.0, %v3949
    %v3951 = vpop.f32.mrf.mxu0
    %v3952 = vpop.f32.mrf.mxu0
    %v3953 = vpop.f32.mrf.mxu0
    %3954 = vdwg.mxu0
    %v3955 = vadd.f32 %v3871, %v3950
    %3956 = vmatprep.subr.bf16.mxu0 0
    %3957 = vmatpush1.bf16.msra.mxu0 0
    %3958 = vmatprep.subr.bf16.mxu0 0
    %3959 = vmatpush1.bf16.msra.mxu0 0
    %3960 = vmatprep.subr.bf16.mxu0 0
    %3961 = vmatpush1.bf16.msra.mxu0 0
    %3962 = vmatprep.subr.bf16.mxu0 0
    %3963 = vmatpush1.bf16.msra.mxu0 0
    %3964 = vmatprep.subr.bf16.mxu0 0
    %3965 = vmatpush1.bf16.msra.mxu0 0
    %3966 = vmatprep.subr.bf16.mxu0 0
    %3967 = vmatpush1.bf16.msra.mxu0 0
    %3968 = vmatprep.subr.bf16.mxu0 0
    %3969 = vmatpush1.bf16.msra.mxu0 %v586
    %3970 = vmatprep.subr.bf16.mxu0 0
    %3971 = vmatpush1.bf16.msra.mxu0 %v585
    %3972 = vmatprep.subr.bf16.mxu0 0
    %3973 = vmatpush2.bf16.msra.mxu0 0
    %3974 = vmatprep.subr.bf16.mxu0 0
    %3975 = vmatpush2.bf16.msra.mxu0 0
    %3976 = vmatprep.subr.bf16.mxu0 0
    %3977 = vmatpush2.bf16.msra.mxu0 0
    %3978 = vmatprep.subr.bf16.mxu0 0
    %3979 = vmatpush2.bf16.msra.mxu0 0
    %3980 = vmatprep.subr.bf16.mxu0 0
    %3981 = vmatpush2.bf16.msra.mxu0 0
    %3982 = vmatprep.subr.bf16.mxu0 0
    %3983 = vmatpush2.bf16.msra.mxu0 0
    %3984 = vmatprep.subr.bf16.mxu0 0
    %3985 = vmatpush2.bf16.msra.mxu0 0
    %3986 = vmatprep.subr.bf16.mxu0 0
    %3987 = vmatpush2.bf16.msra.mxu0 0
    %3988 = vmatprep.mubr.bf16.mxu0 0
    %3989 = vmatmul.mubr.bf16.gmra.mxu0 %v3522
    %v3990 = vpop.f32.mrf.mxu0
    %v3991 = vadd.f32 0.0, %v3990
    %v3992 = vpop.f32.mrf.mxu0
    %v3993 = vpop.f32.mrf.mxu0
    %v3994 = vpop.f32.mrf.mxu0
    %3995 = vdwg.mxu0
    %v3996 = vadd.f32 %v3872, %v3991
    %3997 = vmatprep.subr.bf16.mxu0 0
    %3998 = vmatpush1.bf16.msra.mxu0 0
    %3999 = vmatprep.subr.bf16.mxu0 0
    %4000 = vmatpush1.bf16.msra.mxu0 0
    %4001 = vmatprep.subr.bf16.mxu0 0
    %4002 = vmatpush1.bf16.msra.mxu0 0
    %4003 = vmatprep.subr.bf16.mxu0 0
    %4004 = vmatpush1.bf16.msra.mxu0 0
    %4005 = vmatprep.subr.bf16.mxu0 0
    %4006 = vmatpush1.bf16.msra.mxu0 0
    %4007 = vmatprep.subr.bf16.mxu0 0
    %4008 = vmatpush1.bf16.msra.mxu0 0
    %4009 = vmatprep.subr.bf16.mxu0 0
    %4010 = vmatpush1.bf16.msra.mxu0 %v644
    %4011 = vmatprep.subr.bf16.mxu0 0
    %4012 = vmatpush1.bf16.msra.mxu0 %v643
    %4013 = vmatprep.subr.bf16.mxu0 0
    %4014 = vmatpush2.bf16.msra.mxu0 0
    %4015 = vmatprep.subr.bf16.mxu0 0
    %4016 = vmatpush2.bf16.msra.mxu0 0
    %4017 = vmatprep.subr.bf16.mxu0 0
    %4018 = vmatpush2.bf16.msra.mxu0 0
    %4019 = vmatprep.subr.bf16.mxu0 0
    %4020 = vmatpush2.bf16.msra.mxu0 0
    %4021 = vmatprep.subr.bf16.mxu0 0
    %4022 = vmatpush2.bf16.msra.mxu0 0
    %4023 = vmatprep.subr.bf16.mxu0 0
    %4024 = vmatpush2.bf16.msra.mxu0 0
    %4025 = vmatprep.subr.bf16.mxu0 0
    %4026 = vmatpush2.bf16.msra.mxu0 0
    %4027 = vmatprep.subr.bf16.mxu0 0
    %4028 = vmatpush2.bf16.msra.mxu0 0
    %4029 = vmatprep.mubr.bf16.mxu0 0
    %4030 = vmatmul.mubr.bf16.gmra.mxu0 %v3522
    %v4031 = vpop.f32.mrf.mxu0
    %v4032 = vadd.f32 0.0, %v4031
    %v4033 = vpop.f32.mrf.mxu0
    %v4034 = vpop.f32.mrf.mxu0
    %v4035 = vpop.f32.mrf.mxu0
    %4036 = vdwg.mxu0
    %v4037 = vadd.f32 %v3873, %v4032
    %v4038 = vmul.f32 %v3914, 0.5
    %v4039 = vtanh.pop %v4038
    %v4040 = vmul.f32 %v4039, 0.5
    %v4041 = vadd.f32 %v4040, 0.5
    %v4042 = vmul.f32 %v3955, 0.5
    %v4043 = vtanh.pop %v4042
    %v4044 = vmul.f32 %v4043, 0.5
    %v4045 = vadd.f32 %v4044, 0.5
    %v4046 = vtanh.pop %v3996
    %v4047 = vmul.f32 %v4037, 0.5
    %v4048 = vtanh.pop %v4047
    %v4049 = vmul.f32 %v4048, 0.5
    %v4050 = vadd.f32 %v4049, 0.5
    %v4051 = vmul.f32 %v4045, %v3517
    %v4052 = vmul.f32 %v4041, %v4046
    %v4053 = vadd.f32 %v4051, %v4052
    %v4054 = vtanh.pop %v4053
    %v4055 = vmul.f32 %v4050, %v4054
    %v4056 = vpack.c.bf16 %v4055, %v4055
    %v4058 = vsel %vm197, %v4056, 0
    %4060 = vmatprep.subr.bf16.mxu0 0
    %4061 = vmatpush1.bf16.msra.mxu0 0
    %4062 = vmatprep.subr.bf16.mxu0 0
    %4063 = vmatpush1.bf16.msra.mxu0 0
    %4064 = vmatprep.subr.bf16.mxu0 0
    %4065 = vmatpush1.bf16.msra.mxu0 0
    %4066 = vmatprep.subr.bf16.mxu0 0
    %4067 = vmatpush1.bf16.msra.mxu0 0
    %4068 = vmatprep.subr.bf16.mxu0 0
    %4069 = vmatpush1.bf16.msra.mxu0 0
    %4070 = vmatprep.subr.bf16.mxu0 0
    %4071 = vmatpush1.bf16.msra.mxu0 0
    %4072 = vmatprep.subr.bf16.mxu0 0
    %4073 = vmatpush1.bf16.msra.mxu0 %v720
    %4074 = vmatprep.subr.bf16.mxu0 0
    %4075 = vmatpush1.bf16.msra.mxu0 %v719
    %4076 = vmatprep.subr.bf16.mxu0 0
    %4077 = vmatpush2.bf16.msra.mxu0 0
    %4078 = vmatprep.subr.bf16.mxu0 0
    %4079 = vmatpush2.bf16.msra.mxu0 0
    %4080 = vmatprep.subr.bf16.mxu0 0
    %4081 = vmatpush2.bf16.msra.mxu0 0
    %4082 = vmatprep.subr.bf16.mxu0 0
    %4083 = vmatpush2.bf16.msra.mxu0 0
    %4084 = vmatprep.subr.bf16.mxu0 0
    %4085 = vmatpush2.bf16.msra.mxu0 0
    %4086 = vmatprep.subr.bf16.mxu0 0
    %4087 = vmatpush2.bf16.msra.mxu0 0
    %4088 = vmatprep.subr.bf16.mxu0 0
    %4089 = vmatpush2.bf16.msra.mxu0 0
    %4090 = vmatprep.subr.bf16.mxu0 0
    %4091 = vmatpush2.bf16.msra.mxu0 0
    %4092 = vmatprep.mubr.bf16.mxu0 0
    %4093 = vmatmul.mubr.bf16.gmra.mxu0 %v4058
    %v4094 = vpop.f32.mrf.mxu0
    %v4095 = vadd.f32 %v417, %v4094
    %v4096 = vpop.f32.mrf.mxu0
    %v4097 = vpop.f32.mrf.mxu0
    %v4098 = vpop.f32.mrf.mxu0
    %4099 = vdwg.mxu0
    %4100 = vmatprep.subr.bf16.mxu0 0
    %4101 = vmatpush1.bf16.msra.mxu0 0
    %4102 = vmatprep.subr.bf16.mxu0 0
    %4103 = vmatpush1.bf16.msra.mxu0 0
    %4104 = vmatprep.subr.bf16.mxu0 0
    %4105 = vmatpush1.bf16.msra.mxu0 0
    %4106 = vmatprep.subr.bf16.mxu0 0
    %4107 = vmatpush1.bf16.msra.mxu0 0
    %4108 = vmatprep.subr.bf16.mxu0 0
    %4109 = vmatpush1.bf16.msra.mxu0 0
    %4110 = vmatprep.subr.bf16.mxu0 0
    %4111 = vmatpush1.bf16.msra.mxu0 0
    %4112 = vmatprep.subr.bf16.mxu0 0
    %4113 = vmatpush1.bf16.msra.mxu0 %v780
    %4114 = vmatprep.subr.bf16.mxu0 0
    %4115 = vmatpush1.bf16.msra.mxu0 %v779
    %4116 = vmatprep.subr.bf16.mxu0 0
    %4117 = vmatpush2.bf16.msra.mxu0 0
    %4118 = vmatprep.subr.bf16.mxu0 0
    %4119 = vmatpush2.bf16.msra.mxu0 0
    %4120 = vmatprep.subr.bf16.mxu0 0
    %4121 = vmatpush2.bf16.msra.mxu0 0
    %4122 = vmatprep.subr.bf16.mxu0 0
    %4123 = vmatpush2.bf16.msra.mxu0 0
    %4124 = vmatprep.subr.bf16.mxu0 0
    %4125 = vmatpush2.bf16.msra.mxu0 0
    %4126 = vmatprep.subr.bf16.mxu0 0
    %4127 = vmatpush2.bf16.msra.mxu0 0
    %4128 = vmatprep.subr.bf16.mxu0 0
    %4129 = vmatpush2.bf16.msra.mxu0 0
    %4130 = vmatprep.subr.bf16.mxu0 0
    %4131 = vmatpush2.bf16.msra.mxu0 0
    %4132 = vmatprep.mubr.bf16.mxu0 0
    %4133 = vmatmul.mubr.bf16.gmra.mxu0 %v4058
    %v4134 = vpop.f32.mrf.mxu0
    %v4135 = vadd.f32 %v425, %v4134
    %v4136 = vpop.f32.mrf.mxu0
    %v4137 = vpop.f32.mrf.mxu0
    %v4138 = vpop.f32.mrf.mxu0
    %4139 = vdwg.mxu0
    %4140 = vmatprep.subr.bf16.mxu0 0
    %4141 = vmatpush1.bf16.msra.mxu0 0
    %4142 = vmatprep.subr.bf16.mxu0 0
    %4143 = vmatpush1.bf16.msra.mxu0 0
    %4144 = vmatprep.subr.bf16.mxu0 0
    %4145 = vmatpush1.bf16.msra.mxu0 0
    %4146 = vmatprep.subr.bf16.mxu0 0
    %4147 = vmatpush1.bf16.msra.mxu0 0
    %4148 = vmatprep.subr.bf16.mxu0 0
    %4149 = vmatpush1.bf16.msra.mxu0 0
    %4150 = vmatprep.subr.bf16.mxu0 0
    %4151 = vmatpush1.bf16.msra.mxu0 0
    %4152 = vmatprep.subr.bf16.mxu0 0
    %4153 = vmatpush1.bf16.msra.mxu0 %v837
    %4154 = vmatprep.subr.bf16.mxu0 0
    %4155 = vmatpush1.bf16.msra.mxu0 %v836
    %4156 = vmatprep.subr.bf16.mxu0 0
    %4157 = vmatpush2.bf16.msra.mxu0 0
    %4158 = vmatprep.subr.bf16.mxu0 0
    %4159 = vmatpush2.bf16.msra.mxu0 0
    %4160 = vmatprep.subr.bf16.mxu0 0
    %4161 = vmatpush2.bf16.msra.mxu0 0
    %4162 = vmatprep.subr.bf16.mxu0 0
    %4163 = vmatpush2.bf16.msra.mxu0 0
    %4164 = vmatprep.subr.bf16.mxu0 0
    %4165 = vmatpush2.bf16.msra.mxu0 0
    %4166 = vmatprep.subr.bf16.mxu0 0
    %4167 = vmatpush2.bf16.msra.mxu0 0
    %4168 = vmatprep.subr.bf16.mxu0 0
    %4169 = vmatpush2.bf16.msra.mxu0 0
    %4170 = vmatprep.subr.bf16.mxu0 0
    %4171 = vmatpush2.bf16.msra.mxu0 0
    %4172 = vmatprep.mubr.bf16.mxu0 0
    %4173 = vmatmul.mubr.bf16.gmra.mxu0 %v4058
    %v4174 = vpop.f32.mrf.mxu0
    %v4175 = vadd.f32 %v433, %v4174
    %v4176 = vpop.f32.mrf.mxu0
    %v4177 = vpop.f32.mrf.mxu0
    %v4178 = vpop.f32.mrf.mxu0
    %4179 = vdwg.mxu0
    %4180 = vmatprep.subr.bf16.mxu0 0
    %4181 = vmatpush1.bf16.msra.mxu0 0
    %4182 = vmatprep.subr.bf16.mxu0 0
    %4183 = vmatpush1.bf16.msra.mxu0 0
    %4184 = vmatprep.subr.bf16.mxu0 0
    %4185 = vmatpush1.bf16.msra.mxu0 0
    %4186 = vmatprep.subr.bf16.mxu0 0
    %4187 = vmatpush1.bf16.msra.mxu0 0
    %4188 = vmatprep.subr.bf16.mxu0 0
    %4189 = vmatpush1.bf16.msra.mxu0 0
    %4190 = vmatprep.subr.bf16.mxu0 0
    %4191 = vmatpush1.bf16.msra.mxu0 0
    %4192 = vmatprep.subr.bf16.mxu0 0
    %4193 = vmatpush1.bf16.msra.mxu0 %v894
    %4194 = vmatprep.subr.bf16.mxu0 0
    %4195 = vmatpush1.bf16.msra.mxu0 %v893
    %4196 = vmatprep.subr.bf16.mxu0 0
    %4197 = vmatpush2.bf16.msra.mxu0 0
    %4198 = vmatprep.subr.bf16.mxu0 0
    %4199 = vmatpush2.bf16.msra.mxu0 0
    %4200 = vmatprep.subr.bf16.mxu0 0
    %4201 = vmatpush2.bf16.msra.mxu0 0
    %4202 = vmatprep.subr.bf16.mxu0 0
    %4203 = vmatpush2.bf16.msra.mxu0 0
    %4204 = vmatprep.subr.bf16.mxu0 0
    %4205 = vmatpush2.bf16.msra.mxu0 0
    %4206 = vmatprep.subr.bf16.mxu0 0
    %4207 = vmatpush2.bf16.msra.mxu0 0
    %4208 = vmatprep.subr.bf16.mxu0 0
    %4209 = vmatpush2.bf16.msra.mxu0 0
    %4210 = vmatprep.subr.bf16.mxu0 0
    %4211 = vmatpush2.bf16.msra.mxu0 0
    %4212 = vmatprep.mubr.bf16.mxu0 0
    %4213 = vmatmul.mubr.bf16.gmra.mxu0 %v4058
    %v4214 = vpop.f32.mrf.mxu0
    %v4215 = vadd.f32 %v441, %v4214
    %v4216 = vpop.f32.mrf.mxu0
    %v4217 = vpop.f32.mrf.mxu0
    %v4218 = vpop.f32.mrf.mxu0
    %4219 = vdwg.mxu0
    %v4220 = vpack.c.bf16 %v3869, %v3869
    %v4222 = vsel %vm197, %v4220, 0
    %4224 = vmatprep.subr.bf16.mxu0 0
    %4225 = vmatpush1.bf16.msra.mxu0 0
    %4226 = vmatprep.subr.bf16.mxu0 0
    %4227 = vmatpush1.bf16.msra.mxu0 0
    %4228 = vmatprep.subr.bf16.mxu0 0
    %4229 = vmatpush1.bf16.msra.mxu0 0
    %4230 = vmatprep.subr.bf16.mxu0 0
    %4231 = vmatpush1.bf16.msra.mxu0 0
    %4232 = vmatprep.subr.bf16.mxu0 0
    %4233 = vmatpush1.bf16.msra.mxu0 0
    %4234 = vmatprep.subr.bf16.mxu0 0
    %4235 = vmatpush1.bf16.msra.mxu0 0
    %4236 = vmatprep.subr.bf16.mxu0 0
    %4237 = vmatpush1.bf16.msra.mxu0 %v951
    %4238 = vmatprep.subr.bf16.mxu0 0
    %4239 = vmatpush1.bf16.msra.mxu0 %v950
    %4240 = vmatprep.subr.bf16.mxu0 0
    %4241 = vmatpush2.bf16.msra.mxu0 0
    %4242 = vmatprep.subr.bf16.mxu0 0
    %4243 = vmatpush2.bf16.msra.mxu0 0
    %4244 = vmatprep.subr.bf16.mxu0 0
    %4245 = vmatpush2.bf16.msra.mxu0 0
    %4246 = vmatprep.subr.bf16.mxu0 0
    %4247 = vmatpush2.bf16.msra.mxu0 0
    %4248 = vmatprep.subr.bf16.mxu0 0
    %4249 = vmatpush2.bf16.msra.mxu0 0
    %4250 = vmatprep.subr.bf16.mxu0 0
    %4251 = vmatpush2.bf16.msra.mxu0 0
    %4252 = vmatprep.subr.bf16.mxu0 0
    %4253 = vmatpush2.bf16.msra.mxu0 0
    %4254 = vmatprep.subr.bf16.mxu0 0
    %4255 = vmatpush2.bf16.msra.mxu0 0
    %4256 = vmatprep.mubr.bf16.mxu0 0
    %4257 = vmatmul.mubr.bf16.gmra.mxu0 %v4222
    %v4258 = vpop.f32.mrf.mxu0
    %v4259 = vadd.f32 0.0, %v4258
    %v4260 = vpop.f32.mrf.mxu0
    %v4261 = vpop.f32.mrf.mxu0
    %v4262 = vpop.f32.mrf.mxu0
    %4263 = vdwg.mxu0
    %v4264 = vadd.f32 %v4095, %v4259
    %4265 = vmatprep.subr.bf16.mxu0 0
    %4266 = vmatpush1.bf16.msra.mxu0 0
    %4267 = vmatprep.subr.bf16.mxu0 0
    %4268 = vmatpush1.bf16.msra.mxu0 0
    %4269 = vmatprep.subr.bf16.mxu0 0
    %4270 = vmatpush1.bf16.msra.mxu0 0
    %4271 = vmatprep.subr.bf16.mxu0 0
    %4272 = vmatpush1.bf16.msra.mxu0 0
    %4273 = vmatprep.subr.bf16.mxu0 0
    %4274 = vmatpush1.bf16.msra.mxu0 0
    %4275 = vmatprep.subr.bf16.mxu0 0
    %4276 = vmatpush1.bf16.msra.mxu0 0
    %4277 = vmatprep.subr.bf16.mxu0 0
    %4278 = vmatpush1.bf16.msra.mxu0 %v1012
    %4279 = vmatprep.subr.bf16.mxu0 0
    %4280 = vmatpush1.bf16.msra.mxu0 %v1011
    %4281 = vmatprep.subr.bf16.mxu0 0
    %4282 = vmatpush2.bf16.msra.mxu0 0
    %4283 = vmatprep.subr.bf16.mxu0 0
    %4284 = vmatpush2.bf16.msra.mxu0 0
    %4285 = vmatprep.subr.bf16.mxu0 0
    %4286 = vmatpush2.bf16.msra.mxu0 0
    %4287 = vmatprep.subr.bf16.mxu0 0
    %4288 = vmatpush2.bf16.msra.mxu0 0
    %4289 = vmatprep.subr.bf16.mxu0 0
    %4290 = vmatpush2.bf16.msra.mxu0 0
    %4291 = vmatprep.subr.bf16.mxu0 0
    %4292 = vmatpush2.bf16.msra.mxu0 0
    %4293 = vmatprep.subr.bf16.mxu0 0
    %4294 = vmatpush2.bf16.msra.mxu0 0
    %4295 = vmatprep.subr.bf16.mxu0 0
    %4296 = vmatpush2.bf16.msra.mxu0 0
    %4297 = vmatprep.mubr.bf16.mxu0 0
    %4298 = vmatmul.mubr.bf16.gmra.mxu0 %v4222
    %v4299 = vpop.f32.mrf.mxu0
    %v4300 = vadd.f32 0.0, %v4299
    %v4301 = vpop.f32.mrf.mxu0
    %v4302 = vpop.f32.mrf.mxu0
    %v4303 = vpop.f32.mrf.mxu0
    %4304 = vdwg.mxu0
    %v4305 = vadd.f32 %v4135, %v4300
    %4306 = vmatprep.subr.bf16.mxu0 0
    %4307 = vmatpush1.bf16.msra.mxu0 0
    %4308 = vmatprep.subr.bf16.mxu0 0
    %4309 = vmatpush1.bf16.msra.mxu0 0
    %4310 = vmatprep.subr.bf16.mxu0 0
    %4311 = vmatpush1.bf16.msra.mxu0 0
    %4312 = vmatprep.subr.bf16.mxu0 0
    %4313 = vmatpush1.bf16.msra.mxu0 0
    %4314 = vmatprep.subr.bf16.mxu0 0
    %4315 = vmatpush1.bf16.msra.mxu0 0
    %4316 = vmatprep.subr.bf16.mxu0 0
    %4317 = vmatpush1.bf16.msra.mxu0 0
    %4318 = vmatprep.subr.bf16.mxu0 0
    %4319 = vmatpush1.bf16.msra.mxu0 %v1070
    %4320 = vmatprep.subr.bf16.mxu0 0
    %4321 = vmatpush1.bf16.msra.mxu0 %v1069
    %4322 = vmatprep.subr.bf16.mxu0 0
    %4323 = vmatpush2.bf16.msra.mxu0 0
    %4324 = vmatprep.subr.bf16.mxu0 0
    %4325 = vmatpush2.bf16.msra.mxu0 0
    %4326 = vmatprep.subr.bf16.mxu0 0
    %4327 = vmatpush2.bf16.msra.mxu0 0
    %4328 = vmatprep.subr.bf16.mxu0 0
    %4329 = vmatpush2.bf16.msra.mxu0 0
    %4330 = vmatprep.subr.bf16.mxu0 0
    %4331 = vmatpush2.bf16.msra.mxu0 0
    %4332 = vmatprep.subr.bf16.mxu0 0
    %4333 = vmatpush2.bf16.msra.mxu0 0
    %4334 = vmatprep.subr.bf16.mxu0 0
    %4335 = vmatpush2.bf16.msra.mxu0 0
    %4336 = vmatprep.subr.bf16.mxu0 0
    %4337 = vmatpush2.bf16.msra.mxu0 0
    %4338 = vmatprep.mubr.bf16.mxu0 0
    %4339 = vmatmul.mubr.bf16.gmra.mxu0 %v4222
    %v4340 = vpop.f32.mrf.mxu0
    %v4341 = vadd.f32 0.0, %v4340
    %v4342 = vpop.f32.mrf.mxu0
    %v4343 = vpop.f32.mrf.mxu0
    %v4344 = vpop.f32.mrf.mxu0
    %4345 = vdwg.mxu0
    %v4346 = vadd.f32 %v4175, %v4341
    %4347 = vmatprep.subr.bf16.mxu0 0
    %4348 = vmatpush1.bf16.msra.mxu0 0
    %4349 = vmatprep.subr.bf16.mxu0 0
    %4350 = vmatpush1.bf16.msra.mxu0 0
    %4351 = vmatprep.subr.bf16.mxu0 0
    %4352 = vmatpush1.bf16.msra.mxu0 0
    %4353 = vmatprep.subr.bf16.mxu0 0
    %4354 = vmatpush1.bf16.msra.mxu0 0
    %4355 = vmatprep.subr.bf16.mxu0 0
    %4356 = vmatpush1.bf16.msra.mxu0 0
    %4357 = vmatprep.subr.bf16.mxu0 0
    %4358 = vmatpush1.bf16.msra.mxu0 0
    %4359 = vmatprep.subr.bf16.mxu0 0
    %4360 = vmatpush1.bf16.msra.mxu0 %v1128
    %4361 = vmatprep.subr.bf16.mxu0 0
    %4362 = vmatpush1.bf16.msra.mxu0 %v1127
    %4363 = vmatprep.subr.bf16.mxu0 0
    %4364 = vmatpush2.bf16.msra.mxu0 0
    %4365 = vmatprep.subr.bf16.mxu0 0
    %4366 = vmatpush2.bf16.msra.mxu0 0
    %4367 = vmatprep.subr.bf16.mxu0 0
    %4368 = vmatpush2.bf16.msra.mxu0 0
    %4369 = vmatprep.subr.bf16.mxu0 0
    %4370 = vmatpush2.bf16.msra.mxu0 0
    %4371 = vmatprep.subr.bf16.mxu0 0
    %4372 = vmatpush2.bf16.msra.mxu0 0
    %4373 = vmatprep.subr.bf16.mxu0 0
    %4374 = vmatpush2.bf16.msra.mxu0 0
    %4375 = vmatprep.subr.bf16.mxu0 0
    %4376 = vmatpush2.bf16.msra.mxu0 0
    %4377 = vmatprep.subr.bf16.mxu0 0
    %4378 = vmatpush2.bf16.msra.mxu0 0
    %4379 = vmatprep.mubr.bf16.mxu0 0
    %4380 = vmatmul.mubr.bf16.gmra.mxu0 %v4222
    %v4381 = vpop.f32.mrf.mxu0
    %v4382 = vadd.f32 0.0, %v4381
    %v4383 = vpop.f32.mrf.mxu0
    %v4384 = vpop.f32.mrf.mxu0
    %v4385 = vpop.f32.mrf.mxu0
    %4386 = vdwg.mxu0
    %v4387 = vadd.f32 %v4215, %v4382
    %v4388 = vmul.f32 %v4264, 0.5
    %v4389 = vtanh.pop %v4388
    %v4390 = vmul.f32 %v4389, 0.5
    %v4391 = vadd.f32 %v4390, 0.5
    %v4392 = vmul.f32 %v4305, 0.5
    %v4393 = vtanh.pop %v4392
    %v4394 = vmul.f32 %v4393, 0.5
    %v4395 = vadd.f32 %v4394, 0.5
    %v4396 = vtanh.pop %v4346
    %v4397 = vmul.f32 %v4387, 0.5
    %v4398 = vtanh.pop %v4397
    %v4399 = vmul.f32 %v4398, 0.5
    %v4400 = vadd.f32 %v4399, 0.5
    %v4401 = vmul.f32 %v4395, %v3867
    %v4402 = vmul.f32 %v4391, %v4396
    %v4403 = vadd.f32 %v4401, %v4402
    %v4404 = vtanh.pop %v4403
    %v4405 = vmul.f32 %v4400, %v4404
    %v4406 = vld [vmem:[#allocation2 + $0x1c] sm:$0xf]
    %v4407 = vld [vmem:[#allocation3 + $0x1c] sm:$0xf]
    %v4408 = vld [vmem:[#allocation4 + $0x1c] sm:$0xf]
    %v4409 = vld [vmem:[#allocation5 + $0x1c] sm:$0xf]
    %4410 = vmatprep.subr.bf16.mxu0 0
    %4411 = vmatpush1.bf16.msra.mxu0 0
    %4412 = vmatprep.subr.bf16.mxu0 0
    %4413 = vmatpush1.bf16.msra.mxu0 0
    %4414 = vmatprep.subr.bf16.mxu0 0
    %4415 = vmatpush1.bf16.msra.mxu0 0
    %4416 = vmatprep.subr.bf16.mxu0 0
    %4417 = vmatpush1.bf16.msra.mxu0 0
    %4418 = vmatprep.subr.bf16.mxu0 0
    %4419 = vmatpush1.bf16.msra.mxu0 0
    %4420 = vmatprep.subr.bf16.mxu0 0
    %4421 = vmatpush1.bf16.msra.mxu0 0
    %4422 = vmatprep.subr.bf16.mxu0 0
    %4423 = vmatpush1.bf16.msra.mxu0 %v467
    %4424 = vmatprep.subr.bf16.mxu0 0
    %4425 = vmatpush1.bf16.msra.mxu0 %v466
    %4426 = vmatprep.subr.bf16.mxu0 0
    %4427 = vmatpush2.bf16.msra.mxu0 0
    %4428 = vmatprep.subr.bf16.mxu0 0
    %4429 = vmatpush2.bf16.msra.mxu0 0
    %4430 = vmatprep.subr.bf16.mxu0 0
    %4431 = vmatpush2.bf16.msra.mxu0 0
    %4432 = vmatprep.subr.bf16.mxu0 0
    %4433 = vmatpush2.bf16.msra.mxu0 0
    %4434 = vmatprep.subr.bf16.mxu0 0
    %4435 = vmatpush2.bf16.msra.mxu0 0
    %4436 = vmatprep.subr.bf16.mxu0 0
    %4437 = vmatpush2.bf16.msra.mxu0 0
    %4438 = vmatprep.subr.bf16.mxu0 0
    %4439 = vmatpush2.bf16.msra.mxu0 0
    %4440 = vmatprep.subr.bf16.mxu0 0
    %4441 = vmatpush2.bf16.msra.mxu0 0
    %4442 = vmatprep.mubr.bf16.mxu0 0
    %4443 = vmatmul.mubr.bf16.gmra.mxu0 %v4058
    %v4444 = vpop.f32.mrf.mxu0
    %v4445 = vadd.f32 0.0, %v4444
    %v4446 = vpop.f32.mrf.mxu0
    %v4447 = vpop.f32.mrf.mxu0
    %v4448 = vpop.f32.mrf.mxu0
    %4449 = vdwg.mxu0
    %v4450 = vadd.f32 %v4406, %v4445
    %4451 = vmatprep.subr.bf16.mxu0 0
    %4452 = vmatpush1.bf16.msra.mxu0 0
    %4453 = vmatprep.subr.bf16.mxu0 0
    %4454 = vmatpush1.bf16.msra.mxu0 0
    %4455 = vmatprep.subr.bf16.mxu0 0
    %4456 = vmatpush1.bf16.msra.mxu0 0
    %4457 = vmatprep.subr.bf16.mxu0 0
    %4458 = vmatpush1.bf16.msra.mxu0 0
    %4459 = vmatprep.subr.bf16.mxu0 0
    %4460 = vmatpush1.bf16.msra.mxu0 0
    %4461 = vmatprep.subr.bf16.mxu0 0
    %4462 = vmatpush1.bf16.msra.mxu0 0
    %4463 = vmatprep.subr.bf16.mxu0 0
    %4464 = vmatpush1.bf16.msra.mxu0 %v528
    %4465 = vmatprep.subr.bf16.mxu0 0
    %4466 = vmatpush1.bf16.msra.mxu0 %v527
    %4467 = vmatprep.subr.bf16.mxu0 0
    %4468 = vmatpush2.bf16.msra.mxu0 0
    %4469 = vmatprep.subr.bf16.mxu0 0
    %4470 = vmatpush2.bf16.msra.mxu0 0
    %4471 = vmatprep.subr.bf16.mxu0 0
    %4472 = vmatpush2.bf16.msra.mxu0 0
    %4473 = vmatprep.subr.bf16.mxu0 0
    %4474 = vmatpush2.bf16.msra.mxu0 0
    %4475 = vmatprep.subr.bf16.mxu0 0
    %4476 = vmatpush2.bf16.msra.mxu0 0
    %4477 = vmatprep.subr.bf16.mxu0 0
    %4478 = vmatpush2.bf16.msra.mxu0 0
    %4479 = vmatprep.subr.bf16.mxu0 0
    %4480 = vmatpush2.bf16.msra.mxu0 0
    %4481 = vmatprep.subr.bf16.mxu0 0
    %4482 = vmatpush2.bf16.msra.mxu0 0
    %4483 = vmatprep.mubr.bf16.mxu0 0
    %4484 = vmatmul.mubr.bf16.gmra.mxu0 %v4058
    %v4485 = vpop.f32.mrf.mxu0
    %v4486 = vadd.f32 0.0, %v4485
    %v4487 = vpop.f32.mrf.mxu0
    %v4488 = vpop.f32.mrf.mxu0
    %v4489 = vpop.f32.mrf.mxu0
    %4490 = vdwg.mxu0
    %v4491 = vadd.f32 %v4407, %v4486
    %4492 = vmatprep.subr.bf16.mxu0 0
    %4493 = vmatpush1.bf16.msra.mxu0 0
    %4494 = vmatprep.subr.bf16.mxu0 0
    %4495 = vmatpush1.bf16.msra.mxu0 0
    %4496 = vmatprep.subr.bf16.mxu0 0
    %4497 = vmatpush1.bf16.msra.mxu0 0
    %4498 = vmatprep.subr.bf16.mxu0 0
    %4499 = vmatpush1.bf16.msra.mxu0 0
    %4500 = vmatprep.subr.bf16.mxu0 0
    %4501 = vmatpush1.bf16.msra.mxu0 0
    %4502 = vmatprep.subr.bf16.mxu0 0
    %4503 = vmatpush1.bf16.msra.mxu0 0
    %4504 = vmatprep.subr.bf16.mxu0 0
    %4505 = vmatpush1.bf16.msra.mxu0 %v586
    %4506 = vmatprep.subr.bf16.mxu0 0
    %4507 = vmatpush1.bf16.msra.mxu0 %v585
    %4508 = vmatprep.subr.bf16.mxu0 0
    %4509 = vmatpush2.bf16.msra.mxu0 0
    %4510 = vmatprep.subr.bf16.mxu0 0
    %4511 = vmatpush2.bf16.msra.mxu0 0
    %4512 = vmatprep.subr.bf16.mxu0 0
    %4513 = vmatpush2.bf16.msra.mxu0 0
    %4514 = vmatprep.subr.bf16.mxu0 0
    %4515 = vmatpush2.bf16.msra.mxu0 0
    %4516 = vmatprep.subr.bf16.mxu0 0
    %4517 = vmatpush2.bf16.msra.mxu0 0
    %4518 = vmatprep.subr.bf16.mxu0 0
    %4519 = vmatpush2.bf16.msra.mxu0 0
    %4520 = vmatprep.subr.bf16.mxu0 0
    %4521 = vmatpush2.bf16.msra.mxu0 0
    %4522 = vmatprep.subr.bf16.mxu0 0
    %4523 = vmatpush2.bf16.msra.mxu0 0
    %4524 = vmatprep.mubr.bf16.mxu0 0
    %4525 = vmatmul.mubr.bf16.gmra.mxu0 %v4058
    %v4526 = vpop.f32.mrf.mxu0
    %v4527 = vadd.f32 0.0, %v4526
    %v4528 = vpop.f32.mrf.mxu0
    %v4529 = vpop.f32.mrf.mxu0
    %v4530 = vpop.f32.mrf.mxu0
    %4531 = vdwg.mxu0
    %v4532 = vadd.f32 %v4408, %v4527
    %4533 = vmatprep.subr.bf16.mxu0 0
    %4534 = vmatpush1.bf16.msra.mxu0 0
    %4535 = vmatprep.subr.bf16.mxu0 0
    %4536 = vmatpush1.bf16.msra.mxu0 0
    %4537 = vmatprep.subr.bf16.mxu0 0
    %4538 = vmatpush1.bf16.msra.mxu0 0
    %4539 = vmatprep.subr.bf16.mxu0 0
    %4540 = vmatpush1.bf16.msra.mxu0 0
    %4541 = vmatprep.subr.bf16.mxu0 0
    %4542 = vmatpush1.bf16.msra.mxu0 0
    %4543 = vmatprep.subr.bf16.mxu0 0
    %4544 = vmatpush1.bf16.msra.mxu0 0
    %4545 = vmatprep.subr.bf16.mxu0 0
    %4546 = vmatpush1.bf16.msra.mxu0 %v644
    %4547 = vmatprep.subr.bf16.mxu0 0
    %4548 = vmatpush1.bf16.msra.mxu0 %v643
    %4549 = vmatprep.subr.bf16.mxu0 0
    %4550 = vmatpush2.bf16.msra.mxu0 0
    %4551 = vmatprep.subr.bf16.mxu0 0
    %4552 = vmatpush2.bf16.msra.mxu0 0
    %4553 = vmatprep.subr.bf16.mxu0 0
    %4554 = vmatpush2.bf16.msra.mxu0 0
    %4555 = vmatprep.subr.bf16.mxu0 0
    %4556 = vmatpush2.bf16.msra.mxu0 0
    %4557 = vmatprep.subr.bf16.mxu0 0
    %4558 = vmatpush2.bf16.msra.mxu0 0
    %4559 = vmatprep.subr.bf16.mxu0 0
    %4560 = vmatpush2.bf16.msra.mxu0 0
    %4561 = vmatprep.subr.bf16.mxu0 0
    %4562 = vmatpush2.bf16.msra.mxu0 0
    %4563 = vmatprep.subr.bf16.mxu0 0
    %4564 = vmatpush2.bf16.msra.mxu0 0
    %4565 = vmatprep.mubr.bf16.mxu0 0
    %4566 = vmatmul.mubr.bf16.gmra.mxu0 %v4058
    %v4567 = vpop.f32.mrf.mxu0
    %v4568 = vadd.f32 0.0, %v4567
    %v4569 = vpop.f32.mrf.mxu0
    %v4570 = vpop.f32.mrf.mxu0
    %v4571 = vpop.f32.mrf.mxu0
    %4572 = vdwg.mxu0
    %v4573 = vadd.f32 %v4409, %v4568
    %v4574 = vmul.f32 %v4450, 0.5
    %v4575 = vtanh.pop %v4574
    %v4576 = vmul.f32 %v4575, 0.5
    %v4577 = vadd.f32 %v4576, 0.5
    %v4578 = vmul.f32 %v4491, 0.5
    %v4579 = vtanh.pop %v4578
    %v4580 = vmul.f32 %v4579, 0.5
    %v4581 = vadd.f32 %v4580, 0.5
    %v4582 = vtanh.pop %v4532
    %v4583 = vmul.f32 %v4573, 0.5
    %v4584 = vtanh.pop %v4583
    %v4585 = vmul.f32 %v4584, 0.5
    %v4586 = vadd.f32 %v4585, 0.5
    %v4587 = vmul.f32 %v4581, %v4053
    %v4588 = vmul.f32 %v4577, %v4582
    %v4589 = vadd.f32 %v4587, %v4588
    %v4590 = vtanh.pop %v4589
    %v4591 = vmul.f32 %v4586, %v4590
    %v4592 = vpack.c.bf16 %v4591, %v4591
    %v4594 = vsel %vm197, %v4592, 0
    %4596 = vmatprep.subr.bf16.mxu0 0
    %4597 = vmatpush1.bf16.msra.mxu0 0
    %4598 = vmatprep.subr.bf16.mxu0 0
    %4599 = vmatpush1.bf16.msra.mxu0 0
    %4600 = vmatprep.subr.bf16.mxu0 0
    %4601 = vmatpush1.bf16.msra.mxu0 0
    %4602 = vmatprep.subr.bf16.mxu0 0
    %4603 = vmatpush1.bf16.msra.mxu0 0
    %4604 = vmatprep.subr.bf16.mxu0 0
    %4605 = vmatpush1.bf16.msra.mxu0 0
    %4606 = vmatprep.subr.bf16.mxu0 0
    %4607 = vmatpush1.bf16.msra.mxu0 0
    %4608 = vmatprep.subr.bf16.mxu0 0
    %4609 = vmatpush1.bf16.msra.mxu0 %v720
    %4610 = vmatprep.subr.bf16.mxu0 0
    %4611 = vmatpush1.bf16.msra.mxu0 %v719
    %4612 = vmatprep.subr.bf16.mxu0 0
    %4613 = vmatpush2.bf16.msra.mxu0 0
    %4614 = vmatprep.subr.bf16.mxu0 0
    %4615 = vmatpush2.bf16.msra.mxu0 0
    %4616 = vmatprep.subr.bf16.mxu0 0
    %4617 = vmatpush2.bf16.msra.mxu0 0
    %4618 = vmatprep.subr.bf16.mxu0 0
    %4619 = vmatpush2.bf16.msra.mxu0 0
    %4620 = vmatprep.subr.bf16.mxu0 0
    %4621 = vmatpush2.bf16.msra.mxu0 0
    %4622 = vmatprep.subr.bf16.mxu0 0
    %4623 = vmatpush2.bf16.msra.mxu0 0
    %4624 = vmatprep.subr.bf16.mxu0 0
    %4625 = vmatpush2.bf16.msra.mxu0 0
    %4626 = vmatprep.subr.bf16.mxu0 0
    %4627 = vmatpush2.bf16.msra.mxu0 0
    %4628 = vmatprep.mubr.bf16.mxu0 0
    %4629 = vmatmul.mubr.bf16.gmra.mxu0 %v4594
    %v4630 = vpop.f32.mrf.mxu0
    %v4631 = vadd.f32 %v417, %v4630
    %v4632 = vpop.f32.mrf.mxu0
    %v4633 = vpop.f32.mrf.mxu0
    %v4634 = vpop.f32.mrf.mxu0
    %4635 = vdwg.mxu0
    %4636 = vmatprep.subr.bf16.mxu0 0
    %4637 = vmatpush1.bf16.msra.mxu0 0
    %4638 = vmatprep.subr.bf16.mxu0 0
    %4639 = vmatpush1.bf16.msra.mxu0 0
    %4640 = vmatprep.subr.bf16.mxu0 0
    %4641 = vmatpush1.bf16.msra.mxu0 0
    %4642 = vmatprep.subr.bf16.mxu0 0
    %4643 = vmatpush1.bf16.msra.mxu0 0
    %4644 = vmatprep.subr.bf16.mxu0 0
    %4645 = vmatpush1.bf16.msra.mxu0 0
    %4646 = vmatprep.subr.bf16.mxu0 0
    %4647 = vmatpush1.bf16.msra.mxu0 0
    %4648 = vmatprep.subr.bf16.mxu0 0
    %4649 = vmatpush1.bf16.msra.mxu0 %v780
    %4650 = vmatprep.subr.bf16.mxu0 0
    %4651 = vmatpush1.bf16.msra.mxu0 %v779
    %4652 = vmatprep.subr.bf16.mxu0 0
    %4653 = vmatpush2.bf16.msra.mxu0 0
    %4654 = vmatprep.subr.bf16.mxu0 0
    %4655 = vmatpush2.bf16.msra.mxu0 0
    %4656 = vmatprep.subr.bf16.mxu0 0
    %4657 = vmatpush2.bf16.msra.mxu0 0
    %4658 = vmatprep.subr.bf16.mxu0 0
    %4659 = vmatpush2.bf16.msra.mxu0 0
    %4660 = vmatprep.subr.bf16.mxu0 0
    %4661 = vmatpush2.bf16.msra.mxu0 0
    %4662 = vmatprep.subr.bf16.mxu0 0
    %4663 = vmatpush2.bf16.msra.mxu0 0
    %4664 = vmatprep.subr.bf16.mxu0 0
    %4665 = vmatpush2.bf16.msra.mxu0 0
    %4666 = vmatprep.subr.bf16.mxu0 0
    %4667 = vmatpush2.bf16.msra.mxu0 0
    %4668 = vmatprep.mubr.bf16.mxu0 0
    %4669 = vmatmul.mubr.bf16.gmra.mxu0 %v4594
    %v4670 = vpop.f32.mrf.mxu0
    %v4671 = vadd.f32 %v425, %v4670
    %v4672 = vpop.f32.mrf.mxu0
    %v4673 = vpop.f32.mrf.mxu0
    %v4674 = vpop.f32.mrf.mxu0
    %4675 = vdwg.mxu0
    %4676 = vmatprep.subr.bf16.mxu0 0
    %4677 = vmatpush1.bf16.msra.mxu0 0
    %4678 = vmatprep.subr.bf16.mxu0 0
    %4679 = vmatpush1.bf16.msra.mxu0 0
    %4680 = vmatprep.subr.bf16.mxu0 0
    %4681 = vmatpush1.bf16.msra.mxu0 0
    %4682 = vmatprep.subr.bf16.mxu0 0
    %4683 = vmatpush1.bf16.msra.mxu0 0
    %4684 = vmatprep.subr.bf16.mxu0 0
    %4685 = vmatpush1.bf16.msra.mxu0 0
    %4686 = vmatprep.subr.bf16.mxu0 0
    %4687 = vmatpush1.bf16.msra.mxu0 0
    %4688 = vmatprep.subr.bf16.mxu0 0
    %4689 = vmatpush1.bf16.msra.mxu0 %v837
    %4690 = vmatprep.subr.bf16.mxu0 0
    %4691 = vmatpush1.bf16.msra.mxu0 %v836
    %4692 = vmatprep.subr.bf16.mxu0 0
    %4693 = vmatpush2.bf16.msra.mxu0 0
    %4694 = vmatprep.subr.bf16.mxu0 0
    %4695 = vmatpush2.bf16.msra.mxu0 0
    %4696 = vmatprep.subr.bf16.mxu0 0
    %4697 = vmatpush2.bf16.msra.mxu0 0
    %4698 = vmatprep.subr.bf16.mxu0 0
    %4699 = vmatpush2.bf16.msra.mxu0 0
    %4700 = vmatprep.subr.bf16.mxu0 0
    %4701 = vmatpush2.bf16.msra.mxu0 0
    %4702 = vmatprep.subr.bf16.mxu0 0
    %4703 = vmatpush2.bf16.msra.mxu0 0
    %4704 = vmatprep.subr.bf16.mxu0 0
    %4705 = vmatpush2.bf16.msra.mxu0 0
    %4706 = vmatprep.subr.bf16.mxu0 0
    %4707 = vmatpush2.bf16.msra.mxu0 0
    %4708 = vmatprep.mubr.bf16.mxu0 0
    %4709 = vmatmul.mubr.bf16.gmra.mxu0 %v4594
    %v4710 = vpop.f32.mrf.mxu0
    %v4711 = vadd.f32 %v433, %v4710
    %v4712 = vpop.f32.mrf.mxu0
    %v4713 = vpop.f32.mrf.mxu0
    %v4714 = vpop.f32.mrf.mxu0
    %4715 = vdwg.mxu0
    %4716 = vmatprep.subr.bf16.mxu0 0
    %4717 = vmatpush1.bf16.msra.mxu0 0
    %4718 = vmatprep.subr.bf16.mxu0 0
    %4719 = vmatpush1.bf16.msra.mxu0 0
    %4720 = vmatprep.subr.bf16.mxu0 0
    %4721 = vmatpush1.bf16.msra.mxu0 0
    %4722 = vmatprep.subr.bf16.mxu0 0
    %4723 = vmatpush1.bf16.msra.mxu0 0
    %4724 = vmatprep.subr.bf16.mxu0 0
    %4725 = vmatpush1.bf16.msra.mxu0 0
    %4726 = vmatprep.subr.bf16.mxu0 0
    %4727 = vmatpush1.bf16.msra.mxu0 0
    %4728 = vmatprep.subr.bf16.mxu0 0
    %4729 = vmatpush1.bf16.msra.mxu0 %v894
    %4730 = vmatprep.subr.bf16.mxu0 0
    %4731 = vmatpush1.bf16.msra.mxu0 %v893
    %4732 = vmatprep.subr.bf16.mxu0 0
    %4733 = vmatpush2.bf16.msra.mxu0 0
    %4734 = vmatprep.subr.bf16.mxu0 0
    %4735 = vmatpush2.bf16.msra.mxu0 0
    %4736 = vmatprep.subr.bf16.mxu0 0
    %4737 = vmatpush2.bf16.msra.mxu0 0
    %4738 = vmatprep.subr.bf16.mxu0 0
    %4739 = vmatpush2.bf16.msra.mxu0 0
    %4740 = vmatprep.subr.bf16.mxu0 0
    %4741 = vmatpush2.bf16.msra.mxu0 0
    %4742 = vmatprep.subr.bf16.mxu0 0
    %4743 = vmatpush2.bf16.msra.mxu0 0
    %4744 = vmatprep.subr.bf16.mxu0 0
    %4745 = vmatpush2.bf16.msra.mxu0 0
    %4746 = vmatprep.subr.bf16.mxu0 0
    %4747 = vmatpush2.bf16.msra.mxu0 0
    %4748 = vmatprep.mubr.bf16.mxu0 0
    %4749 = vmatmul.mubr.bf16.gmra.mxu0 %v4594
    %v4750 = vpop.f32.mrf.mxu0
    %v4751 = vadd.f32 %v441, %v4750
    %v4752 = vpop.f32.mrf.mxu0
    %v4753 = vpop.f32.mrf.mxu0
    %v4754 = vpop.f32.mrf.mxu0
    %4755 = vdwg.mxu0
    %v4756 = vpack.c.bf16 %v4405, %v4405
    %v4758 = vsel %vm197, %v4756, 0
    %4760 = vmatprep.subr.bf16.mxu0 0
    %4761 = vmatpush1.bf16.msra.mxu0 0
    %4762 = vmatprep.subr.bf16.mxu0 0
    %4763 = vmatpush1.bf16.msra.mxu0 0
    %4764 = vmatprep.subr.bf16.mxu0 0
    %4765 = vmatpush1.bf16.msra.mxu0 0
    %4766 = vmatprep.subr.bf16.mxu0 0
    %4767 = vmatpush1.bf16.msra.mxu0 0
    %4768 = vmatprep.subr.bf16.mxu0 0
    %4769 = vmatpush1.bf16.msra.mxu0 0
    %4770 = vmatprep.subr.bf16.mxu0 0
    %4771 = vmatpush1.bf16.msra.mxu0 0
    %4772 = vmatprep.subr.bf16.mxu0 0
    %4773 = vmatpush1.bf16.msra.mxu0 %v951
    %4774 = vmatprep.subr.bf16.mxu0 0
    %4775 = vmatpush1.bf16.msra.mxu0 %v950
    %4776 = vmatprep.subr.bf16.mxu0 0
    %4777 = vmatpush2.bf16.msra.mxu0 0
    %4778 = vmatprep.subr.bf16.mxu0 0
    %4779 = vmatpush2.bf16.msra.mxu0 0
    %4780 = vmatprep.subr.bf16.mxu0 0
    %4781 = vmatpush2.bf16.msra.mxu0 0
    %4782 = vmatprep.subr.bf16.mxu0 0
    %4783 = vmatpush2.bf16.msra.mxu0 0
    %4784 = vmatprep.subr.bf16.mxu0 0
    %4785 = vmatpush2.bf16.msra.mxu0 0
    %4786 = vmatprep.subr.bf16.mxu0 0
    %4787 = vmatpush2.bf16.msra.mxu0 0
    %4788 = vmatprep.subr.bf16.mxu0 0
    %4789 = vmatpush2.bf16.msra.mxu0 0
    %4790 = vmatprep.subr.bf16.mxu0 0
    %4791 = vmatpush2.bf16.msra.mxu0 0
    %4792 = vmatprep.mubr.bf16.mxu0 0
    %4793 = vmatmul.mubr.bf16.gmra.mxu0 %v4758
    %v4794 = vpop.f32.mrf.mxu0
    %v4795 = vadd.f32 0.0, %v4794
    %v4796 = vpop.f32.mrf.mxu0
    %v4797 = vpop.f32.mrf.mxu0
    %v4798 = vpop.f32.mrf.mxu0
    %4799 = vdwg.mxu0
    %v4800 = vadd.f32 %v4631, %v4795
    %4801 = vmatprep.subr.bf16.mxu0 0
    %4802 = vmatpush1.bf16.msra.mxu0 0
    %4803 = vmatprep.subr.bf16.mxu0 0
    %4804 = vmatpush1.bf16.msra.mxu0 0
    %4805 = vmatprep.subr.bf16.mxu0 0
    %4806 = vmatpush1.bf16.msra.mxu0 0
    %4807 = vmatprep.subr.bf16.mxu0 0
    %4808 = vmatpush1.bf16.msra.mxu0 0
    %4809 = vmatprep.subr.bf16.mxu0 0
    %4810 = vmatpush1.bf16.msra.mxu0 0
    %4811 = vmatprep.subr.bf16.mxu0 0
    %4812 = vmatpush1.bf16.msra.mxu0 0
    %4813 = vmatprep.subr.bf16.mxu0 0
    %4814 = vmatpush1.bf16.msra.mxu0 %v1012
    %4815 = vmatprep.subr.bf16.mxu0 0
    %4816 = vmatpush1.bf16.msra.mxu0 %v1011
    %4817 = vmatprep.subr.bf16.mxu0 0
    %4818 = vmatpush2.bf16.msra.mxu0 0
    %4819 = vmatprep.subr.bf16.mxu0 0
    %4820 = vmatpush2.bf16.msra.mxu0 0
    %4821 = vmatprep.subr.bf16.mxu0 0
    %4822 = vmatpush2.bf16.msra.mxu0 0
    %4823 = vmatprep.subr.bf16.mxu0 0
    %4824 = vmatpush2.bf16.msra.mxu0 0
    %4825 = vmatprep.subr.bf16.mxu0 0
    %4826 = vmatpush2.bf16.msra.mxu0 0
    %4827 = vmatprep.subr.bf16.mxu0 0
    %4828 = vmatpush2.bf16.msra.mxu0 0
    %4829 = vmatprep.subr.bf16.mxu0 0
    %4830 = vmatpush2.bf16.msra.mxu0 0
    %4831 = vmatprep.subr.bf16.mxu0 0
    %4832 = vmatpush2.bf16.msra.mxu0 0
    %4833 = vmatprep.mubr.bf16.mxu0 0
    %4834 = vmatmul.mubr.bf16.gmra.mxu0 %v4758
    %v4835 = vpop.f32.mrf.mxu0
    %v4836 = vadd.f32 0.0, %v4835
    %v4837 = vpop.f32.mrf.mxu0
    %v4838 = vpop.f32.mrf.mxu0
    %v4839 = vpop.f32.mrf.mxu0
    %4840 = vdwg.mxu0
    %v4841 = vadd.f32 %v4671, %v4836
    %4842 = vmatprep.subr.bf16.mxu0 0
    %4843 = vmatpush1.bf16.msra.mxu0 0
    %4844 = vmatprep.subr.bf16.mxu0 0
    %4845 = vmatpush1.bf16.msra.mxu0 0
    %4846 = vmatprep.subr.bf16.mxu0 0
    %4847 = vmatpush1.bf16.msra.mxu0 0
    %4848 = vmatprep.subr.bf16.mxu0 0
    %4849 = vmatpush1.bf16.msra.mxu0 0
    %4850 = vmatprep.subr.bf16.mxu0 0
    %4851 = vmatpush1.bf16.msra.mxu0 0
    %4852 = vmatprep.subr.bf16.mxu0 0
    %4853 = vmatpush1.bf16.msra.mxu0 0
    %4854 = vmatprep.subr.bf16.mxu0 0
    %4855 = vmatpush1.bf16.msra.mxu0 %v1070
    %4856 = vmatprep.subr.bf16.mxu0 0
    %4857 = vmatpush1.bf16.msra.mxu0 %v1069
    %4858 = vmatprep.subr.bf16.mxu0 0
    %4859 = vmatpush2.bf16.msra.mxu0 0
    %4860 = vmatprep.subr.bf16.mxu0 0
    %4861 = vmatpush2.bf16.msra.mxu0 0
    %4862 = vmatprep.subr.bf16.mxu0 0
    %4863 = vmatpush2.bf16.msra.mxu0 0
    %4864 = vmatprep.subr.bf16.mxu0 0
    %4865 = vmatpush2.bf16.msra.mxu0 0
    %4866 = vmatprep.subr.bf16.mxu0 0
    %4867 = vmatpush2.bf16.msra.mxu0 0
    %4868 = vmatprep.subr.bf16.mxu0 0
    %4869 = vmatpush2.bf16.msra.mxu0 0
    %4870 = vmatprep.subr.bf16.mxu0 0
    %4871 = vmatpush2.bf16.msra.mxu0 0
    %4872 = vmatprep.subr.bf16.mxu0 0
    %4873 = vmatpush2.bf16.msra.mxu0 0
    %4874 = vmatprep.mubr.bf16.mxu0 0
    %4875 = vmatmul.mubr.bf16.gmra.mxu0 %v4758
    %v4876 = vpop.f32.mrf.mxu0
    %v4877 = vadd.f32 0.0, %v4876
    %v4878 = vpop.f32.mrf.mxu0
    %v4879 = vpop.f32.mrf.mxu0
    %v4880 = vpop.f32.mrf.mxu0
    %4881 = vdwg.mxu0
    %v4882 = vadd.f32 %v4711, %v4877
    %4883 = vmatprep.subr.bf16.mxu0 0
    %4884 = vmatpush1.bf16.msra.mxu0 0
    %4885 = vmatprep.subr.bf16.mxu0 0
    %4886 = vmatpush1.bf16.msra.mxu0 0
    %4887 = vmatprep.subr.bf16.mxu0 0
    %4888 = vmatpush1.bf16.msra.mxu0 0
    %4889 = vmatprep.subr.bf16.mxu0 0
    %4890 = vmatpush1.bf16.msra.mxu0 0
    %4891 = vmatprep.subr.bf16.mxu0 0
    %4892 = vmatpush1.bf16.msra.mxu0 0
    %4893 = vmatprep.subr.bf16.mxu0 0
    %4894 = vmatpush1.bf16.msra.mxu0 0
    %4895 = vmatprep.subr.bf16.mxu0 0
    %4896 = vmatpush1.bf16.msra.mxu0 %v1128
    %4897 = vmatprep.subr.bf16.mxu0 0
    %4898 = vmatpush1.bf16.msra.mxu0 %v1127
    %4899 = vmatprep.subr.bf16.mxu0 0
    %4900 = vmatpush2.bf16.msra.mxu0 0
    %4901 = vmatprep.subr.bf16.mxu0 0
    %4902 = vmatpush2.bf16.msra.mxu0 0
    %4903 = vmatprep.subr.bf16.mxu0 0
    %4904 = vmatpush2.bf16.msra.mxu0 0
    %4905 = vmatprep.subr.bf16.mxu0 0
    %4906 = vmatpush2.bf16.msra.mxu0 0
    %4907 = vmatprep.subr.bf16.mxu0 0
    %4908 = vmatpush2.bf16.msra.mxu0 0
    %4909 = vmatprep.subr.bf16.mxu0 0
    %4910 = vmatpush2.bf16.msra.mxu0 0
    %4911 = vmatprep.subr.bf16.mxu0 0
    %4912 = vmatpush2.bf16.msra.mxu0 0
    %4913 = vmatprep.subr.bf16.mxu0 0
    %4914 = vmatpush2.bf16.msra.mxu0 0
    %4915 = vmatprep.mubr.bf16.mxu0 0
    %4916 = vmatmul.mubr.bf16.gmra.mxu0 %v4758
    %v4917 = vpop.f32.mrf.mxu0
    %v4918 = vadd.f32 0.0, %v4917
    %v4919 = vpop.f32.mrf.mxu0
    %v4920 = vpop.f32.mrf.mxu0
    %v4921 = vpop.f32.mrf.mxu0
    %4922 = vdwg.mxu0
    %v4923 = vadd.f32 %v4751, %v4918
    %v4924 = vmul.f32 %v4800, 0.5
    %v4925 = vtanh.pop %v4924
    %v4926 = vmul.f32 %v4925, 0.5
    %v4927 = vadd.f32 %v4926, 0.5
    %v4928 = vmul.f32 %v4841, 0.5
    %v4929 = vtanh.pop %v4928
    %v4930 = vmul.f32 %v4929, 0.5
    %v4931 = vadd.f32 %v4930, 0.5
    %v4932 = vtanh.pop %v4882
    %v4933 = vmul.f32 %v4923, 0.5
    %v4934 = vtanh.pop %v4933
    %v4935 = vmul.f32 %v4934, 0.5
    %v4936 = vadd.f32 %v4935, 0.5
    %v4937 = vmul.f32 %v4931, %v4403
    %v4938 = vmul.f32 %v4927, %v4932
    %v4939 = vadd.f32 %v4937, %v4938
    %v4940 = vtanh.pop %v4939
    %v4941 = vmul.f32 %v4936, %v4940
    %v4942 = vmax.f32 %v4941, 0.0
    %v4943 = vpack.c.bf16 %v4942, %v4942
    %v4944 = vld [vmem:[%s9] sm:$0xf]
    %v4945 = vld [vmem:[%s9 + $0x4] sm:$0xf]
    %v4946 = vld [vmem:[%s9 + $0x8] sm:$0xf]
    %v4947 = vld [vmem:[%s9 + $0xc] sm:$0xf]
    %v4948 = vld [vmem:[#allocation15] sm:$0x1]
    %v4950 = vlaneseq
    %v4951 = vshrl.u32 %v4950, 7
    %v4952 = vsub.s32 0, %v4951
    %v4953 = vrot.slane %v4948, %v4952
    %v4959 = vunpack.c.l.b16 %v4944
    %v4960 = vunpack.c.l.b16 %v4945
    %v4961 = vunpack.c.l.b16 %v4946
    %v4962 = vunpack.c.l.b16 %v4947
    %v4963 = vpack.c.b16 %v4960, %v4959
    %v4964 = vpack.c.b16 %v4962, %v4961
    %v4968 = vsel %vm197, %v4943, 0
    %4970 = vmatprep.subr.bf16.mxu0 0
    %4971 = vmatpush1.bf16.msra.mxu0 0
    %4972 = vmatprep.subr.bf16.mxu0 0
    %4973 = vmatpush1.bf16.msra.mxu0 0
    %4974 = vmatprep.subr.bf16.mxu0 0
    %4975 = vmatpush1.bf16.msra.mxu0 0
    %4976 = vmatprep.subr.bf16.mxu0 0
    %4977 = vmatpush1.bf16.msra.mxu0 0
    %4978 = vmatprep.subr.bf16.mxu0 0
    %4979 = vmatpush1.bf16.msra.mxu0 0
    %4980 = vmatprep.subr.bf16.mxu0 0
    %4981 = vmatpush1.bf16.msra.mxu0 0
    %4982 = vmatprep.subr.bf16.mxu0 0
    %4983 = vmatpush1.bf16.msra.mxu0 %v4964
    %4984 = vmatprep.subr.bf16.mxu0 0
    %4985 = vmatpush1.bf16.msra.mxu0 %v4963
    %4986 = vmatprep.subr.bf16.mxu0 0
    %4987 = vmatpush2.bf16.msra.mxu0 0
    %4988 = vmatprep.subr.bf16.mxu0 0
    %4989 = vmatpush2.bf16.msra.mxu0 0
    %4990 = vmatprep.subr.bf16.mxu0 0
    %4991 = vmatpush2.bf16.msra.mxu0 0
    %4992 = vmatprep.subr.bf16.mxu0 0
    %4993 = vmatpush2.bf16.msra.mxu0 0
    %4994 = vmatprep.subr.bf16.mxu0 0
    %4995 = vmatpush2.bf16.msra.mxu0 0
    %4996 = vmatprep.subr.bf16.mxu0 0
    %4997 = vmatpush2.bf16.msra.mxu0 0
    %4998 = vmatprep.subr.bf16.mxu0 0
    %4999 = vmatpush2.bf16.msra.mxu0 0
    %5000 = vmatprep.subr.bf16.mxu0 0
    %5001 = vmatpush2.bf16.msra.mxu0 0
    %5002 = vmatprep.mubr.bf16.mxu0 0
    %5003 = vmatmul.mubr.bf16.gmra.mxu0 %v4968
    %v5004 = vpop.f32.mrf.mxu0
    %v5005 = vadd.f32 %v4953, %v5004
    %v5006 = vpop.f32.mrf.mxu0
    %v5007 = vpop.f32.mrf.mxu0
    %v5008 = vpop.f32.mrf.mxu0
    %5009 = vdwg.mxu0
    %vm5010 = vcmask 60416
    %5011 = vst.msk [vmem:[#allocation17] sm:$0xf] %vm5010, %v5005
    // Predicated region
    $region70: #{lstm_forward_pallas.1} parent=1 // pred_check
      _
    $region71: #{lstm_forward_pallas.1} parent=1 // pred_check_branch
      %5013 = sbr.rel (0) target = $region73
    $region72: #{lstm_forward_pallas.1} parent=1 // pred_region
      %s5015 = ssub.s32 64, 64
      %5016 = vsyncadd [#allocation8], %s5015
      %s5018 = sshll.u32 [#allocation17], 4
      %s5019 = int_to_ptr.vmem [resolvable:$true] %s5018
      %5021 = dma.vmem_to_hbm [thread:$0]  %s5019, 64, %s11, [#allocation8]
    $region73: #{lstm_forward_pallas.1} parent=1 // pred_fallthru
      _
    // Predicated region
    $region74: #{lstm_forward_pallas.1} parent=1 // pred_check
      _
    $region75: #{lstm_forward_pallas.1} parent=1 // pred_check_branch
      %5023 = sbr.rel (0) target = $region77
    $region76: #{lstm_forward_pallas.1} parent=1 // pred_region
      %5024 = dma.done [#allocation8], 64
    $region77: #{lstm_forward_pallas.1} parent=1 // pred_fallthru
      _
    %5025 = vsyncpa [#allocation7], 1
    %5026 = vsyncpa [#allocation10], 1
    %5027 = vsyncpa [#allocation13], 1
    %5028 = vsyncpa [#allocation16], 1
    %5029 = vsyncpa [#allocation8], 1

</llo_original>
